<compile_context>
chip_gen: v6e
topology: v6e:2x2x1
jax: 0.10.0
libtpu: 0.0.40
codegen_flags: <defaults>
</compile_context>

<pallas_src>
import functools

import jax
import jax.numpy as jnp
from jax.experimental import pallas as pl
from jax.experimental.pallas import tpu as pltpu

EPS_BN = 1e-5
LANE = 128


def _round_up(x, m):
    return ((x + m - 1) // m) * m


# --------------------------------------------------------------------------- kernel
def _bottleneck_kernel(x_ref, w1_ref, s1_ref, b1_ref, w2_ref, s2_ref, b2_ref,
                       o_ref, col1_ref, y1_ref, col2_ref,
                       *, TH, W, add, compute_dtype):
    """Fused Bottleneck forward for one (batch, row-tile) grid step.

    x_ref   : [TH+4, W+2, C1p]   haloed input window (compute_dtype)
    w1_ref  : [9*C1p, C_p]       cv1 weight, im2col layout (K ordered (di, dj, cin))
    s1/b1   : [1, C_p]           cv1 folded BN scale / bias (f32)
    w2_ref  : [9*C_p, C2p]       cv2 weight, im2col layout
    s2/b2   : [1, C2p]           cv2 folded BN scale / bias (f32)
    o_ref   : [TH*W, C2p]        output rows for this tile (f32)
    col1_ref: [TH+2, W, 9*C1p]   scratch: cv1 im2col block
    y1_ref  : [TH+2, W+9, C_p]   scratch: cv1 activation, interior at sublane 8
    col2_ref: [TH,   W, 9*C_p]   scratch: cv2 im2col block
    """
    C1p = x_ref.shape[-1]
    Cmp = w1_ref.shape[-1]
    r = pl.program_id(1)

    def silu(y):
        # sigmoid via EUP exp + near-free approx reciprocal (no VPU divide)
        return y * pl.reciprocal(1.0 + jnp.exp(-y), approx=True)

    # ---- cv1 im2col: 9 shifted window copies, each a full-lane aligned store ----
    for di in range(3):
        for dj in range(3):
            t = di * 3 + dj
            col1_ref[:, :, t * C1p:(t + 1) * C1p] = x_ref[di:di + TH + 2, dj:dj + W, :]

    # ---- cv1: one MXU matmul (K = 9*C1p) + folded BN + SiLU ----
    y1 = jnp.dot(col1_ref[...].reshape((TH + 2) * W, 9 * C1p), w1_ref[...],
                 preferred_element_type=jnp.float32)
    y1 = silu(y1 * s1_ref[...] + b1_ref[...])

    # cv1 activation stays in VMEM; interior starts at sublane offset 8 (aligned);
    # only the 1-column W halo ring is re-zeroed (parallel-safe, cheap).
    y1_ref[:, 7:8, :] = jnp.zeros((TH + 2, 1, Cmp), compute_dtype)
    y1_ref[:, 8 + W:9 + W, :] = jnp.zeros((TH + 2, 1, Cmp), compute_dtype)
    y1_ref[:, 8:8 + W, :] = y1.reshape(TH + 2, W, Cmp).astype(compute_dtype)

    # Rows recomputed outside the image must equal the conv zero padding.
    @pl.when(r == 0)
    def _():
        y1_ref[0:1, :, :] = jnp.zeros((1, W + 9, Cmp), compute_dtype)

    @pl.when(r == pl.num_programs(1) - 1)
    def _():
        y1_ref[TH + 1:TH + 2, :, :] = jnp.zeros((1, W + 9, Cmp), compute_dtype)

    # ---- cv2 im2col from the VMEM-resident activation ----
    for di in range(3):
        for dj in range(3):
            t = di * 3 + dj
            col2_ref[:, :, t * Cmp:(t + 1) * Cmp] = y1_ref[di:di + TH, 7 + dj:7 + dj + W, :]

    # ---- cv2: one MXU matmul + folded BN + SiLU ----
    y2 = jnp.dot(col2_ref[...].reshape(TH * W, 9 * Cmp), w2_ref[...],
                 preferred_element_type=jnp.float32)
    y2 = silu(y2 * s2_ref[...] + b2_ref[...])

    # ---- shortcut: the centre tap is already staged (lane-aligned) in col1 ----
    if add:
        xc = col1_ref[1:1 + TH, :, 4 * C1p:5 * C1p]
        y2 = y2 + xc.astype(jnp.float32).reshape(TH * W, C1p)

    o_ref[...] = y2.astype(o_ref.dtype)


# --------------------------------------------------------------------------- param prep
def _fold_bn(gamma, beta, mean, var, cpad):
    scale = gamma * jax.lax.rsqrt(var + EPS_BN)
    bias = beta - mean * scale
    scale = jnp.pad(scale, (0, cpad - scale.shape[0]))
    bias = jnp.pad(bias, (0, cpad - bias.shape[0]))
    return (scale.reshape(1, cpad).astype(jnp.float32),
            bias.reshape(1, cpad).astype(jnp.float32))


def _im2col_weight(w_oihw, cin_pad, cout_pad, dtype):
    """(Cout, Cin, 3, 3) -> [9*cin_pad, cout_pad], K ordered (di, dj, cin)."""
    co, ci, kh, kw = w_oihw.shape
    w = jnp.transpose(w_oihw, (2, 3, 1, 0))                     # (3, 3, Cin, Cout)
    w = jnp.pad(w, ((0, 0), (0, 0), (0, cin_pad - ci), (0, cout_pad - co)))
    return w.reshape(kh * kw * cin_pad, cout_pad).astype(dtype)


def _block_vmem_bytes(TH, W, c1p, cmp_, c2p, compute_dtype):
    e = jnp.dtype(compute_dtype).itemsize
    x_blk = (TH + 4) * (W + 2) * c1p * e
    col1 = (TH + 2) * W * 9 * c1p * e
    y1p = (TH + 2) * (W + 9) * cmp_ * e
    col2 = TH * W * 9 * cmp_ * e
    o_blk = TH * W * c2p * 4
    wgt = (9 * c1p * cmp_ + 9 * cmp_ * c2p) * e
    # pipelined inputs/outputs are double-buffered; scratch is single-buffered
    return 2 * (x_blk + o_blk + wgt) + col1 + y1p + col2


def _pick_row_tile(H, W, c1p, cmp_, c2p, compute_dtype, budget=24 * 2**20):
    best = 1
    for th in range(1, H + 1):
        if H % th == 0 and _block_vmem_bytes(th, W, c1p, cmp_, c2p, compute_dtype) <= budget:
            best = th
    return best


# --------------------------------------------------------------------------- forward
def bottleneck_forward_nhwc(x_nhwc, params, *, shortcut=True,
                            compute_dtype=jnp.bfloat16, row_tile=None):
    """Fused Bottleneck forward on a channel-last input. Returns NHWC float32."""
    B, H, W, C1 = x_nhwc.shape
    C_ = params["w1"].shape[0]
    C2 = params["w2"].shape[0]
    add = bool(shortcut) and (C1 == C2)

    c1p = _round_up(C1, LANE)
    cmp_ = _round_up(C_, LANE)
    c2p = _round_up(C2, LANE)

    TH = (_pick_row_tile(H, W, c1p, cmp_, c2p, compute_dtype)
          if row_tile is None else int(row_tile))
    assert H % TH == 0, (H, TH)
    nR = H // TH

    # channel pad + compute-dtype cast + 2-row / 1-col halo, then overlapping row windows
    x = x_nhwc.astype(compute_dtype)
    x = jnp.pad(x, ((0, 0), (2, 2), (1, 1), (0, c1p - C1)))
    rows = (jnp.arange(nR) * TH)[:, None] + jnp.arange(TH + 4)[None, :]
    x_tiles = x[:, rows]                                    # [B, nR, TH+4, W+2, c1p]

    w1 = _im2col_weight(params["w1"], c1p, cmp_, compute_dtype)
    w2 = _im2col_weight(params["w2"], cmp_, c2p, compute_dtype)
    s1, b1 = _fold_bn(params["bn1_g"], params["bn1_b"], params["bn1_m"], params["bn1_v"], cmp_)
    s2, b2 = _fold_bn(params["bn2_g"], params["bn2_b"], params["bn2_m"], params["bn2_v"], c2p)

    vmem_limit = int(min(
        64 * 2**20,
        max(32 * 2**20, 2 * _block_vmem_bytes(TH, W, c1p, cmp_, c2p, compute_dtype))))

    out = pl.pallas_call(
        functools.partial(_bottleneck_kernel, TH=TH, W=W, add=add,
                          compute_dtype=compute_dtype),
        out_shape=jax.ShapeDtypeStruct((B, nR, TH * W, c2p), jnp.float32),
        grid=(B, nR),
        in_specs=[
            pl.BlockSpec((None, None, TH + 4, W + 2, c1p), lambda b, r: (b, r, 0, 0, 0)),
            pl.BlockSpec((9 * c1p, cmp_), lambda b, r: (0, 0)),
            pl.BlockSpec((1, cmp_), lambda b, r: (0, 0)),
            pl.BlockSpec((1, cmp_), lambda b, r: (0, 0)),
            pl.BlockSpec((9 * cmp_, c2p), lambda b, r: (0, 0)),
            pl.BlockSpec((1, c2p), lambda b, r: (0, 0)),
            pl.BlockSpec((1, c2p), lambda b, r: (0, 0)),
        ],
        out_specs=pl.BlockSpec((None, None, TH * W, c2p), lambda b, r: (b, r, 0, 0)),
        scratch_shapes=[
            pltpu.VMEM((TH + 2, W, 9 * c1p), compute_dtype),
            pltpu.VMEM((TH + 2, W + 9, cmp_), compute_dtype),
            pltpu.VMEM((TH, W, 9 * cmp_), compute_dtype),
        ],
        compiler_params=pltpu.CompilerParams(
            dimension_semantics=("parallel", "parallel"),
            vmem_limit_bytes=vmem_limit),
    )(x_tiles, w1, s1, b1, w2, s2, b2)

    return out.reshape(B, H, W, c2p)[..., :C2]


def bottleneck_forward(x_nchw, params, *, shortcut=True,
                       compute_dtype=jnp.bfloat16, row_tile=None):
    """PyTorch-compatible NCHW interface.  (When chaining bottlenecks, prefer
    bottleneck_forward_nhwc to avoid the layout round trip.)"""
    x_nhwc = jnp.transpose(x_nchw, (0, 2, 3, 1))
    y = bottleneck_forward_nhwc(x_nhwc, params, shortcut=shortcut,
                                compute_dtype=compute_dtype, row_tile=row_tile)
    return jnp.transpose(y, (0, 3, 1, 2))


# --------------------------------------------------------------------------- reference
def bottleneck_reference(x, params, shortcut=True):
    """Pure-JAX reference (lax.conv, HIGHEST precision) of the same forward."""
    def conv_bn_silu(inp, w, g, b, m, v):
        y = jax.lax.conv_general_dilated(
            inp, w, window_strides=(1, 1), padding=((1, 1), (1, 1)),
            dimension_numbers=("NCHW", "OIHW", "NCHW"),
            precision=jax.lax.Precision.HIGHEST)
        s = g * jax.lax.rsqrt(v + EPS_BN)
        y = y * s.reshape(1, -1, 1, 1) + (b - m * s).reshape(1, -1, 1, 1)
        return y * jax.nn.sigmoid(y)

    y = conv_bn_silu(x, params["w1"], params["bn1_g"], params["bn1_b"],
                     params["bn1_m"], params["bn1_v"])
    y = conv_bn_silu(y, params["w2"], params["bn2_g"], params["bn2_b"],
                     params["bn2_m"], params["bn2_v"])
    add = shortcut and (x.shape[1] == params["w2"].shape[0])
    return x + y if add else y


# --------------------------------------------------------------------------- params
def init_params(key, c1, c2, e=0.5):
    c_ = int(c2 * e)
    ks = jax.random.split(key, 6)

    def rnd(kk, shape, scale=0.1):
        return scale * jax.random.normal(kk, shape, jnp.float32)

    return {
        "w1": rnd(ks[0], (c_, c1, 3, 3)),
        "bn1_g": 1.0 + rnd(ks[1], (c_,)), "bn1_b": rnd(ks[2], (c_,)),
        "bn1_m": jnp.zeros((c_,), jnp.float32), "bn1_v": jnp.ones((c_,), jnp.float32),
        "w2": rnd(ks[3], (c2, c_, 3, 3)),
        "bn2_g": 1.0 + rnd(ks[4], (c2,)), "bn2_b": rnd(ks[5], (c2,)),
        "bn2_m": jnp.zeros((c2,), jnp.float32), "bn2_v": jnp.ones((c2,), jnp.float32),
    }


# --------------------------------------------------------------------------- main
if __name__ == "__main__":
    key = jax.random.PRNGKey(0)
    kx, kp = jax.random.split(key)

    B, C1, H, W = 2, 32, 16, 16
    C2 = 32                                     # shortcut active since C1 == C2

    x = jax.random.normal(kx, (B, C1, H, W), jnp.float32)
    params = init_params(kp, C1, C2, e=0.5)

    ref = jax.block_until_ready(bottleneck_reference(x, params, shortcut=True))

    # Default path: bf16 MXU operands, explicit row tiling (2 row tiles -> 4 grid steps).
    out = jax.block_until_ready(
        bottleneck_forward(x, params, shortcut=True, row_tile=8))
    assert out.shape == (B, C2, H, W), out.shape
    assert bool(jnp.all(jnp.isfinite(out)))
    err = float(jnp.max(jnp.abs(out - ref) / (1.0 + jnp.abs(ref))))
    assert err < 1e-1, err

    # f32 MXU-operand path with auto row tiling (single tile): tighter tolerance.
    out32 = jax.block_until_ready(
        bottleneck_forward(x, params, shortcut=True, compute_dtype=jnp.float32))
    assert out32.shape == (B, C2, H, W)
    err32 = float(jnp.max(jnp.abs(out32 - ref) / (1.0 + jnp.abs(ref))))
    assert err32 < 5e-2, err32

    print("KERNEL_OK")
</pallas_src>

<mosaic_0001>
module attributes {stable_mosaic.version = 11 : i64} {
  func.func @_bottleneck_kernel(%arg0: i32, %arg1: i32, %arg2: memref<1x1x12x18x128xbf16, #tpu.memory_space<vmem>>, %arg3: memref<1152x128xbf16, #tpu.memory_space<vmem>>, %arg4: memref<1x128xf32, #tpu.memory_space<vmem>>, %arg5: memref<1x128xf32, #tpu.memory_space<vmem>>, %arg6: memref<1152x128xbf16, #tpu.memory_space<vmem>>, %arg7: memref<1x128xf32, #tpu.memory_space<vmem>>, %arg8: memref<1x128xf32, #tpu.memory_space<vmem>>, %arg9: memref<1x1x128x128xf32, #tpu.memory_space<vmem>>, %arg10: memref<10x16x1152xbf16, #tpu.memory_space<vmem>>, %arg11: memref<10x25x128xbf16, #tpu.memory_space<vmem>>, %arg12: memref<8x16x1152xbf16, #tpu.memory_space<vmem>>) attributes {dimension_semantics = [#tpu.dimension_semantics<parallel>, #tpu.dimension_semantics<parallel>], iteration_bounds = array<i64: 2, 2>, scalar_prefetch = 0 : i64, scratch_operands = 3 : i64, tpu.core_type = #tpu.core_type<tc>, window_params = [{transform_indices = @transform_0, window_bounds = array<i64: 1, 1, 12, 18, 128>}, {pipeline_mode = #tpu.pipeline_mode<synchronous>, transform_indices = @transform_1, window_bounds = array<i64: 1152, 128>}, {pipeline_mode = #tpu.pipeline_mode<synchronous>, transform_indices = @transform_2, window_bounds = array<i64: 1, 128>}, {pipeline_mode = #tpu.pipeline_mode<synchronous>, transform_indices = @transform_3, window_bounds = array<i64: 1, 128>}, {pipeline_mode = #tpu.pipeline_mode<synchronous>, transform_indices = @transform_4, window_bounds = array<i64: 1152, 128>}, {pipeline_mode = #tpu.pipeline_mode<synchronous>, transform_indices = @transform_5, window_bounds = array<i64: 1, 128>}, {pipeline_mode = #tpu.pipeline_mode<synchronous>, transform_indices = @transform_6, window_bounds = array<i64: 1, 128>}, {transform_indices = @transform_7, window_bounds = array<i64: 1, 1, 128, 128>}]} {
    %c0 = arith.constant 0 : index
    %c0_0 = arith.constant 0 : index
    %c0_1 = arith.constant 0 : index
    %c0_2 = arith.constant 0 : index
    %c0_3 = arith.constant 0 : index
    %0 = vector.load %arg2[%c0, %c0_0, %c0_1, %c0_2, %c0_3] : memref<1x1x12x18x128xbf16, #tpu.memory_space<vmem>>, vector<1x1x10x16x128xbf16>
    %1 = vector.shape_cast %0 : vector<1x1x10x16x128xbf16> to vector<10x16x128xbf16>
    %c0_4 = arith.constant 0 : index
    %c0_5 = arith.constant 0 : index
    %c0_6 = arith.constant 0 : index
    %2 = vector.load %arg10[%c0_4, %c0_5, %c0_6] : memref<10x16x1152xbf16, #tpu.memory_space<vmem>>, vector<10x16x128xbf16>
    tpu.vector_store %arg10[%c0_4, %c0_5, %c0_6], %1 {strides = array<i32>} : memref<10x16x1152xbf16, #tpu.memory_space<vmem>>, vector<10x16x128xbf16>,
    %c0_7 = arith.constant 0 : index
    %c0_8 = arith.constant 0 : index
    %c0_9 = arith.constant 0 : index
    %c1 = arith.constant 1 : index
    %c0_10 = arith.constant 0 : index
    %3 = vector.load %arg2[%c0_7, %c0_8, %c0_9, %c1, %c0_10] : memref<1x1x12x18x128xbf16, #tpu.memory_space<vmem>>, vector<1x1x10x16x128xbf16>
    %4 = vector.shape_cast %3 : vector<1x1x10x16x128xbf16> to vector<10x16x128xbf16>
    %c0_11 = arith.constant 0 : index
    %c0_12 = arith.constant 0 : index
    %c128 = arith.constant 128 : index
    %5 = vector.load %arg10[%c0_11, %c0_12, %c128] : memref<10x16x1152xbf16, #tpu.memory_space<vmem>>, vector<10x16x128xbf16>
    tpu.vector_store %arg10[%c0_11, %c0_12, %c128], %4 {strides = array<i32>} : memref<10x16x1152xbf16, #tpu.memory_space<vmem>>, vector<10x16x128xbf16>,
    %c0_13 = arith.constant 0 : index
    %c0_14 = arith.constant 0 : index
    %c0_15 = arith.constant 0 : index
    %c2 = arith.constant 2 : index
    %c0_16 = arith.constant 0 : index
    %6 = vector.load %arg2[%c0_13, %c0_14, %c0_15, %c2, %c0_16] : memref<1x1x12x18x128xbf16, #tpu.memory_space<vmem>>, vector<1x1x10x16x128xbf16>
    %7 = vector.shape_cast %6 : vector<1x1x10x16x128xbf16> to vector<10x16x128xbf16>
    %c0_17 = arith.constant 0 : index
    %c0_18 = arith.constant 0 : index
    %c256 = arith.constant 256 : index
    %8 = vector.load %arg10[%c0_17, %c0_18, %c256] : memref<10x16x1152xbf16, #tpu.memory_space<vmem>>, vector<10x16x128xbf16>
    tpu.vector_store %arg10[%c0_17, %c0_18, %c256], %7 {strides = array<i32>} : memref<10x16x1152xbf16, #tpu.memory_space<vmem>>, vector<10x16x128xbf16>,
    %c0_19 = arith.constant 0 : index
    %c0_20 = arith.constant 0 : index
    %c1_21 = arith.constant 1 : index
    %c0_22 = arith.constant 0 : index
    %c0_23 = arith.constant 0 : index
    %9 = vector.load %arg2[%c0_19, %c0_20, %c1_21, %c0_22, %c0_23] : memref<1x1x12x18x128xbf16, #tpu.memory_space<vmem>>, vector<1x1x10x16x128xbf16>
    %10 = vector.shape_cast %9 : vector<1x1x10x16x128xbf16> to vector<10x16x128xbf16>
    %c0_24 = arith.constant 0 : index
    %c0_25 = arith.constant 0 : index
    %c384 = arith.constant 384 : index
    %11 = vector.load %arg10[%c0_24, %c0_25, %c384] : memref<10x16x1152xbf16, #tpu.memory_space<vmem>>, vector<10x16x128xbf16>
    tpu.vector_store %arg10[%c0_24, %c0_25, %c384], %10 {strides = array<i32>} : memref<10x16x1152xbf16, #tpu.memory_space<vmem>>, vector<10x16x128xbf16>,
    %c0_26 = arith.constant 0 : index
    %c0_27 = arith.constant 0 : index
    %c1_28 = arith.constant 1 : index
    %c1_29 = arith.constant 1 : index
    %c0_30 = arith.constant 0 : index
    %12 = vector.load %arg2[%c0_26, %c0_27, %c1_28, %c1_29, %c0_30] : memref<1x1x12x18x128xbf16, #tpu.memory_space<vmem>>, vector<1x1x10x16x128xbf16>
    %13 = vector.shape_cast %12 : vector<1x1x10x16x128xbf16> to vector<10x16x128xbf16>
    %c0_31 = arith.constant 0 : index
    %c0_32 = arith.constant 0 : index
    %c512 = arith.constant 512 : index
    %14 = vector.load %arg10[%c0_31, %c0_32, %c512] : memref<10x16x1152xbf16, #tpu.memory_space<vmem>>, vector<10x16x128xbf16>
    tpu.vector_store %arg10[%c0_31, %c0_32, %c512], %13 {strides = array<i32>} : memref<10x16x1152xbf16, #tpu.memory_space<vmem>>, vector<10x16x128xbf16>,
    %c0_33 = arith.constant 0 : index
    %c0_34 = arith.constant 0 : index
    %c1_35 = arith.constant 1 : index
    %c2_36 = arith.constant 2 : index
    %c0_37 = arith.constant 0 : index
    %15 = vector.load %arg2[%c0_33, %c0_34, %c1_35, %c2_36, %c0_37] : memref<1x1x12x18x128xbf16, #tpu.memory_space<vmem>>, vector<1x1x10x16x128xbf16>
    %16 = vector.shape_cast %15 : vector<1x1x10x16x128xbf16> to vector<10x16x128xbf16>
    %c0_38 = arith.constant 0 : index
    %c0_39 = arith.constant 0 : index
    %c640 = arith.constant 640 : index
    %17 = vector.load %arg10[%c0_38, %c0_39, %c640] : memref<10x16x1152xbf16, #tpu.memory_space<vmem>>, vector<10x16x128xbf16>
    tpu.vector_store %arg10[%c0_38, %c0_39, %c640], %16 {strides = array<i32>} : memref<10x16x1152xbf16, #tpu.memory_space<vmem>>, vector<10x16x128xbf16>,
    %c0_40 = arith.constant 0 : index
    %c0_41 = arith.constant 0 : index
    %c2_42 = arith.constant 2 : index
    %c0_43 = arith.constant 0 : index
    %c0_44 = arith.constant 0 : index
    %18 = vector.load %arg2[%c0_40, %c0_41, %c2_42, %c0_43, %c0_44] : memref<1x1x12x18x128xbf16, #tpu.memory_space<vmem>>, vector<1x1x10x16x128xbf16>
    %19 = vector.shape_cast %18 : vector<1x1x10x16x128xbf16> to vector<10x16x128xbf16>
    %c0_45 = arith.constant 0 : index
    %c0_46 = arith.constant 0 : index
    %c768 = arith.constant 768 : index
    %20 = vector.load %arg10[%c0_45, %c0_46, %c768] : memref<10x16x1152xbf16, #tpu.memory_space<vmem>>, vector<10x16x128xbf16>
    tpu.vector_store %arg10[%c0_45, %c0_46, %c768], %19 {strides = array<i32>} : memref<10x16x1152xbf16, #tpu.memory_space<vmem>>, vector<10x16x128xbf16>,
    %c0_47 = arith.constant 0 : index
    %c0_48 = arith.constant 0 : index
    %c2_49 = arith.constant 2 : index
    %c1_50 = arith.constant 1 : index
    %c0_51 = arith.constant 0 : index
    %21 = vector.load %arg2[%c0_47, %c0_48, %c2_49, %c1_50, %c0_51] : memref<1x1x12x18x128xbf16, #tpu.memory_space<vmem>>, vector<1x1x10x16x128xbf16>
    %22 = vector.shape_cast %21 : vector<1x1x10x16x128xbf16> to vector<10x16x128xbf16>
    %c0_52 = arith.constant 0 : index
    %c0_53 = arith.constant 0 : index
    %c896 = arith.constant 896 : index
    %23 = vector.load %arg10[%c0_52, %c0_53, %c896] : memref<10x16x1152xbf16, #tpu.memory_space<vmem>>, vector<10x16x128xbf16>
    tpu.vector_store %arg10[%c0_52, %c0_53, %c896], %22 {strides = array<i32>} : memref<10x16x1152xbf16, #tpu.memory_space<vmem>>, vector<10x16x128xbf16>,
    %c0_54 = arith.constant 0 : index
    %c0_55 = arith.constant 0 : index
    %c2_56 = arith.constant 2 : index
    %c2_57 = arith.constant 2 : index
    %c0_58 = arith.constant 0 : index
    %24 = vector.load %arg2[%c0_54, %c0_55, %c2_56, %c2_57, %c0_58] : memref<1x1x12x18x128xbf16, #tpu.memory_space<vmem>>, vector<1x1x10x16x128xbf16>
    %25 = vector.shape_cast %24 : vector<1x1x10x16x128xbf16> to vector<10x16x128xbf16>
    %c0_59 = arith.constant 0 : index
    %c0_60 = arith.constant 0 : index
    %c1024 = arith.constant 1024 : index
    %26 = vector.load %arg10[%c0_59, %c0_60, %c1024] : memref<10x16x1152xbf16, #tpu.memory_space<vmem>>, vector<10x16x128xbf16>
    tpu.vector_store %arg10[%c0_59, %c0_60, %c1024], %25 {strides = array<i32>} : memref<10x16x1152xbf16, #tpu.memory_space<vmem>>, vector<10x16x128xbf16>,
    %c0_61 = arith.constant 0 : index
    %c0_62 = arith.constant 0 : index
    %c0_63 = arith.constant 0 : index
    %27 = vector.load %arg10[%c0_61, %c0_62, %c0_63] : memref<10x16x1152xbf16, #tpu.memory_space<vmem>>, vector<10x16x1152xbf16>
    %28 = vector.shape_cast %27 : vector<10x16x1152xbf16> to vector<160x1152xbf16>
    %c0_64 = arith.constant 0 : index
    %c0_65 = arith.constant 0 : index
    %29 = vector.load %arg3[%c0_64, %c0_65] : memref<1152x128xbf16, #tpu.memory_space<vmem>>, vector<1152x128xbf16>
    %cst = arith.constant dense<0.000000e+00> : vector<160x128xf32>
    %30 = tpu.matmul %28, %29, %cst {dimension_numbers = #tpu.dot_dimension_numbers<[1], [0], [0], [1], [0, 0, 1, 1], [], []>} : vector<160x1152xbf16>, vector<1152x128xbf16>, vector<160x128xf32> -> vector<160x128xf32>
    %c0_66 = arith.constant 0 : index
    %c0_67 = arith.constant 0 : index
    %31 = vector.load %arg4[%c0_66, %c0_67] : memref<1x128xf32, #tpu.memory_space<vmem>>, vector<1x128xf32>
    %32 = vector.broadcast %31 : vector<1x128xf32> to vector<160x128xf32>
    %33 = arith.mulf %30, %32 : vector<160x128xf32>
    %c0_68 = arith.constant 0 : index
    %c0_69 = arith.constant 0 : index
    %34 = vector.load %arg5[%c0_68, %c0_69] : memref<1x128xf32, #tpu.memory_space<vmem>>, vector<1x128xf32>
    %35 = vector.broadcast %34 : vector<1x128xf32> to vector<160x128xf32>
    %36 = arith.addf %33, %35 : vector<160x128xf32>
    %cst_70 = arith.constant 0.000000e+00 : f32
    %37 = vector.broadcast %cst_70 : f32 to vector<160x128xf32>
    %38 = arith.subf %37, %36 : vector<160x128xf32>
    %39 = math.exp %38 : vector<160x128xf32>
    %cst_71 = arith.constant 1.000000e+00 : f32
    %40 = vector.broadcast %cst_71 : f32 to vector<160x128xf32>
    %41 = arith.addf %40, %39 : vector<160x128xf32>
    %42 = tpu.reciprocal %41 {approx = true} : vector<160x128xf32> -> vector<160x128xf32>
    %43 = arith.mulf %36, %42 : vector<160x128xf32>
    %cst_72 = arith.constant 0.000000e+00 : bf16
    %44 = vector.broadcast %cst_72 : bf16 to vector<10x1x128xbf16>
    %c0_73 = arith.constant 0 : index
    %c7 = arith.constant 7 : index
    %c0_74 = arith.constant 0 : index
    %45 = vector.load %arg11[%c0_73, %c7, %c0_74] : memref<10x25x128xbf16, #tpu.memory_space<vmem>>, vector<10x1x128xbf16>
    tpu.vector_store %arg11[%c0_73, %c7, %c0_74], %44 {strides = array<i32>} : memref<10x25x128xbf16, #tpu.memory_space<vmem>>, vector<10x1x128xbf16>,
    %cst_75 = arith.constant 0.000000e+00 : bf16
    %46 = vector.broadcast %cst_75 : bf16 to vector<10x1x128xbf16>
    %c0_76 = arith.constant 0 : index
    %c24 = arith.constant 24 : index
    %c0_77 = arith.constant 0 : index
    %47 = vector.load %arg11[%c0_76, %c24, %c0_77] : memref<10x25x128xbf16, #tpu.memory_space<vmem>>, vector<10x1x128xbf16>
    tpu.vector_store %arg11[%c0_76, %c24, %c0_77], %46 {strides = array<i32>} : memref<10x25x128xbf16, #tpu.memory_space<vmem>>, vector<10x1x128xbf16>,
    %48 = vector.shape_cast %43 : vector<160x128xf32> to vector<10x16x128xf32>
    %49 = arith.truncf %48 : vector<10x16x128xf32> to vector<10x16x128xbf16>
    %c0_78 = arith.constant 0 : index
    %c8 = arith.constant 8 : index
    %c0_79 = arith.constant 0 : index
    %50 = vector.load %arg11[%c0_78, %c8, %c0_79] : memref<10x25x128xbf16, #tpu.memory_space<vmem>>, vector<10x16x128xbf16>
    tpu.vector_store %arg11[%c0_78, %c8, %c0_79], %49 {strides = array<i32>} : memref<10x25x128xbf16, #tpu.memory_space<vmem>>, vector<10x16x128xbf16>,
    %c0_i32 = arith.constant 0 : i32
    %51 = arith.cmpi eq, %arg1, %c0_i32 : i32
    %52 = arith.extui %51 : i1 to i32
    %c0_i32_80 = arith.constant 0 : i32
    %53 = arith.cmpi ne, %52, %c0_i32_80 : i32
    scf.if %53 {
      %cst_154 = arith.constant 0.000000e+00 : bf16
      %99 = vector.broadcast %cst_154 : bf16 to vector<1x25x128xbf16>
      %c0_155 = arith.constant 0 : index
      %c0_156 = arith.constant 0 : index
      %c0_157 = arith.constant 0 : index
      %100 = vector.load %arg11[%c0_155, %c0_156, %c0_157] : memref<10x25x128xbf16, #tpu.memory_space<vmem>>, vector<1x25x128xbf16>
      tpu.vector_store %arg11[%c0_155, %c0_156, %c0_157], %99 {strides = array<i32>} : memref<10x25x128xbf16, #tpu.memory_space<vmem>>, vector<1x25x128xbf16>,
    } else {
    }
    %c1_i32 = arith.constant 1 : i32
    %54 = arith.cmpi eq, %arg1, %c1_i32 : i32
    %55 = arith.extui %54 : i1 to i32
    %c0_i32_81 = arith.constant 0 : i32
    %56 = arith.cmpi ne, %55, %c0_i32_81 : i32
    scf.if %56 {
      %cst_154 = arith.constant 0.000000e+00 : bf16
      %99 = vector.broadcast %cst_154 : bf16 to vector<1x25x128xbf16>
      %c9_155 = arith.constant 9 : index
      %c0_156 = arith.constant 0 : index
      %c0_157 = arith.constant 0 : index
      %100 = vector.load %arg11[%c9_155, %c0_156, %c0_157] : memref<10x25x128xbf16, #tpu.memory_space<vmem>>, vector<1x25x128xbf16>
      tpu.vector_store %arg11[%c9_155, %c0_156, %c0_157], %99 {strides = array<i32>} : memref<10x25x128xbf16, #tpu.memory_space<vmem>>, vector<1x25x128xbf16>,
    } else {
    }
    %c0_82 = arith.constant 0 : index
    %c7_83 = arith.constant 7 : index
    %c0_84 = arith.constant 0 : index
    %57 = vector.load %arg11[%c0_82, %c7_83, %c0_84] : memref<10x25x128xbf16, #tpu.memory_space<vmem>>, vector<8x16x128xbf16>
    %c0_85 = arith.constant 0 : index
    %c0_86 = arith.constant 0 : index
    %c0_87 = arith.constant 0 : index
    %58 = vector.load %arg12[%c0_85, %c0_86, %c0_87] : memref<8x16x1152xbf16, #tpu.memory_space<vmem>>, vector<8x16x128xbf16>
    tpu.vector_store %arg12[%c0_85, %c0_86, %c0_87], %57 {strides = array<i32>} : memref<8x16x1152xbf16, #tpu.memory_space<vmem>>, vector<8x16x128xbf16>,
    %c0_88 = arith.constant 0 : index
    %c8_89 = arith.constant 8 : index
    %c0_90 = arith.constant 0 : index
    %59 = vector.load %arg11[%c0_88, %c8_89, %c0_90] : memref<10x25x128xbf16, #tpu.memory_space<vmem>>, vector<8x16x128xbf16>
    %c0_91 = arith.constant 0 : index
    %c0_92 = arith.constant 0 : index
    %c128_93 = arith.constant 128 : index
    %60 = vector.load %arg12[%c0_91, %c0_92, %c128_93] : memref<8x16x1152xbf16, #tpu.memory_space<vmem>>, vector<8x16x128xbf16>
    tpu.vector_store %arg12[%c0_91, %c0_92, %c128_93], %59 {strides = array<i32>} : memref<8x16x1152xbf16, #tpu.memory_space<vmem>>, vector<8x16x128xbf16>,
    %c0_94 = arith.constant 0 : index
    %c9 = arith.constant 9 : index
    %c0_95 = arith.constant 0 : index
    %61 = vector.load %arg11[%c0_94, %c9, %c0_95] : memref<10x25x128xbf16, #tpu.memory_space<vmem>>, vector<8x16x128xbf16>
    %c0_96 = arith.constant 0 : index
    %c0_97 = arith.constant 0 : index
    %c256_98 = arith.constant 256 : index
    %62 = vector.load %arg12[%c0_96, %c0_97, %c256_98] : memref<8x16x1152xbf16, #tpu.memory_space<vmem>>, vector<8x16x128xbf16>
    tpu.vector_store %arg12[%c0_96, %c0_97, %c256_98], %61 {strides = array<i32>} : memref<8x16x1152xbf16, #tpu.memory_space<vmem>>, vector<8x16x128xbf16>,
    %c1_99 = arith.constant 1 : index
    %c7_100 = arith.constant 7 : index
    %c0_101 = arith.constant 0 : index
    %63 = vector.load %arg11[%c1_99, %c7_100, %c0_101] : memref<10x25x128xbf16, #tpu.memory_space<vmem>>, vector<8x16x128xbf16>
    %c0_102 = arith.constant 0 : index
    %c0_103 = arith.constant 0 : index
    %c384_104 = arith.constant 384 : index
    %64 = vector.load %arg12[%c0_102, %c0_103, %c384_104] : memref<8x16x1152xbf16, #tpu.memory_space<vmem>>, vector<8x16x128xbf16>
    tpu.vector_store %arg12[%c0_102, %c0_103, %c384_104], %63 {strides = array<i32>} : memref<8x16x1152xbf16, #tpu.memory_space<vmem>>, vector<8x16x128xbf16>,
    %c1_105 = arith.constant 1 : index
    %c8_106 = arith.constant 8 : index
    %c0_107 = arith.constant 0 : index
    %65 = vector.load %arg11[%c1_105, %c8_106, %c0_107] : memref<10x25x128xbf16, #tpu.memory_space<vmem>>, vector<8x16x128xbf16>
    %c0_108 = arith.constant 0 : index
    %c0_109 = arith.constant 0 : index
    %c512_110 = arith.constant 512 : index
    %66 = vector.load %arg12[%c0_108, %c0_109, %c512_110] : memref<8x16x1152xbf16, #tpu.memory_space<vmem>>, vector<8x16x128xbf16>
    tpu.vector_store %arg12[%c0_108, %c0_109, %c512_110], %65 {strides = array<i32>} : memref<8x16x1152xbf16, #tpu.memory_space<vmem>>, vector<8x16x128xbf16>,
    %c1_111 = arith.constant 1 : index
    %c9_112 = arith.constant 9 : index
    %c0_113 = arith.constant 0 : index
    %67 = vector.load %arg11[%c1_111, %c9_112, %c0_113] : memref<10x25x128xbf16, #tpu.memory_space<vmem>>, vector<8x16x128xbf16>
    %c0_114 = arith.constant 0 : index
    %c0_115 = arith.constant 0 : index
    %c640_116 = arith.constant 640 : index
    %68 = vector.load %arg12[%c0_114, %c0_115, %c640_116] : memref<8x16x1152xbf16, #tpu.memory_space<vmem>>, vector<8x16x128xbf16>
    tpu.vector_store %arg12[%c0_114, %c0_115, %c640_116], %67 {strides = array<i32>} : memref<8x16x1152xbf16, #tpu.memory_space<vmem>>, vector<8x16x128xbf16>,
    %c2_117 = arith.constant 2 : index
    %c7_118 = arith.constant 7 : index
    %c0_119 = arith.constant 0 : index
    %69 = vector.load %arg11[%c2_117, %c7_118, %c0_119] : memref<10x25x128xbf16, #tpu.memory_space<vmem>>, vector<8x16x128xbf16>
    %c0_120 = arith.constant 0 : index
    %c0_121 = arith.constant 0 : index
    %c768_122 = arith.constant 768 : index
    %70 = vector.load %arg12[%c0_120, %c0_121, %c768_122] : memref<8x16x1152xbf16, #tpu.memory_space<vmem>>, vector<8x16x128xbf16>
    tpu.vector_store %arg12[%c0_120, %c0_121, %c768_122], %69 {strides = array<i32>} : memref<8x16x1152xbf16, #tpu.memory_space<vmem>>, vector<8x16x128xbf16>,
    %c2_123 = arith.constant 2 : index
    %c8_124 = arith.constant 8 : index
    %c0_125 = arith.constant 0 : index
    %71 = vector.load %arg11[%c2_123, %c8_124, %c0_125] : memref<10x25x128xbf16, #tpu.memory_space<vmem>>, vector<8x16x128xbf16>
    %c0_126 = arith.constant 0 : index
    %c0_127 = arith.constant 0 : index
    %c896_128 = arith.constant 896 : index
    %72 = vector.load %arg12[%c0_126, %c0_127, %c896_128] : memref<8x16x1152xbf16, #tpu.memory_space<vmem>>, vector<8x16x128xbf16>
    tpu.vector_store %arg12[%c0_126, %c0_127, %c896_128], %71 {strides = array<i32>} : memref<8x16x1152xbf16, #tpu.memory_space<vmem>>, vector<8x16x128xbf16>,
    %c2_129 = arith.constant 2 : index
    %c9_130 = arith.constant 9 : index
    %c0_131 = arith.constant 0 : index
    %73 = vector.load %arg11[%c2_129, %c9_130, %c0_131] : memref<10x25x128xbf16, #tpu.memory_space<vmem>>, vector<8x16x128xbf16>
    %c0_132 = arith.constant 0 : index
    %c0_133 = arith.constant 0 : index
    %c1024_134 = arith.constant 1024 : index
    %74 = vector.load %arg12[%c0_132, %c0_133, %c1024_134] : memref<8x16x1152xbf16, #tpu.memory_space<vmem>>, vector<8x16x128xbf16>
    tpu.vector_store %arg12[%c0_132, %c0_133, %c1024_134], %73 {strides = array<i32>} : memref<8x16x1152xbf16, #tpu.memory_space<vmem>>, vector<8x16x128xbf16>,
    %c0_135 = arith.constant 0 : index
    %c0_136 = arith.constant 0 : index
    %c0_137 = arith.constant 0 : index
    %75 = vector.load %arg12[%c0_135, %c0_136, %c0_137] : memref<8x16x1152xbf16, #tpu.memory_space<vmem>>, vector<8x16x1152xbf16>
    %76 = vector.shape_cast %75 : vector<8x16x1152xbf16> to vector<128x1152xbf16>
    %c0_138 = arith.constant 0 : index
    %c0_139 = arith.constant 0 : index
    %77 = vector.load %arg6[%c0_138, %c0_139] : memref<1152x128xbf16, #tpu.memory_space<vmem>>, vector<1152x128xbf16>
    %cst_140 = arith.constant dense<0.000000e+00> : vector<128x128xf32>
    %78 = tpu.matmul %76, %77, %cst_140 {dimension_numbers = #tpu.dot_dimension_numbers<[1], [0], [0], [1], [0, 0, 1, 1], [], []>} : vector<128x1152xbf16>, vector<1152x128xbf16>, vector<128x128xf32> -> vector<128x128xf32>
    %c0_141 = arith.constant 0 : index
    %c0_142 = arith.constant 0 : index
    %79 = vector.load %arg7[%c0_141, %c0_142] : memref<1x128xf32, #tpu.memory_space<vmem>>, vector<1x128xf32>
    %80 = vector.broadcast %79 : vector<1x128xf32> to vector<128x128xf32>
    %81 = arith.mulf %78, %80 : vector<128x128xf32>
    %c0_143 = arith.constant 0 : index
    %c0_144 = arith.constant 0 : index
    %82 = vector.load %arg8[%c0_143, %c0_144] : memref<1x128xf32, #tpu.memory_space<vmem>>, vector<1x128xf32>
    %83 = vector.broadcast %82 : vector<1x128xf32> to vector<128x128xf32>
    %84 = arith.addf %81, %83 : vector<128x128xf32>
    %cst_145 = arith.constant 0.000000e+00 : f32
    %85 = vector.broadcast %cst_145 : f32 to vector<128x128xf32>
    %86 = arith.subf %85, %84 : vector<128x128xf32>
    %87 = math.exp %86 : vector<128x128xf32>
    %cst_146 = arith.constant 1.000000e+00 : f32
    %88 = vector.broadcast %cst_146 : f32 to vector<128x128xf32>
    %89 = arith.addf %88, %87 : vector<128x128xf32>
    %90 = tpu.reciprocal %89 {approx = true} : vector<128x128xf32> -> vector<128x128xf32>
    %91 = arith.mulf %84, %90 : vector<128x128xf32>
    %c1_147 = arith.constant 1 : index
    %c0_148 = arith.constant 0 : index
    %c512_149 = arith.constant 512 : index
    %92 = vector.load %arg10[%c1_147, %c0_148, %c512_149] : memref<10x16x1152xbf16, #tpu.memory_space<vmem>>, vector<8x16x128xbf16>
    %93 = arith.extf %92 : vector<8x16x128xbf16> to vector<8x16x128xf32>
    %94 = vector.shape_cast %93 : vector<8x16x128xf32> to vector<128x128xf32>
    %95 = arith.addf %91, %94 : vector<128x128xf32>
    %c0_150 = arith.constant 0 : index
    %c0_151 = arith.constant 0 : index
    %c0_152 = arith.constant 0 : index
    %c0_153 = arith.constant 0 : index
    %96 = vector.load %arg9[%c0_150, %c0_151, %c0_152, %c0_153] : memref<1x1x128x128xf32, #tpu.memory_space<vmem>>, vector<1x1x128x128xf32>
    %97 = vector.shape_cast %96 : vector<1x1x128x128xf32> to vector<128x128xf32>
    %98 = vector.shape_cast %95 : vector<128x128xf32> to vector<1x1x128x128xf32>
    tpu.vector_store %arg9[%c0_150, %c0_151, %c0_152, %c0_153], %98 {strides = array<i32>} : memref<1x1x128x128xf32, #tpu.memory_space<vmem>>, vector<1x1x128x128xf32>,
    return
  }
  func.func @transform_0(%arg0: i32, %arg1: i32) -> (i32, i32, i32, i32, i32) {
    %c0_i32 = arith.constant 0 : i32
    %c0_i32_0 = arith.constant 0 : i32
    %c0_i32_1 = arith.constant 0 : i32
    %c0_i32_2 = arith.constant 0 : i32
    return %arg0, %arg1, %c0_i32, %c0_i32_0, %c0_i32_1 : i32, i32, i32, i32, i32
  }
  func.func @transform_1(%arg0: i32, %arg1: i32) -> (i32, i32) {
    %c0_i32 = arith.constant 0 : i32
    %c0_i32_0 = arith.constant 0 : i32
    %c0_i32_1 = arith.constant 0 : i32
    return %c0_i32, %c0_i32_0 : i32, i32
  }
  func.func @transform_2(%arg0: i32, %arg1: i32) -> (i32, i32) {
    %c0_i32 = arith.constant 0 : i32
    %c0_i32_0 = arith.constant 0 : i32
    %c0_i32_1 = arith.constant 0 : i32
    return %c0_i32, %c0_i32_0 : i32, i32
  }
  func.func @transform_3(%arg0: i32, %arg1: i32) -> (i32, i32) {
    %c0_i32 = arith.constant 0 : i32
    %c0_i32_0 = arith.constant 0 : i32
    %c0_i32_1 = arith.constant 0 : i32
    return %c0_i32, %c0_i32_0 : i32, i32
  }
  func.func @transform_4(%arg0: i32, %arg1: i32) -> (i32, i32) {
    %c0_i32 = arith.constant 0 : i32
    %c0_i32_0 = arith.constant 0 : i32
    %c0_i32_1 = arith.constant 0 : i32
    return %c0_i32, %c0_i32_0 : i32, i32
  }
  func.func @transform_5(%arg0: i32, %arg1: i32) -> (i32, i32) {
    %c0_i32 = arith.constant 0 : i32
    %c0_i32_0 = arith.constant 0 : i32
    %c0_i32_1 = arith.constant 0 : i32
    return %c0_i32, %c0_i32_0 : i32, i32
  }
  func.func @transform_6(%arg0: i32, %arg1: i32) -> (i32, i32) {
    %c0_i32 = arith.constant 0 : i32
    %c0_i32_0 = arith.constant 0 : i32
    %c0_i32_1 = arith.constant 0 : i32
    return %c0_i32, %c0_i32_0 : i32, i32
  }
  func.func @transform_7(%arg0: i32, %arg1: i32) -> (i32, i32, i32, i32) {
    %c0_i32 = arith.constant 0 : i32
    %c0_i32_0 = arith.constant 0 : i32
    %c0_i32_1 = arith.constant 0 : i32
    return %arg0, %arg1, %c0_i32, %c0_i32_0 : i32, i32, i32, i32
  }
}

</mosaic_0001>

<llo_original>
// kernel: tpu_custom_call.1
$region0: #{tpu_custom_call.1}
  #allocation0 [shape = 'u32[]', space=smem, size = 0x4, offset = 0x4, fixed_abs, tag = 'smem constant byte address 0x4 - core index']
  #allocation1 [shape = 'u32[144,128]{1,0:T(1,128)}', space=vmem, size = 0x12000, scoped, tag = 'internal scratch']
  #allocation2 [shape = 'bf16[10,16,1152]{2,1,0:T(8,128)(2,1)}', space=vmem, size = 0x5a000, scoped, tag = 'scratch operand']
  #allocation3 [shape = 'bf16[10,25,128]{2,1,0:T(8,128)(2,1)}', space=vmem, size = 0x14000, scoped, tag = 'scratch operand']
  #allocation4 [shape = 'bf16[8,16,1152]{2,1,0:T(8,128)(2,1)}', space=vmem, size = 0x48000, scoped, tag = 'scratch operand']
  %s0 = inlined_call_operand.vmem [shape: bf16[2,2,12,18,128], index: 0, kind: input, shape index: {}]
  %s1 = inlined_call_operand.vmem [shape: bf16[1152,128], index: 1, kind: input, shape index: {}]
  %s2 = inlined_call_operand.vmem [shape: f32[1,128], index: 2, kind: input, shape index: {}]
  %s3 = inlined_call_operand.vmem [shape: f32[1,128], index: 3, kind: input, shape index: {}]
  %s4 = inlined_call_operand.hbm [shape: bf16[1152,128], index: 4, kind: input, shape index: {}]
  %s5 = inlined_call_operand.vmem [shape: f32[1,128], index: 5, kind: input, shape index: {}]
  %s6 = inlined_call_operand.vmem [shape: f32[1,128], index: 6, kind: input, shape index: {}]
  %s7 = inlined_call_operand.hbm [shape: f32[2,2,128,128], index: 7, kind: output, shape index: {}]
  %s8 = sld [smem:[#allocation0]]
  $region73: #{tpu_custom_call.1} parent=0
    _
  %s10 = ssub.s32 1, %s8
  %s11 = scalar_select 0, %s10, %s8
  $region1: #{tpu_custom_call.1} parent=0
    #allocation5 [shape = 'u8[294912]{0}', space=vmem, size = 0x48000, scoped, tag = 'input window, operand 4, single buffered']
    #allocation6 [shape = 's32[2]{0}', space=sflag, size = 0x8, scoped, tag = 'scoped memory for tpu_custom_call.1']
    #allocation7 [shape = 's32[2]{0}', space=sflag, size = 0x8, scoped, tag = 'scoped memory for tpu_custom_call.1']
    #allocation8 [shape = 'u8[131072]{0}', space=vmem, size = 0x20000, scoped, tag = 'output window, operand 0']
    %12 = vsyncpa [#allocation6], 0
    %13 = vsyncpa [#allocation7], 0
    %s14 = scalar_lea.sflag [#allocation7], 1
    %15 = vsyncpa %s14, 0
    loop: start=0, step=1, limit=6
    $region2: #{tpu_custom_call.1} parent=1 // loop_pre_header
      _
    $region3: #{tpu_custom_call.1} parent=1 // loop_header
      %s17 = sphi 0, %s21
      %p18 = scmp.ge.s32.totalorder %s17, 6
      %s24 = sphi 0, %s36
      %s25 = sphi 0, %s32
      %s26 = sphi 0, %s24
      %s27 = sphi 0, %s25
      %s28 = sphi 0, %s26
      %s29 = sphi 0, %s27
      %s41 = sphi 0, %s43
      %s44 = sphi 0, %s41
      %s45 = sphi 0, %s44
      %s61 = sphi 0, %s45
      %s65 = sphi 0, %s65
      %s67 = sphi 0, %s65
      %s68 = sphi 0, %s67
      %s82 = sphi 0, %s68
      %s86 = sphi 0, %s86
      %s88 = sphi 0, %s86
      %s89 = sphi 0, %s88
      %s103 = sphi 0, %s89
      %s107 = sphi 0, %s107
      %s109 = sphi 0, %s107
      %s110 = sphi 0, %s109
      %s124 = sphi 0, %s110
      %s128 = sphi 0, %s128
      %s130 = sphi 0, %s128
      %s131 = sphi 0, %s130
      %s145 = sphi 0, %s131
      %s149 = sphi 0, %s149
      %s151 = sphi 0, %s149
      %s152 = sphi 0, %s151
      %s166 = sphi 0, %s152
      %s170 = sphi 0, %s170
      %s172 = sphi 0, %s170
      %s173 = sphi 0, %s172
      %s187 = sphi 0, %s173
      %s195 = sphi 0, %s197
      %s198 = sphi 0, %s195
      %s199 = sphi 0, %s198
      %s215 = sphi 0, %s199
    $region4: #{tpu_custom_call.1} parent=1 // loop_header_branch
      %20 = sbr.rel (%p18) target = $region8
    $region5: #{tpu_custom_call.1} parent=1 // loop_body
      %s22 = ssub.s32 %s17, 1
      %s23 = ssub.s32 %s17, 2
      %s30 = sadd.s32 1, %s25
      %p31 = scmp.ge.s32.totalorder %s30, 2
      %s32 = scalar_select %p31, 0, %s30
      %s33 = sadd.s32 1, %s24
      %s34 = scalar_select %p31, %s33, %s24
      %p35 = scmp.ge.s32.totalorder %s34, 2
      %s36 = scalar_select %p35, 0, %s34
      %s37 = ssub.s32 %s24, %s36
      %s38 = ssub.s32 %s25, %s32
      %s39 = sor.u32 %s37, %s38
      %p40 = scmp.eq.s32.totalorder %s39, 0
      %s42 = sadd.s32 %s41, 1
      %s43 = scalar_select %p40, %s41, %s42
      %p46 = pneg %p40
      %p47 = scmp.eq.s32.totalorder %s17, 3
      %p48 = por %p46, %p47
      %p49 = scmp.ne.s32.totalorder %s41, %s44
      %p50 = scmp.eq.s32.totalorder %s17, 0
      %p51 = por %p49, %p50
      %p52 = scmp.ne.s32.totalorder %s41, %s44
      %p53 = scmp.eq.s32.totalorder %s22, 3
      %p54 = por %p52, %p53
      %p55 = scmp.ne.s32.totalorder %s44, %s45
      %p56 = scmp.eq.s32.totalorder %s22, 0
      %p57 = por %p55, %p56
      %p58 = scmp.ne.s32.totalorder %s44, %s45
      %p59 = scmp.eq.s32.totalorder %s23, 3
      %p60 = por %p58, %p59
      %p62 = scmp.ne.s32.totalorder %s45, %s61
      %p63 = scmp.eq.s32.totalorder %s23, 0
      %p64 = por %p62, %p63
      %s66 = sadd.s32 %s65, 1
      %p69 = scmp.eq.s32.totalorder %s17, 3
      %p70 = scmp.ne.s32.totalorder %s65, %s67
      %p71 = scmp.eq.s32.totalorder %s17, 0
      %p72 = por %p70, %p71
      %p73 = scmp.ne.s32.totalorder %s65, %s67
      %p74 = scmp.eq.s32.totalorder %s22, 3
      %p75 = por %p73, %p74
      %p76 = scmp.ne.s32.totalorder %s67, %s68
      %p77 = scmp.eq.s32.totalorder %s22, 0
      %p78 = por %p76, %p77
      %p79 = scmp.ne.s32.totalorder %s67, %s68
      %p80 = scmp.eq.s32.totalorder %s23, 3
      %p81 = por %p79, %p80
      %p83 = scmp.ne.s32.totalorder %s68, %s82
      %p84 = scmp.eq.s32.totalorder %s23, 0
      %p85 = por %p83, %p84
      %s87 = sadd.s32 %s86, 1
      %p90 = scmp.eq.s32.totalorder %s17, 3
      %p91 = scmp.ne.s32.totalorder %s86, %s88
      %p92 = scmp.eq.s32.totalorder %s17, 0
      %p93 = por %p91, %p92
      %p94 = scmp.ne.s32.totalorder %s86, %s88
      %p95 = scmp.eq.s32.totalorder %s22, 3
      %p96 = por %p94, %p95
      %p97 = scmp.ne.s32.totalorder %s88, %s89
      %p98 = scmp.eq.s32.totalorder %s22, 0
      %p99 = por %p97, %p98
      %p100 = scmp.ne.s32.totalorder %s88, %s89
      %p101 = scmp.eq.s32.totalorder %s23, 3
      %p102 = por %p100, %p101
      %p104 = scmp.ne.s32.totalorder %s89, %s103
      %p105 = scmp.eq.s32.totalorder %s23, 0
      %p106 = por %p104, %p105
      %s108 = sadd.s32 %s107, 1
      %p111 = scmp.eq.s32.totalorder %s17, 3
      %p112 = scmp.ne.s32.totalorder %s107, %s109
      %p113 = scmp.eq.s32.totalorder %s17, 0
      %p114 = por %p112, %p113
      %p115 = scmp.ne.s32.totalorder %s107, %s109
      %p116 = scmp.eq.s32.totalorder %s22, 3
      %p117 = por %p115, %p116
      %p118 = scmp.ne.s32.totalorder %s109, %s110
      %p119 = scmp.eq.s32.totalorder %s22, 0
      %p120 = por %p118, %p119
      %p121 = scmp.ne.s32.totalorder %s109, %s110
      %p122 = scmp.eq.s32.totalorder %s23, 3
      %p123 = por %p121, %p122
      %p125 = scmp.ne.s32.totalorder %s110, %s124
      %p126 = scmp.eq.s32.totalorder %s23, 0
      %p127 = por %p125, %p126
      %s129 = sadd.s32 %s128, 1
      %p132 = scmp.eq.s32.totalorder %s17, 3
      %p133 = scmp.ne.s32.totalorder %s128, %s130
      %p134 = scmp.eq.s32.totalorder %s17, 0
      %p135 = por %p133, %p134
      %p136 = scmp.ne.s32.totalorder %s128, %s130
      %p137 = scmp.eq.s32.totalorder %s22, 3
      %p138 = por %p136, %p137
      %p139 = scmp.ne.s32.totalorder %s130, %s131
      %p140 = scmp.eq.s32.totalorder %s22, 0
      %p141 = por %p139, %p140
      %p142 = scmp.ne.s32.totalorder %s130, %s131
      %p143 = scmp.eq.s32.totalorder %s23, 3
      %p144 = por %p142, %p143
      %p146 = scmp.ne.s32.totalorder %s131, %s145
      %p147 = scmp.eq.s32.totalorder %s23, 0
      %p148 = por %p146, %p147
      %s150 = sadd.s32 %s149, 1
      %p153 = scmp.eq.s32.totalorder %s17, 3
      %p154 = scmp.ne.s32.totalorder %s149, %s151
      %p155 = scmp.eq.s32.totalorder %s17, 0
      %p156 = por %p154, %p155
      %p157 = scmp.ne.s32.totalorder %s149, %s151
      %p158 = scmp.eq.s32.totalorder %s22, 3
      %p159 = por %p157, %p158
      %p160 = scmp.ne.s32.totalorder %s151, %s152
      %p161 = scmp.eq.s32.totalorder %s22, 0
      %p162 = por %p160, %p161
      %p163 = scmp.ne.s32.totalorder %s151, %s152
      %p164 = scmp.eq.s32.totalorder %s23, 3
      %p165 = por %p163, %p164
      %p167 = scmp.ne.s32.totalorder %s152, %s166
      %p168 = scmp.eq.s32.totalorder %s23, 0
      %p169 = por %p167, %p168
      %s171 = sadd.s32 %s170, 1
      %p174 = scmp.eq.s32.totalorder %s17, 3
      %p175 = scmp.ne.s32.totalorder %s170, %s172
      %p176 = scmp.eq.s32.totalorder %s17, 0
      %p177 = por %p175, %p176
      %p178 = scmp.ne.s32.totalorder %s170, %s172
      %p179 = scmp.eq.s32.totalorder %s22, 3
      %p180 = por %p178, %p179
      %p181 = scmp.ne.s32.totalorder %s172, %s173
      %p182 = scmp.eq.s32.totalorder %s22, 0
      %p183 = por %p181, %p182
      %p184 = scmp.ne.s32.totalorder %s172, %s173
      %p185 = scmp.eq.s32.totalorder %s23, 3
      %p186 = por %p184, %p185
      %p188 = scmp.ne.s32.totalorder %s173, %s187
      %p189 = scmp.eq.s32.totalorder %s23, 0
      %p190 = por %p188, %p189
      %s191 = ssub.s32 %s24, %s36
      %s192 = ssub.s32 %s25, %s32
      %s193 = sor.u32 %s191, %s192
      %p194 = scmp.eq.s32.totalorder %s193, 0
      %s196 = sadd.s32 %s195, 1
      %s197 = scalar_select %p194, %s195, %s196
      %p200 = pneg %p194
      %p201 = scmp.eq.s32.totalorder %s17, 3
      %p202 = por %p200, %p201
      %p203 = scmp.ne.s32.totalorder %s195, %s198
      %p204 = scmp.eq.s32.totalorder %s17, 0
      %p205 = por %p203, %p204
      %p206 = scmp.ne.s32.totalorder %s195, %s198
      %p207 = scmp.eq.s32.totalorder %s22, 3
      %p208 = por %p206, %p207
      %p209 = scmp.ne.s32.totalorder %s198, %s199
      %p210 = scmp.eq.s32.totalorder %s22, 0
      %p211 = por %p209, %p210
      %p212 = scmp.ne.s32.totalorder %s198, %s199
      %p213 = scmp.eq.s32.totalorder %s23, 3
      %p214 = por %p212, %p213
      %p216 = scmp.ne.s32.totalorder %s199, %s215
      %p217 = scmp.eq.s32.totalorder %s23, 0
      %p218 = por %p216, %p217
      %p219 = scmp.le.s32.totalorder 1, %s17
      %p220 = scmp.lt.s32.totalorder %s17, 5
      %p221 = pnand %p219, %p220
      %p222 = pneg %p221
      // Predicated region
      $region9: #{tpu_custom_call.1} parent=5 // pred_check
        _
      $region10: #{tpu_custom_call.1} parent=5 // pred_check_branch
        %224 = sbr.rel (%p221) target = $region12
      $region11: #{tpu_custom_call.1} parent=5 // pred_region
        %s225 = ssub.s32 %s17, 1
        // Predicated region
        $region13: #{tpu_custom_call.1} parent=11 // pred_check
          %p226 = pneg %p78
        $region14: #{tpu_custom_call.1} parent=11 // pred_check_branch
          %228 = sbr.rel (%p226) target = $region16
        $region15: #{tpu_custom_call.1} parent=11 // pred_region
          _
        $region16: #{tpu_custom_call.1} parent=11 // pred_fallthru
          _
        // Predicated region
        $region17: #{tpu_custom_call.1} parent=11 // pred_check
          %p229 = pneg %p99
        $region18: #{tpu_custom_call.1} parent=11 // pred_check_branch
          %231 = sbr.rel (%p229) target = $region20
        $region19: #{tpu_custom_call.1} parent=11 // pred_region
          _
        $region20: #{tpu_custom_call.1} parent=11 // pred_fallthru
          _
        // Predicated region
        $region21: #{tpu_custom_call.1} parent=11 // pred_check
          %p232 = pneg %p120
        $region22: #{tpu_custom_call.1} parent=11 // pred_check_branch
          %234 = sbr.rel (%p232) target = $region24
        $region23: #{tpu_custom_call.1} parent=11 // pred_region
          _
        $region24: #{tpu_custom_call.1} parent=11 // pred_fallthru
          _
        // Predicated region
        $region25: #{tpu_custom_call.1} parent=11 // pred_check
          %p235 = pneg %p141
        $region26: #{tpu_custom_call.1} parent=11 // pred_check_branch
          %237 = sbr.rel (%p235) target = $region28
        $region27: #{tpu_custom_call.1} parent=11 // pred_region
          %s239 = ssub.s32 9216, 9216
          %240 = vsyncadd [#allocation6], %s239
          %s241 = sshll.u32 [#allocation5], 4
          %s242 = int_to_ptr.vmem [resolvable:$true] %s241
          %247 = dma.hbm_to_vmem [thread:$0]  %s4, 9216, %s242, [#allocation6], 64, 64, 4
        $region28: #{tpu_custom_call.1} parent=11 // pred_fallthru
          _
        // Predicated region
        $region29: #{tpu_custom_call.1} parent=11 // pred_check
          %p248 = pneg %p162
        $region30: #{tpu_custom_call.1} parent=11 // pred_check_branch
          %250 = sbr.rel (%p248) target = $region32
        $region31: #{tpu_custom_call.1} parent=11 // pred_region
          _
        $region32: #{tpu_custom_call.1} parent=11 // pred_fallthru
          _
        // Predicated region
        $region33: #{tpu_custom_call.1} parent=11 // pred_check
          %p251 = pneg %p183
        $region34: #{tpu_custom_call.1} parent=11 // pred_check_branch
          %253 = sbr.rel (%p251) target = $region36
        $region35: #{tpu_custom_call.1} parent=11 // pred_region
          _
        $region36: #{tpu_custom_call.1} parent=11 // pred_fallthru
          _
      $region12: #{tpu_custom_call.1} parent=5 // pred_fallthru
        _
      %p254 = scmp.lt.s32.totalorder %s17, 4
      // Predicated region
      $region37: #{tpu_custom_call.1} parent=5 // pred_check
        %p255 = pneg %p254
      $region38: #{tpu_custom_call.1} parent=5 // pred_check_branch
        %257 = sbr.rel (%p255) target = $region40
      $region39: #{tpu_custom_call.1} parent=5 // pred_region
        // Predicated region
        $region41: #{tpu_custom_call.1} parent=39 // pred_check
          %p258 = pneg %p51
        $region42: #{tpu_custom_call.1} parent=39 // pred_check_branch
          %260 = sbr.rel (%p258) target = $region44
        $region43: #{tpu_custom_call.1} parent=39 // pred_region
          %p261 = scmp.lt.s32.totalorder %s24, 1
          %s262 = scalar_select %p261, %s24, 1
          %p263 = scmp.lt.s32.totalorder %s25, 1
          %s264 = scalar_select %p263, %s25, 1
          %s265 = smul.addr %s264, 36
          %s266 = smul.addr %s262, 72
          %s267 = sadd.s32 %s265, %s266
          %s268 = smul.addr %s267, 4
          %s269 = scalar_lea.vmem %s0, %s268
        $region44: #{tpu_custom_call.1} parent=39 // pred_fallthru
          _
      $region40: #{tpu_custom_call.1} parent=5 // pred_fallthru
        _
      %p270 = scmp.le.s32.totalorder 1, %s17
      %p271 = scmp.lt.s32.totalorder %s17, 5
      %p272 = pnand %p270, %p271
      %p273 = pneg %p272
      // Predicated region
      $region45: #{tpu_custom_call.1} parent=5 // pred_check
        _
      $region46: #{tpu_custom_call.1} parent=5 // pred_check_branch
        %275 = sbr.rel (%p272) target = $region48
      $region47: #{tpu_custom_call.1} parent=5 // pred_region
        %s276 = ssub.s32 %s17, 1
        // Predicated region
        $region49: #{tpu_custom_call.1} parent=47 // pred_check
          %p277 = pneg %p141
        $region50: #{tpu_custom_call.1} parent=47 // pred_check_branch
          %279 = sbr.rel (%p277) target = $region52
        $region51: #{tpu_custom_call.1} parent=47 // pred_region
          %280 = dma.done [#allocation6], 9216
        $region52: #{tpu_custom_call.1} parent=47 // pred_fallthru
          _
        %p281 = scmp.lt.s32.totalorder %s26, 1
        %s282 = scalar_select %p281, %s26, 1
        %p283 = scmp.lt.s32.totalorder %s27, 1
        %s284 = scalar_select %p283, %s27, 1
        %s285 = smul.addr %s284, 36
        %s286 = smul.addr %s282, 72
        %s287 = sadd.s32 %s285, %s286
        %s288 = smul.addr %s287, 4
        %s289 = scalar_lea.vmem %s0, %s288
        %p290 = pneg %p57
        %p291 = pneg %p54
        %p292 = pneg %p78
        %p293 = pneg %p75
        %p294 = pneg %p99
        %p295 = pneg %p96
        %p296 = pneg %p120
        %p297 = pneg %p117
        %p298 = pneg %p141
        %p299 = pneg %p138
        %p300 = pneg %p162
        %p301 = pneg %p159
        %p302 = pneg %p183
        %p303 = pneg %p180
        %p304 = pneg %p211
        %p305 = pneg %p208
        %s306 = sand.u32 %s198, 1
        %s307 = scalar_lea.sflag [#allocation7], %s306
        %s308 = sand.u32 %s198, 1
        %s309 = smul.addr %s308, 128
        %s310 = scalar_lea.vmem [#allocation8], %s309
        %p311 = scmp.lt.s32.totalorder %s26, 1
        %s312 = scalar_select %p311, %s26, 1
        %p313 = scmp.lt.s32.totalorder %s27, 1
        %s314 = scalar_select %p313, %s27, 1
        %s315 = smul.addr %s314, 36
        %s316 = smul.addr %s312, 72
        %s317 = sadd.s32 %s315, %s316
        %s318 = smul.addr %s317, 4
        %s319 = scalar_lea.vmem %s0, %s318
        %v321 = vld [vmem:[%s319] sm:$0xf]
        %v322 = vld [vmem:[%s319 + $0x4] sm:$0xf]
        %v323 = vld [vmem:[%s319 + $0xc] sm:$0xf]
        %v324 = vld [vmem:[%s319 + $0x10] sm:$0xf]
        %v325 = vld [vmem:[%s319 + $0x18] sm:$0xf]
        %v326 = vld [vmem:[%s319 + $0x1c] sm:$0xf]
        %v327 = vld [vmem:[%s319 + $0x24] sm:$0xf]
        %v328 = vld [vmem:[%s319 + $0x28] sm:$0xf]
        %v329 = vld [vmem:[%s319 + $0x30] sm:$0xf]
        %v330 = vld [vmem:[%s319 + $0x34] sm:$0xf]
        %v331 = vld [vmem:[%s319 + $0x3c] sm:$0xf]
        %v332 = vld [vmem:[%s319 + $0x40] sm:$0xf]
        %v333 = vld [vmem:[%s319 + $0x48] sm:$0xf]
        %v334 = vld [vmem:[%s319 + $0x4c] sm:$0xf]
        %v335 = vld [vmem:[%s319 + $0x54] sm:$0xf]
        %v336 = vld [vmem:[%s319 + $0x58] sm:$0xf]
        %v337 = vld [vmem:[%s319 + $0x60] sm:$0xf]
        %v338 = vld [vmem:[%s319 + $0x64] sm:$0xf]
        %v339 = vld [vmem:[%s319 + $0x6c] sm:$0xf]
        %v340 = vld [vmem:[%s319 + $0x70] sm:$0xf]
        %341 = vst [vmem:[#allocation2] sm:$0xf] %v321
        %342 = vst [vmem:[#allocation2 + $0x24] sm:$0xf] %v322
        %343 = vst [vmem:[#allocation2 + $0x48] sm:$0xf] %v323
        %344 = vst [vmem:[#allocation2 + $0x6c] sm:$0xf] %v324
        %345 = vst [vmem:[#allocation2 + $0x90] sm:$0xf] %v325
        %346 = vst [vmem:[#allocation2 + $0xb4] sm:$0xf] %v326
        %347 = vst [vmem:[#allocation2 + $0xd8] sm:$0xf] %v327
        %348 = vst [vmem:[#allocation2 + $0xfc] sm:$0xf] %v328
        %349 = vst [vmem:[#allocation2 + $0x120] sm:$0xf] %v329
        %350 = vst [vmem:[#allocation2 + $0x144] sm:$0xf] %v330
        %351 = vst [vmem:[#allocation2 + $0x168] sm:$0xf] %v331
        %352 = vst [vmem:[#allocation2 + $0x18c] sm:$0xf] %v332
        %353 = vst [vmem:[#allocation2 + $0x1b0] sm:$0xf] %v333
        %354 = vst [vmem:[#allocation2 + $0x1d4] sm:$0xf] %v334
        %355 = vst [vmem:[#allocation2 + $0x1f8] sm:$0xf] %v335
        %356 = vst [vmem:[#allocation2 + $0x21c] sm:$0xf] %v336
        %357 = vst [vmem:[#allocation2 + $0x240] sm:$0xf] %v337
        %358 = vst [vmem:[#allocation2 + $0x264] sm:$0xf] %v338
        %359 = vst [vmem:[#allocation2 + $0x288] sm:$0xf] %v339
        %360 = vst [vmem:[#allocation2 + $0x2ac] sm:$0xf] %v340
        %v361 = vld [vmem:[%s319] sm:$0xf]
        %v362 = vld [vmem:[%s319 + $0x4] sm:$0xf]
        %v363 = vld [vmem:[%s319 + $0x8] sm:$0x1]
        %v364 = vld [vmem:[%s319 + $0xc] sm:$0xf]
        %v365 = vld [vmem:[%s319 + $0x10] sm:$0xf]
        %v366 = vld [vmem:[%s319 + $0x14] sm:$0x1]
        %v367 = vld [vmem:[%s319 + $0x18] sm:$0xf]
        %v368 = vld [vmem:[%s319 + $0x1c] sm:$0xf]
        %v369 = vld [vmem:[%s319 + $0x20] sm:$0x1]
        %v370 = vld [vmem:[%s319 + $0x24] sm:$0xf]
        %v371 = vld [vmem:[%s319 + $0x28] sm:$0xf]
        %v372 = vld [vmem:[%s319 + $0x2c] sm:$0x1]
        %v373 = vld [vmem:[%s319 + $0x30] sm:$0xf]
        %v374 = vld [vmem:[%s319 + $0x34] sm:$0xf]
        %v375 = vld [vmem:[%s319 + $0x38] sm:$0x1]
        %v376 = vld [vmem:[%s319 + $0x3c] sm:$0xf]
        %v377 = vld [vmem:[%s319 + $0x40] sm:$0xf]
        %v378 = vld [vmem:[%s319 + $0x44] sm:$0x1]
        %v379 = vld [vmem:[%s319 + $0x48] sm:$0xf]
        %v380 = vld [vmem:[%s319 + $0x4c] sm:$0xf]
        %v381 = vld [vmem:[%s319 + $0x50] sm:$0x1]
        %v382 = vld [vmem:[%s319 + $0x54] sm:$0xf]
        %v383 = vld [vmem:[%s319 + $0x58] sm:$0xf]
        %v384 = vld [vmem:[%s319 + $0x5c] sm:$0x1]
        %v385 = vld [vmem:[%s319 + $0x60] sm:$0xf]
        %v386 = vld [vmem:[%s319 + $0x64] sm:$0xf]
        %v387 = vld [vmem:[%s319 + $0x68] sm:$0x1]
        %v388 = vld [vmem:[%s319 + $0x6c] sm:$0xf]
        %v389 = vld [vmem:[%s319 + $0x70] sm:$0xf]
        %v390 = vld [vmem:[%s319 + $0x74] sm:$0x1]
        %vm391 = vsmask.f32 3328
        %vm392 = vsmask.f32 7440
        %vm393 = vmor %vm391, %vm392
        %v395 = vshrl.u32 %v361, 16
        %v397 = vrot.slane %v395, 4
        %v398 = vshll.u32 %v361, 16
        %v400 = vrot.slane %v398, 5
        %v401 = vor.u32 %v397, %v400
        %v402 = vrot.slane %v401, 4
        %v404 = vshll.u32 %v362, 16
        %v406 = vrot.slane %v404, 5
        %v407 = vsel %vm393, %v402, %v406
        %v408 = vshrl.u32 %v362, 16
        %v410 = vrot.slane %v408, 4
        %v411 = vor.u32 %v410, %v406
        %v412 = vrot.slane %v411, 4
        %v414 = vshll.u32 %v363, 16
        %v416 = vrot.slane %v414, 5
        %v417 = vsel %vm393, %v412, %v416
        %v419 = vshrl.u32 %v364, 16
        %v421 = vrot.slane %v419, 4
        %v422 = vshll.u32 %v364, 16
        %v424 = vrot.slane %v422, 5
        %v425 = vor.u32 %v421, %v424
        %v426 = vrot.slane %v425, 4
        %v428 = vshll.u32 %v365, 16
        %v430 = vrot.slane %v428, 5
        %v431 = vsel %vm393, %v426, %v430
        %v432 = vshrl.u32 %v365, 16
        %v434 = vrot.slane %v432, 4
        %v435 = vor.u32 %v434, %v430
        %v436 = vrot.slane %v435, 4
        %v438 = vshll.u32 %v366, 16
        %v440 = vrot.slane %v438, 5
        %v441 = vsel %vm393, %v436, %v440
        %v443 = vshrl.u32 %v367, 16
        %v445 = vrot.slane %v443, 4
        %v446 = vshll.u32 %v367, 16
        %v448 = vrot.slane %v446, 5
        %v449 = vor.u32 %v445, %v448
        %v450 = vrot.slane %v449, 4
        %v452 = vshll.u32 %v368, 16
        %v454 = vrot.slane %v452, 5
        %v455 = vsel %vm393, %v450, %v454
        %v456 = vshrl.u32 %v368, 16
        %v458 = vrot.slane %v456, 4
        %v459 = vor.u32 %v458, %v454
        %v460 = vrot.slane %v459, 4
        %v462 = vshll.u32 %v369, 16
        %v464 = vrot.slane %v462, 5
        %v465 = vsel %vm393, %v460, %v464
        %v467 = vshrl.u32 %v370, 16
        %v469 = vrot.slane %v467, 4
        %v470 = vshll.u32 %v370, 16
        %v472 = vrot.slane %v470, 5
        %v473 = vor.u32 %v469, %v472
        %v474 = vrot.slane %v473, 4
        %v476 = vshll.u32 %v371, 16
        %v478 = vrot.slane %v476, 5
        %v479 = vsel %vm393, %v474, %v478
        %v480 = vshrl.u32 %v371, 16
        %v482 = vrot.slane %v480, 4
        %v483 = vor.u32 %v482, %v478
        %v484 = vrot.slane %v483, 4
        %v486 = vshll.u32 %v372, 16
        %v488 = vrot.slane %v486, 5
        %v489 = vsel %vm393, %v484, %v488
        %v491 = vshrl.u32 %v373, 16
        %v493 = vrot.slane %v491, 4
        %v494 = vshll.u32 %v373, 16
        %v496 = vrot.slane %v494, 5
        %v497 = vor.u32 %v493, %v496
        %v498 = vrot.slane %v497, 4
        %v500 = vshll.u32 %v374, 16
        %v502 = vrot.slane %v500, 5
        %v503 = vsel %vm393, %v498, %v502
        %v504 = vshrl.u32 %v374, 16
        %v506 = vrot.slane %v504, 4
        %v507 = vor.u32 %v506, %v502
        %v508 = vrot.slane %v507, 4
        %v510 = vshll.u32 %v375, 16
        %v512 = vrot.slane %v510, 5
        %v513 = vsel %vm393, %v508, %v512
        %v515 = vshrl.u32 %v376, 16
        %v517 = vrot.slane %v515, 4
        %v518 = vshll.u32 %v376, 16
        %v520 = vrot.slane %v518, 5
        %v521 = vor.u32 %v517, %v520
        %v522 = vrot.slane %v521, 4
        %v524 = vshll.u32 %v377, 16
        %v526 = vrot.slane %v524, 5
        %v527 = vsel %vm393, %v522, %v526
        %v528 = vshrl.u32 %v377, 16
        %v530 = vrot.slane %v528, 4
        %v531 = vor.u32 %v530, %v526
        %v532 = vrot.slane %v531, 4
        %v534 = vshll.u32 %v378, 16
        %v536 = vrot.slane %v534, 5
        %v537 = vsel %vm393, %v532, %v536
        %v539 = vshrl.u32 %v379, 16
        %v541 = vrot.slane %v539, 4
        %v542 = vshll.u32 %v379, 16
        %v544 = vrot.slane %v542, 5
        %v545 = vor.u32 %v541, %v544
        %v546 = vrot.slane %v545, 4
        %v548 = vshll.u32 %v380, 16
        %v550 = vrot.slane %v548, 5
        %v551 = vsel %vm393, %v546, %v550
        %v552 = vshrl.u32 %v380, 16
        %v554 = vrot.slane %v552, 4
        %v555 = vor.u32 %v554, %v550
        %v556 = vrot.slane %v555, 4
        %v558 = vshll.u32 %v381, 16
        %v560 = vrot.slane %v558, 5
        %v561 = vsel %vm393, %v556, %v560
        %v563 = vshrl.u32 %v382, 16
        %v565 = vrot.slane %v563, 4
        %v566 = vshll.u32 %v382, 16
        %v568 = vrot.slane %v566, 5
        %v569 = vor.u32 %v565, %v568
        %v570 = vrot.slane %v569, 4
        %v572 = vshll.u32 %v383, 16
        %v574 = vrot.slane %v572, 5
        %v575 = vsel %vm393, %v570, %v574
        %v576 = vshrl.u32 %v383, 16
        %v578 = vrot.slane %v576, 4
        %v579 = vor.u32 %v578, %v574
        %v580 = vrot.slane %v579, 4
        %v582 = vshll.u32 %v384, 16
        %v584 = vrot.slane %v582, 5
        %v585 = vsel %vm393, %v580, %v584
        %v587 = vshrl.u32 %v385, 16
        %v589 = vrot.slane %v587, 4
        %v590 = vshll.u32 %v385, 16
        %v592 = vrot.slane %v590, 5
        %v593 = vor.u32 %v589, %v592
        %v594 = vrot.slane %v593, 4
        %v596 = vshll.u32 %v386, 16
        %v598 = vrot.slane %v596, 5
        %v599 = vsel %vm393, %v594, %v598
        %v600 = vshrl.u32 %v386, 16
        %v602 = vrot.slane %v600, 4
        %v603 = vor.u32 %v602, %v598
        %v604 = vrot.slane %v603, 4
        %v606 = vshll.u32 %v387, 16
        %v608 = vrot.slane %v606, 5
        %v609 = vsel %vm393, %v604, %v608
        %v611 = vshrl.u32 %v388, 16
        %v613 = vrot.slane %v611, 4
        %v614 = vshll.u32 %v388, 16
        %v616 = vrot.slane %v614, 5
        %v617 = vor.u32 %v613, %v616
        %v618 = vrot.slane %v617, 4
        %v620 = vshll.u32 %v389, 16
        %v622 = vrot.slane %v620, 5
        %v623 = vsel %vm393, %v618, %v622
        %v624 = vshrl.u32 %v389, 16
        %v626 = vrot.slane %v624, 4
        %v627 = vor.u32 %v626, %v622
        %v628 = vrot.slane %v627, 4
        %v630 = vshll.u32 %v390, 16
        %v632 = vrot.slane %v630, 5
        %v633 = vsel %vm393, %v628, %v632
        %654 = vst [vmem:[#allocation2 + $0x4] sm:$0xf] %v407
        %655 = vst [vmem:[#allocation2 + $0x28] sm:$0xf] %v417
        %656 = vst [vmem:[#allocation2 + $0x4c] sm:$0xf] %v431
        %657 = vst [vmem:[#allocation2 + $0x70] sm:$0xf] %v441
        %658 = vst [vmem:[#allocation2 + $0x94] sm:$0xf] %v455
        %659 = vst [vmem:[#allocation2 + $0xb8] sm:$0xf] %v465
        %660 = vst [vmem:[#allocation2 + $0xdc] sm:$0xf] %v479
        %661 = vst [vmem:[#allocation2 + $0x100] sm:$0xf] %v489
        %662 = vst [vmem:[#allocation2 + $0x124] sm:$0xf] %v503
        %663 = vst [vmem:[#allocation2 + $0x148] sm:$0xf] %v513
        %664 = vst [vmem:[#allocation2 + $0x16c] sm:$0xf] %v527
        %665 = vst [vmem:[#allocation2 + $0x190] sm:$0xf] %v537
        %666 = vst [vmem:[#allocation2 + $0x1b4] sm:$0xf] %v551
        %667 = vst [vmem:[#allocation2 + $0x1d8] sm:$0xf] %v561
        %668 = vst [vmem:[#allocation2 + $0x1fc] sm:$0xf] %v575
        %669 = vst [vmem:[#allocation2 + $0x220] sm:$0xf] %v585
        %670 = vst [vmem:[#allocation2 + $0x244] sm:$0xf] %v599
        %671 = vst [vmem:[#allocation2 + $0x268] sm:$0xf] %v609
        %672 = vst [vmem:[#allocation2 + $0x28c] sm:$0xf] %v623
        %673 = vst [vmem:[#allocation2 + $0x2b0] sm:$0xf] %v633
        %v674 = vld [vmem:[%s319] sm:$0xe]
        %v675 = vld [vmem:[%s319 + $0x4] sm:$0xf]
        %v676 = vld [vmem:[%s319 + $0x8] sm:$0x1]
        %v677 = vld [vmem:[%s319 + $0xc] sm:$0xe]
        %v678 = vld [vmem:[%s319 + $0x10] sm:$0xf]
        %v679 = vld [vmem:[%s319 + $0x14] sm:$0x1]
        %v680 = vld [vmem:[%s319 + $0x18] sm:$0xe]
        %v681 = vld [vmem:[%s319 + $0x1c] sm:$0xf]
        %v682 = vld [vmem:[%s319 + $0x20] sm:$0x1]
        %v683 = vld [vmem:[%s319 + $0x24] sm:$0xe]
        %v684 = vld [vmem:[%s319 + $0x28] sm:$0xf]
        %v685 = vld [vmem:[%s319 + $0x2c] sm:$0x1]
        %v686 = vld [vmem:[%s319 + $0x30] sm:$0xe]
        %v687 = vld [vmem:[%s319 + $0x34] sm:$0xf]
        %v688 = vld [vmem:[%s319 + $0x38] sm:$0x1]
        %v689 = vld [vmem:[%s319 + $0x3c] sm:$0xe]
        %v690 = vld [vmem:[%s319 + $0x40] sm:$0xf]
        %v691 = vld [vmem:[%s319 + $0x44] sm:$0x1]
        %v692 = vld [vmem:[%s319 + $0x48] sm:$0xe]
        %v693 = vld [vmem:[%s319 + $0x4c] sm:$0xf]
        %v694 = vld [vmem:[%s319 + $0x50] sm:$0x1]
        %v695 = vld [vmem:[%s319 + $0x54] sm:$0xe]
        %v696 = vld [vmem:[%s319 + $0x58] sm:$0xf]
        %v697 = vld [vmem:[%s319 + $0x5c] sm:$0x1]
        %v698 = vld [vmem:[%s319 + $0x60] sm:$0xe]
        %v699 = vld [vmem:[%s319 + $0x64] sm:$0xf]
        %v700 = vld [vmem:[%s319 + $0x68] sm:$0x1]
        %v701 = vld [vmem:[%s319 + $0x6c] sm:$0xe]
        %v702 = vld [vmem:[%s319 + $0x70] sm:$0xf]
        %v703 = vld [vmem:[%s319 + $0x74] sm:$0x1]
        %vm734 = vcmask 1042432
        %vm735 = vcmask 1046532
        %vm736 = vmor %vm734, %vm735
        %v737 = vrot.slane %v674, 5
        %v738 = vrot.slane %v737, 4
        %v739 = vrot.slane %v675, 5
        %v740 = vsel %vm736, %v738, %v739
        %v741 = vrot.slane %v739, 4
        %v742 = vrot.slane %v676, 5
        %v743 = vsel %vm736, %v741, %v742
        %v744 = vrot.slane %v677, 5
        %v745 = vrot.slane %v744, 4
        %v746 = vrot.slane %v678, 5
        %v747 = vsel %vm736, %v745, %v746
        %v748 = vrot.slane %v746, 4
        %v749 = vrot.slane %v679, 5
        %v750 = vsel %vm736, %v748, %v749
        %v751 = vrot.slane %v680, 5
        %v752 = vrot.slane %v751, 4
        %v753 = vrot.slane %v681, 5
        %v754 = vsel %vm736, %v752, %v753
        %v755 = vrot.slane %v753, 4
        %v756 = vrot.slane %v682, 5
        %v757 = vsel %vm736, %v755, %v756
        %v758 = vrot.slane %v683, 5
        %v759 = vrot.slane %v758, 4
        %v760 = vrot.slane %v684, 5
        %v761 = vsel %vm736, %v759, %v760
        %v762 = vrot.slane %v760, 4
        %v763 = vrot.slane %v685, 5
        %v764 = vsel %vm736, %v762, %v763
        %v765 = vrot.slane %v686, 5
        %v766 = vrot.slane %v765, 4
        %v767 = vrot.slane %v687, 5
        %v768 = vsel %vm736, %v766, %v767
        %v769 = vrot.slane %v767, 4
        %v770 = vrot.slane %v688, 5
        %v771 = vsel %vm736, %v769, %v770
        %v772 = vrot.slane %v689, 5
        %v773 = vrot.slane %v772, 4
        %v774 = vrot.slane %v690, 5
        %v775 = vsel %vm736, %v773, %v774
        %v776 = vrot.slane %v774, 4
        %v777 = vrot.slane %v691, 5
        %v778 = vsel %vm736, %v776, %v777
        %v779 = vrot.slane %v692, 5
        %v780 = vrot.slane %v779, 4
        %v781 = vrot.slane %v693, 5
        %v782 = vsel %vm736, %v780, %v781
        %v783 = vrot.slane %v781, 4
        %v784 = vrot.slane %v694, 5
        %v785 = vsel %vm736, %v783, %v784
        %v786 = vrot.slane %v695, 5
        %v787 = vrot.slane %v786, 4
        %v788 = vrot.slane %v696, 5
        %v789 = vsel %vm736, %v787, %v788
        %v790 = vrot.slane %v788, 4
        %v791 = vrot.slane %v697, 5
        %v792 = vsel %vm736, %v790, %v791
        %v793 = vrot.slane %v698, 5
        %v794 = vrot.slane %v793, 4
        %v795 = vrot.slane %v699, 5
        %v796 = vsel %vm736, %v794, %v795
        %v797 = vrot.slane %v795, 4
        %v798 = vrot.slane %v700, 5
        %v799 = vsel %vm736, %v797, %v798
        %v800 = vrot.slane %v701, 5
        %v801 = vrot.slane %v800, 4
        %v802 = vrot.slane %v702, 5
        %v803 = vsel %vm736, %v801, %v802
        %v804 = vrot.slane %v802, 4
        %v805 = vrot.slane %v703, 5
        %v806 = vsel %vm736, %v804, %v805
        %827 = vst [vmem:[#allocation2 + $0x8] sm:$0xf] %v740
        %828 = vst [vmem:[#allocation2 + $0x2c] sm:$0xf] %v743
        %829 = vst [vmem:[#allocation2 + $0x50] sm:$0xf] %v747
        %830 = vst [vmem:[#allocation2 + $0x74] sm:$0xf] %v750
        %831 = vst [vmem:[#allocation2 + $0x98] sm:$0xf] %v754
        %832 = vst [vmem:[#allocation2 + $0xbc] sm:$0xf] %v757
        %833 = vst [vmem:[#allocation2 + $0xe0] sm:$0xf] %v761
        %834 = vst [vmem:[#allocation2 + $0x104] sm:$0xf] %v764
        %835 = vst [vmem:[#allocation2 + $0x128] sm:$0xf] %v768
        %836 = vst [vmem:[#allocation2 + $0x14c] sm:$0xf] %v771
        %837 = vst [vmem:[#allocation2 + $0x170] sm:$0xf] %v775
        %838 = vst [vmem:[#allocation2 + $0x194] sm:$0xf] %v778
        %839 = vst [vmem:[#allocation2 + $0x1b8] sm:$0xf] %v782
        %840 = vst [vmem:[#allocation2 + $0x1dc] sm:$0xf] %v785
        %841 = vst [vmem:[#allocation2 + $0x200] sm:$0xf] %v789
        %842 = vst [vmem:[#allocation2 + $0x224] sm:$0xf] %v792
        %843 = vst [vmem:[#allocation2 + $0x248] sm:$0xf] %v796
        %844 = vst [vmem:[#allocation2 + $0x26c] sm:$0xf] %v799
        %845 = vst [vmem:[#allocation2 + $0x290] sm:$0xf] %v803
        %846 = vst [vmem:[#allocation2 + $0x2b4] sm:$0xf] %v806
        %s847 = scalar_lea.vmem %s319, 12
        %v848 = vld [vmem:[%s847] sm:$0xf]
        %v849 = vld [vmem:[%s847 + $0x4] sm:$0xf]
        %v850 = vld [vmem:[%s847 + $0xc] sm:$0xf]
        %v851 = vld [vmem:[%s847 + $0x10] sm:$0xf]
        %v852 = vld [vmem:[%s847 + $0x18] sm:$0xf]
        %v853 = vld [vmem:[%s847 + $0x1c] sm:$0xf]
        %v854 = vld [vmem:[%s847 + $0x24] sm:$0xf]
        %v855 = vld [vmem:[%s847 + $0x28] sm:$0xf]
        %v856 = vld [vmem:[%s847 + $0x30] sm:$0xf]
        %v857 = vld [vmem:[%s847 + $0x34] sm:$0xf]
        %v858 = vld [vmem:[%s847 + $0x3c] sm:$0xf]
        %v859 = vld [vmem:[%s847 + $0x40] sm:$0xf]
        %v860 = vld [vmem:[%s847 + $0x48] sm:$0xf]
        %v861 = vld [vmem:[%s847 + $0x4c] sm:$0xf]
        %v862 = vld [vmem:[%s847 + $0x54] sm:$0xf]
        %v863 = vld [vmem:[%s847 + $0x58] sm:$0xf]
        %v864 = vld [vmem:[%s847 + $0x60] sm:$0xf]
        %v865 = vld [vmem:[%s847 + $0x64] sm:$0xf]
        %v866 = vld [vmem:[%s847 + $0x6c] sm:$0xf]
        %v867 = vld [vmem:[%s847 + $0x70] sm:$0xf]
        %868 = vst [vmem:[#allocation2 + $0xc] sm:$0xf] %v848
        %869 = vst [vmem:[#allocation2 + $0x30] sm:$0xf] %v849
        %870 = vst [vmem:[#allocation2 + $0x54] sm:$0xf] %v850
        %871 = vst [vmem:[#allocation2 + $0x78] sm:$0xf] %v851
        %872 = vst [vmem:[#allocation2 + $0x9c] sm:$0xf] %v852
        %873 = vst [vmem:[#allocation2 + $0xc0] sm:$0xf] %v853
        %874 = vst [vmem:[#allocation2 + $0xe4] sm:$0xf] %v854
        %875 = vst [vmem:[#allocation2 + $0x108] sm:$0xf] %v855
        %876 = vst [vmem:[#allocation2 + $0x12c] sm:$0xf] %v856
        %877 = vst [vmem:[#allocation2 + $0x150] sm:$0xf] %v857
        %878 = vst [vmem:[#allocation2 + $0x174] sm:$0xf] %v858
        %879 = vst [vmem:[#allocation2 + $0x198] sm:$0xf] %v859
        %880 = vst [vmem:[#allocation2 + $0x1bc] sm:$0xf] %v860
        %881 = vst [vmem:[#allocation2 + $0x1e0] sm:$0xf] %v861
        %882 = vst [vmem:[#allocation2 + $0x204] sm:$0xf] %v862
        %883 = vst [vmem:[#allocation2 + $0x228] sm:$0xf] %v863
        %884 = vst [vmem:[#allocation2 + $0x24c] sm:$0xf] %v864
        %885 = vst [vmem:[#allocation2 + $0x270] sm:$0xf] %v865
        %886 = vst [vmem:[#allocation2 + $0x294] sm:$0xf] %v866
        %887 = vst [vmem:[#allocation2 + $0x2b8] sm:$0xf] %v867
        %v888 = vld [vmem:[%s847] sm:$0xf]
        %v889 = vld [vmem:[%s847 + $0x4] sm:$0xf]
        %v890 = vld [vmem:[%s847 + $0x8] sm:$0x1]
        %v891 = vld [vmem:[%s847 + $0xc] sm:$0xf]
        %v892 = vld [vmem:[%s847 + $0x10] sm:$0xf]
        %v893 = vld [vmem:[%s847 + $0x14] sm:$0x1]
        %v894 = vld [vmem:[%s847 + $0x18] sm:$0xf]
        %v895 = vld [vmem:[%s847 + $0x1c] sm:$0xf]
        %v896 = vld [vmem:[%s847 + $0x20] sm:$0x1]
        %v897 = vld [vmem:[%s847 + $0x24] sm:$0xf]
        %v898 = vld [vmem:[%s847 + $0x28] sm:$0xf]
        %v899 = vld [vmem:[%s847 + $0x2c] sm:$0x1]
        %v900 = vld [vmem:[%s847 + $0x30] sm:$0xf]
        %v901 = vld [vmem:[%s847 + $0x34] sm:$0xf]
        %v902 = vld [vmem:[%s847 + $0x38] sm:$0x1]
        %v903 = vld [vmem:[%s847 + $0x3c] sm:$0xf]
        %v904 = vld [vmem:[%s847 + $0x40] sm:$0xf]
        %v905 = vld [vmem:[%s847 + $0x44] sm:$0x1]
        %v906 = vld [vmem:[%s847 + $0x48] sm:$0xf]
        %v907 = vld [vmem:[%s847 + $0x4c] sm:$0xf]
        %v908 = vld [vmem:[%s847 + $0x50] sm:$0x1]
        %v909 = vld [vmem:[%s847 + $0x54] sm:$0xf]
        %v910 = vld [vmem:[%s847 + $0x58] sm:$0xf]
        %v911 = vld [vmem:[%s847 + $0x5c] sm:$0x1]
        %v912 = vld [vmem:[%s847 + $0x60] sm:$0xf]
        %v913 = vld [vmem:[%s847 + $0x64] sm:$0xf]
        %v914 = vld [vmem:[%s847 + $0x68] sm:$0x1]
        %v915 = vld [vmem:[%s847 + $0x6c] sm:$0xf]
        %v916 = vld [vmem:[%s847 + $0x70] sm:$0xf]
        %v917 = vld [vmem:[%s847 + $0x74] sm:$0x1]
        %v919 = vshrl.u32 %v888, 16
        %v921 = vrot.slane %v919, 4
        %v922 = vshll.u32 %v888, 16
        %v924 = vrot.slane %v922, 5
        %v925 = vor.u32 %v921, %v924
        %v926 = vrot.slane %v925, 4
        %v928 = vshll.u32 %v889, 16
        %v930 = vrot.slane %v928, 5
        %v931 = vsel %vm393, %v926, %v930
        %v932 = vshrl.u32 %v889, 16
        %v934 = vrot.slane %v932, 4
        %v935 = vor.u32 %v934, %v930
        %v936 = vrot.slane %v935, 4
        %v938 = vshll.u32 %v890, 16
        %v940 = vrot.slane %v938, 5
        %v941 = vsel %vm393, %v936, %v940
        %v943 = vshrl.u32 %v891, 16
        %v945 = vrot.slane %v943, 4
        %v946 = vshll.u32 %v891, 16
        %v948 = vrot.slane %v946, 5
        %v949 = vor.u32 %v945, %v948
        %v950 = vrot.slane %v949, 4
        %v952 = vshll.u32 %v892, 16
        %v954 = vrot.slane %v952, 5
        %v955 = vsel %vm393, %v950, %v954
        %v956 = vshrl.u32 %v892, 16
        %v958 = vrot.slane %v956, 4
        %v959 = vor.u32 %v958, %v954
        %v960 = vrot.slane %v959, 4
        %v962 = vshll.u32 %v893, 16
        %v964 = vrot.slane %v962, 5
        %v965 = vsel %vm393, %v960, %v964
        %v967 = vshrl.u32 %v894, 16
        %v969 = vrot.slane %v967, 4
        %v970 = vshll.u32 %v894, 16
        %v972 = vrot.slane %v970, 5
        %v973 = vor.u32 %v969, %v972
        %v974 = vrot.slane %v973, 4
        %v976 = vshll.u32 %v895, 16
        %v978 = vrot.slane %v976, 5
        %v979 = vsel %vm393, %v974, %v978
        %v980 = vshrl.u32 %v895, 16
        %v982 = vrot.slane %v980, 4
        %v983 = vor.u32 %v982, %v978
        %v984 = vrot.slane %v983, 4
        %v986 = vshll.u32 %v896, 16
        %v988 = vrot.slane %v986, 5
        %v989 = vsel %vm393, %v984, %v988
        %v991 = vshrl.u32 %v897, 16
        %v993 = vrot.slane %v991, 4
        %v994 = vshll.u32 %v897, 16
        %v996 = vrot.slane %v994, 5
        %v997 = vor.u32 %v993, %v996
        %v998 = vrot.slane %v997, 4
        %v1000 = vshll.u32 %v898, 16
        %v1002 = vrot.slane %v1000, 5
        %v1003 = vsel %vm393, %v998, %v1002
        %v1004 = vshrl.u32 %v898, 16
        %v1006 = vrot.slane %v1004, 4
        %v1007 = vor.u32 %v1006, %v1002
        %v1008 = vrot.slane %v1007, 4
        %v1010 = vshll.u32 %v899, 16
        %v1012 = vrot.slane %v1010, 5
        %v1013 = vsel %vm393, %v1008, %v1012
        %v1015 = vshrl.u32 %v900, 16
        %v1017 = vrot.slane %v1015, 4
        %v1018 = vshll.u32 %v900, 16
        %v1020 = vrot.slane %v1018, 5
        %v1021 = vor.u32 %v1017, %v1020
        %v1022 = vrot.slane %v1021, 4
        %v1024 = vshll.u32 %v901, 16
        %v1026 = vrot.slane %v1024, 5
        %v1027 = vsel %vm393, %v1022, %v1026
        %v1028 = vshrl.u32 %v901, 16
        %v1030 = vrot.slane %v1028, 4
        %v1031 = vor.u32 %v1030, %v1026
        %v1032 = vrot.slane %v1031, 4
        %v1034 = vshll.u32 %v902, 16
        %v1036 = vrot.slane %v1034, 5
        %v1037 = vsel %vm393, %v1032, %v1036
        %v1039 = vshrl.u32 %v903, 16
        %v1041 = vrot.slane %v1039, 4
        %v1042 = vshll.u32 %v903, 16
        %v1044 = vrot.slane %v1042, 5
        %v1045 = vor.u32 %v1041, %v1044
        %v1046 = vrot.slane %v1045, 4
        %v1048 = vshll.u32 %v904, 16
        %v1050 = vrot.slane %v1048, 5
        %v1051 = vsel %vm393, %v1046, %v1050
        %v1052 = vshrl.u32 %v904, 16
        %v1054 = vrot.slane %v1052, 4
        %v1055 = vor.u32 %v1054, %v1050
        %v1056 = vrot.slane %v1055, 4
        %v1058 = vshll.u32 %v905, 16
        %v1060 = vrot.slane %v1058, 5
        %v1061 = vsel %vm393, %v1056, %v1060
        %v1063 = vshrl.u32 %v906, 16
        %v1065 = vrot.slane %v1063, 4
        %v1066 = vshll.u32 %v906, 16
        %v1068 = vrot.slane %v1066, 5
        %v1069 = vor.u32 %v1065, %v1068
        %v1070 = vrot.slane %v1069, 4
        %v1072 = vshll.u32 %v907, 16
        %v1074 = vrot.slane %v1072, 5
        %v1075 = vsel %vm393, %v1070, %v1074
        %v1076 = vshrl.u32 %v907, 16
        %v1078 = vrot.slane %v1076, 4
        %v1079 = vor.u32 %v1078, %v1074
        %v1080 = vrot.slane %v1079, 4
        %v1082 = vshll.u32 %v908, 16
        %v1084 = vrot.slane %v1082, 5
        %v1085 = vsel %vm393, %v1080, %v1084
        %v1087 = vshrl.u32 %v909, 16
        %v1089 = vrot.slane %v1087, 4
        %v1090 = vshll.u32 %v909, 16
        %v1092 = vrot.slane %v1090, 5
        %v1093 = vor.u32 %v1089, %v1092
        %v1094 = vrot.slane %v1093, 4
        %v1096 = vshll.u32 %v910, 16
        %v1098 = vrot.slane %v1096, 5
        %v1099 = vsel %vm393, %v1094, %v1098
        %v1100 = vshrl.u32 %v910, 16
        %v1102 = vrot.slane %v1100, 4
        %v1103 = vor.u32 %v1102, %v1098
        %v1104 = vrot.slane %v1103, 4
        %v1106 = vshll.u32 %v911, 16
        %v1108 = vrot.slane %v1106, 5
        %v1109 = vsel %vm393, %v1104, %v1108
        %v1111 = vshrl.u32 %v912, 16
        %v1113 = vrot.slane %v1111, 4
        %v1114 = vshll.u32 %v912, 16
        %v1116 = vrot.slane %v1114, 5
        %v1117 = vor.u32 %v1113, %v1116
        %v1118 = vrot.slane %v1117, 4
        %v1120 = vshll.u32 %v913, 16
        %v1122 = vrot.slane %v1120, 5
        %v1123 = vsel %vm393, %v1118, %v1122
        %v1124 = vshrl.u32 %v913, 16
        %v1126 = vrot.slane %v1124, 4
        %v1127 = vor.u32 %v1126, %v1122
        %v1128 = vrot.slane %v1127, 4
        %v1130 = vshll.u32 %v914, 16
        %v1132 = vrot.slane %v1130, 5
        %v1133 = vsel %vm393, %v1128, %v1132
        %v1135 = vshrl.u32 %v915, 16
        %v1137 = vrot.slane %v1135, 4
        %v1138 = vshll.u32 %v915, 16
        %v1140 = vrot.slane %v1138, 5
        %v1141 = vor.u32 %v1137, %v1140
        %v1142 = vrot.slane %v1141, 4
        %v1144 = vshll.u32 %v916, 16
        %v1146 = vrot.slane %v1144, 5
        %v1147 = vsel %vm393, %v1142, %v1146
        %v1148 = vshrl.u32 %v916, 16
        %v1150 = vrot.slane %v1148, 4
        %v1151 = vor.u32 %v1150, %v1146
        %v1152 = vrot.slane %v1151, 4
        %v1154 = vshll.u32 %v917, 16
        %v1156 = vrot.slane %v1154, 5
        %v1157 = vsel %vm393, %v1152, %v1156
        %1178 = vst [vmem:[#allocation2 + $0x10] sm:$0xf] %v931
        %1179 = vst [vmem:[#allocation2 + $0x34] sm:$0xf] %v941
        %1180 = vst [vmem:[#allocation2 + $0x58] sm:$0xf] %v955
        %1181 = vst [vmem:[#allocation2 + $0x7c] sm:$0xf] %v965
        %1182 = vst [vmem:[#allocation2 + $0xa0] sm:$0xf] %v979
        %1183 = vst [vmem:[#allocation2 + $0xc4] sm:$0xf] %v989
        %1184 = vst [vmem:[#allocation2 + $0xe8] sm:$0xf] %v1003
        %1185 = vst [vmem:[#allocation2 + $0x10c] sm:$0xf] %v1013
        %1186 = vst [vmem:[#allocation2 + $0x130] sm:$0xf] %v1027
        %1187 = vst [vmem:[#allocation2 + $0x154] sm:$0xf] %v1037
        %1188 = vst [vmem:[#allocation2 + $0x178] sm:$0xf] %v1051
        %1189 = vst [vmem:[#allocation2 + $0x19c] sm:$0xf] %v1061
        %1190 = vst [vmem:[#allocation2 + $0x1c0] sm:$0xf] %v1075
        %1191 = vst [vmem:[#allocation2 + $0x1e4] sm:$0xf] %v1085
        %1192 = vst [vmem:[#allocation2 + $0x208] sm:$0xf] %v1099
        %1193 = vst [vmem:[#allocation2 + $0x22c] sm:$0xf] %v1109
        %1194 = vst [vmem:[#allocation2 + $0x250] sm:$0xf] %v1123
        %1195 = vst [vmem:[#allocation2 + $0x274] sm:$0xf] %v1133
        %1196 = vst [vmem:[#allocation2 + $0x298] sm:$0xf] %v1147
        %1197 = vst [vmem:[#allocation2 + $0x2bc] sm:$0xf] %v1157
        %v1198 = vld [vmem:[%s847] sm:$0xe]
        %v1199 = vld [vmem:[%s847 + $0x4] sm:$0xf]
        %v1200 = vld [vmem:[%s847 + $0x8] sm:$0x1]
        %v1201 = vld [vmem:[%s847 + $0xc] sm:$0xe]
        %v1202 = vld [vmem:[%s847 + $0x10] sm:$0xf]
        %v1203 = vld [vmem:[%s847 + $0x14] sm:$0x1]
        %v1204 = vld [vmem:[%s847 + $0x18] sm:$0xe]
        %v1205 = vld [vmem:[%s847 + $0x1c] sm:$0xf]
        %v1206 = vld [vmem:[%s847 + $0x20] sm:$0x1]
        %v1207 = vld [vmem:[%s847 + $0x24] sm:$0xe]
        %v1208 = vld [vmem:[%s847 + $0x28] sm:$0xf]
        %v1209 = vld [vmem:[%s847 + $0x2c] sm:$0x1]
        %v1210 = vld [vmem:[%s847 + $0x30] sm:$0xe]
        %v1211 = vld [vmem:[%s847 + $0x34] sm:$0xf]
        %v1212 = vld [vmem:[%s847 + $0x38] sm:$0x1]
        %v1213 = vld [vmem:[%s847 + $0x3c] sm:$0xe]
        %v1214 = vld [vmem:[%s847 + $0x40] sm:$0xf]
        %v1215 = vld [vmem:[%s847 + $0x44] sm:$0x1]
        %v1216 = vld [vmem:[%s847 + $0x48] sm:$0xe]
        %v1217 = vld [vmem:[%s847 + $0x4c] sm:$0xf]
        %v1218 = vld [vmem:[%s847 + $0x50] sm:$0x1]
        %v1219 = vld [vmem:[%s847 + $0x54] sm:$0xe]
        %v1220 = vld [vmem:[%s847 + $0x58] sm:$0xf]
        %v1221 = vld [vmem:[%s847 + $0x5c] sm:$0x1]
        %v1222 = vld [vmem:[%s847 + $0x60] sm:$0xe]
        %v1223 = vld [vmem:[%s847 + $0x64] sm:$0xf]
        %v1224 = vld [vmem:[%s847 + $0x68] sm:$0x1]
        %v1225 = vld [vmem:[%s847 + $0x6c] sm:$0xe]
        %v1226 = vld [vmem:[%s847 + $0x70] sm:$0xf]
        %v1227 = vld [vmem:[%s847 + $0x74] sm:$0x1]
        %v1258 = vrot.slane %v1198, 5
        %v1259 = vrot.slane %v1258, 4
        %v1260 = vrot.slane %v1199, 5
        %v1261 = vsel %vm736, %v1259, %v1260
        %v1262 = vrot.slane %v1260, 4
        %v1263 = vrot.slane %v1200, 5
        %v1264 = vsel %vm736, %v1262, %v1263
        %v1265 = vrot.slane %v1201, 5
        %v1266 = vrot.slane %v1265, 4
        %v1267 = vrot.slane %v1202, 5
        %v1268 = vsel %vm736, %v1266, %v1267
        %v1269 = vrot.slane %v1267, 4
        %v1270 = vrot.slane %v1203, 5
        %v1271 = vsel %vm736, %v1269, %v1270
        %v1272 = vrot.slane %v1204, 5
        %v1273 = vrot.slane %v1272, 4
        %v1274 = vrot.slane %v1205, 5
        %v1275 = vsel %vm736, %v1273, %v1274
        %v1276 = vrot.slane %v1274, 4
        %v1277 = vrot.slane %v1206, 5
        %v1278 = vsel %vm736, %v1276, %v1277
        %v1279 = vrot.slane %v1207, 5
        %v1280 = vrot.slane %v1279, 4
        %v1281 = vrot.slane %v1208, 5
        %v1282 = vsel %vm736, %v1280, %v1281
        %v1283 = vrot.slane %v1281, 4
        %v1284 = vrot.slane %v1209, 5
        %v1285 = vsel %vm736, %v1283, %v1284
        %v1286 = vrot.slane %v1210, 5
        %v1287 = vrot.slane %v1286, 4
        %v1288 = vrot.slane %v1211, 5
        %v1289 = vsel %vm736, %v1287, %v1288
        %v1290 = vrot.slane %v1288, 4
        %v1291 = vrot.slane %v1212, 5
        %v1292 = vsel %vm736, %v1290, %v1291
        %v1293 = vrot.slane %v1213, 5
        %v1294 = vrot.slane %v1293, 4
        %v1295 = vrot.slane %v1214, 5
        %v1296 = vsel %vm736, %v1294, %v1295
        %v1297 = vrot.slane %v1295, 4
        %v1298 = vrot.slane %v1215, 5
        %v1299 = vsel %vm736, %v1297, %v1298
        %v1300 = vrot.slane %v1216, 5
        %v1301 = vrot.slane %v1300, 4
        %v1302 = vrot.slane %v1217, 5
        %v1303 = vsel %vm736, %v1301, %v1302
        %v1304 = vrot.slane %v1302, 4
        %v1305 = vrot.slane %v1218, 5
        %v1306 = vsel %vm736, %v1304, %v1305
        %v1307 = vrot.slane %v1219, 5
        %v1308 = vrot.slane %v1307, 4
        %v1309 = vrot.slane %v1220, 5
        %v1310 = vsel %vm736, %v1308, %v1309
        %v1311 = vrot.slane %v1309, 4
        %v1312 = vrot.slane %v1221, 5
        %v1313 = vsel %vm736, %v1311, %v1312
        %v1314 = vrot.slane %v1222, 5
        %v1315 = vrot.slane %v1314, 4
        %v1316 = vrot.slane %v1223, 5
        %v1317 = vsel %vm736, %v1315, %v1316
        %v1318 = vrot.slane %v1316, 4
        %v1319 = vrot.slane %v1224, 5
        %v1320 = vsel %vm736, %v1318, %v1319
        %v1321 = vrot.slane %v1225, 5
        %v1322 = vrot.slane %v1321, 4
        %v1323 = vrot.slane %v1226, 5
        %v1324 = vsel %vm736, %v1322, %v1323
        %v1325 = vrot.slane %v1323, 4
        %v1326 = vrot.slane %v1227, 5
        %v1327 = vsel %vm736, %v1325, %v1326
        %1348 = vst [vmem:[#allocation2 + $0x14] sm:$0xf] %v1261
        %1349 = vst [vmem:[#allocation2 + $0x38] sm:$0xf] %v1264
        %1350 = vst [vmem:[#allocation2 + $0x5c] sm:$0xf] %v1268
        %1351 = vst [vmem:[#allocation2 + $0x80] sm:$0xf] %v1271
        %1352 = vst [vmem:[#allocation2 + $0xa4] sm:$0xf] %v1275
        %1353 = vst [vmem:[#allocation2 + $0xc8] sm:$0xf] %v1278
        %1354 = vst [vmem:[#allocation2 + $0xec] sm:$0xf] %v1282
        %1355 = vst [vmem:[#allocation2 + $0x110] sm:$0xf] %v1285
        %1356 = vst [vmem:[#allocation2 + $0x134] sm:$0xf] %v1289
        %1357 = vst [vmem:[#allocation2 + $0x158] sm:$0xf] %v1292
        %1358 = vst [vmem:[#allocation2 + $0x17c] sm:$0xf] %v1296
        %1359 = vst [vmem:[#allocation2 + $0x1a0] sm:$0xf] %v1299
        %1360 = vst [vmem:[#allocation2 + $0x1c4] sm:$0xf] %v1303
        %1361 = vst [vmem:[#allocation2 + $0x1e8] sm:$0xf] %v1306
        %1362 = vst [vmem:[#allocation2 + $0x20c] sm:$0xf] %v1310
        %1363 = vst [vmem:[#allocation2 + $0x230] sm:$0xf] %v1313
        %1364 = vst [vmem:[#allocation2 + $0x254] sm:$0xf] %v1317
        %1365 = vst [vmem:[#allocation2 + $0x278] sm:$0xf] %v1320
        %1366 = vst [vmem:[#allocation2 + $0x29c] sm:$0xf] %v1324
        %1367 = vst [vmem:[#allocation2 + $0x2c0] sm:$0xf] %v1327
        %s1368 = scalar_lea.vmem %s319, 24
        %v1369 = vld [vmem:[%s1368] sm:$0xf]
        %v1370 = vld [vmem:[%s1368 + $0x4] sm:$0xf]
        %v1371 = vld [vmem:[%s1368 + $0xc] sm:$0xf]
        %v1372 = vld [vmem:[%s1368 + $0x10] sm:$0xf]
        %v1373 = vld [vmem:[%s1368 + $0x18] sm:$0xf]
        %v1374 = vld [vmem:[%s1368 + $0x1c] sm:$0xf]
        %v1375 = vld [vmem:[%s1368 + $0x24] sm:$0xf]
        %v1376 = vld [vmem:[%s1368 + $0x28] sm:$0xf]
        %v1377 = vld [vmem:[%s1368 + $0x30] sm:$0xf]
        %v1378 = vld [vmem:[%s1368 + $0x34] sm:$0xf]
        %v1379 = vld [vmem:[%s1368 + $0x3c] sm:$0xf]
        %v1380 = vld [vmem:[%s1368 + $0x40] sm:$0xf]
        %v1381 = vld [vmem:[%s1368 + $0x48] sm:$0xf]
        %v1382 = vld [vmem:[%s1368 + $0x4c] sm:$0xf]
        %v1383 = vld [vmem:[%s1368 + $0x54] sm:$0xf]
        %v1384 = vld [vmem:[%s1368 + $0x58] sm:$0xf]
        %v1385 = vld [vmem:[%s1368 + $0x60] sm:$0xf]
        %v1386 = vld [vmem:[%s1368 + $0x64] sm:$0xf]
        %v1387 = vld [vmem:[%s1368 + $0x6c] sm:$0xf]
        %v1388 = vld [vmem:[%s1368 + $0x70] sm:$0xf]
        %1389 = vst [vmem:[#allocation2 + $0x18] sm:$0xf] %v1369
        %1390 = vst [vmem:[#allocation2 + $0x3c] sm:$0xf] %v1370
        %1391 = vst [vmem:[#allocation2 + $0x60] sm:$0xf] %v1371
        %1392 = vst [vmem:[#allocation2 + $0x84] sm:$0xf] %v1372
        %1393 = vst [vmem:[#allocation2 + $0xa8] sm:$0xf] %v1373
        %1394 = vst [vmem:[#allocation2 + $0xcc] sm:$0xf] %v1374
        %1395 = vst [vmem:[#allocation2 + $0xf0] sm:$0xf] %v1375
        %1396 = vst [vmem:[#allocation2 + $0x114] sm:$0xf] %v1376
        %1397 = vst [vmem:[#allocation2 + $0x138] sm:$0xf] %v1377
        %1398 = vst [vmem:[#allocation2 + $0x15c] sm:$0xf] %v1378
        %1399 = vst [vmem:[#allocation2 + $0x180] sm:$0xf] %v1379
        %1400 = vst [vmem:[#allocation2 + $0x1a4] sm:$0xf] %v1380
        %1401 = vst [vmem:[#allocation2 + $0x1c8] sm:$0xf] %v1381
        %1402 = vst [vmem:[#allocation2 + $0x1ec] sm:$0xf] %v1382
        %1403 = vst [vmem:[#allocation2 + $0x210] sm:$0xf] %v1383
        %1404 = vst [vmem:[#allocation2 + $0x234] sm:$0xf] %v1384
        %1405 = vst [vmem:[#allocation2 + $0x258] sm:$0xf] %v1385
        %1406 = vst [vmem:[#allocation2 + $0x27c] sm:$0xf] %v1386
        %1407 = vst [vmem:[#allocation2 + $0x2a0] sm:$0xf] %v1387
        %1408 = vst [vmem:[#allocation2 + $0x2c4] sm:$0xf] %v1388
        %v1409 = vld [vmem:[%s1368] sm:$0xf]
        %v1410 = vld [vmem:[%s1368 + $0x4] sm:$0xf]
        %v1411 = vld [vmem:[%s1368 + $0x8] sm:$0x1]
        %v1412 = vld [vmem:[%s1368 + $0xc] sm:$0xf]
        %v1413 = vld [vmem:[%s1368 + $0x10] sm:$0xf]
        %v1414 = vld [vmem:[%s1368 + $0x14] sm:$0x1]
        %v1415 = vld [vmem:[%s1368 + $0x18] sm:$0xf]
        %v1416 = vld [vmem:[%s1368 + $0x1c] sm:$0xf]
        %v1417 = vld [vmem:[%s1368 + $0x20] sm:$0x1]
        %v1418 = vld [vmem:[%s1368 + $0x24] sm:$0xf]
        %v1419 = vld [vmem:[%s1368 + $0x28] sm:$0xf]
        %v1420 = vld [vmem:[%s1368 + $0x2c] sm:$0x1]
        %v1421 = vld [vmem:[%s1368 + $0x30] sm:$0xf]
        %v1422 = vld [vmem:[%s1368 + $0x34] sm:$0xf]
        %v1423 = vld [vmem:[%s1368 + $0x38] sm:$0x1]
        %v1424 = vld [vmem:[%s1368 + $0x3c] sm:$0xf]
        %v1425 = vld [vmem:[%s1368 + $0x40] sm:$0xf]
        %v1426 = vld [vmem:[%s1368 + $0x44] sm:$0x1]
        %v1427 = vld [vmem:[%s1368 + $0x48] sm:$0xf]
        %v1428 = vld [vmem:[%s1368 + $0x4c] sm:$0xf]
        %v1429 = vld [vmem:[%s1368 + $0x50] sm:$0x1]
        %v1430 = vld [vmem:[%s1368 + $0x54] sm:$0xf]
        %v1431 = vld [vmem:[%s1368 + $0x58] sm:$0xf]
        %v1432 = vld [vmem:[%s1368 + $0x5c] sm:$0x1]
        %v1433 = vld [vmem:[%s1368 + $0x60] sm:$0xf]
        %v1434 = vld [vmem:[%s1368 + $0x64] sm:$0xf]
        %v1435 = vld [vmem:[%s1368 + $0x68] sm:$0x1]
        %v1436 = vld [vmem:[%s1368 + $0x6c] sm:$0xf]
        %v1437 = vld [vmem:[%s1368 + $0x70] sm:$0xf]
        %v1438 = vld [vmem:[%s1368 + $0x74] sm:$0x1]
        %v1440 = vshrl.u32 %v1409, 16
        %v1442 = vrot.slane %v1440, 4
        %v1443 = vshll.u32 %v1409, 16
        %v1445 = vrot.slane %v1443, 5
        %v1446 = vor.u32 %v1442, %v1445
        %v1447 = vrot.slane %v1446, 4
        %v1449 = vshll.u32 %v1410, 16
        %v1451 = vrot.slane %v1449, 5
        %v1452 = vsel %vm393, %v1447, %v1451
        %v1453 = vshrl.u32 %v1410, 16
        %v1455 = vrot.slane %v1453, 4
        %v1456 = vor.u32 %v1455, %v1451
        %v1457 = vrot.slane %v1456, 4
        %v1459 = vshll.u32 %v1411, 16
        %v1461 = vrot.slane %v1459, 5
        %v1462 = vsel %vm393, %v1457, %v1461
        %v1464 = vshrl.u32 %v1412, 16
        %v1466 = vrot.slane %v1464, 4
        %v1467 = vshll.u32 %v1412, 16
        %v1469 = vrot.slane %v1467, 5
        %v1470 = vor.u32 %v1466, %v1469
        %v1471 = vrot.slane %v1470, 4
        %v1473 = vshll.u32 %v1413, 16
        %v1475 = vrot.slane %v1473, 5
        %v1476 = vsel %vm393, %v1471, %v1475
        %v1477 = vshrl.u32 %v1413, 16
        %v1479 = vrot.slane %v1477, 4
        %v1480 = vor.u32 %v1479, %v1475
        %v1481 = vrot.slane %v1480, 4
        %v1483 = vshll.u32 %v1414, 16
        %v1485 = vrot.slane %v1483, 5
        %v1486 = vsel %vm393, %v1481, %v1485
        %v1488 = vshrl.u32 %v1415, 16
        %v1490 = vrot.slane %v1488, 4
        %v1491 = vshll.u32 %v1415, 16
        %v1493 = vrot.slane %v1491, 5
        %v1494 = vor.u32 %v1490, %v1493
        %v1495 = vrot.slane %v1494, 4
        %v1497 = vshll.u32 %v1416, 16
        %v1499 = vrot.slane %v1497, 5
        %v1500 = vsel %vm393, %v1495, %v1499
        %v1501 = vshrl.u32 %v1416, 16
        %v1503 = vrot.slane %v1501, 4
        %v1504 = vor.u32 %v1503, %v1499
        %v1505 = vrot.slane %v1504, 4
        %v1507 = vshll.u32 %v1417, 16
        %v1509 = vrot.slane %v1507, 5
        %v1510 = vsel %vm393, %v1505, %v1509
        %v1512 = vshrl.u32 %v1418, 16
        %v1514 = vrot.slane %v1512, 4
        %v1515 = vshll.u32 %v1418, 16
        %v1517 = vrot.slane %v1515, 5
        %v1518 = vor.u32 %v1514, %v1517
        %v1519 = vrot.slane %v1518, 4
        %v1521 = vshll.u32 %v1419, 16
        %v1523 = vrot.slane %v1521, 5
        %v1524 = vsel %vm393, %v1519, %v1523
        %v1525 = vshrl.u32 %v1419, 16
        %v1527 = vrot.slane %v1525, 4
        %v1528 = vor.u32 %v1527, %v1523
        %v1529 = vrot.slane %v1528, 4
        %v1531 = vshll.u32 %v1420, 16
        %v1533 = vrot.slane %v1531, 5
        %v1534 = vsel %vm393, %v1529, %v1533
        %v1536 = vshrl.u32 %v1421, 16
        %v1538 = vrot.slane %v1536, 4
        %v1539 = vshll.u32 %v1421, 16
        %v1541 = vrot.slane %v1539, 5
        %v1542 = vor.u32 %v1538, %v1541
        %v1543 = vrot.slane %v1542, 4
        %v1545 = vshll.u32 %v1422, 16
        %v1547 = vrot.slane %v1545, 5
        %v1548 = vsel %vm393, %v1543, %v1547
        %v1549 = vshrl.u32 %v1422, 16
        %v1551 = vrot.slane %v1549, 4
        %v1552 = vor.u32 %v1551, %v1547
        %v1553 = vrot.slane %v1552, 4
        %v1555 = vshll.u32 %v1423, 16
        %v1557 = vrot.slane %v1555, 5
        %v1558 = vsel %vm393, %v1553, %v1557
        %v1560 = vshrl.u32 %v1424, 16
        %v1562 = vrot.slane %v1560, 4
        %v1563 = vshll.u32 %v1424, 16
        %v1565 = vrot.slane %v1563, 5
        %v1566 = vor.u32 %v1562, %v1565
        %v1567 = vrot.slane %v1566, 4
        %v1569 = vshll.u32 %v1425, 16
        %v1571 = vrot.slane %v1569, 5
        %v1572 = vsel %vm393, %v1567, %v1571
        %v1573 = vshrl.u32 %v1425, 16
        %v1575 = vrot.slane %v1573, 4
        %v1576 = vor.u32 %v1575, %v1571
        %v1577 = vrot.slane %v1576, 4
        %v1579 = vshll.u32 %v1426, 16
        %v1581 = vrot.slane %v1579, 5
        %v1582 = vsel %vm393, %v1577, %v1581
        %v1584 = vshrl.u32 %v1427, 16
        %v1586 = vrot.slane %v1584, 4
        %v1587 = vshll.u32 %v1427, 16
        %v1589 = vrot.slane %v1587, 5
        %v1590 = vor.u32 %v1586, %v1589
        %v1591 = vrot.slane %v1590, 4
        %v1593 = vshll.u32 %v1428, 16
        %v1595 = vrot.slane %v1593, 5
        %v1596 = vsel %vm393, %v1591, %v1595
        %v1597 = vshrl.u32 %v1428, 16
        %v1599 = vrot.slane %v1597, 4
        %v1600 = vor.u32 %v1599, %v1595
        %v1601 = vrot.slane %v1600, 4
        %v1603 = vshll.u32 %v1429, 16
        %v1605 = vrot.slane %v1603, 5
        %v1606 = vsel %vm393, %v1601, %v1605
        %v1608 = vshrl.u32 %v1430, 16
        %v1610 = vrot.slane %v1608, 4
        %v1611 = vshll.u32 %v1430, 16
        %v1613 = vrot.slane %v1611, 5
        %v1614 = vor.u32 %v1610, %v1613
        %v1615 = vrot.slane %v1614, 4
        %v1617 = vshll.u32 %v1431, 16
        %v1619 = vrot.slane %v1617, 5
        %v1620 = vsel %vm393, %v1615, %v1619
        %v1621 = vshrl.u32 %v1431, 16
        %v1623 = vrot.slane %v1621, 4
        %v1624 = vor.u32 %v1623, %v1619
        %v1625 = vrot.slane %v1624, 4
        %v1627 = vshll.u32 %v1432, 16
        %v1629 = vrot.slane %v1627, 5
        %v1630 = vsel %vm393, %v1625, %v1629
        %v1632 = vshrl.u32 %v1433, 16
        %v1634 = vrot.slane %v1632, 4
        %v1635 = vshll.u32 %v1433, 16
        %v1637 = vrot.slane %v1635, 5
        %v1638 = vor.u32 %v1634, %v1637
        %v1639 = vrot.slane %v1638, 4
        %v1641 = vshll.u32 %v1434, 16
        %v1643 = vrot.slane %v1641, 5
        %v1644 = vsel %vm393, %v1639, %v1643
        %v1645 = vshrl.u32 %v1434, 16
        %v1647 = vrot.slane %v1645, 4
        %v1648 = vor.u32 %v1647, %v1643
        %v1649 = vrot.slane %v1648, 4
        %v1651 = vshll.u32 %v1435, 16
        %v1653 = vrot.slane %v1651, 5
        %v1654 = vsel %vm393, %v1649, %v1653
        %v1656 = vshrl.u32 %v1436, 16
        %v1658 = vrot.slane %v1656, 4
        %v1659 = vshll.u32 %v1436, 16
        %v1661 = vrot.slane %v1659, 5
        %v1662 = vor.u32 %v1658, %v1661
        %v1663 = vrot.slane %v1662, 4
        %v1665 = vshll.u32 %v1437, 16
        %v1667 = vrot.slane %v1665, 5
        %v1668 = vsel %vm393, %v1663, %v1667
        %v1669 = vshrl.u32 %v1437, 16
        %v1671 = vrot.slane %v1669, 4
        %v1672 = vor.u32 %v1671, %v1667
        %v1673 = vrot.slane %v1672, 4
        %v1675 = vshll.u32 %v1438, 16
        %v1677 = vrot.slane %v1675, 5
        %v1678 = vsel %vm393, %v1673, %v1677
        %1699 = vst [vmem:[#allocation2 + $0x1c] sm:$0xf] %v1452
        %1700 = vst [vmem:[#allocation2 + $0x40] sm:$0xf] %v1462
        %1701 = vst [vmem:[#allocation2 + $0x64] sm:$0xf] %v1476
        %1702 = vst [vmem:[#allocation2 + $0x88] sm:$0xf] %v1486
        %1703 = vst [vmem:[#allocation2 + $0xac] sm:$0xf] %v1500
        %1704 = vst [vmem:[#allocation2 + $0xd0] sm:$0xf] %v1510
        %1705 = vst [vmem:[#allocation2 + $0xf4] sm:$0xf] %v1524
        %1706 = vst [vmem:[#allocation2 + $0x118] sm:$0xf] %v1534
        %1707 = vst [vmem:[#allocation2 + $0x13c] sm:$0xf] %v1548
        %1708 = vst [vmem:[#allocation2 + $0x160] sm:$0xf] %v1558
        %1709 = vst [vmem:[#allocation2 + $0x184] sm:$0xf] %v1572
        %1710 = vst [vmem:[#allocation2 + $0x1a8] sm:$0xf] %v1582
        %1711 = vst [vmem:[#allocation2 + $0x1cc] sm:$0xf] %v1596
        %1712 = vst [vmem:[#allocation2 + $0x1f0] sm:$0xf] %v1606
        %1713 = vst [vmem:[#allocation2 + $0x214] sm:$0xf] %v1620
        %1714 = vst [vmem:[#allocation2 + $0x238] sm:$0xf] %v1630
        %1715 = vst [vmem:[#allocation2 + $0x25c] sm:$0xf] %v1644
        %1716 = vst [vmem:[#allocation2 + $0x280] sm:$0xf] %v1654
        %1717 = vst [vmem:[#allocation2 + $0x2a4] sm:$0xf] %v1668
        %1718 = vst [vmem:[#allocation2 + $0x2c8] sm:$0xf] %v1678
        %v1719 = vld [vmem:[%s1368] sm:$0xe]
        %v1720 = vld [vmem:[%s1368 + $0x4] sm:$0xf]
        %v1721 = vld [vmem:[%s1368 + $0x8] sm:$0x1]
        %v1722 = vld [vmem:[%s1368 + $0xc] sm:$0xe]
        %v1723 = vld [vmem:[%s1368 + $0x10] sm:$0xf]
        %v1724 = vld [vmem:[%s1368 + $0x14] sm:$0x1]
        %v1725 = vld [vmem:[%s1368 + $0x18] sm:$0xe]
        %v1726 = vld [vmem:[%s1368 + $0x1c] sm:$0xf]
        %v1727 = vld [vmem:[%s1368 + $0x20] sm:$0x1]
        %v1728 = vld [vmem:[%s1368 + $0x24] sm:$0xe]
        %v1729 = vld [vmem:[%s1368 + $0x28] sm:$0xf]
        %v1730 = vld [vmem:[%s1368 + $0x2c] sm:$0x1]
        %v1731 = vld [vmem:[%s1368 + $0x30] sm:$0xe]
        %v1732 = vld [vmem:[%s1368 + $0x34] sm:$0xf]
        %v1733 = vld [vmem:[%s1368 + $0x38] sm:$0x1]
        %v1734 = vld [vmem:[%s1368 + $0x3c] sm:$0xe]
        %v1735 = vld [vmem:[%s1368 + $0x40] sm:$0xf]
        %v1736 = vld [vmem:[%s1368 + $0x44] sm:$0x1]
        %v1737 = vld [vmem:[%s1368 + $0x48] sm:$0xe]
        %v1738 = vld [vmem:[%s1368 + $0x4c] sm:$0xf]
        %v1739 = vld [vmem:[%s1368 + $0x50] sm:$0x1]
        %v1740 = vld [vmem:[%s1368 + $0x54] sm:$0xe]
        %v1741 = vld [vmem:[%s1368 + $0x58] sm:$0xf]
        %v1742 = vld [vmem:[%s1368 + $0x5c] sm:$0x1]
        %v1743 = vld [vmem:[%s1368 + $0x60] sm:$0xe]
        %v1744 = vld [vmem:[%s1368 + $0x64] sm:$0xf]
        %v1745 = vld [vmem:[%s1368 + $0x68] sm:$0x1]
        %v1746 = vld [vmem:[%s1368 + $0x6c] sm:$0xe]
        %v1747 = vld [vmem:[%s1368 + $0x70] sm:$0xf]
        %v1748 = vld [vmem:[%s1368 + $0x74] sm:$0x1]
        %v1779 = vrot.slane %v1719, 5
        %v1780 = vrot.slane %v1779, 4
        %v1781 = vrot.slane %v1720, 5
        %v1782 = vsel %vm736, %v1780, %v1781
        %v1783 = vrot.slane %v1781, 4
        %v1784 = vrot.slane %v1721, 5
        %v1785 = vsel %vm736, %v1783, %v1784
        %v1786 = vrot.slane %v1722, 5
        %v1787 = vrot.slane %v1786, 4
        %v1788 = vrot.slane %v1723, 5
        %v1789 = vsel %vm736, %v1787, %v1788
        %v1790 = vrot.slane %v1788, 4
        %v1791 = vrot.slane %v1724, 5
        %v1792 = vsel %vm736, %v1790, %v1791
        %v1793 = vrot.slane %v1725, 5
        %v1794 = vrot.slane %v1793, 4
        %v1795 = vrot.slane %v1726, 5
        %v1796 = vsel %vm736, %v1794, %v1795
        %v1797 = vrot.slane %v1795, 4
        %v1798 = vrot.slane %v1727, 5
        %v1799 = vsel %vm736, %v1797, %v1798
        %v1800 = vrot.slane %v1728, 5
        %v1801 = vrot.slane %v1800, 4
        %v1802 = vrot.slane %v1729, 5
        %v1803 = vsel %vm736, %v1801, %v1802
        %v1804 = vrot.slane %v1802, 4
        %v1805 = vrot.slane %v1730, 5
        %v1806 = vsel %vm736, %v1804, %v1805
        %v1807 = vrot.slane %v1731, 5
        %v1808 = vrot.slane %v1807, 4
        %v1809 = vrot.slane %v1732, 5
        %v1810 = vsel %vm736, %v1808, %v1809
        %v1811 = vrot.slane %v1809, 4
        %v1812 = vrot.slane %v1733, 5
        %v1813 = vsel %vm736, %v1811, %v1812
        %v1814 = vrot.slane %v1734, 5
        %v1815 = vrot.slane %v1814, 4
        %v1816 = vrot.slane %v1735, 5
        %v1817 = vsel %vm736, %v1815, %v1816
        %v1818 = vrot.slane %v1816, 4
        %v1819 = vrot.slane %v1736, 5
        %v1820 = vsel %vm736, %v1818, %v1819
        %v1821 = vrot.slane %v1737, 5
        %v1822 = vrot.slane %v1821, 4
        %v1823 = vrot.slane %v1738, 5
        %v1824 = vsel %vm736, %v1822, %v1823
        %v1825 = vrot.slane %v1823, 4
        %v1826 = vrot.slane %v1739, 5
        %v1827 = vsel %vm736, %v1825, %v1826
        %v1828 = vrot.slane %v1740, 5
        %v1829 = vrot.slane %v1828, 4
        %v1830 = vrot.slane %v1741, 5
        %v1831 = vsel %vm736, %v1829, %v1830
        %v1832 = vrot.slane %v1830, 4
        %v1833 = vrot.slane %v1742, 5
        %v1834 = vsel %vm736, %v1832, %v1833
        %v1835 = vrot.slane %v1743, 5
        %v1836 = vrot.slane %v1835, 4
        %v1837 = vrot.slane %v1744, 5
        %v1838 = vsel %vm736, %v1836, %v1837
        %v1839 = vrot.slane %v1837, 4
        %v1840 = vrot.slane %v1745, 5
        %v1841 = vsel %vm736, %v1839, %v1840
        %v1842 = vrot.slane %v1746, 5
        %v1843 = vrot.slane %v1842, 4
        %v1844 = vrot.slane %v1747, 5
        %v1845 = vsel %vm736, %v1843, %v1844
        %v1846 = vrot.slane %v1844, 4
        %v1847 = vrot.slane %v1748, 5
        %v1848 = vsel %vm736, %v1846, %v1847
        %1869 = vst [vmem:[#allocation2 + $0x20] sm:$0xf] %v1782
        %1870 = vst [vmem:[#allocation2 + $0x44] sm:$0xf] %v1785
        %1871 = vst [vmem:[#allocation2 + $0x68] sm:$0xf] %v1789
        %1872 = vst [vmem:[#allocation2 + $0x8c] sm:$0xf] %v1792
        %1873 = vst [vmem:[#allocation2 + $0xb0] sm:$0xf] %v1796
        %1874 = vst [vmem:[#allocation2 + $0xd4] sm:$0xf] %v1799
        %1875 = vst [vmem:[#allocation2 + $0xf8] sm:$0xf] %v1803
        %1876 = vst [vmem:[#allocation2 + $0x11c] sm:$0xf] %v1806
        %1877 = vst [vmem:[#allocation2 + $0x140] sm:$0xf] %v1810
        %1878 = vst [vmem:[#allocation2 + $0x164] sm:$0xf] %v1813
        %1879 = vst [vmem:[#allocation2 + $0x188] sm:$0xf] %v1817
        %1880 = vst [vmem:[#allocation2 + $0x1ac] sm:$0xf] %v1820
        %1881 = vst [vmem:[#allocation2 + $0x1d0] sm:$0xf] %v1824
        %1882 = vst [vmem:[#allocation2 + $0x1f4] sm:$0xf] %v1827
        %1883 = vst [vmem:[#allocation2 + $0x218] sm:$0xf] %v1831
        %1884 = vst [vmem:[#allocation2 + $0x23c] sm:$0xf] %v1834
        %1885 = vst [vmem:[#allocation2 + $0x260] sm:$0xf] %v1838
        %1886 = vst [vmem:[#allocation2 + $0x284] sm:$0xf] %v1841
        %1887 = vst [vmem:[#allocation2 + $0x2a8] sm:$0xf] %v1845
        %1888 = vst [vmem:[#allocation2 + $0x2cc] sm:$0xf] %v1848
        %v1889 = vld [vmem:[#allocation2] sm:$0xff]
        %v1890 = vld [vmem:[#allocation2 + $0x8] sm:$0xff]
        %v1891 = vld [vmem:[#allocation2 + $0x10] sm:$0xff]
        %v1892 = vld [vmem:[#allocation2 + $0x18] sm:$0xff]
        %v1893 = vld [vmem:[#allocation2 + $0x20] sm:$0xf]
        %v1894 = vld [vmem:[#allocation2 + $0x24] sm:$0xff]
        %v1895 = vld [vmem:[#allocation2 + $0x2c] sm:$0xff]
        %v1896 = vld [vmem:[#allocation2 + $0x34] sm:$0xff]
        %v1897 = vld [vmem:[#allocation2 + $0x3c] sm:$0xff]
        %v1898 = vld [vmem:[#allocation2 + $0x44] sm:$0xf]
        %v1899 = vld [vmem:[#allocation2 + $0x48] sm:$0xff]
        %v1900 = vld [vmem:[#allocation2 + $0x50] sm:$0xff]
        %v1901 = vld [vmem:[#allocation2 + $0x58] sm:$0xff]
        %v1902 = vld [vmem:[#allocation2 + $0x60] sm:$0xff]
        %v1903 = vld [vmem:[#allocation2 + $0x68] sm:$0xf]
        %v1904 = vld [vmem:[#allocation2 + $0x6c] sm:$0xff]
        %v1905 = vld [vmem:[#allocation2 + $0x74] sm:$0xff]
        %v1906 = vld [vmem:[#allocation2 + $0x7c] sm:$0xff]
        %v1907 = vld [vmem:[#allocation2 + $0x84] sm:$0xff]
        %v1908 = vld [vmem:[#allocation2 + $0x8c] sm:$0xf]
        %v1909 = vld [vmem:[#allocation2 + $0x90] sm:$0xff]
        %v1910 = vld [vmem:[#allocation2 + $0x98] sm:$0xff]
        %v1911 = vld [vmem:[#allocation2 + $0xa0] sm:$0xff]
        %v1912 = vld [vmem:[#allocation2 + $0xa8] sm:$0xff]
        %v1913 = vld [vmem:[#allocation2 + $0xb0] sm:$0xf]
        %v1914 = vld [vmem:[#allocation2 + $0xb4] sm:$0xff]
        %v1915 = vld [vmem:[#allocation2 + $0xbc] sm:$0xff]
        %v1916 = vld [vmem:[#allocation2 + $0xc4] sm:$0xff]
        %v1917 = vld [vmem:[#allocation2 + $0xcc] sm:$0xff]
        %v1918 = vld [vmem:[#allocation2 + $0xd4] sm:$0xf]
        %v1919 = vld [vmem:[#allocation2 + $0xd8] sm:$0xff]
        %v1920 = vld [vmem:[#allocation2 + $0xe0] sm:$0xff]
        %v1921 = vld [vmem:[#allocation2 + $0xe8] sm:$0xff]
        %v1922 = vld [vmem:[#allocation2 + $0xf0] sm:$0xff]
        %v1923 = vld [vmem:[#allocation2 + $0xf8] sm:$0xf]
        %v1924 = vld [vmem:[#allocation2 + $0xfc] sm:$0xff]
        %v1925 = vld [vmem:[#allocation2 + $0x104] sm:$0xff]
        %v1926 = vld [vmem:[#allocation2 + $0x10c] sm:$0xff]
        %v1927 = vld [vmem:[#allocation2 + $0x114] sm:$0xff]
        %v1928 = vld [vmem:[#allocation2 + $0x11c] sm:$0xf]
        %v1929 = vld [vmem:[#allocation2 + $0x120] sm:$0xff]
        %v1930 = vld [vmem:[#allocation2 + $0x128] sm:$0xff]
        %v1931 = vld [vmem:[#allocation2 + $0x130] sm:$0xff]
        %v1932 = vld [vmem:[#allocation2 + $0x138] sm:$0xff]
        %v1933 = vld [vmem:[#allocation2 + $0x140] sm:$0xf]
        %v1934 = vld [vmem:[#allocation2 + $0x144] sm:$0xff]
        %v1935 = vld [vmem:[#allocation2 + $0x14c] sm:$0xff]
        %v1936 = vld [vmem:[#allocation2 + $0x154] sm:$0xff]
        %v1937 = vld [vmem:[#allocation2 + $0x15c] sm:$0xff]
        %v1938 = vld [vmem:[#allocation2 + $0x164] sm:$0xf]
        %v1939 = vld [vmem:[#allocation2 + $0x168] sm:$0xff]
        %v1940 = vld [vmem:[#allocation2 + $0x170] sm:$0xff]
        %v1941 = vld [vmem:[#allocation2 + $0x178] sm:$0xff]
        %v1942 = vld [vmem:[#allocation2 + $0x180] sm:$0xff]
        %v1943 = vld [vmem:[#allocation2 + $0x188] sm:$0xf]
        %v1944 = vld [vmem:[#allocation2 + $0x18c] sm:$0xff]
        %v1945 = vld [vmem:[#allocation2 + $0x194] sm:$0xff]
        %v1946 = vld [vmem:[#allocation2 + $0x19c] sm:$0xff]
        %v1947 = vld [vmem:[#allocation2 + $0x1a4] sm:$0xff]
        %v1948 = vld [vmem:[#allocation2 + $0x1ac] sm:$0xf]
        %v1949 = vld [vmem:[#allocation2 + $0x1b0] sm:$0xff]
        %v1950 = vld [vmem:[#allocation2 + $0x1b8] sm:$0xff]
        %v1951 = vld [vmem:[#allocation2 + $0x1c0] sm:$0xff]
        %v1952 = vld [vmem:[#allocation2 + $0x1c8] sm:$0xff]
        %v1953 = vld [vmem:[#allocation2 + $0x1d0] sm:$0xf]
        %v1954 = vld [vmem:[#allocation2 + $0x1d4] sm:$0xff]
        %v1955 = vld [vmem:[#allocation2 + $0x1dc] sm:$0xff]
        %v1956 = vld [vmem:[#allocation2 + $0x1e4] sm:$0xff]
        %v1957 = vld [vmem:[#allocation2 + $0x1ec] sm:$0xff]
        %v1958 = vld [vmem:[#allocation2 + $0x1f4] sm:$0xf]
        %v1959 = vld [vmem:[#allocation2 + $0x1f8] sm:$0xff]
        %v1960 = vld [vmem:[#allocation2 + $0x200] sm:$0xff]
        %v1961 = vld [vmem:[#allocation2 + $0x208] sm:$0xff]
        %v1962 = vld [vmem:[#allocation2 + $0x210] sm:$0xff]
        %v1963 = vld [vmem:[#allocation2 + $0x218] sm:$0xf]
        %v1964 = vld [vmem:[#allocation2 + $0x21c] sm:$0xff]
        %v1965 = vld [vmem:[#allocation2 + $0x224] sm:$0xff]
        %v1966 = vld [vmem:[#allocation2 + $0x22c] sm:$0xff]
        %v1967 = vld [vmem:[#allocation2 + $0x234] sm:$0xff]
        %v1968 = vld [vmem:[#allocation2 + $0x23c] sm:$0xf]
        %v1969 = vld [vmem:[#allocation2 + $0x240] sm:$0xff]
        %v1970 = vld [vmem:[#allocation2 + $0x248] sm:$0xff]
        %v1971 = vld [vmem:[#allocation2 + $0x250] sm:$0xff]
        %v1972 = vld [vmem:[#allocation2 + $0x258] sm:$0xff]
        %v1973 = vld [vmem:[#allocation2 + $0x260] sm:$0xf]
        %v1974 = vld [vmem:[#allocation2 + $0x264] sm:$0xff]
        %v1975 = vld [vmem:[#allocation2 + $0x26c] sm:$0xff]
        %v1976 = vld [vmem:[#allocation2 + $0x274] sm:$0xff]
        %v1977 = vld [vmem:[#allocation2 + $0x27c] sm:$0xff]
        %v1978 = vld [vmem:[#allocation2 + $0x284] sm:$0xf]
        %v1979 = vld [vmem:[#allocation2 + $0x288] sm:$0xff]
        %v1980 = vld [vmem:[#allocation2 + $0x290] sm:$0xff]
        %v1981 = vld [vmem:[#allocation2 + $0x298] sm:$0xff]
        %v1982 = vld [vmem:[#allocation2 + $0x2a0] sm:$0xff]
        %v1983 = vld [vmem:[#allocation2 + $0x2a8] sm:$0xf]
        %v1984 = vld [vmem:[#allocation2 + $0x2ac] sm:$0xff]
        %v1985 = vld [vmem:[#allocation2 + $0x2b4] sm:$0xff]
        %v1986 = vld [vmem:[#allocation2 + $0x2bc] sm:$0xff]
        %v1987 = vld [vmem:[#allocation2 + $0x2c4] sm:$0xff]
        %v1988 = vld [vmem:[#allocation2 + $0x2cc] sm:$0xf]
        %v1989 = vld [vmem:[%s1] sm:$0xf]
        %v1990 = vld [vmem:[%s1 + $0x4] sm:$0xf]
        %v1991 = vld [vmem:[%s1 + $0x8] sm:$0xf]
        %v1992 = vld [vmem:[%s1 + $0xc] sm:$0xf]
        %v1993 = vld [vmem:[%s1 + $0x10] sm:$0xf]
        %v1994 = vld [vmem:[%s1 + $0x14] sm:$0xf]
        %v1995 = vld [vmem:[%s1 + $0x18] sm:$0xf]
        %v1996 = vld [vmem:[%s1 + $0x1c] sm:$0xf]
        %v1997 = vld [vmem:[%s1 + $0x20] sm:$0xf]
        %v1998 = vld [vmem:[%s1 + $0x24] sm:$0xf]
        %v1999 = vld [vmem:[%s1 + $0x28] sm:$0xf]
        %v2000 = vld [vmem:[%s1 + $0x2c] sm:$0xf]
        %v2001 = vld [vmem:[%s1 + $0x30] sm:$0xf]
        %v2002 = vld [vmem:[%s1 + $0x34] sm:$0xf]
        %v2003 = vld [vmem:[%s1 + $0x38] sm:$0xf]
        %v2004 = vld [vmem:[%s1 + $0x3c] sm:$0xf]
        %v2005 = vld [vmem:[%s1 + $0x40] sm:$0xf]
        %v2006 = vld [vmem:[%s1 + $0x44] sm:$0xf]
        %v2007 = vld [vmem:[%s1 + $0x48] sm:$0xf]
        %v2008 = vld [vmem:[%s1 + $0x4c] sm:$0xf]
        %v2009 = vld [vmem:[%s1 + $0x50] sm:$0xf]
        %v2010 = vld [vmem:[%s1 + $0x54] sm:$0xf]
        %v2011 = vld [vmem:[%s1 + $0x58] sm:$0xf]
        %v2012 = vld [vmem:[%s1 + $0x5c] sm:$0xf]
        %v2013 = vld [vmem:[%s1 + $0x60] sm:$0xf]
        %v2014 = vld [vmem:[%s1 + $0x64] sm:$0xf]
        %v2015 = vld [vmem:[%s1 + $0x68] sm:$0xf]
        %v2016 = vld [vmem:[%s1 + $0x6c] sm:$0xf]
        %v2017 = vld [vmem:[%s1 + $0x70] sm:$0xf]
        %v2018 = vld [vmem:[%s1 + $0x74] sm:$0xf]
        %v2019 = vld [vmem:[%s1 + $0x78] sm:$0xf]
        %v2020 = vld [vmem:[%s1 + $0x7c] sm:$0xf]
        %v2021 = vld [vmem:[%s1 + $0x80] sm:$0xf]
        %v2022 = vld [vmem:[%s1 + $0x84] sm:$0xf]
        %v2023 = vld [vmem:[%s1 + $0x88] sm:$0xf]
        %v2024 = vld [vmem:[%s1 + $0x8c] sm:$0xf]
        %v2025 = vld [vmem:[%s1 + $0x90] sm:$0xf]
        %v2026 = vld [vmem:[%s1 + $0x94] sm:$0xf]
        %v2027 = vld [vmem:[%s1 + $0x98] sm:$0xf]
        %v2028 = vld [vmem:[%s1 + $0x9c] sm:$0xf]
        %v2029 = vld [vmem:[%s1 + $0xa0] sm:$0xf]
        %v2030 = vld [vmem:[%s1 + $0xa4] sm:$0xf]
        %v2031 = vld [vmem:[%s1 + $0xa8] sm:$0xf]
        %v2032 = vld [vmem:[%s1 + $0xac] sm:$0xf]
        %v2033 = vld [vmem:[%s1 + $0xb0] sm:$0xf]
        %v2034 = vld [vmem:[%s1 + $0xb4] sm:$0xf]
        %v2035 = vld [vmem:[%s1 + $0xb8] sm:$0xf]
        %v2036 = vld [vmem:[%s1 + $0xbc] sm:$0xf]
        %v2037 = vld [vmem:[%s1 + $0xc0] sm:$0xf]
        %v2038 = vld [vmem:[%s1 + $0xc4] sm:$0xf]
        %v2039 = vld [vmem:[%s1 + $0xc8] sm:$0xf]
        %v2040 = vld [vmem:[%s1 + $0xcc] sm:$0xf]
        %v2041 = vld [vmem:[%s1 + $0xd0] sm:$0xf]
        %v2042 = vld [vmem:[%s1 + $0xd4] sm:$0xf]
        %v2043 = vld [vmem:[%s1 + $0xd8] sm:$0xf]
        %v2044 = vld [vmem:[%s1 + $0xdc] sm:$0xf]
        %v2045 = vld [vmem:[%s1 + $0xe0] sm:$0xf]
        %v2046 = vld [vmem:[%s1 + $0xe4] sm:$0xf]
        %v2047 = vld [vmem:[%s1 + $0xe8] sm:$0xf]
        %v2048 = vld [vmem:[%s1 + $0xec] sm:$0xf]
        %v2049 = vld [vmem:[%s1 + $0xf0] sm:$0xf]
        %v2050 = vld [vmem:[%s1 + $0xf4] sm:$0xf]
        %v2051 = vld [vmem:[%s1 + $0xf8] sm:$0xf]
        %v2052 = vld [vmem:[%s1 + $0xfc] sm:$0xf]
        %v2053 = vld [vmem:[%s1 + $0x100] sm:$0xf]
        %v2054 = vld [vmem:[%s1 + $0x104] sm:$0xf]
        %v2055 = vld [vmem:[%s1 + $0x108] sm:$0xf]
        %v2056 = vld [vmem:[%s1 + $0x10c] sm:$0xf]
        %v2057 = vld [vmem:[%s1 + $0x110] sm:$0xf]
        %v2058 = vld [vmem:[%s1 + $0x114] sm:$0xf]
        %v2059 = vld [vmem:[%s1 + $0x118] sm:$0xf]
        %v2060 = vld [vmem:[%s1 + $0x11c] sm:$0xf]
        %v2061 = vld [vmem:[%s1 + $0x120] sm:$0xf]
        %v2062 = vld [vmem:[%s1 + $0x124] sm:$0xf]
        %v2063 = vld [vmem:[%s1 + $0x128] sm:$0xf]
        %v2064 = vld [vmem:[%s1 + $0x12c] sm:$0xf]
        %v2065 = vld [vmem:[%s1 + $0x130] sm:$0xf]
        %v2066 = vld [vmem:[%s1 + $0x134] sm:$0xf]
        %v2067 = vld [vmem:[%s1 + $0x138] sm:$0xf]
        %v2068 = vld [vmem:[%s1 + $0x13c] sm:$0xf]
        %v2069 = vld [vmem:[%s1 + $0x140] sm:$0xf]
        %v2070 = vld [vmem:[%s1 + $0x144] sm:$0xf]
        %v2071 = vld [vmem:[%s1 + $0x148] sm:$0xf]
        %v2072 = vld [vmem:[%s1 + $0x14c] sm:$0xf]
        %v2073 = vld [vmem:[%s1 + $0x150] sm:$0xf]
        %v2074 = vld [vmem:[%s1 + $0x154] sm:$0xf]
        %v2075 = vld [vmem:[%s1 + $0x158] sm:$0xf]
        %v2076 = vld [vmem:[%s1 + $0x15c] sm:$0xf]
        %v2077 = vld [vmem:[%s1 + $0x160] sm:$0xf]
        %v2078 = vld [vmem:[%s1 + $0x164] sm:$0xf]
        %v2079 = vld [vmem:[%s1 + $0x168] sm:$0xf]
        %v2080 = vld [vmem:[%s1 + $0x16c] sm:$0xf]
        %v2081 = vld [vmem:[%s1 + $0x170] sm:$0xf]
        %v2082 = vld [vmem:[%s1 + $0x174] sm:$0xf]
        %v2083 = vld [vmem:[%s1 + $0x178] sm:$0xf]
        %v2084 = vld [vmem:[%s1 + $0x17c] sm:$0xf]
        %v2085 = vld [vmem:[%s1 + $0x180] sm:$0xf]
        %v2086 = vld [vmem:[%s1 + $0x184] sm:$0xf]
        %v2087 = vld [vmem:[%s1 + $0x188] sm:$0xf]
        %v2088 = vld [vmem:[%s1 + $0x18c] sm:$0xf]
        %v2089 = vld [vmem:[%s1 + $0x190] sm:$0xf]
        %v2090 = vld [vmem:[%s1 + $0x194] sm:$0xf]
        %v2091 = vld [vmem:[%s1 + $0x198] sm:$0xf]
        %v2092 = vld [vmem:[%s1 + $0x19c] sm:$0xf]
        %v2093 = vld [vmem:[%s1 + $0x1a0] sm:$0xf]
        %v2094 = vld [vmem:[%s1 + $0x1a4] sm:$0xf]
        %v2095 = vld [vmem:[%s1 + $0x1a8] sm:$0xf]
        %v2096 = vld [vmem:[%s1 + $0x1ac] sm:$0xf]
        %v2097 = vld [vmem:[%s1 + $0x1b0] sm:$0xf]
        %v2098 = vld [vmem:[%s1 + $0x1b4] sm:$0xf]
        %v2099 = vld [vmem:[%s1 + $0x1b8] sm:$0xf]
        %v2100 = vld [vmem:[%s1 + $0x1bc] sm:$0xf]
        %v2101 = vld [vmem:[%s1 + $0x1c0] sm:$0xf]
        %v2102 = vld [vmem:[%s1 + $0x1c4] sm:$0xf]
        %v2103 = vld [vmem:[%s1 + $0x1c8] sm:$0xf]
        %v2104 = vld [vmem:[%s1 + $0x1cc] sm:$0xf]
        %v2105 = vld [vmem:[%s1 + $0x1d0] sm:$0xf]
        %v2106 = vld [vmem:[%s1 + $0x1d4] sm:$0xf]
        %v2107 = vld [vmem:[%s1 + $0x1d8] sm:$0xf]
        %v2108 = vld [vmem:[%s1 + $0x1dc] sm:$0xf]
        %v2109 = vld [vmem:[%s1 + $0x1e0] sm:$0xf]
        %v2110 = vld [vmem:[%s1 + $0x1e4] sm:$0xf]
        %v2111 = vld [vmem:[%s1 + $0x1e8] sm:$0xf]
        %v2112 = vld [vmem:[%s1 + $0x1ec] sm:$0xf]
        %v2113 = vld [vmem:[%s1 + $0x1f0] sm:$0xf]
        %v2114 = vld [vmem:[%s1 + $0x1f4] sm:$0xf]
        %v2115 = vld [vmem:[%s1 + $0x1f8] sm:$0xf]
        %v2116 = vld [vmem:[%s1 + $0x1fc] sm:$0xf]
        %v2117 = vld [vmem:[%s1 + $0x200] sm:$0xf]
        %v2118 = vld [vmem:[%s1 + $0x204] sm:$0xf]
        %v2119 = vld [vmem:[%s1 + $0x208] sm:$0xf]
        %v2120 = vld [vmem:[%s1 + $0x20c] sm:$0xf]
        %v2121 = vld [vmem:[%s1 + $0x210] sm:$0xf]
        %v2122 = vld [vmem:[%s1 + $0x214] sm:$0xf]
        %v2123 = vld [vmem:[%s1 + $0x218] sm:$0xf]
        %v2124 = vld [vmem:[%s1 + $0x21c] sm:$0xf]
        %v2125 = vld [vmem:[%s1 + $0x220] sm:$0xf]
        %v2126 = vld [vmem:[%s1 + $0x224] sm:$0xf]
        %v2127 = vld [vmem:[%s1 + $0x228] sm:$0xf]
        %v2128 = vld [vmem:[%s1 + $0x22c] sm:$0xf]
        %v2129 = vld [vmem:[%s1 + $0x230] sm:$0xf]
        %v2130 = vld [vmem:[%s1 + $0x234] sm:$0xf]
        %v2131 = vld [vmem:[%s1 + $0x238] sm:$0xf]
        %v2132 = vld [vmem:[%s1 + $0x23c] sm:$0xf]
        %v2233 = vunpack.c.l.b16 %v1889
        %v2234 = vunpack.c.h.b16 %v1889
        %v2235 = vunpack.c.l.b16 %v1890
        %v2236 = vunpack.c.h.b16 %v1890
        %v2237 = vunpack.c.l.b16 %v1891
        %v2238 = vunpack.c.h.b16 %v1891
        %v2239 = vunpack.c.l.b16 %v1892
        %v2240 = vunpack.c.h.b16 %v1892
        %v2241 = vunpack.c.l.b16 %v1893
        %v2242 = vunpack.c.l.b16 %v1894
        %v2243 = vunpack.c.h.b16 %v1894
        %v2244 = vunpack.c.l.b16 %v1895
        %v2245 = vunpack.c.h.b16 %v1895
        %v2246 = vunpack.c.l.b16 %v1896
        %v2247 = vunpack.c.h.b16 %v1896
        %v2248 = vunpack.c.l.b16 %v1897
        %v2249 = vunpack.c.h.b16 %v1897
        %v2250 = vunpack.c.l.b16 %v1898
        %v2251 = vunpack.c.l.b16 %v1899
        %v2252 = vunpack.c.h.b16 %v1899
        %v2253 = vunpack.c.l.b16 %v1900
        %v2254 = vunpack.c.h.b16 %v1900
        %v2255 = vunpack.c.l.b16 %v1901
        %v2256 = vunpack.c.h.b16 %v1901
        %v2257 = vunpack.c.l.b16 %v1902
        %v2258 = vunpack.c.h.b16 %v1902
        %v2259 = vunpack.c.l.b16 %v1903
        %v2260 = vunpack.c.l.b16 %v1904
        %v2261 = vunpack.c.h.b16 %v1904
        %v2262 = vunpack.c.l.b16 %v1905
        %v2263 = vunpack.c.h.b16 %v1905
        %v2264 = vunpack.c.l.b16 %v1906
        %v2265 = vunpack.c.h.b16 %v1906
        %v2266 = vunpack.c.l.b16 %v1907
        %v2267 = vunpack.c.h.b16 %v1907
        %v2268 = vunpack.c.l.b16 %v1908
        %v2269 = vunpack.c.l.b16 %v1909
        %v2270 = vunpack.c.h.b16 %v1909
        %v2271 = vunpack.c.l.b16 %v1910
        %v2272 = vunpack.c.h.b16 %v1910
        %v2273 = vunpack.c.l.b16 %v1911
        %v2274 = vunpack.c.h.b16 %v1911
        %v2275 = vunpack.c.l.b16 %v1912
        %v2276 = vunpack.c.h.b16 %v1912
        %v2277 = vunpack.c.l.b16 %v1913
        %v2278 = vunpack.c.l.b16 %v1914
        %v2279 = vunpack.c.h.b16 %v1914
        %v2280 = vunpack.c.l.b16 %v1915
        %v2281 = vunpack.c.h.b16 %v1915
        %v2282 = vunpack.c.l.b16 %v1916
        %v2283 = vunpack.c.h.b16 %v1916
        %v2284 = vunpack.c.l.b16 %v1917
        %v2285 = vunpack.c.h.b16 %v1917
        %v2286 = vunpack.c.l.b16 %v1918
        %v2287 = vunpack.c.l.b16 %v1919
        %v2288 = vunpack.c.h.b16 %v1919
        %v2289 = vunpack.c.l.b16 %v1920
        %v2290 = vunpack.c.h.b16 %v1920
        %v2291 = vunpack.c.l.b16 %v1921
        %v2292 = vunpack.c.h.b16 %v1921
        %v2293 = vunpack.c.l.b16 %v1922
        %v2294 = vunpack.c.h.b16 %v1922
        %v2295 = vunpack.c.l.b16 %v1923
        %v2296 = vunpack.c.l.b16 %v1924
        %v2297 = vunpack.c.h.b16 %v1924
        %v2298 = vunpack.c.l.b16 %v1925
        %v2299 = vunpack.c.h.b16 %v1925
        %v2300 = vunpack.c.l.b16 %v1926
        %v2301 = vunpack.c.h.b16 %v1926
        %v2302 = vunpack.c.l.b16 %v1927
        %v2303 = vunpack.c.h.b16 %v1927
        %v2304 = vunpack.c.l.b16 %v1928
        %v2305 = vunpack.c.l.b16 %v1929
        %v2306 = vunpack.c.h.b16 %v1929
        %v2307 = vunpack.c.l.b16 %v1930
        %v2308 = vunpack.c.h.b16 %v1930
        %v2309 = vunpack.c.l.b16 %v1931
        %v2310 = vunpack.c.h.b16 %v1931
        %v2311 = vunpack.c.l.b16 %v1932
        %v2312 = vunpack.c.h.b16 %v1932
        %v2313 = vunpack.c.l.b16 %v1933
        %v2314 = vunpack.c.l.b16 %v1934
        %v2315 = vunpack.c.h.b16 %v1934
        %v2316 = vunpack.c.l.b16 %v1935
        %v2317 = vunpack.c.h.b16 %v1935
        %v2318 = vunpack.c.l.b16 %v1936
        %v2319 = vunpack.c.h.b16 %v1936
        %v2320 = vunpack.c.l.b16 %v1937
        %v2321 = vunpack.c.h.b16 %v1937
        %v2322 = vunpack.c.l.b16 %v1938
        %v2323 = vunpack.c.l.b16 %v1939
        %v2324 = vunpack.c.h.b16 %v1939
        %v2325 = vunpack.c.l.b16 %v1940
        %v2326 = vunpack.c.h.b16 %v1940
        %v2327 = vunpack.c.l.b16 %v1941
        %v2328 = vunpack.c.h.b16 %v1941
        %v2329 = vunpack.c.l.b16 %v1942
        %v2330 = vunpack.c.h.b16 %v1942
        %v2331 = vunpack.c.l.b16 %v1943
        %v2332 = vunpack.c.l.b16 %v1944
        %v2333 = vunpack.c.h.b16 %v1944
        %v2334 = vunpack.c.l.b16 %v1945
        %v2335 = vunpack.c.h.b16 %v1945
        %v2336 = vunpack.c.l.b16 %v1946
        %v2337 = vunpack.c.h.b16 %v1946
        %v2338 = vunpack.c.l.b16 %v1947
        %v2339 = vunpack.c.h.b16 %v1947
        %v2340 = vunpack.c.l.b16 %v1948
        %v2341 = vunpack.c.l.b16 %v1949
        %v2342 = vunpack.c.h.b16 %v1949
        %v2343 = vunpack.c.l.b16 %v1950
        %v2344 = vunpack.c.h.b16 %v1950
        %v2345 = vunpack.c.l.b16 %v1951
        %v2346 = vunpack.c.h.b16 %v1951
        %v2347 = vunpack.c.l.b16 %v1952
        %v2348 = vunpack.c.h.b16 %v1952
        %v2349 = vunpack.c.l.b16 %v1953
        %v2350 = vunpack.c.l.b16 %v1954
        %v2351 = vunpack.c.h.b16 %v1954
        %v2352 = vunpack.c.l.b16 %v1955
        %v2353 = vunpack.c.h.b16 %v1955
        %v2354 = vunpack.c.l.b16 %v1956
        %v2355 = vunpack.c.h.b16 %v1956
        %v2356 = vunpack.c.l.b16 %v1957
        %v2357 = vunpack.c.h.b16 %v1957
        %v2358 = vunpack.c.l.b16 %v1958
        %v2359 = vunpack.c.l.b16 %v1959
        %v2360 = vunpack.c.h.b16 %v1959
        %v2361 = vunpack.c.l.b16 %v1960
        %v2362 = vunpack.c.h.b16 %v1960
        %v2363 = vunpack.c.l.b16 %v1961
        %v2364 = vunpack.c.h.b16 %v1961
        %v2365 = vunpack.c.l.b16 %v1962
        %v2366 = vunpack.c.h.b16 %v1962
        %v2367 = vunpack.c.l.b16 %v1963
        %v2368 = vunpack.c.l.b16 %v1964
        %v2369 = vunpack.c.h.b16 %v1964
        %v2370 = vunpack.c.l.b16 %v1965
        %v2371 = vunpack.c.h.b16 %v1965
        %v2372 = vunpack.c.l.b16 %v1966
        %v2373 = vunpack.c.h.b16 %v1966
        %v2374 = vunpack.c.l.b16 %v1967
        %v2375 = vunpack.c.h.b16 %v1967
        %v2376 = vunpack.c.l.b16 %v1968
        %v2377 = vunpack.c.l.b16 %v1969
        %v2378 = vunpack.c.h.b16 %v1969
        %v2379 = vunpack.c.l.b16 %v1970
        %v2380 = vunpack.c.h.b16 %v1970
        %v2381 = vunpack.c.l.b16 %v1971
        %v2382 = vunpack.c.h.b16 %v1971
        %v2383 = vunpack.c.l.b16 %v1972
        %v2384 = vunpack.c.h.b16 %v1972
        %v2385 = vunpack.c.l.b16 %v1973
        %v2386 = vunpack.c.l.b16 %v1974
        %v2387 = vunpack.c.h.b16 %v1974
        %v2388 = vunpack.c.l.b16 %v1975
        %v2389 = vunpack.c.h.b16 %v1975
        %v2390 = vunpack.c.l.b16 %v1976
        %v2391 = vunpack.c.h.b16 %v1976
        %v2392 = vunpack.c.l.b16 %v1977
        %v2393 = vunpack.c.h.b16 %v1977
        %v2394 = vunpack.c.l.b16 %v1978
        %v2395 = vunpack.c.l.b16 %v1979
        %v2396 = vunpack.c.h.b16 %v1979
        %v2397 = vunpack.c.l.b16 %v1980
        %v2398 = vunpack.c.h.b16 %v1980
        %v2399 = vunpack.c.l.b16 %v1981
        %v2400 = vunpack.c.h.b16 %v1981
        %v2401 = vunpack.c.l.b16 %v1982
        %v2402 = vunpack.c.h.b16 %v1982
        %v2403 = vunpack.c.l.b16 %v1983
        %v2404 = vunpack.c.l.b16 %v1984
        %v2405 = vunpack.c.h.b16 %v1984
        %v2406 = vunpack.c.l.b16 %v1985
        %v2407 = vunpack.c.h.b16 %v1985
        %v2408 = vunpack.c.l.b16 %v1986
        %v2409 = vunpack.c.h.b16 %v1986
        %v2410 = vunpack.c.l.b16 %v1987
        %v2411 = vunpack.c.h.b16 %v1987
        %v2412 = vunpack.c.l.b16 %v1988
        %v2413 = vpack.c.b16 %v2242, %v2233
        %v2414 = vpack.c.b16 %v2243, %v2234
        %v2415 = vpack.c.b16 %v2244, %v2235
        %v2416 = vpack.c.b16 %v2245, %v2236
        %v2417 = vpack.c.b16 %v2246, %v2237
        %v2418 = vpack.c.b16 %v2247, %v2238
        %v2419 = vpack.c.b16 %v2248, %v2239
        %v2420 = vpack.c.b16 %v2249, %v2240
        %v2421 = vpack.c.b16 %v2250, %v2241
        %v2422 = vpack.c.b16 %v2260, %v2251
        %v2423 = vpack.c.b16 %v2261, %v2252
        %v2424 = vpack.c.b16 %v2262, %v2253
        %v2425 = vpack.c.b16 %v2263, %v2254
        %v2426 = vpack.c.b16 %v2264, %v2255
        %v2427 = vpack.c.b16 %v2265, %v2256
        %v2428 = vpack.c.b16 %v2266, %v2257
        %v2429 = vpack.c.b16 %v2267, %v2258
        %v2430 = vpack.c.b16 %v2268, %v2259
        %v2431 = vpack.c.b16 %v2278, %v2269
        %v2432 = vpack.c.b16 %v2279, %v2270
        %v2433 = vpack.c.b16 %v2280, %v2271
        %v2434 = vpack.c.b16 %v2281, %v2272
        %v2435 = vpack.c.b16 %v2282, %v2273
        %v2436 = vpack.c.b16 %v2283, %v2274
        %v2437 = vpack.c.b16 %v2284, %v2275
        %v2438 = vpack.c.b16 %v2285, %v2276
        %v2439 = vpack.c.b16 %v2286, %v2277
        %v2440 = vpack.c.b16 %v2296, %v2287
        %v2441 = vpack.c.b16 %v2297, %v2288
        %v2442 = vpack.c.b16 %v2298, %v2289
        %v2443 = vpack.c.b16 %v2299, %v2290
        %v2444 = vpack.c.b16 %v2300, %v2291
        %v2445 = vpack.c.b16 %v2301, %v2292
        %v2446 = vpack.c.b16 %v2302, %v2293
        %v2447 = vpack.c.b16 %v2303, %v2294
        %v2448 = vpack.c.b16 %v2304, %v2295
        %v2449 = vpack.c.b16 %v2314, %v2305
        %v2450 = vpack.c.b16 %v2315, %v2306
        %v2451 = vpack.c.b16 %v2316, %v2307
        %v2452 = vpack.c.b16 %v2317, %v2308
        %v2453 = vpack.c.b16 %v2318, %v2309
        %v2454 = vpack.c.b16 %v2319, %v2310
        %v2455 = vpack.c.b16 %v2320, %v2311
        %v2456 = vpack.c.b16 %v2321, %v2312
        %v2457 = vpack.c.b16 %v2322, %v2313
        %v2458 = vpack.c.b16 %v2332, %v2323
        %v2459 = vpack.c.b16 %v2333, %v2324
        %v2460 = vpack.c.b16 %v2334, %v2325
        %v2461 = vpack.c.b16 %v2335, %v2326
        %v2462 = vpack.c.b16 %v2336, %v2327
        %v2463 = vpack.c.b16 %v2337, %v2328
        %v2464 = vpack.c.b16 %v2338, %v2329
        %v2465 = vpack.c.b16 %v2339, %v2330
        %v2466 = vpack.c.b16 %v2340, %v2331
        %v2467 = vpack.c.b16 %v2350, %v2341
        %v2468 = vpack.c.b16 %v2351, %v2342
        %v2469 = vpack.c.b16 %v2352, %v2343
        %v2470 = vpack.c.b16 %v2353, %v2344
        %v2471 = vpack.c.b16 %v2354, %v2345
        %v2472 = vpack.c.b16 %v2355, %v2346
        %v2473 = vpack.c.b16 %v2356, %v2347
        %v2474 = vpack.c.b16 %v2357, %v2348
        %v2475 = vpack.c.b16 %v2358, %v2349
        %v2476 = vpack.c.b16 %v2368, %v2359
        %v2477 = vpack.c.b16 %v2369, %v2360
        %v2478 = vpack.c.b16 %v2370, %v2361
        %v2479 = vpack.c.b16 %v2371, %v2362
        %v2480 = vpack.c.b16 %v2372, %v2363
        %v2481 = vpack.c.b16 %v2373, %v2364
        %v2482 = vpack.c.b16 %v2374, %v2365
        %v2483 = vpack.c.b16 %v2375, %v2366
        %v2484 = vpack.c.b16 %v2376, %v2367
        %v2485 = vpack.c.b16 %v2386, %v2377
        %v2486 = vpack.c.b16 %v2387, %v2378
        %v2487 = vpack.c.b16 %v2388, %v2379
        %v2488 = vpack.c.b16 %v2389, %v2380
        %v2489 = vpack.c.b16 %v2390, %v2381
        %v2490 = vpack.c.b16 %v2391, %v2382
        %v2491 = vpack.c.b16 %v2392, %v2383
        %v2492 = vpack.c.b16 %v2393, %v2384
        %v2493 = vpack.c.b16 %v2394, %v2385
        %v2494 = vpack.c.b16 %v2404, %v2395
        %v2495 = vpack.c.b16 %v2405, %v2396
        %v2496 = vpack.c.b16 %v2406, %v2397
        %v2497 = vpack.c.b16 %v2407, %v2398
        %v2498 = vpack.c.b16 %v2408, %v2399
        %v2499 = vpack.c.b16 %v2409, %v2400
        %v2500 = vpack.c.b16 %v2410, %v2401
        %v2501 = vpack.c.b16 %v2411, %v2402
        %v2502 = vpack.c.b16 %v2412, %v2403
        %v2737 = vunpack.c.l.b16 %v1989
        %v2738 = vunpack.c.l.b16 %v1990
        %v2739 = vunpack.c.l.b16 %v1991
        %v2740 = vunpack.c.l.b16 %v1992
        %v2741 = vunpack.c.l.b16 %v1993
        %v2742 = vunpack.c.l.b16 %v1994
        %v2743 = vunpack.c.l.b16 %v1995
        %v2744 = vunpack.c.l.b16 %v1996
        %v2745 = vunpack.c.l.b16 %v1997
        %v2746 = vunpack.c.l.b16 %v1998
        %v2747 = vunpack.c.l.b16 %v1999
        %v2748 = vunpack.c.l.b16 %v2000
        %v2749 = vunpack.c.l.b16 %v2001
        %v2750 = vunpack.c.l.b16 %v2002
        %v2751 = vunpack.c.l.b16 %v2003
        %v2752 = vunpack.c.l.b16 %v2004
        %v2753 = vunpack.c.l.b16 %v2005
        %v2754 = vunpack.c.l.b16 %v2006
        %v2755 = vunpack.c.l.b16 %v2007
        %v2756 = vunpack.c.l.b16 %v2008
        %v2757 = vunpack.c.l.b16 %v2009
        %v2758 = vunpack.c.l.b16 %v2010
        %v2759 = vunpack.c.l.b16 %v2011
        %v2760 = vunpack.c.l.b16 %v2012
        %v2761 = vunpack.c.l.b16 %v2013
        %v2762 = vunpack.c.l.b16 %v2014
        %v2763 = vunpack.c.l.b16 %v2015
        %v2764 = vunpack.c.l.b16 %v2016
        %v2765 = vunpack.c.l.b16 %v2017
        %v2766 = vunpack.c.l.b16 %v2018
        %v2767 = vunpack.c.l.b16 %v2019
        %v2768 = vunpack.c.l.b16 %v2020
        %v2769 = vunpack.c.l.b16 %v2021
        %v2770 = vunpack.c.l.b16 %v2022
        %v2771 = vunpack.c.l.b16 %v2023
        %v2772 = vunpack.c.l.b16 %v2024
        %v2773 = vunpack.c.l.b16 %v2025
        %v2774 = vunpack.c.l.b16 %v2026
        %v2775 = vunpack.c.l.b16 %v2027
        %v2776 = vunpack.c.l.b16 %v2028
        %v2777 = vunpack.c.l.b16 %v2029
        %v2778 = vunpack.c.l.b16 %v2030
        %v2779 = vunpack.c.l.b16 %v2031
        %v2780 = vunpack.c.l.b16 %v2032
        %v2781 = vunpack.c.l.b16 %v2033
        %v2782 = vunpack.c.l.b16 %v2034
        %v2783 = vunpack.c.l.b16 %v2035
        %v2784 = vunpack.c.l.b16 %v2036
        %v2785 = vunpack.c.l.b16 %v2037
        %v2786 = vunpack.c.l.b16 %v2038
        %v2787 = vunpack.c.l.b16 %v2039
        %v2788 = vunpack.c.l.b16 %v2040
        %v2789 = vunpack.c.l.b16 %v2041
        %v2790 = vunpack.c.l.b16 %v2042
        %v2791 = vunpack.c.l.b16 %v2043
        %v2792 = vunpack.c.l.b16 %v2044
        %v2793 = vunpack.c.l.b16 %v2045
        %v2794 = vunpack.c.l.b16 %v2046
        %v2795 = vunpack.c.l.b16 %v2047
        %v2796 = vunpack.c.l.b16 %v2048
        %v2797 = vunpack.c.l.b16 %v2049
        %v2798 = vunpack.c.l.b16 %v2050
        %v2799 = vunpack.c.l.b16 %v2051
        %v2800 = vunpack.c.l.b16 %v2052
        %v2801 = vunpack.c.l.b16 %v2053
        %v2802 = vunpack.c.l.b16 %v2054
        %v2803 = vunpack.c.l.b16 %v2055
        %v2804 = vunpack.c.l.b16 %v2056
        %v2805 = vunpack.c.l.b16 %v2057
        %v2806 = vunpack.c.l.b16 %v2058
        %v2807 = vunpack.c.l.b16 %v2059
        %v2808 = vunpack.c.l.b16 %v2060
        %v2809 = vunpack.c.l.b16 %v2061
        %v2810 = vunpack.c.l.b16 %v2062
        %v2811 = vunpack.c.l.b16 %v2063
        %v2812 = vunpack.c.l.b16 %v2064
        %v2813 = vunpack.c.l.b16 %v2065
        %v2814 = vunpack.c.l.b16 %v2066
        %v2815 = vunpack.c.l.b16 %v2067
        %v2816 = vunpack.c.l.b16 %v2068
        %v2817 = vunpack.c.l.b16 %v2069
        %v2818 = vunpack.c.l.b16 %v2070
        %v2819 = vunpack.c.l.b16 %v2071
        %v2820 = vunpack.c.l.b16 %v2072
        %v2821 = vunpack.c.l.b16 %v2073
        %v2822 = vunpack.c.l.b16 %v2074
        %v2823 = vunpack.c.l.b16 %v2075
        %v2824 = vunpack.c.l.b16 %v2076
        %v2825 = vunpack.c.l.b16 %v2077
        %v2826 = vunpack.c.l.b16 %v2078
        %v2827 = vunpack.c.l.b16 %v2079
        %v2828 = vunpack.c.l.b16 %v2080
        %v2829 = vunpack.c.l.b16 %v2081
        %v2830 = vunpack.c.l.b16 %v2082
        %v2831 = vunpack.c.l.b16 %v2083
        %v2832 = vunpack.c.l.b16 %v2084
        %v2833 = vunpack.c.l.b16 %v2085
        %v2834 = vunpack.c.l.b16 %v2086
        %v2835 = vunpack.c.l.b16 %v2087
        %v2836 = vunpack.c.l.b16 %v2088
        %v2837 = vunpack.c.l.b16 %v2089
        %v2838 = vunpack.c.l.b16 %v2090
        %v2839 = vunpack.c.l.b16 %v2091
        %v2840 = vunpack.c.l.b16 %v2092
        %v2841 = vunpack.c.l.b16 %v2093
        %v2842 = vunpack.c.l.b16 %v2094
        %v2843 = vunpack.c.l.b16 %v2095
        %v2844 = vunpack.c.l.b16 %v2096
        %v2845 = vunpack.c.l.b16 %v2097
        %v2846 = vunpack.c.l.b16 %v2098
        %v2847 = vunpack.c.l.b16 %v2099
        %v2848 = vunpack.c.l.b16 %v2100
        %v2849 = vunpack.c.l.b16 %v2101
        %v2850 = vunpack.c.l.b16 %v2102
        %v2851 = vunpack.c.l.b16 %v2103
        %v2852 = vunpack.c.l.b16 %v2104
        %v2853 = vunpack.c.l.b16 %v2105
        %v2854 = vunpack.c.l.b16 %v2106
        %v2855 = vunpack.c.l.b16 %v2107
        %v2856 = vunpack.c.l.b16 %v2108
        %v2857 = vunpack.c.l.b16 %v2109
        %v2858 = vunpack.c.l.b16 %v2110
        %v2859 = vunpack.c.l.b16 %v2111
        %v2860 = vunpack.c.l.b16 %v2112
        %v2861 = vunpack.c.l.b16 %v2113
        %v2862 = vunpack.c.l.b16 %v2114
        %v2863 = vunpack.c.l.b16 %v2115
        %v2864 = vunpack.c.l.b16 %v2116
        %v2865 = vunpack.c.l.b16 %v2117
        %v2866 = vunpack.c.l.b16 %v2118
        %v2867 = vunpack.c.l.b16 %v2119
        %v2868 = vunpack.c.l.b16 %v2120
        %v2869 = vunpack.c.l.b16 %v2121
        %v2870 = vunpack.c.l.b16 %v2122
        %v2871 = vunpack.c.l.b16 %v2123
        %v2872 = vunpack.c.l.b16 %v2124
        %v2873 = vunpack.c.l.b16 %v2125
        %v2874 = vunpack.c.l.b16 %v2126
        %v2875 = vunpack.c.l.b16 %v2127
        %v2876 = vunpack.c.l.b16 %v2128
        %v2877 = vunpack.c.l.b16 %v2129
        %v2878 = vunpack.c.l.b16 %v2130
        %v2879 = vunpack.c.l.b16 %v2131
        %v2880 = vunpack.c.l.b16 %v2132
        %v2881 = vpack.c.b16 %v2738, %v2737
        %v2882 = vpack.c.b16 %v2740, %v2739
        %v2883 = vpack.c.b16 %v2742, %v2741
        %v2884 = vpack.c.b16 %v2744, %v2743
        %v2885 = vpack.c.b16 %v2746, %v2745
        %v2886 = vpack.c.b16 %v2748, %v2747
        %v2887 = vpack.c.b16 %v2750, %v2749
        %v2888 = vpack.c.b16 %v2752, %v2751
        %v2889 = vpack.c.b16 %v2754, %v2753
        %v2890 = vpack.c.b16 %v2756, %v2755
        %v2891 = vpack.c.b16 %v2758, %v2757
        %v2892 = vpack.c.b16 %v2760, %v2759
        %v2893 = vpack.c.b16 %v2762, %v2761
        %v2894 = vpack.c.b16 %v2764, %v2763
        %v2895 = vpack.c.b16 %v2766, %v2765
        %v2896 = vpack.c.b16 %v2768, %v2767
        %v2897 = vpack.c.b16 %v2770, %v2769
        %v2898 = vpack.c.b16 %v2772, %v2771
        %v2899 = vpack.c.b16 %v2774, %v2773
        %v2900 = vpack.c.b16 %v2776, %v2775
        %v2901 = vpack.c.b16 %v2778, %v2777
        %v2902 = vpack.c.b16 %v2780, %v2779
        %v2903 = vpack.c.b16 %v2782, %v2781
        %v2904 = vpack.c.b16 %v2784, %v2783
        %v2905 = vpack.c.b16 %v2786, %v2785
        %v2906 = vpack.c.b16 %v2788, %v2787
        %v2907 = vpack.c.b16 %v2790, %v2789
        %v2908 = vpack.c.b16 %v2792, %v2791
        %v2909 = vpack.c.b16 %v2794, %v2793
        %v2910 = vpack.c.b16 %v2796, %v2795
        %v2911 = vpack.c.b16 %v2798, %v2797
        %v2912 = vpack.c.b16 %v2800, %v2799
        %v2913 = vpack.c.b16 %v2802, %v2801
        %v2914 = vpack.c.b16 %v2804, %v2803
        %v2915 = vpack.c.b16 %v2806, %v2805
        %v2916 = vpack.c.b16 %v2808, %v2807
        %v2917 = vpack.c.b16 %v2810, %v2809
        %v2918 = vpack.c.b16 %v2812, %v2811
        %v2919 = vpack.c.b16 %v2814, %v2813
        %v2920 = vpack.c.b16 %v2816, %v2815
        %v2921 = vpack.c.b16 %v2818, %v2817
        %v2922 = vpack.c.b16 %v2820, %v2819
        %v2923 = vpack.c.b16 %v2822, %v2821
        %v2924 = vpack.c.b16 %v2824, %v2823
        %v2925 = vpack.c.b16 %v2826, %v2825
        %v2926 = vpack.c.b16 %v2828, %v2827
        %v2927 = vpack.c.b16 %v2830, %v2829
        %v2928 = vpack.c.b16 %v2832, %v2831
        %v2929 = vpack.c.b16 %v2834, %v2833
        %v2930 = vpack.c.b16 %v2836, %v2835
        %v2931 = vpack.c.b16 %v2838, %v2837
        %v2932 = vpack.c.b16 %v2840, %v2839
        %v2933 = vpack.c.b16 %v2842, %v2841
        %v2934 = vpack.c.b16 %v2844, %v2843
        %v2935 = vpack.c.b16 %v2846, %v2845
        %v2936 = vpack.c.b16 %v2848, %v2847
        %v2937 = vpack.c.b16 %v2850, %v2849
        %v2938 = vpack.c.b16 %v2852, %v2851
        %v2939 = vpack.c.b16 %v2854, %v2853
        %v2940 = vpack.c.b16 %v2856, %v2855
        %v2941 = vpack.c.b16 %v2858, %v2857
        %v2942 = vpack.c.b16 %v2860, %v2859
        %v2943 = vpack.c.b16 %v2862, %v2861
        %v2944 = vpack.c.b16 %v2864, %v2863
        %v2945 = vpack.c.b16 %v2866, %v2865
        %v2946 = vpack.c.b16 %v2868, %v2867
        %v2947 = vpack.c.b16 %v2870, %v2869
        %v2948 = vpack.c.b16 %v2872, %v2871
        %v2949 = vpack.c.b16 %v2874, %v2873
        %v2950 = vpack.c.b16 %v2876, %v2875
        %v2951 = vpack.c.b16 %v2878, %v2877
        %v2952 = vpack.c.b16 %v2880, %v2879
        %3025 = vmatprep.subr.bf16.mxu0 0
        %3026 = vmatpush1.bf16.msra.mxu0 %v2888
        %3027 = vmatprep.subr.bf16.mxu0 0
        %3028 = vmatpush1.bf16.msra.mxu0 %v2887
        %3029 = vmatprep.subr.bf16.mxu0 0
        %3030 = vmatpush1.bf16.msra.mxu0 %v2886
        %3031 = vmatprep.subr.bf16.mxu0 0
        %3032 = vmatpush1.bf16.msra.mxu0 %v2885
        %3033 = vmatprep.subr.bf16.mxu0 0
        %3034 = vmatpush1.bf16.msra.mxu0 %v2884
        %3035 = vmatprep.subr.bf16.mxu0 0
        %3036 = vmatpush1.bf16.msra.mxu0 %v2883
        %3037 = vmatprep.subr.bf16.mxu0 0
        %3038 = vmatpush1.bf16.msra.mxu0 %v2882
        %3039 = vmatprep.subr.bf16.mxu0 0
        %3040 = vmatpush1.bf16.msra.mxu0 %v2881
        %3041 = vmatprep.subr.bf16.mxu0 0
        %3042 = vmatpush2.bf16.msra.mxu0 %v2896
        %3043 = vmatprep.subr.bf16.mxu0 0
        %3044 = vmatpush2.bf16.msra.mxu0 %v2895
        %3045 = vmatprep.subr.bf16.mxu0 0
        %3046 = vmatpush2.bf16.msra.mxu0 %v2894
        %3047 = vmatprep.subr.bf16.mxu0 0
        %3048 = vmatpush2.bf16.msra.mxu0 %v2893
        %3049 = vmatprep.subr.bf16.mxu0 0
        %3050 = vmatpush2.bf16.msra.mxu0 %v2892
        %3051 = vmatprep.subr.bf16.mxu0 0
        %3052 = vmatpush2.bf16.msra.mxu0 %v2891
        %3053 = vmatprep.subr.bf16.mxu0 0
        %3054 = vmatpush2.bf16.msra.mxu0 %v2890
        %3055 = vmatprep.subr.bf16.mxu0 0
        %3056 = vmatpush2.bf16.msra.mxu0 %v2889
        %3057 = vmatprep.mubr.bf16.mxu0 %v2414
        %3058 = vmatmul.mubr.bf16.gmra.mxu0 %v2413
        %v3059 = vpop.f32.mrf.mxu0
        %v3060 = vadd.f32 0.0, %v3059
        %v3061 = vpop.f32.mrf.mxu0
        %v3062 = vpop.f32.mrf.mxu0
        %v3063 = vadd.f32 0.0, %v3062
        %v3064 = vpop.f32.mrf.mxu0
        %3065 = vmatprep.mubr.bf16.mxu0 %v2423
        %3066 = vmatmul.mubr.bf16.gmra.mxu0 %v2422
        %v3067 = vpop.f32.mrf.mxu0
        %v3068 = vadd.f32 0.0, %v3067
        %v3069 = vpop.f32.mrf.mxu0
        %v3070 = vpop.f32.mrf.mxu0
        %v3071 = vadd.f32 0.0, %v3070
        %v3072 = vpop.f32.mrf.mxu0
        %3073 = vmatprep.mubr.bf16.mxu0 %v2432
        %3074 = vmatmul.mubr.bf16.gmra.mxu0 %v2431
        %v3075 = vpop.f32.mrf.mxu0
        %v3076 = vadd.f32 0.0, %v3075
        %v3077 = vpop.f32.mrf.mxu0
        %v3078 = vpop.f32.mrf.mxu0
        %v3079 = vadd.f32 0.0, %v3078
        %v3080 = vpop.f32.mrf.mxu0
        %3081 = vmatprep.mubr.bf16.mxu0 %v2441
        %3082 = vmatmul.mubr.bf16.gmra.mxu0 %v2440
        %v3083 = vpop.f32.mrf.mxu0
        %v3084 = vadd.f32 0.0, %v3083
        %v3085 = vpop.f32.mrf.mxu0
        %v3086 = vpop.f32.mrf.mxu0
        %v3087 = vadd.f32 0.0, %v3086
        %v3088 = vpop.f32.mrf.mxu0
        %3089 = vmatprep.mubr.bf16.mxu0 %v2450
        %3090 = vmatmul.mubr.bf16.gmra.mxu0 %v2449
        %v3091 = vpop.f32.mrf.mxu0
        %v3092 = vadd.f32 0.0, %v3091
        %v3093 = vpop.f32.mrf.mxu0
        %v3094 = vpop.f32.mrf.mxu0
        %v3095 = vadd.f32 0.0, %v3094
        %v3096 = vpop.f32.mrf.mxu0
        %3097 = vmatprep.mubr.bf16.mxu0 %v2459
        %3098 = vmatmul.mubr.bf16.gmra.mxu0 %v2458
        %v3099 = vpop.f32.mrf.mxu0
        %v3100 = vadd.f32 0.0, %v3099
        %v3101 = vpop.f32.mrf.mxu0
        %v3102 = vpop.f32.mrf.mxu0
        %v3103 = vadd.f32 0.0, %v3102
        %v3104 = vpop.f32.mrf.mxu0
        %3105 = vmatprep.mubr.bf16.mxu0 %v2468
        %3106 = vmatmul.mubr.bf16.gmra.mxu0 %v2467
        %v3107 = vpop.f32.mrf.mxu0
        %v3108 = vadd.f32 0.0, %v3107
        %v3109 = vpop.f32.mrf.mxu0
        %v3110 = vpop.f32.mrf.mxu0
        %v3111 = vadd.f32 0.0, %v3110
        %v3112 = vpop.f32.mrf.mxu0
        %3113 = vmatprep.mubr.bf16.mxu0 %v2477
        %3114 = vmatmul.mubr.bf16.gmra.mxu0 %v2476
        %v3115 = vpop.f32.mrf.mxu0
        %v3116 = vadd.f32 0.0, %v3115
        %v3117 = vpop.f32.mrf.mxu0
        %v3118 = vpop.f32.mrf.mxu0
        %v3119 = vadd.f32 0.0, %v3118
        %v3120 = vpop.f32.mrf.mxu0
        %3121 = vmatprep.mubr.bf16.mxu0 %v2486
        %3122 = vmatmul.mubr.bf16.gmra.mxu0 %v2485
        %v3123 = vpop.f32.mrf.mxu0
        %v3124 = vadd.f32 0.0, %v3123
        %v3125 = vpop.f32.mrf.mxu0
        %v3126 = vpop.f32.mrf.mxu0
        %v3127 = vadd.f32 0.0, %v3126
        %v3128 = vpop.f32.mrf.mxu0
        %3129 = vmatprep.mubr.bf16.mxu0 %v2495
        %3130 = vmatmul.mubr.bf16.gmra.mxu0 %v2494
        %v3131 = vpop.f32.mrf.mxu0
        %v3132 = vadd.f32 0.0, %v3131
        %v3133 = vpop.f32.mrf.mxu0
        %v3134 = vpop.f32.mrf.mxu0
        %v3135 = vadd.f32 0.0, %v3134
        %v3136 = vpop.f32.mrf.mxu0
        %3137 = vdwg.mxu0
        %3138 = vmatprep.subr.bf16.mxu0 0
        %3139 = vmatpush1.bf16.msra.mxu0 %v2904
        %3140 = vmatprep.subr.bf16.mxu0 0
        %3141 = vmatpush1.bf16.msra.mxu0 %v2903
        %3142 = vmatprep.subr.bf16.mxu0 0
        %3143 = vmatpush1.bf16.msra.mxu0 %v2902
        %3144 = vmatprep.subr.bf16.mxu0 0
        %3145 = vmatpush1.bf16.msra.mxu0 %v2901
        %3146 = vmatprep.subr.bf16.mxu0 0
        %3147 = vmatpush1.bf16.msra.mxu0 %v2900
        %3148 = vmatprep.subr.bf16.mxu0 0
        %3149 = vmatpush1.bf16.msra.mxu0 %v2899
        %3150 = vmatprep.subr.bf16.mxu0 0
        %3151 = vmatpush1.bf16.msra.mxu0 %v2898
        %3152 = vmatprep.subr.bf16.mxu0 0
        %3153 = vmatpush1.bf16.msra.mxu0 %v2897
        %3154 = vmatprep.subr.bf16.mxu0 0
        %3155 = vmatpush2.bf16.msra.mxu0 %v2912
        %3156 = vmatprep.subr.bf16.mxu0 0
        %3157 = vmatpush2.bf16.msra.mxu0 %v2911
        %3158 = vmatprep.subr.bf16.mxu0 0
        %3159 = vmatpush2.bf16.msra.mxu0 %v2910
        %3160 = vmatprep.subr.bf16.mxu0 0
        %3161 = vmatpush2.bf16.msra.mxu0 %v2909
        %3162 = vmatprep.subr.bf16.mxu0 0
        %3163 = vmatpush2.bf16.msra.mxu0 %v2908
        %3164 = vmatprep.subr.bf16.mxu0 0
        %3165 = vmatpush2.bf16.msra.mxu0 %v2907
        %3166 = vmatprep.subr.bf16.mxu0 0
        %3167 = vmatpush2.bf16.msra.mxu0 %v2906
        %3168 = vmatprep.subr.bf16.mxu0 0
        %3169 = vmatpush2.bf16.msra.mxu0 %v2905
        %3170 = vmatprep.mubr.bf16.mxu0 %v2416
        %3171 = vmatmul.mubr.bf16.gmra.mxu0 %v2415
        %v3172 = vpop.f32.mrf.mxu0
        %v3173 = vadd.f32 %v3060, %v3172
        %v3174 = vpop.f32.mrf.mxu0
        %v3175 = vpop.f32.mrf.mxu0
        %v3176 = vadd.f32 %v3063, %v3175
        %v3177 = vpop.f32.mrf.mxu0
        %3178 = vmatprep.mubr.bf16.mxu0 %v2425
        %3179 = vmatmul.mubr.bf16.gmra.mxu0 %v2424
        %v3180 = vpop.f32.mrf.mxu0
        %v3181 = vadd.f32 %v3068, %v3180
        %v3182 = vpop.f32.mrf.mxu0
        %v3183 = vpop.f32.mrf.mxu0
        %v3184 = vadd.f32 %v3071, %v3183
        %v3185 = vpop.f32.mrf.mxu0
        %3186 = vmatprep.mubr.bf16.mxu0 %v2434
        %3187 = vmatmul.mubr.bf16.gmra.mxu0 %v2433
        %v3188 = vpop.f32.mrf.mxu0
        %v3189 = vadd.f32 %v3076, %v3188
        %v3190 = vpop.f32.mrf.mxu0
        %v3191 = vpop.f32.mrf.mxu0
        %v3192 = vadd.f32 %v3079, %v3191
        %v3193 = vpop.f32.mrf.mxu0
        %3194 = vmatprep.mubr.bf16.mxu0 %v2443
        %3195 = vmatmul.mubr.bf16.gmra.mxu0 %v2442
        %v3196 = vpop.f32.mrf.mxu0
        %v3197 = vadd.f32 %v3084, %v3196
        %v3198 = vpop.f32.mrf.mxu0
        %v3199 = vpop.f32.mrf.mxu0
        %v3200 = vadd.f32 %v3087, %v3199
        %v3201 = vpop.f32.mrf.mxu0
        %3202 = vmatprep.mubr.bf16.mxu0 %v2452
        %3203 = vmatmul.mubr.bf16.gmra.mxu0 %v2451
        %v3204 = vpop.f32.mrf.mxu0
        %v3205 = vadd.f32 %v3092, %v3204
        %v3206 = vpop.f32.mrf.mxu0
        %v3207 = vpop.f32.mrf.mxu0
        %v3208 = vadd.f32 %v3095, %v3207
        %v3209 = vpop.f32.mrf.mxu0
        %3210 = vmatprep.mubr.bf16.mxu0 %v2461
        %3211 = vmatmul.mubr.bf16.gmra.mxu0 %v2460
        %v3212 = vpop.f32.mrf.mxu0
        %v3213 = vadd.f32 %v3100, %v3212
        %v3214 = vpop.f32.mrf.mxu0
        %v3215 = vpop.f32.mrf.mxu0
        %v3216 = vadd.f32 %v3103, %v3215
        %v3217 = vpop.f32.mrf.mxu0
        %3218 = vmatprep.mubr.bf16.mxu0 %v2470
        %3219 = vmatmul.mubr.bf16.gmra.mxu0 %v2469
        %v3220 = vpop.f32.mrf.mxu0
        %v3221 = vadd.f32 %v3108, %v3220
        %v3222 = vpop.f32.mrf.mxu0
        %v3223 = vpop.f32.mrf.mxu0
        %v3224 = vadd.f32 %v3111, %v3223
        %v3225 = vpop.f32.mrf.mxu0
        %3226 = vmatprep.mubr.bf16.mxu0 %v2479
        %3227 = vmatmul.mubr.bf16.gmra.mxu0 %v2478
        %v3228 = vpop.f32.mrf.mxu0
        %v3229 = vadd.f32 %v3116, %v3228
        %v3230 = vpop.f32.mrf.mxu0
        %v3231 = vpop.f32.mrf.mxu0
        %v3232 = vadd.f32 %v3119, %v3231
        %v3233 = vpop.f32.mrf.mxu0
        %3234 = vmatprep.mubr.bf16.mxu0 %v2488
        %3235 = vmatmul.mubr.bf16.gmra.mxu0 %v2487
        %v3236 = vpop.f32.mrf.mxu0
        %v3237 = vadd.f32 %v3124, %v3236
        %v3238 = vpop.f32.mrf.mxu0
        %v3239 = vpop.f32.mrf.mxu0
        %v3240 = vadd.f32 %v3127, %v3239
        %v3241 = vpop.f32.mrf.mxu0
        %3242 = vmatprep.mubr.bf16.mxu0 %v2497
        %3243 = vmatmul.mubr.bf16.gmra.mxu0 %v2496
        %v3244 = vpop.f32.mrf.mxu0
        %v3245 = vadd.f32 %v3132, %v3244
        %v3246 = vpop.f32.mrf.mxu0
        %v3247 = vpop.f32.mrf.mxu0
        %v3248 = vadd.f32 %v3135, %v3247
        %v3249 = vpop.f32.mrf.mxu0
        %3250 = vdwg.mxu0
        %3251 = vmatprep.subr.bf16.mxu0 0
        %3252 = vmatpush1.bf16.msra.mxu0 %v2920
        %3253 = vmatprep.subr.bf16.mxu0 0
        %3254 = vmatpush1.bf16.msra.mxu0 %v2919
        %3255 = vmatprep.subr.bf16.mxu0 0
        %3256 = vmatpush1.bf16.msra.mxu0 %v2918
        %3257 = vmatprep.subr.bf16.mxu0 0
        %3258 = vmatpush1.bf16.msra.mxu0 %v2917
        %3259 = vmatprep.subr.bf16.mxu0 0
        %3260 = vmatpush1.bf16.msra.mxu0 %v2916
        %3261 = vmatprep.subr.bf16.mxu0 0
        %3262 = vmatpush1.bf16.msra.mxu0 %v2915
        %3263 = vmatprep.subr.bf16.mxu0 0
        %3264 = vmatpush1.bf16.msra.mxu0 %v2914
        %3265 = vmatprep.subr.bf16.mxu0 0
        %3266 = vmatpush1.bf16.msra.mxu0 %v2913
        %3267 = vmatprep.subr.bf16.mxu0 0
        %3268 = vmatpush2.bf16.msra.mxu0 %v2928
        %3269 = vmatprep.subr.bf16.mxu0 0
        %3270 = vmatpush2.bf16.msra.mxu0 %v2927
        %3271 = vmatprep.subr.bf16.mxu0 0
        %3272 = vmatpush2.bf16.msra.mxu0 %v2926
        %3273 = vmatprep.subr.bf16.mxu0 0
        %3274 = vmatpush2.bf16.msra.mxu0 %v2925
        %3275 = vmatprep.subr.bf16.mxu0 0
        %3276 = vmatpush2.bf16.msra.mxu0 %v2924
        %3277 = vmatprep.subr.bf16.mxu0 0
        %3278 = vmatpush2.bf16.msra.mxu0 %v2923
        %3279 = vmatprep.subr.bf16.mxu0 0
        %3280 = vmatpush2.bf16.msra.mxu0 %v2922
        %3281 = vmatprep.subr.bf16.mxu0 0
        %3282 = vmatpush2.bf16.msra.mxu0 %v2921
        %3283 = vmatprep.mubr.bf16.mxu0 %v2418
        %3284 = vmatmul.mubr.bf16.gmra.mxu0 %v2417
        %v3285 = vpop.f32.mrf.mxu0
        %v3286 = vadd.f32 %v3173, %v3285
        %v3287 = vpop.f32.mrf.mxu0
        %v3288 = vpop.f32.mrf.mxu0
        %v3289 = vadd.f32 %v3176, %v3288
        %v3290 = vpop.f32.mrf.mxu0
        %3291 = vmatprep.mubr.bf16.mxu0 %v2427
        %3292 = vmatmul.mubr.bf16.gmra.mxu0 %v2426
        %v3293 = vpop.f32.mrf.mxu0
        %v3294 = vadd.f32 %v3181, %v3293
        %v3295 = vpop.f32.mrf.mxu0
        %v3296 = vpop.f32.mrf.mxu0
        %v3297 = vadd.f32 %v3184, %v3296
        %v3298 = vpop.f32.mrf.mxu0
        %3299 = vmatprep.mubr.bf16.mxu0 %v2436
        %3300 = vmatmul.mubr.bf16.gmra.mxu0 %v2435
        %v3301 = vpop.f32.mrf.mxu0
        %v3302 = vadd.f32 %v3189, %v3301
        %v3303 = vpop.f32.mrf.mxu0
        %v3304 = vpop.f32.mrf.mxu0
        %v3305 = vadd.f32 %v3192, %v3304
        %v3306 = vpop.f32.mrf.mxu0
        %3307 = vmatprep.mubr.bf16.mxu0 %v2445
        %3308 = vmatmul.mubr.bf16.gmra.mxu0 %v2444
        %v3309 = vpop.f32.mrf.mxu0
        %v3310 = vadd.f32 %v3197, %v3309
        %v3311 = vpop.f32.mrf.mxu0
        %v3312 = vpop.f32.mrf.mxu0
        %v3313 = vadd.f32 %v3200, %v3312
        %v3314 = vpop.f32.mrf.mxu0
        %3315 = vmatprep.mubr.bf16.mxu0 %v2454
        %3316 = vmatmul.mubr.bf16.gmra.mxu0 %v2453
        %v3317 = vpop.f32.mrf.mxu0
        %v3318 = vadd.f32 %v3205, %v3317
        %v3319 = vpop.f32.mrf.mxu0
        %v3320 = vpop.f32.mrf.mxu0
        %v3321 = vadd.f32 %v3208, %v3320
        %v3322 = vpop.f32.mrf.mxu0
        %3323 = vmatprep.mubr.bf16.mxu0 %v2463
        %3324 = vmatmul.mubr.bf16.gmra.mxu0 %v2462
        %v3325 = vpop.f32.mrf.mxu0
        %v3326 = vadd.f32 %v3213, %v3325
        %v3327 = vpop.f32.mrf.mxu0
        %v3328 = vpop.f32.mrf.mxu0
        %v3329 = vadd.f32 %v3216, %v3328
        %v3330 = vpop.f32.mrf.mxu0
        %3331 = vmatprep.mubr.bf16.mxu0 %v2472
        %3332 = vmatmul.mubr.bf16.gmra.mxu0 %v2471
        %v3333 = vpop.f32.mrf.mxu0
        %v3334 = vadd.f32 %v3221, %v3333
        %v3335 = vpop.f32.mrf.mxu0
        %v3336 = vpop.f32.mrf.mxu0
        %v3337 = vadd.f32 %v3224, %v3336
        %v3338 = vpop.f32.mrf.mxu0
        %3339 = vmatprep.mubr.bf16.mxu0 %v2481
        %3340 = vmatmul.mubr.bf16.gmra.mxu0 %v2480
        %v3341 = vpop.f32.mrf.mxu0
        %v3342 = vadd.f32 %v3229, %v3341
        %v3343 = vpop.f32.mrf.mxu0
        %v3344 = vpop.f32.mrf.mxu0
        %v3345 = vadd.f32 %v3232, %v3344
        %v3346 = vpop.f32.mrf.mxu0
        %3347 = vmatprep.mubr.bf16.mxu0 %v2490
        %3348 = vmatmul.mubr.bf16.gmra.mxu0 %v2489
        %v3349 = vpop.f32.mrf.mxu0
        %v3350 = vadd.f32 %v3237, %v3349
        %v3351 = vpop.f32.mrf.mxu0
        %v3352 = vpop.f32.mrf.mxu0
        %v3353 = vadd.f32 %v3240, %v3352
        %v3354 = vpop.f32.mrf.mxu0
        %3355 = vmatprep.mubr.bf16.mxu0 %v2499
        %3356 = vmatmul.mubr.bf16.gmra.mxu0 %v2498
        %v3357 = vpop.f32.mrf.mxu0
        %v3358 = vadd.f32 %v3245, %v3357
        %v3359 = vpop.f32.mrf.mxu0
        %v3360 = vpop.f32.mrf.mxu0
        %v3361 = vadd.f32 %v3248, %v3360
        %v3362 = vpop.f32.mrf.mxu0
        %3363 = vdwg.mxu0
        %3364 = vmatprep.subr.bf16.mxu0 0
        %3365 = vmatpush1.bf16.msra.mxu0 %v2936
        %3366 = vmatprep.subr.bf16.mxu0 0
        %3367 = vmatpush1.bf16.msra.mxu0 %v2935
        %3368 = vmatprep.subr.bf16.mxu0 0
        %3369 = vmatpush1.bf16.msra.mxu0 %v2934
        %3370 = vmatprep.subr.bf16.mxu0 0
        %3371 = vmatpush1.bf16.msra.mxu0 %v2933
        %3372 = vmatprep.subr.bf16.mxu0 0
        %3373 = vmatpush1.bf16.msra.mxu0 %v2932
        %3374 = vmatprep.subr.bf16.mxu0 0
        %3375 = vmatpush1.bf16.msra.mxu0 %v2931
        %3376 = vmatprep.subr.bf16.mxu0 0
        %3377 = vmatpush1.bf16.msra.mxu0 %v2930
        %3378 = vmatprep.subr.bf16.mxu0 0
        %3379 = vmatpush1.bf16.msra.mxu0 %v2929
        %3380 = vmatprep.subr.bf16.mxu0 0
        %3381 = vmatpush2.bf16.msra.mxu0 %v2944
        %3382 = vmatprep.subr.bf16.mxu0 0
        %3383 = vmatpush2.bf16.msra.mxu0 %v2943
        %3384 = vmatprep.subr.bf16.mxu0 0
        %3385 = vmatpush2.bf16.msra.mxu0 %v2942
        %3386 = vmatprep.subr.bf16.mxu0 0
        %3387 = vmatpush2.bf16.msra.mxu0 %v2941
        %3388 = vmatprep.subr.bf16.mxu0 0
        %3389 = vmatpush2.bf16.msra.mxu0 %v2940
        %3390 = vmatprep.subr.bf16.mxu0 0
        %3391 = vmatpush2.bf16.msra.mxu0 %v2939
        %3392 = vmatprep.subr.bf16.mxu0 0
        %3393 = vmatpush2.bf16.msra.mxu0 %v2938
        %3394 = vmatprep.subr.bf16.mxu0 0
        %3395 = vmatpush2.bf16.msra.mxu0 %v2937
        %3396 = vmatprep.mubr.bf16.mxu0 %v2420
        %3397 = vmatmul.mubr.bf16.gmra.mxu0 %v2419
        %v3398 = vpop.f32.mrf.mxu0
        %v3399 = vadd.f32 %v3286, %v3398
        %v3400 = vpop.f32.mrf.mxu0
        %v3401 = vpop.f32.mrf.mxu0
        %v3402 = vadd.f32 %v3289, %v3401
        %v3403 = vpop.f32.mrf.mxu0
        %3404 = vmatprep.mubr.bf16.mxu0 %v2429
        %3405 = vmatmul.mubr.bf16.gmra.mxu0 %v2428
        %v3406 = vpop.f32.mrf.mxu0
        %v3407 = vadd.f32 %v3294, %v3406
        %v3408 = vpop.f32.mrf.mxu0
        %v3409 = vpop.f32.mrf.mxu0
        %v3410 = vadd.f32 %v3297, %v3409
        %v3411 = vpop.f32.mrf.mxu0
        %3412 = vmatprep.mubr.bf16.mxu0 %v2438
        %3413 = vmatmul.mubr.bf16.gmra.mxu0 %v2437
        %v3414 = vpop.f32.mrf.mxu0
        %v3415 = vadd.f32 %v3302, %v3414
        %v3416 = vpop.f32.mrf.mxu0
        %v3417 = vpop.f32.mrf.mxu0
        %v3418 = vadd.f32 %v3305, %v3417
        %v3419 = vpop.f32.mrf.mxu0
        %3420 = vmatprep.mubr.bf16.mxu0 %v2447
        %3421 = vmatmul.mubr.bf16.gmra.mxu0 %v2446
        %v3422 = vpop.f32.mrf.mxu0
        %v3423 = vadd.f32 %v3310, %v3422
        %v3424 = vpop.f32.mrf.mxu0
        %v3425 = vpop.f32.mrf.mxu0
        %v3426 = vadd.f32 %v3313, %v3425
        %v3427 = vpop.f32.mrf.mxu0
        %3428 = vmatprep.mubr.bf16.mxu0 %v2456
        %3429 = vmatmul.mubr.bf16.gmra.mxu0 %v2455
        %v3430 = vpop.f32.mrf.mxu0
        %v3431 = vadd.f32 %v3318, %v3430
        %v3432 = vpop.f32.mrf.mxu0
        %v3433 = vpop.f32.mrf.mxu0
        %v3434 = vadd.f32 %v3321, %v3433
        %v3435 = vpop.f32.mrf.mxu0
        %3436 = vmatprep.mubr.bf16.mxu0 %v2465
        %3437 = vmatmul.mubr.bf16.gmra.mxu0 %v2464
        %v3438 = vpop.f32.mrf.mxu0
        %v3439 = vadd.f32 %v3326, %v3438
        %v3440 = vpop.f32.mrf.mxu0
        %v3441 = vpop.f32.mrf.mxu0
        %v3442 = vadd.f32 %v3329, %v3441
        %v3443 = vpop.f32.mrf.mxu0
        %3444 = vmatprep.mubr.bf16.mxu0 %v2474
        %3445 = vmatmul.mubr.bf16.gmra.mxu0 %v2473
        %v3446 = vpop.f32.mrf.mxu0
        %v3447 = vadd.f32 %v3334, %v3446
        %v3448 = vpop.f32.mrf.mxu0
        %v3449 = vpop.f32.mrf.mxu0
        %v3450 = vadd.f32 %v3337, %v3449
        %v3451 = vpop.f32.mrf.mxu0
        %3452 = vmatprep.mubr.bf16.mxu0 %v2483
        %3453 = vmatmul.mubr.bf16.gmra.mxu0 %v2482
        %v3454 = vpop.f32.mrf.mxu0
        %v3455 = vadd.f32 %v3342, %v3454
        %v3456 = vpop.f32.mrf.mxu0
        %v3457 = vpop.f32.mrf.mxu0
        %v3458 = vadd.f32 %v3345, %v3457
        %v3459 = vpop.f32.mrf.mxu0
        %3460 = vmatprep.mubr.bf16.mxu0 %v2492
        %3461 = vmatmul.mubr.bf16.gmra.mxu0 %v2491
        %v3462 = vpop.f32.mrf.mxu0
        %v3463 = vadd.f32 %v3350, %v3462
        %v3464 = vpop.f32.mrf.mxu0
        %v3465 = vpop.f32.mrf.mxu0
        %v3466 = vadd.f32 %v3353, %v3465
        %v3467 = vpop.f32.mrf.mxu0
        %3468 = vmatprep.mubr.bf16.mxu0 %v2501
        %3469 = vmatmul.mubr.bf16.gmra.mxu0 %v2500
        %v3470 = vpop.f32.mrf.mxu0
        %v3471 = vadd.f32 %v3358, %v3470
        %v3472 = vpop.f32.mrf.mxu0
        %v3473 = vpop.f32.mrf.mxu0
        %v3474 = vadd.f32 %v3361, %v3473
        %v3475 = vpop.f32.mrf.mxu0
        %3476 = vdwg.mxu0
        %3477 = vmatprep.subr.bf16.mxu0 0
        %3478 = vmatpush1.bf16.msra.mxu0 %v2952
        %3479 = vmatprep.subr.bf16.mxu0 0
        %3480 = vmatpush1.bf16.msra.mxu0 %v2951
        %3481 = vmatprep.subr.bf16.mxu0 0
        %3482 = vmatpush1.bf16.msra.mxu0 %v2950
        %3483 = vmatprep.subr.bf16.mxu0 0
        %3484 = vmatpush1.bf16.msra.mxu0 %v2949
        %3485 = vmatprep.subr.bf16.mxu0 0
        %3486 = vmatpush1.bf16.msra.mxu0 %v2948
        %3487 = vmatprep.subr.bf16.mxu0 0
        %3488 = vmatpush1.bf16.msra.mxu0 %v2947
        %3489 = vmatprep.subr.bf16.mxu0 0
        %3490 = vmatpush1.bf16.msra.mxu0 %v2946
        %3491 = vmatprep.subr.bf16.mxu0 0
        %3492 = vmatpush1.bf16.msra.mxu0 %v2945
        %3493 = vmatprep.subr.bf16.mxu0 0
        %3494 = vmatpush2.bf16.msra.mxu0 0
        %3495 = vmatprep.subr.bf16.mxu0 0
        %3496 = vmatpush2.bf16.msra.mxu0 0
        %3497 = vmatprep.subr.bf16.mxu0 0
        %3498 = vmatpush2.bf16.msra.mxu0 0
        %3499 = vmatprep.subr.bf16.mxu0 0
        %3500 = vmatpush2.bf16.msra.mxu0 0
        %3501 = vmatprep.subr.bf16.mxu0 0
        %3502 = vmatpush2.bf16.msra.mxu0 0
        %3503 = vmatprep.subr.bf16.mxu0 0
        %3504 = vmatpush2.bf16.msra.mxu0 0
        %3505 = vmatprep.subr.bf16.mxu0 0
        %3506 = vmatpush2.bf16.msra.mxu0 0
        %3507 = vmatprep.subr.bf16.mxu0 0
        %3508 = vmatpush2.bf16.msra.mxu0 0
        %3509 = vmatprep.mubr.bf16.mxu0 0
        %3510 = vmatmul.mubr.bf16.gmra.mxu0 %v2421
        %v3511 = vpop.f32.mrf.mxu0
        %v3512 = vadd.f32 %v3399, %v3511
        %v3513 = vpop.f32.mrf.mxu0
        %v3514 = vpop.f32.mrf.mxu0
        %v3515 = vadd.f32 %v3402, %v3514
        %v3516 = vpop.f32.mrf.mxu0
        %3517 = vmatprep.mubr.bf16.mxu0 0
        %3518 = vmatmul.mubr.bf16.gmra.mxu0 %v2430
        %v3519 = vpop.f32.mrf.mxu0
        %v3520 = vadd.f32 %v3407, %v3519
        %v3521 = vpop.f32.mrf.mxu0
        %v3522 = vpop.f32.mrf.mxu0
        %v3523 = vadd.f32 %v3410, %v3522
        %v3524 = vpop.f32.mrf.mxu0
        %3525 = vmatprep.mubr.bf16.mxu0 0
        %3526 = vmatmul.mubr.bf16.gmra.mxu0 %v2439
        %v3527 = vpop.f32.mrf.mxu0
        %v3528 = vadd.f32 %v3415, %v3527
        %v3529 = vpop.f32.mrf.mxu0
        %v3530 = vpop.f32.mrf.mxu0
        %v3531 = vadd.f32 %v3418, %v3530
        %v3532 = vpop.f32.mrf.mxu0
        %3533 = vmatprep.mubr.bf16.mxu0 0
        %3534 = vmatmul.mubr.bf16.gmra.mxu0 %v2448
        %v3535 = vpop.f32.mrf.mxu0
        %v3536 = vadd.f32 %v3423, %v3535
        %v3537 = vpop.f32.mrf.mxu0
        %v3538 = vpop.f32.mrf.mxu0
        %v3539 = vadd.f32 %v3426, %v3538
        %v3540 = vpop.f32.mrf.mxu0
        %3541 = vmatprep.mubr.bf16.mxu0 0
        %3542 = vmatmul.mubr.bf16.gmra.mxu0 %v2457
        %v3543 = vpop.f32.mrf.mxu0
        %v3544 = vadd.f32 %v3431, %v3543
        %v3545 = vpop.f32.mrf.mxu0
        %v3546 = vpop.f32.mrf.mxu0
        %v3547 = vadd.f32 %v3434, %v3546
        %v3548 = vpop.f32.mrf.mxu0
        %3549 = vmatprep.mubr.bf16.mxu0 0
        %3550 = vmatmul.mubr.bf16.gmra.mxu0 %v2466
        %v3551 = vpop.f32.mrf.mxu0
        %v3552 = vadd.f32 %v3439, %v3551
        %v3553 = vpop.f32.mrf.mxu0
        %v3554 = vpop.f32.mrf.mxu0
        %v3555 = vadd.f32 %v3442, %v3554
        %v3556 = vpop.f32.mrf.mxu0
        %3557 = vmatprep.mubr.bf16.mxu0 0
        %3558 = vmatmul.mubr.bf16.gmra.mxu0 %v2475
        %v3559 = vpop.f32.mrf.mxu0
        %v3560 = vadd.f32 %v3447, %v3559
        %v3561 = vpop.f32.mrf.mxu0
        %v3562 = vpop.f32.mrf.mxu0
        %v3563 = vadd.f32 %v3450, %v3562
        %v3564 = vpop.f32.mrf.mxu0
        %3565 = vmatprep.mubr.bf16.mxu0 0
        %3566 = vmatmul.mubr.bf16.gmra.mxu0 %v2484
        %v3567 = vpop.f32.mrf.mxu0
        %v3568 = vadd.f32 %v3455, %v3567
        %v3569 = vpop.f32.mrf.mxu0
        %v3570 = vpop.f32.mrf.mxu0
        %v3571 = vadd.f32 %v3458, %v3570
        %v3572 = vpop.f32.mrf.mxu0
        %3573 = vmatprep.mubr.bf16.mxu0 0
        %3574 = vmatmul.mubr.bf16.gmra.mxu0 %v2493
        %v3575 = vpop.f32.mrf.mxu0
        %v3576 = vadd.f32 %v3463, %v3575
        %v3577 = vpop.f32.mrf.mxu0
        %v3578 = vpop.f32.mrf.mxu0
        %v3579 = vadd.f32 %v3466, %v3578
        %v3580 = vpop.f32.mrf.mxu0
        %3581 = vmatprep.mubr.bf16.mxu0 0
        %3582 = vmatmul.mubr.bf16.gmra.mxu0 %v2502
        %v3583 = vpop.f32.mrf.mxu0
        %v3584 = vadd.f32 %v3471, %v3583
        %v3585 = vpop.f32.mrf.mxu0
        %v3586 = vpop.f32.mrf.mxu0
        %v3587 = vadd.f32 %v3474, %v3586
        %v3588 = vpop.f32.mrf.mxu0
        %3589 = vdwg.mxu0
        %v3590 = vld [vmem:[%s2] sm:$0x1]
        %v3592 = vlaneseq
        %v3593 = vshrl.u32 %v3592, 7
        %v3594 = vsub.s32 0, %v3593
        %v3595 = vrot.slane %v3590, %v3594
        %v3597 = vmul.f32 %v3512, %v3595
        %v3598 = vmul.f32 %v3515, %v3595
        %v3599 = vmul.f32 %v3520, %v3595
        %v3600 = vmul.f32 %v3523, %v3595
        %v3601 = vmul.f32 %v3528, %v3595
        %v3602 = vmul.f32 %v3531, %v3595
        %v3603 = vmul.f32 %v3536, %v3595
        %v3604 = vmul.f32 %v3539, %v3595
        %v3605 = vmul.f32 %v3544, %v3595
        %v3606 = vmul.f32 %v3547, %v3595
        %v3607 = vmul.f32 %v3552, %v3595
        %v3608 = vmul.f32 %v3555, %v3595
        %v3609 = vmul.f32 %v3560, %v3595
        %v3610 = vmul.f32 %v3563, %v3595
        %v3611 = vmul.f32 %v3568, %v3595
        %v3612 = vmul.f32 %v3571, %v3595
        %v3613 = vmul.f32 %v3576, %v3595
        %v3614 = vmul.f32 %v3579, %v3595
        %v3615 = vmul.f32 %v3584, %v3595
        %v3616 = vmul.f32 %v3587, %v3595
        %v3617 = vld [vmem:[%s3] sm:$0x1]
        %v3619 = vlaneseq
        %v3620 = vshrl.u32 %v3619, 7
        %v3621 = vsub.s32 0, %v3620
        %v3622 = vrot.slane %v3617, %v3621
        %v3624 = vadd.f32 %v3597, %v3622
        %v3625 = vadd.f32 %v3598, %v3622
        %v3626 = vadd.f32 %v3599, %v3622
        %v3627 = vadd.f32 %v3600, %v3622
        %v3628 = vadd.f32 %v3601, %v3622
        %v3629 = vadd.f32 %v3602, %v3622
        %v3630 = vadd.f32 %v3603, %v3622
        %v3631 = vadd.f32 %v3604, %v3622
        %v3632 = vadd.f32 %v3605, %v3622
        %v3633 = vadd.f32 %v3606, %v3622
        %v3634 = vadd.f32 %v3607, %v3622
        %v3635 = vadd.f32 %v3608, %v3622
        %v3636 = vadd.f32 %v3609, %v3622
        %v3637 = vadd.f32 %v3610, %v3622
        %v3638 = vadd.f32 %v3611, %v3622
        %v3639 = vadd.f32 %v3612, %v3622
        %v3640 = vadd.f32 %v3613, %v3622
        %v3641 = vadd.f32 %v3614, %v3622
        %v3642 = vadd.f32 %v3615, %v3622
        %v3643 = vadd.f32 %v3616, %v3622
        %v3644 = vsub.f32 0.0, %v3624
        %v3645 = vsub.f32 0.0, %v3625
        %v3646 = vsub.f32 0.0, %v3626
        %v3647 = vsub.f32 0.0, %v3627
        %v3648 = vsub.f32 0.0, %v3628
        %v3649 = vsub.f32 0.0, %v3629
        %v3650 = vsub.f32 0.0, %v3630
        %v3651 = vsub.f32 0.0, %v3631
        %v3652 = vsub.f32 0.0, %v3632
        %v3653 = vsub.f32 0.0, %v3633
        %v3654 = vsub.f32 0.0, %v3634
        %v3655 = vsub.f32 0.0, %v3635
        %v3656 = vsub.f32 0.0, %v3636
        %v3657 = vsub.f32 0.0, %v3637
        %v3658 = vsub.f32 0.0, %v3638
        %v3659 = vsub.f32 0.0, %v3639
        %v3660 = vsub.f32 0.0, %v3640
        %v3661 = vsub.f32 0.0, %v3641
        %v3662 = vsub.f32 0.0, %v3642
        %v3663 = vsub.f32 0.0, %v3643
        %v3664 = vmul.f32 %v3644, 1.442695
        %v3665 = vpow.pop %v3664
        %v3666 = vmul.f32 %v3645, 1.442695
        %v3667 = vpow.pop %v3666
        %v3668 = vmul.f32 %v3646, 1.442695
        %v3669 = vpow.pop %v3668
        %v3670 = vmul.f32 %v3647, 1.442695
        %v3671 = vpow.pop %v3670
        %v3672 = vmul.f32 %v3648, 1.442695
        %v3673 = vpow.pop %v3672
        %v3674 = vmul.f32 %v3649, 1.442695
        %v3675 = vpow.pop %v3674
        %v3676 = vmul.f32 %v3650, 1.442695
        %v3677 = vpow.pop %v3676
        %v3678 = vmul.f32 %v3651, 1.442695
        %v3679 = vpow.pop %v3678
        %v3680 = vmul.f32 %v3652, 1.442695
        %v3681 = vpow.pop %v3680
        %v3682 = vmul.f32 %v3653, 1.442695
        %v3683 = vpow.pop %v3682
        %v3684 = vmul.f32 %v3654, 1.442695
        %v3685 = vpow.pop %v3684
        %v3686 = vmul.f32 %v3655, 1.442695
        %v3687 = vpow.pop %v3686
        %v3688 = vmul.f32 %v3656, 1.442695
        %v3689 = vpow.pop %v3688
        %v3690 = vmul.f32 %v3657, 1.442695
        %v3691 = vpow.pop %v3690
        %v3692 = vmul.f32 %v3658, 1.442695
        %v3693 = vpow.pop %v3692
        %v3694 = vmul.f32 %v3659, 1.442695
        %v3695 = vpow.pop %v3694
        %v3696 = vmul.f32 %v3660, 1.442695
        %v3697 = vpow.pop %v3696
        %v3698 = vmul.f32 %v3661, 1.442695
        %v3699 = vpow.pop %v3698
        %v3700 = vmul.f32 %v3662, 1.442695
        %v3701 = vpow.pop %v3700
        %v3702 = vmul.f32 %v3663, 1.442695
        %v3703 = vpow.pop %v3702
        %v3704 = vadd.f32 %v3665, 1.0
        %v3705 = vadd.f32 %v3667, 1.0
        %v3706 = vadd.f32 %v3669, 1.0
        %v3707 = vadd.f32 %v3671, 1.0
        %v3708 = vadd.f32 %v3673, 1.0
        %v3709 = vadd.f32 %v3675, 1.0
        %v3710 = vadd.f32 %v3677, 1.0
        %v3711 = vadd.f32 %v3679, 1.0
        %v3712 = vadd.f32 %v3681, 1.0
        %v3713 = vadd.f32 %v3683, 1.0
        %v3714 = vadd.f32 %v3685, 1.0
        %v3715 = vadd.f32 %v3687, 1.0
        %v3716 = vadd.f32 %v3689, 1.0
        %v3717 = vadd.f32 %v3691, 1.0
        %v3718 = vadd.f32 %v3693, 1.0
        %v3719 = vadd.f32 %v3695, 1.0
        %v3720 = vadd.f32 %v3697, 1.0
        %v3721 = vadd.f32 %v3699, 1.0
        %v3722 = vadd.f32 %v3701, 1.0
        %v3723 = vadd.f32 %v3703, 1.0
        %v3724 = vrcp.pop %v3704
        %v3725 = vrcp.pop %v3705
        %v3726 = vrcp.pop %v3706
        %v3727 = vrcp.pop %v3707
        %v3728 = vrcp.pop %v3708
        %v3729 = vrcp.pop %v3709
        %v3730 = vrcp.pop %v3710
        %v3731 = vrcp.pop %v3711
        %v3732 = vrcp.pop %v3712
        %v3733 = vrcp.pop %v3713
        %v3734 = vrcp.pop %v3714
        %v3735 = vrcp.pop %v3715
        %v3736 = vrcp.pop %v3716
        %v3737 = vrcp.pop %v3717
        %v3738 = vrcp.pop %v3718
        %v3739 = vrcp.pop %v3719
        %v3740 = vrcp.pop %v3720
        %v3741 = vrcp.pop %v3721
        %v3742 = vrcp.pop %v3722
        %v3743 = vrcp.pop %v3723
        %v3744 = vmul.f32 %v3624, %v3724
        %v3745 = vmul.f32 %v3625, %v3725
        %v3746 = vmul.f32 %v3626, %v3726
        %v3747 = vmul.f32 %v3627, %v3727
        %v3748 = vmul.f32 %v3628, %v3728
        %v3749 = vmul.f32 %v3629, %v3729
        %v3750 = vmul.f32 %v3630, %v3730
        %v3751 = vmul.f32 %v3631, %v3731
        %v3752 = vmul.f32 %v3632, %v3732
        %v3753 = vmul.f32 %v3633, %v3733
        %v3754 = vmul.f32 %v3634, %v3734
        %v3755 = vmul.f32 %v3635, %v3735
        %v3756 = vmul.f32 %v3636, %v3736
        %v3757 = vmul.f32 %v3637, %v3737
        %v3758 = vmul.f32 %v3638, %v3738
        %v3759 = vmul.f32 %v3639, %v3739
        %v3760 = vmul.f32 %v3640, %v3740
        %v3761 = vmul.f32 %v3641, %v3741
        %v3762 = vmul.f32 %v3642, %v3742
        %v3763 = vmul.f32 %v3643, %v3743
        %vm3764 = vcmask 1043459
        %vm3765 = vsmask.f32 7950
        %vm3766 = vmand %vm3764, %vm3765
        %v3767 = vld [vmem:[#allocation3] sm:$0x8]
        %v3768 = vsel %vm3766, 0, %v3767
        %3769 = vst [vmem:[#allocation3] sm:$0x8] %v3768
        %v3770 = vld [vmem:[#allocation3 + $0x10] sm:$0x8]
        %v3771 = vsel %vm3766, 0, %v3770
        %3772 = vst [vmem:[#allocation3 + $0x10] sm:$0x8] %v3771
        %v3773 = vld [vmem:[#allocation3 + $0x20] sm:$0x8]
        %v3774 = vsel %vm3766, 0, %v3773
        %3775 = vst [vmem:[#allocation3 + $0x20] sm:$0x8] %v3774
        %v3776 = vld [vmem:[#allocation3 + $0x30] sm:$0x8]
        %v3777 = vsel %vm3766, 0, %v3776
        %3778 = vst [vmem:[#allocation3 + $0x30] sm:$0x8] %v3777
        %v3779 = vld [vmem:[#allocation3 + $0x40] sm:$0x8]
        %v3780 = vsel %vm3766, 0, %v3779
        %3781 = vst [vmem:[#allocation3 + $0x40] sm:$0x8] %v3780
        %v3782 = vld [vmem:[#allocation3 + $0x50] sm:$0x8]
        %v3783 = vsel %vm3766, 0, %v3782
        %3784 = vst [vmem:[#allocation3 + $0x50] sm:$0x8] %v3783
        %v3785 = vld [vmem:[#allocation3 + $0x60] sm:$0x8]
        %v3786 = vsel %vm3766, 0, %v3785
        %3787 = vst [vmem:[#allocation3 + $0x60] sm:$0x8] %v3786
        %v3788 = vld [vmem:[#allocation3 + $0x70] sm:$0x8]
        %v3789 = vsel %vm3766, 0, %v3788
        %3790 = vst [vmem:[#allocation3 + $0x70] sm:$0x8] %v3789
        %v3791 = vld [vmem:[#allocation3 + $0x80] sm:$0x8]
        %v3792 = vsel %vm3766, 0, %v3791
        %3793 = vst [vmem:[#allocation3 + $0x80] sm:$0x8] %v3792
        %v3794 = vld [vmem:[#allocation3 + $0x90] sm:$0x8]
        %v3795 = vsel %vm3766, 0, %v3794
        %3796 = vst [vmem:[#allocation3 + $0x90] sm:$0x8] %v3795
        %vm3797 = vcmask 1040384
        %vm3798 = vsmask.f32 256
        %vm3799 = vmand %vm3797, %vm3798
        %v3800 = vld [vmem:[#allocation3 + $0xc] sm:$0x1]
        %v3801 = vsel %vm3799, 0, %v3800
        %3802 = vst [vmem:[#allocation3 + $0xc] sm:$0x1] %v3801
        %v3803 = vld [vmem:[#allocation3 + $0x1c] sm:$0x1]
        %v3804 = vsel %vm3799, 0, %v3803
        %3805 = vst [vmem:[#allocation3 + $0x1c] sm:$0x1] %v3804
        %v3806 = vld [vmem:[#allocation3 + $0x2c] sm:$0x1]
        %v3807 = vsel %vm3799, 0, %v3806
        %3808 = vst [vmem:[#allocation3 + $0x2c] sm:$0x1] %v3807
        %v3809 = vld [vmem:[#allocation3 + $0x3c] sm:$0x1]
        %v3810 = vsel %vm3799, 0, %v3809
        %3811 = vst [vmem:[#allocation3 + $0x3c] sm:$0x1] %v3810
        %v3812 = vld [vmem:[#allocation3 + $0x4c] sm:$0x1]
        %v3813 = vsel %vm3799, 0, %v3812
        %3814 = vst [vmem:[#allocation3 + $0x4c] sm:$0x1] %v3813
        %v3815 = vld [vmem:[#allocation3 + $0x5c] sm:$0x1]
        %v3816 = vsel %vm3799, 0, %v3815
        %3817 = vst [vmem:[#allocation3 + $0x5c] sm:$0x1] %v3816
        %v3818 = vld [vmem:[#allocation3 + $0x6c] sm:$0x1]
        %v3819 = vsel %vm3799, 0, %v3818
        %3820 = vst [vmem:[#allocation3 + $0x6c] sm:$0x1] %v3819
        %v3821 = vld [vmem:[#allocation3 + $0x7c] sm:$0x1]
        %v3822 = vsel %vm3799, 0, %v3821
        %3823 = vst [vmem:[#allocation3 + $0x7c] sm:$0x1] %v3822
        %v3824 = vld [vmem:[#allocation3 + $0x8c] sm:$0x1]
        %v3825 = vsel %vm3799, 0, %v3824
        %3826 = vst [vmem:[#allocation3 + $0x8c] sm:$0x1] %v3825
        %v3827 = vld [vmem:[#allocation3 + $0x9c] sm:$0x1]
        %v3828 = vsel %vm3799, 0, %v3827
        %3829 = vst [vmem:[#allocation3 + $0x9c] sm:$0x1] %v3828
        %v3830 = vpack.c.bf16 %v3745, %v3744
        %v3831 = vpack.c.bf16 %v3747, %v3746
        %v3832 = vpack.c.bf16 %v3749, %v3748
        %v3833 = vpack.c.bf16 %v3751, %v3750
        %v3834 = vpack.c.bf16 %v3753, %v3752
        %v3835 = vpack.c.bf16 %v3755, %v3754
        %v3836 = vpack.c.bf16 %v3757, %v3756
        %v3837 = vpack.c.bf16 %v3759, %v3758
        %v3838 = vpack.c.bf16 %v3761, %v3760
        %v3839 = vpack.c.bf16 %v3763, %v3762
        %v3850 = vunpack.c.l.b16 %v3830
        %v3851 = vunpack.c.h.b16 %v3830
        %v3852 = vunpack.c.l.b16 %v3831
        %v3853 = vunpack.c.h.b16 %v3831
        %v3854 = vunpack.c.l.b16 %v3832
        %v3855 = vunpack.c.h.b16 %v3832
        %v3856 = vunpack.c.l.b16 %v3833
        %v3857 = vunpack.c.h.b16 %v3833
        %v3858 = vunpack.c.l.b16 %v3834
        %v3859 = vunpack.c.h.b16 %v3834
        %v3860 = vunpack.c.l.b16 %v3835
        %v3861 = vunpack.c.h.b16 %v3835
        %v3862 = vunpack.c.l.b16 %v3836
        %v3863 = vunpack.c.h.b16 %v3836
        %v3864 = vunpack.c.l.b16 %v3837
        %v3865 = vunpack.c.h.b16 %v3837
        %v3866 = vunpack.c.l.b16 %v3838
        %v3867 = vunpack.c.h.b16 %v3838
        %v3868 = vunpack.c.l.b16 %v3839
        %v3869 = vunpack.c.h.b16 %v3839
        %v3870 = vpack.c.b16 %v3850, %v3850
        %v3871 = vpack.c.b16 %v3851, %v3851
        %v3872 = vpack.c.b16 %v3852, %v3852
        %v3873 = vpack.c.b16 %v3853, %v3853
        %v3874 = vpack.c.b16 %v3854, %v3854
        %v3875 = vpack.c.b16 %v3855, %v3855
        %v3876 = vpack.c.b16 %v3856, %v3856
        %v3877 = vpack.c.b16 %v3857, %v3857
        %v3878 = vpack.c.b16 %v3858, %v3858
        %v3879 = vpack.c.b16 %v3859, %v3859
        %v3880 = vpack.c.b16 %v3860, %v3860
        %v3881 = vpack.c.b16 %v3861, %v3861
        %v3882 = vpack.c.b16 %v3862, %v3862
        %v3883 = vpack.c.b16 %v3863, %v3863
        %v3884 = vpack.c.b16 %v3864, %v3864
        %v3885 = vpack.c.b16 %v3865, %v3865
        %v3886 = vpack.c.b16 %v3866, %v3866
        %v3887 = vpack.c.b16 %v3867, %v3867
        %v3888 = vpack.c.b16 %v3868, %v3868
        %v3889 = vpack.c.b16 %v3869, %v3869
        %3910 = vst [vmem:[#allocation3 + $0x4] sm:$0xf] %v3870
        %3911 = vst [vmem:[#allocation3 + $0x8] sm:$0xf] %v3871
        %3912 = vst [vmem:[#allocation3 + $0x14] sm:$0xf] %v3872
        %3913 = vst [vmem:[#allocation3 + $0x18] sm:$0xf] %v3873
        %3914 = vst [vmem:[#allocation3 + $0x24] sm:$0xf] %v3874
        %3915 = vst [vmem:[#allocation3 + $0x28] sm:$0xf] %v3875
        %3916 = vst [vmem:[#allocation3 + $0x34] sm:$0xf] %v3876
        %3917 = vst [vmem:[#allocation3 + $0x38] sm:$0xf] %v3877
        %3918 = vst [vmem:[#allocation3 + $0x44] sm:$0xf] %v3878
        %3919 = vst [vmem:[#allocation3 + $0x48] sm:$0xf] %v3879
        %3920 = vst [vmem:[#allocation3 + $0x54] sm:$0xf] %v3880
        %3921 = vst [vmem:[#allocation3 + $0x58] sm:$0xf] %v3881
        %3922 = vst [vmem:[#allocation3 + $0x64] sm:$0xf] %v3882
        %3923 = vst [vmem:[#allocation3 + $0x68] sm:$0xf] %v3883
        %3924 = vst [vmem:[#allocation3 + $0x74] sm:$0xf] %v3884
        %3925 = vst [vmem:[#allocation3 + $0x78] sm:$0xf] %v3885
        %3926 = vst [vmem:[#allocation3 + $0x84] sm:$0xf] %v3886
        %3927 = vst [vmem:[#allocation3 + $0x88] sm:$0xf] %v3887
        %3928 = vst [vmem:[#allocation3 + $0x94] sm:$0xf] %v3888
        %3929 = vst [vmem:[#allocation3 + $0x98] sm:$0xf] %v3889
        %p3930 = scmp.eq.s32.totalorder %s27, 0
        // Predicated region
        $region53: #{tpu_custom_call.1} parent=47 // pred_check
          %p3931 = pneg %p3930
        $region54: #{tpu_custom_call.1} parent=47 // pred_check_branch
          %3933 = sbr.rel (%p3931) target = $region56
        $region55: #{tpu_custom_call.1} parent=47 // pred_region
          %3934 = vst [vmem:[#allocation3] sm:$0xf] 0
          %3935 = vst [vmem:[#allocation3 + $0x4] sm:$0xf] 0
          %3936 = vst [vmem:[#allocation3 + $0x8] sm:$0xf] 0
          %v3937 = vld [vmem:[#allocation3 + $0xc] sm:$0x1]
          %v3938 = vsel %vm3799, 0, %v3937
          %3939 = vst [vmem:[#allocation3 + $0xc] sm:$0x1] %v3938
        $region56: #{tpu_custom_call.1} parent=47 // pred_fallthru
          _
        %p3940 = scmp.eq.s32.totalorder %s27, 1
        // Predicated region
        $region57: #{tpu_custom_call.1} parent=47 // pred_check
          %p3941 = pneg %p3940
        $region58: #{tpu_custom_call.1} parent=47 // pred_check_branch
          %3943 = sbr.rel (%p3941) target = $region60
        $region59: #{tpu_custom_call.1} parent=47 // pred_region
          %s3944 = scalar_lea.vmem [#allocation3], 144
          %3945 = vst [vmem:[%s3944] sm:$0xf] 0
          %3946 = vst [vmem:[%s3944 + $0x4] sm:$0xf] 0
          %3947 = vst [vmem:[%s3944 + $0x8] sm:$0xf] 0
          %v3948 = vld [vmem:[%s3944 + $0xc] sm:$0x1]
          %v3949 = vsel %vm3799, 0, %v3948
          %3950 = vst [vmem:[%s3944 + $0xc] sm:$0x1] %v3949
        $region60: #{tpu_custom_call.1} parent=47 // pred_fallthru
          _
        %v3951 = vld [vmem:[#allocation3] sm:$0x8]
        %v3952 = vld [vmem:[#allocation3 + $0x4] sm:$0xf]
        %v3953 = vld [vmem:[#allocation3 + $0x8] sm:$0xf]
        %v3954 = vld [vmem:[#allocation3 + $0x10] sm:$0x8]
        %v3955 = vld [vmem:[#allocation3 + $0x14] sm:$0xf]
        %v3956 = vld [vmem:[#allocation3 + $0x18] sm:$0xf]
        %v3957 = vld [vmem:[#allocation3 + $0x20] sm:$0x8]
        %v3958 = vld [vmem:[#allocation3 + $0x24] sm:$0xf]
        %v3959 = vld [vmem:[#allocation3 + $0x28] sm:$0xf]
        %v3960 = vld [vmem:[#allocation3 + $0x30] sm:$0x8]
        %v3961 = vld [vmem:[#allocation3 + $0x34] sm:$0xf]
        %v3962 = vld [vmem:[#allocation3 + $0x38] sm:$0xf]
        %v3963 = vld [vmem:[#allocation3 + $0x40] sm:$0x8]
        %v3964 = vld [vmem:[#allocation3 + $0x44] sm:$0xf]
        %v3965 = vld [vmem:[#allocation3 + $0x48] sm:$0xf]
        %v3966 = vld [vmem:[#allocation3 + $0x50] sm:$0x8]
        %v3967 = vld [vmem:[#allocation3 + $0x54] sm:$0xf]
        %v3968 = vld [vmem:[#allocation3 + $0x58] sm:$0xf]
        %v3969 = vld [vmem:[#allocation3 + $0x60] sm:$0x8]
        %v3970 = vld [vmem:[#allocation3 + $0x64] sm:$0xf]
        %v3971 = vld [vmem:[#allocation3 + $0x68] sm:$0xf]
        %v3972 = vld [vmem:[#allocation3 + $0x70] sm:$0x8]
        %v3973 = vld [vmem:[#allocation3 + $0x74] sm:$0xf]
        %v3974 = vld [vmem:[#allocation3 + $0x78] sm:$0xf]
        %vm3975 = vsmask.f32 4368
        %vm3976 = vmor %vm3798, %vm3975
        %v3978 = vshrl.u32 %v3951, 16
        %v3980 = vrot.slane %v3978, 7
        %v3981 = vrot.slane %v3980, 4
        %v3983 = vshrl.u32 %v3952, 16
        %v3985 = vrot.slane %v3983, 7
        %v3986 = vshll.u32 %v3952, 16
        %v3988 = vor.u32 %v3985, %v3986
        %v3989 = vsel %vm3976, %v3981, %v3988
        %v3990 = vrot.slane %v3985, 4
        %v3992 = vshrl.u32 %v3953, 16
        %v3994 = vrot.slane %v3992, 7
        %v3995 = vshll.u32 %v3953, 16
        %v3997 = vor.u32 %v3994, %v3995
        %v3998 = vsel %vm3976, %v3990, %v3997
        %v4000 = vshrl.u32 %v3954, 16
        %v4002 = vrot.slane %v4000, 7
        %v4003 = vrot.slane %v4002, 4
        %v4005 = vshrl.u32 %v3955, 16
        %v4007 = vrot.slane %v4005, 7
        %v4008 = vshll.u32 %v3955, 16
        %v4010 = vor.u32 %v4007, %v4008
        %v4011 = vsel %vm3976, %v4003, %v4010
        %v4012 = vrot.slane %v4007, 4
        %v4014 = vshrl.u32 %v3956, 16
        %v4016 = vrot.slane %v4014, 7
        %v4017 = vshll.u32 %v3956, 16
        %v4019 = vor.u32 %v4016, %v4017
        %v4020 = vsel %vm3976, %v4012, %v4019
        %v4022 = vshrl.u32 %v3957, 16
        %v4024 = vrot.slane %v4022, 7
        %v4025 = vrot.slane %v4024, 4
        %v4027 = vshrl.u32 %v3958, 16
        %v4029 = vrot.slane %v4027, 7
        %v4030 = vshll.u32 %v3958, 16
        %v4032 = vor.u32 %v4029, %v4030
        %v4033 = vsel %vm3976, %v4025, %v4032
        %v4034 = vrot.slane %v4029, 4
        %v4036 = vshrl.u32 %v3959, 16
        %v4038 = vrot.slane %v4036, 7
        %v4039 = vshll.u32 %v3959, 16
        %v4041 = vor.u32 %v4038, %v4039
        %v4042 = vsel %vm3976, %v4034, %v4041
        %v4044 = vshrl.u32 %v3960, 16
        %v4046 = vrot.slane %v4044, 7
        %v4047 = vrot.slane %v4046, 4
        %v4049 = vshrl.u32 %v3961, 16
        %v4051 = vrot.slane %v4049, 7
        %v4052 = vshll.u32 %v3961, 16
        %v4054 = vor.u32 %v4051, %v4052
        %v4055 = vsel %vm3976, %v4047, %v4054
        %v4056 = vrot.slane %v4051, 4
        %v4058 = vshrl.u32 %v3962, 16
        %v4060 = vrot.slane %v4058, 7
        %v4061 = vshll.u32 %v3962, 16
        %v4063 = vor.u32 %v4060, %v4061
        %v4064 = vsel %vm3976, %v4056, %v4063
        %v4066 = vshrl.u32 %v3963, 16
        %v4068 = vrot.slane %v4066, 7
        %v4069 = vrot.slane %v4068, 4
        %v4071 = vshrl.u32 %v3964, 16
        %v4073 = vrot.slane %v4071, 7
        %v4074 = vshll.u32 %v3964, 16
        %v4076 = vor.u32 %v4073, %v4074
        %v4077 = vsel %vm3976, %v4069, %v4076
        %v4078 = vrot.slane %v4073, 4
        %v4080 = vshrl.u32 %v3965, 16
        %v4082 = vrot.slane %v4080, 7
        %v4083 = vshll.u32 %v3965, 16
        %v4085 = vor.u32 %v4082, %v4083
        %v4086 = vsel %vm3976, %v4078, %v4085
        %v4088 = vshrl.u32 %v3966, 16
        %v4090 = vrot.slane %v4088, 7
        %v4091 = vrot.slane %v4090, 4
        %v4093 = vshrl.u32 %v3967, 16
        %v4095 = vrot.slane %v4093, 7
        %v4096 = vshll.u32 %v3967, 16
        %v4098 = vor.u32 %v4095, %v4096
        %v4099 = vsel %vm3976, %v4091, %v4098
        %v4100 = vrot.slane %v4095, 4
        %v4102 = vshrl.u32 %v3968, 16
        %v4104 = vrot.slane %v4102, 7
        %v4105 = vshll.u32 %v3968, 16
        %v4107 = vor.u32 %v4104, %v4105
        %v4108 = vsel %vm3976, %v4100, %v4107
        %v4110 = vshrl.u32 %v3969, 16
        %v4112 = vrot.slane %v4110, 7
        %v4113 = vrot.slane %v4112, 4
        %v4115 = vshrl.u32 %v3970, 16
        %v4117 = vrot.slane %v4115, 7
        %v4118 = vshll.u32 %v3970, 16
        %v4120 = vor.u32 %v4117, %v4118
        %v4121 = vsel %vm3976, %v4113, %v4120
        %v4122 = vrot.slane %v4117, 4
        %v4124 = vshrl.u32 %v3971, 16
        %v4126 = vrot.slane %v4124, 7
        %v4127 = vshll.u32 %v3971, 16
        %v4129 = vor.u32 %v4126, %v4127
        %v4130 = vsel %vm3976, %v4122, %v4129
        %v4132 = vshrl.u32 %v3972, 16
        %v4134 = vrot.slane %v4132, 7
        %v4135 = vrot.slane %v4134, 4
        %v4137 = vshrl.u32 %v3973, 16
        %v4139 = vrot.slane %v4137, 7
        %v4140 = vshll.u32 %v3973, 16
        %v4142 = vor.u32 %v4139, %v4140
        %v4143 = vsel %vm3976, %v4135, %v4142
        %v4144 = vrot.slane %v4139, 4
        %v4146 = vshrl.u32 %v3974, 16
        %v4148 = vrot.slane %v4146, 7
        %v4149 = vshll.u32 %v3974, 16
        %v4151 = vor.u32 %v4148, %v4149
        %v4152 = vsel %vm3976, %v4144, %v4151
        %4169 = vst [vmem:[#allocation4] sm:$0xf] %v3989
        %4170 = vst [vmem:[#allocation4 + $0x24] sm:$0xf] %v3998
        %4171 = vst [vmem:[#allocation4 + $0x48] sm:$0xf] %v4011
        %4172 = vst [vmem:[#allocation4 + $0x6c] sm:$0xf] %v4020
        %4173 = vst [vmem:[#allocation4 + $0x90] sm:$0xf] %v4033
        %4174 = vst [vmem:[#allocation4 + $0xb4] sm:$0xf] %v4042
        %4175 = vst [vmem:[#allocation4 + $0xd8] sm:$0xf] %v4055
        %4176 = vst [vmem:[#allocation4 + $0xfc] sm:$0xf] %v4064
        %4177 = vst [vmem:[#allocation4 + $0x120] sm:$0xf] %v4077
        %4178 = vst [vmem:[#allocation4 + $0x144] sm:$0xf] %v4086
        %4179 = vst [vmem:[#allocation4 + $0x168] sm:$0xf] %v4099
        %4180 = vst [vmem:[#allocation4 + $0x18c] sm:$0xf] %v4108
        %4181 = vst [vmem:[#allocation4 + $0x1b0] sm:$0xf] %v4121
        %4182 = vst [vmem:[#allocation4 + $0x1d4] sm:$0xf] %v4130
        %4183 = vst [vmem:[#allocation4 + $0x1f8] sm:$0xf] %v4143
        %4184 = vst [vmem:[#allocation4 + $0x21c] sm:$0xf] %v4152
        %v4185 = vld [vmem:[#allocation3 + $0x4] sm:$0xf]
        %v4186 = vld [vmem:[#allocation3 + $0x8] sm:$0xf]
        %v4187 = vld [vmem:[#allocation3 + $0x14] sm:$0xf]
        %v4188 = vld [vmem:[#allocation3 + $0x18] sm:$0xf]
        %v4189 = vld [vmem:[#allocation3 + $0x24] sm:$0xf]
        %v4190 = vld [vmem:[#allocation3 + $0x28] sm:$0xf]
        %v4191 = vld [vmem:[#allocation3 + $0x34] sm:$0xf]
        %v4192 = vld [vmem:[#allocation3 + $0x38] sm:$0xf]
        %v4193 = vld [vmem:[#allocation3 + $0x44] sm:$0xf]
        %v4194 = vld [vmem:[#allocation3 + $0x48] sm:$0xf]
        %v4195 = vld [vmem:[#allocation3 + $0x54] sm:$0xf]
        %v4196 = vld [vmem:[#allocation3 + $0x58] sm:$0xf]
        %v4197 = vld [vmem:[#allocation3 + $0x64] sm:$0xf]
        %v4198 = vld [vmem:[#allocation3 + $0x68] sm:$0xf]
        %v4199 = vld [vmem:[#allocation3 + $0x74] sm:$0xf]
        %v4200 = vld [vmem:[#allocation3 + $0x78] sm:$0xf]
        %4201 = vst [vmem:[#allocation4 + $0x4] sm:$0xf] %v4185
        %4202 = vst [vmem:[#allocation4 + $0x28] sm:$0xf] %v4186
        %4203 = vst [vmem:[#allocation4 + $0x4c] sm:$0xf] %v4187
        %4204 = vst [vmem:[#allocation4 + $0x70] sm:$0xf] %v4188
        %4205 = vst [vmem:[#allocation4 + $0x94] sm:$0xf] %v4189
        %4206 = vst [vmem:[#allocation4 + $0xb8] sm:$0xf] %v4190
        %4207 = vst [vmem:[#allocation4 + $0xdc] sm:$0xf] %v4191
        %4208 = vst [vmem:[#allocation4 + $0x100] sm:$0xf] %v4192
        %4209 = vst [vmem:[#allocation4 + $0x124] sm:$0xf] %v4193
        %4210 = vst [vmem:[#allocation4 + $0x148] sm:$0xf] %v4194
        %4211 = vst [vmem:[#allocation4 + $0x16c] sm:$0xf] %v4195
        %4212 = vst [vmem:[#allocation4 + $0x190] sm:$0xf] %v4196
        %4213 = vst [vmem:[#allocation4 + $0x1b4] sm:$0xf] %v4197
        %4214 = vst [vmem:[#allocation4 + $0x1d8] sm:$0xf] %v4198
        %4215 = vst [vmem:[#allocation4 + $0x1fc] sm:$0xf] %v4199
        %4216 = vst [vmem:[#allocation4 + $0x220] sm:$0xf] %v4200
        %v4217 = vld [vmem:[#allocation3 + $0x4] sm:$0xf]
        %v4218 = vld [vmem:[#allocation3 + $0x8] sm:$0xf]
        %v4219 = vld [vmem:[#allocation3 + $0xc] sm:$0x1]
        %v4220 = vld [vmem:[#allocation3 + $0x14] sm:$0xf]
        %v4221 = vld [vmem:[#allocation3 + $0x18] sm:$0xf]
        %v4222 = vld [vmem:[#allocation3 + $0x1c] sm:$0x1]
        %v4223 = vld [vmem:[#allocation3 + $0x24] sm:$0xf]
        %v4224 = vld [vmem:[#allocation3 + $0x28] sm:$0xf]
        %v4225 = vld [vmem:[#allocation3 + $0x2c] sm:$0x1]
        %v4226 = vld [vmem:[#allocation3 + $0x34] sm:$0xf]
        %v4227 = vld [vmem:[#allocation3 + $0x38] sm:$0xf]
        %v4228 = vld [vmem:[#allocation3 + $0x3c] sm:$0x1]
        %v4229 = vld [vmem:[#allocation3 + $0x44] sm:$0xf]
        %v4230 = vld [vmem:[#allocation3 + $0x48] sm:$0xf]
        %v4231 = vld [vmem:[#allocation3 + $0x4c] sm:$0x1]
        %v4232 = vld [vmem:[#allocation3 + $0x54] sm:$0xf]
        %v4233 = vld [vmem:[#allocation3 + $0x58] sm:$0xf]
        %v4234 = vld [vmem:[#allocation3 + $0x5c] sm:$0x1]
        %v4235 = vld [vmem:[#allocation3 + $0x64] sm:$0xf]
        %v4236 = vld [vmem:[#allocation3 + $0x68] sm:$0xf]
        %v4237 = vld [vmem:[#allocation3 + $0x6c] sm:$0x1]
        %v4238 = vld [vmem:[#allocation3 + $0x74] sm:$0xf]
        %v4239 = vld [vmem:[#allocation3 + $0x78] sm:$0xf]
        %v4240 = vld [vmem:[#allocation3 + $0x7c] sm:$0x1]
        %v4242 = vshrl.u32 %v4217, 16
        %v4244 = vrot.slane %v4242, 4
        %v4245 = vshll.u32 %v4217, 16
        %v4247 = vrot.slane %v4245, 5
        %v4248 = vor.u32 %v4244, %v4247
        %v4249 = vrot.slane %v4248, 4
        %v4251 = vshll.u32 %v4218, 16
        %v4253 = vrot.slane %v4251, 5
        %v4254 = vsel %vm393, %v4249, %v4253
        %v4255 = vshrl.u32 %v4218, 16
        %v4257 = vrot.slane %v4255, 4
        %v4258 = vor.u32 %v4257, %v4253
        %v4259 = vrot.slane %v4258, 4
        %v4261 = vshll.u32 %v4219, 16
        %v4263 = vrot.slane %v4261, 5
        %v4264 = vsel %vm393, %v4259, %v4263
        %v4266 = vshrl.u32 %v4220, 16
        %v4268 = vrot.slane %v4266, 4
        %v4269 = vshll.u32 %v4220, 16
        %v4271 = vrot.slane %v4269, 5
        %v4272 = vor.u32 %v4268, %v4271
        %v4273 = vrot.slane %v4272, 4
        %v4275 = vshll.u32 %v4221, 16
        %v4277 = vrot.slane %v4275, 5
        %v4278 = vsel %vm393, %v4273, %v4277
        %v4279 = vshrl.u32 %v4221, 16
        %v4281 = vrot.slane %v4279, 4
        %v4282 = vor.u32 %v4281, %v4277
        %v4283 = vrot.slane %v4282, 4
        %v4285 = vshll.u32 %v4222, 16
        %v4287 = vrot.slane %v4285, 5
        %v4288 = vsel %vm393, %v4283, %v4287
        %v4290 = vshrl.u32 %v4223, 16
        %v4292 = vrot.slane %v4290, 4
        %v4293 = vshll.u32 %v4223, 16
        %v4295 = vrot.slane %v4293, 5
        %v4296 = vor.u32 %v4292, %v4295
        %v4297 = vrot.slane %v4296, 4
        %v4299 = vshll.u32 %v4224, 16
        %v4301 = vrot.slane %v4299, 5
        %v4302 = vsel %vm393, %v4297, %v4301
        %v4303 = vshrl.u32 %v4224, 16
        %v4305 = vrot.slane %v4303, 4
        %v4306 = vor.u32 %v4305, %v4301
        %v4307 = vrot.slane %v4306, 4
        %v4309 = vshll.u32 %v4225, 16
        %v4311 = vrot.slane %v4309, 5
        %v4312 = vsel %vm393, %v4307, %v4311
        %v4314 = vshrl.u32 %v4226, 16
        %v4316 = vrot.slane %v4314, 4
        %v4317 = vshll.u32 %v4226, 16
        %v4319 = vrot.slane %v4317, 5
        %v4320 = vor.u32 %v4316, %v4319
        %v4321 = vrot.slane %v4320, 4
        %v4323 = vshll.u32 %v4227, 16
        %v4325 = vrot.slane %v4323, 5
        %v4326 = vsel %vm393, %v4321, %v4325
        %v4327 = vshrl.u32 %v4227, 16
        %v4329 = vrot.slane %v4327, 4
        %v4330 = vor.u32 %v4329, %v4325
        %v4331 = vrot.slane %v4330, 4
        %v4333 = vshll.u32 %v4228, 16
        %v4335 = vrot.slane %v4333, 5
        %v4336 = vsel %vm393, %v4331, %v4335
        %v4338 = vshrl.u32 %v4229, 16
        %v4340 = vrot.slane %v4338, 4
        %v4341 = vshll.u32 %v4229, 16
        %v4343 = vrot.slane %v4341, 5
        %v4344 = vor.u32 %v4340, %v4343
        %v4345 = vrot.slane %v4344, 4
        %v4347 = vshll.u32 %v4230, 16
        %v4349 = vrot.slane %v4347, 5
        %v4350 = vsel %vm393, %v4345, %v4349
        %v4351 = vshrl.u32 %v4230, 16
        %v4353 = vrot.slane %v4351, 4
        %v4354 = vor.u32 %v4353, %v4349
        %v4355 = vrot.slane %v4354, 4
        %v4357 = vshll.u32 %v4231, 16
        %v4359 = vrot.slane %v4357, 5
        %v4360 = vsel %vm393, %v4355, %v4359
        %v4362 = vshrl.u32 %v4232, 16
        %v4364 = vrot.slane %v4362, 4
        %v4365 = vshll.u32 %v4232, 16
        %v4367 = vrot.slane %v4365, 5
        %v4368 = vor.u32 %v4364, %v4367
        %v4369 = vrot.slane %v4368, 4
        %v4371 = vshll.u32 %v4233, 16
        %v4373 = vrot.slane %v4371, 5
        %v4374 = vsel %vm393, %v4369, %v4373
        %v4375 = vshrl.u32 %v4233, 16
        %v4377 = vrot.slane %v4375, 4
        %v4378 = vor.u32 %v4377, %v4373
        %v4379 = vrot.slane %v4378, 4
        %v4381 = vshll.u32 %v4234, 16
        %v4383 = vrot.slane %v4381, 5
        %v4384 = vsel %vm393, %v4379, %v4383
        %v4386 = vshrl.u32 %v4235, 16
        %v4388 = vrot.slane %v4386, 4
        %v4389 = vshll.u32 %v4235, 16
        %v4391 = vrot.slane %v4389, 5
        %v4392 = vor.u32 %v4388, %v4391
        %v4393 = vrot.slane %v4392, 4
        %v4395 = vshll.u32 %v4236, 16
        %v4397 = vrot.slane %v4395, 5
        %v4398 = vsel %vm393, %v4393, %v4397
        %v4399 = vshrl.u32 %v4236, 16
        %v4401 = vrot.slane %v4399, 4
        %v4402 = vor.u32 %v4401, %v4397
        %v4403 = vrot.slane %v4402, 4
        %v4405 = vshll.u32 %v4237, 16
        %v4407 = vrot.slane %v4405, 5
        %v4408 = vsel %vm393, %v4403, %v4407
        %v4410 = vshrl.u32 %v4238, 16
        %v4412 = vrot.slane %v4410, 4
        %v4413 = vshll.u32 %v4238, 16
        %v4415 = vrot.slane %v4413, 5
        %v4416 = vor.u32 %v4412, %v4415
        %v4417 = vrot.slane %v4416, 4
        %v4419 = vshll.u32 %v4239, 16
        %v4421 = vrot.slane %v4419, 5
        %v4422 = vsel %vm393, %v4417, %v4421
        %v4423 = vshrl.u32 %v4239, 16
        %v4425 = vrot.slane %v4423, 4
        %v4426 = vor.u32 %v4425, %v4421
        %v4427 = vrot.slane %v4426, 4
        %v4429 = vshll.u32 %v4240, 16
        %v4431 = vrot.slane %v4429, 5
        %v4432 = vsel %vm393, %v4427, %v4431
        %4449 = vst [vmem:[#allocation4 + $0x8] sm:$0xf] %v4254
        %4450 = vst [vmem:[#allocation4 + $0x2c] sm:$0xf] %v4264
        %4451 = vst [vmem:[#allocation4 + $0x50] sm:$0xf] %v4278
        %4452 = vst [vmem:[#allocation4 + $0x74] sm:$0xf] %v4288
        %4453 = vst [vmem:[#allocation4 + $0x98] sm:$0xf] %v4302
        %4454 = vst [vmem:[#allocation4 + $0xbc] sm:$0xf] %v4312
        %4455 = vst [vmem:[#allocation4 + $0xe0] sm:$0xf] %v4326
        %4456 = vst [vmem:[#allocation4 + $0x104] sm:$0xf] %v4336
        %4457 = vst [vmem:[#allocation4 + $0x128] sm:$0xf] %v4350
        %4458 = vst [vmem:[#allocation4 + $0x14c] sm:$0xf] %v4360
        %4459 = vst [vmem:[#allocation4 + $0x170] sm:$0xf] %v4374
        %4460 = vst [vmem:[#allocation4 + $0x194] sm:$0xf] %v4384
        %4461 = vst [vmem:[#allocation4 + $0x1b8] sm:$0xf] %v4398
        %4462 = vst [vmem:[#allocation4 + $0x1dc] sm:$0xf] %v4408
        %4463 = vst [vmem:[#allocation4 + $0x200] sm:$0xf] %v4422
        %4464 = vst [vmem:[#allocation4 + $0x224] sm:$0xf] %v4432
        %s4465 = scalar_lea.vmem [#allocation3], 16
        %v4466 = vld [vmem:[%s4465] sm:$0x8]
        %v4467 = vld [vmem:[%s4465 + $0x4] sm:$0xf]
        %v4468 = vld [vmem:[%s4465 + $0x8] sm:$0xf]
        %v4469 = vld [vmem:[%s4465 + $0x10] sm:$0x8]
        %v4470 = vld [vmem:[%s4465 + $0x14] sm:$0xf]
        %v4471 = vld [vmem:[%s4465 + $0x18] sm:$0xf]
        %v4472 = vld [vmem:[%s4465 + $0x20] sm:$0x8]
        %v4473 = vld [vmem:[%s4465 + $0x24] sm:$0xf]
        %v4474 = vld [vmem:[%s4465 + $0x28] sm:$0xf]
        %v4475 = vld [vmem:[%s4465 + $0x30] sm:$0x8]
        %v4476 = vld [vmem:[%s4465 + $0x34] sm:$0xf]
        %v4477 = vld [vmem:[%s4465 + $0x38] sm:$0xf]
        %v4478 = vld [vmem:[%s4465 + $0x40] sm:$0x8]
        %v4479 = vld [vmem:[%s4465 + $0x44] sm:$0xf]
        %v4480 = vld [vmem:[%s4465 + $0x48] sm:$0xf]
        %v4481 = vld [vmem:[%s4465 + $0x50] sm:$0x8]
        %v4482 = vld [vmem:[%s4465 + $0x54] sm:$0xf]
        %v4483 = vld [vmem:[%s4465 + $0x58] sm:$0xf]
        %v4484 = vld [vmem:[%s4465 + $0x60] sm:$0x8]
        %v4485 = vld [vmem:[%s4465 + $0x64] sm:$0xf]
        %v4486 = vld [vmem:[%s4465 + $0x68] sm:$0xf]
        %v4487 = vld [vmem:[%s4465 + $0x70] sm:$0x8]
        %v4488 = vld [vmem:[%s4465 + $0x74] sm:$0xf]
        %v4489 = vld [vmem:[%s4465 + $0x78] sm:$0xf]
        %v4491 = vshrl.u32 %v4466, 16
        %v4493 = vrot.slane %v4491, 7
        %v4494 = vrot.slane %v4493, 4
        %v4496 = vshrl.u32 %v4467, 16
        %v4498 = vrot.slane %v4496, 7
        %v4499 = vshll.u32 %v4467, 16
        %v4501 = vor.u32 %v4498, %v4499
        %v4502 = vsel %vm3976, %v4494, %v4501
        %v4503 = vrot.slane %v4498, 4
        %v4505 = vshrl.u32 %v4468, 16
        %v4507 = vrot.slane %v4505, 7
        %v4508 = vshll.u32 %v4468, 16
        %v4510 = vor.u32 %v4507, %v4508
        %v4511 = vsel %vm3976, %v4503, %v4510
        %v4513 = vshrl.u32 %v4469, 16
        %v4515 = vrot.slane %v4513, 7
        %v4516 = vrot.slane %v4515, 4
        %v4518 = vshrl.u32 %v4470, 16
        %v4520 = vrot.slane %v4518, 7
        %v4521 = vshll.u32 %v4470, 16
        %v4523 = vor.u32 %v4520, %v4521
        %v4524 = vsel %vm3976, %v4516, %v4523
        %v4525 = vrot.slane %v4520, 4
        %v4527 = vshrl.u32 %v4471, 16
        %v4529 = vrot.slane %v4527, 7
        %v4530 = vshll.u32 %v4471, 16
        %v4532 = vor.u32 %v4529, %v4530
        %v4533 = vsel %vm3976, %v4525, %v4532
        %v4535 = vshrl.u32 %v4472, 16
        %v4537 = vrot.slane %v4535, 7
        %v4538 = vrot.slane %v4537, 4
        %v4540 = vshrl.u32 %v4473, 16
        %v4542 = vrot.slane %v4540, 7
        %v4543 = vshll.u32 %v4473, 16
        %v4545 = vor.u32 %v4542, %v4543
        %v4546 = vsel %vm3976, %v4538, %v4545
        %v4547 = vrot.slane %v4542, 4
        %v4549 = vshrl.u32 %v4474, 16
        %v4551 = vrot.slane %v4549, 7
        %v4552 = vshll.u32 %v4474, 16
        %v4554 = vor.u32 %v4551, %v4552
        %v4555 = vsel %vm3976, %v4547, %v4554
        %v4557 = vshrl.u32 %v4475, 16
        %v4559 = vrot.slane %v4557, 7
        %v4560 = vrot.slane %v4559, 4
        %v4562 = vshrl.u32 %v4476, 16
        %v4564 = vrot.slane %v4562, 7
        %v4565 = vshll.u32 %v4476, 16
        %v4567 = vor.u32 %v4564, %v4565
        %v4568 = vsel %vm3976, %v4560, %v4567
        %v4569 = vrot.slane %v4564, 4
        %v4571 = vshrl.u32 %v4477, 16
        %v4573 = vrot.slane %v4571, 7
        %v4574 = vshll.u32 %v4477, 16
        %v4576 = vor.u32 %v4573, %v4574
        %v4577 = vsel %vm3976, %v4569, %v4576
        %v4579 = vshrl.u32 %v4478, 16
        %v4581 = vrot.slane %v4579, 7
        %v4582 = vrot.slane %v4581, 4
        %v4584 = vshrl.u32 %v4479, 16
        %v4586 = vrot.slane %v4584, 7
        %v4587 = vshll.u32 %v4479, 16
        %v4589 = vor.u32 %v4586, %v4587
        %v4590 = vsel %vm3976, %v4582, %v4589
        %v4591 = vrot.slane %v4586, 4
        %v4593 = vshrl.u32 %v4480, 16
        %v4595 = vrot.slane %v4593, 7
        %v4596 = vshll.u32 %v4480, 16
        %v4598 = vor.u32 %v4595, %v4596
        %v4599 = vsel %vm3976, %v4591, %v4598
        %v4601 = vshrl.u32 %v4481, 16
        %v4603 = vrot.slane %v4601, 7
        %v4604 = vrot.slane %v4603, 4
        %v4606 = vshrl.u32 %v4482, 16
        %v4608 = vrot.slane %v4606, 7
        %v4609 = vshll.u32 %v4482, 16
        %v4611 = vor.u32 %v4608, %v4609
        %v4612 = vsel %vm3976, %v4604, %v4611
        %v4613 = vrot.slane %v4608, 4
        %v4615 = vshrl.u32 %v4483, 16
        %v4617 = vrot.slane %v4615, 7
        %v4618 = vshll.u32 %v4483, 16
        %v4620 = vor.u32 %v4617, %v4618
        %v4621 = vsel %vm3976, %v4613, %v4620
        %v4623 = vshrl.u32 %v4484, 16
        %v4625 = vrot.slane %v4623, 7
        %v4626 = vrot.slane %v4625, 4
        %v4628 = vshrl.u32 %v4485, 16
        %v4630 = vrot.slane %v4628, 7
        %v4631 = vshll.u32 %v4485, 16
        %v4633 = vor.u32 %v4630, %v4631
        %v4634 = vsel %vm3976, %v4626, %v4633
        %v4635 = vrot.slane %v4630, 4
        %v4637 = vshrl.u32 %v4486, 16
        %v4639 = vrot.slane %v4637, 7
        %v4640 = vshll.u32 %v4486, 16
        %v4642 = vor.u32 %v4639, %v4640
        %v4643 = vsel %vm3976, %v4635, %v4642
        %v4645 = vshrl.u32 %v4487, 16
        %v4647 = vrot.slane %v4645, 7
        %v4648 = vrot.slane %v4647, 4
        %v4650 = vshrl.u32 %v4488, 16
        %v4652 = vrot.slane %v4650, 7
        %v4653 = vshll.u32 %v4488, 16
        %v4655 = vor.u32 %v4652, %v4653
        %v4656 = vsel %vm3976, %v4648, %v4655
        %v4657 = vrot.slane %v4652, 4
        %v4659 = vshrl.u32 %v4489, 16
        %v4661 = vrot.slane %v4659, 7
        %v4662 = vshll.u32 %v4489, 16
        %v4664 = vor.u32 %v4661, %v4662
        %v4665 = vsel %vm3976, %v4657, %v4664
        %4682 = vst [vmem:[#allocation4 + $0xc] sm:$0xf] %v4502
        %4683 = vst [vmem:[#allocation4 + $0x30] sm:$0xf] %v4511
        %4684 = vst [vmem:[#allocation4 + $0x54] sm:$0xf] %v4524
        %4685 = vst [vmem:[#allocation4 + $0x78] sm:$0xf] %v4533
        %4686 = vst [vmem:[#allocation4 + $0x9c] sm:$0xf] %v4546
        %4687 = vst [vmem:[#allocation4 + $0xc0] sm:$0xf] %v4555
        %4688 = vst [vmem:[#allocation4 + $0xe4] sm:$0xf] %v4568
        %4689 = vst [vmem:[#allocation4 + $0x108] sm:$0xf] %v4577
        %4690 = vst [vmem:[#allocation4 + $0x12c] sm:$0xf] %v4590
        %4691 = vst [vmem:[#allocation4 + $0x150] sm:$0xf] %v4599
        %4692 = vst [vmem:[#allocation4 + $0x174] sm:$0xf] %v4612
        %4693 = vst [vmem:[#allocation4 + $0x198] sm:$0xf] %v4621
        %4694 = vst [vmem:[#allocation4 + $0x1bc] sm:$0xf] %v4634
        %4695 = vst [vmem:[#allocation4 + $0x1e0] sm:$0xf] %v4643
        %4696 = vst [vmem:[#allocation4 + $0x204] sm:$0xf] %v4656
        %4697 = vst [vmem:[#allocation4 + $0x228] sm:$0xf] %v4665
        %v4698 = vld [vmem:[%s4465 + $0x4] sm:$0xf]
        %v4699 = vld [vmem:[%s4465 + $0x8] sm:$0xf]
        %v4700 = vld [vmem:[%s4465 + $0x14] sm:$0xf]
        %v4701 = vld [vmem:[%s4465 + $0x18] sm:$0xf]
        %v4702 = vld [vmem:[%s4465 + $0x24] sm:$0xf]
        %v4703 = vld [vmem:[%s4465 + $0x28] sm:$0xf]
        %v4704 = vld [vmem:[%s4465 + $0x34] sm:$0xf]
        %v4705 = vld [vmem:[%s4465 + $0x38] sm:$0xf]
        %v4706 = vld [vmem:[%s4465 + $0x44] sm:$0xf]
        %v4707 = vld [vmem:[%s4465 + $0x48] sm:$0xf]
        %v4708 = vld [vmem:[%s4465 + $0x54] sm:$0xf]
        %v4709 = vld [vmem:[%s4465 + $0x58] sm:$0xf]
        %v4710 = vld [vmem:[%s4465 + $0x64] sm:$0xf]
        %v4711 = vld [vmem:[%s4465 + $0x68] sm:$0xf]
        %v4712 = vld [vmem:[%s4465 + $0x74] sm:$0xf]
        %v4713 = vld [vmem:[%s4465 + $0x78] sm:$0xf]
        %4714 = vst [vmem:[#allocation4 + $0x10] sm:$0xf] %v4698
        %4715 = vst [vmem:[#allocation4 + $0x34] sm:$0xf] %v4699
        %4716 = vst [vmem:[#allocation4 + $0x58] sm:$0xf] %v4700
        %4717 = vst [vmem:[#allocation4 + $0x7c] sm:$0xf] %v4701
        %4718 = vst [vmem:[#allocation4 + $0xa0] sm:$0xf] %v4702
        %4719 = vst [vmem:[#allocation4 + $0xc4] sm:$0xf] %v4703
        %4720 = vst [vmem:[#allocation4 + $0xe8] sm:$0xf] %v4704
        %4721 = vst [vmem:[#allocation4 + $0x10c] sm:$0xf] %v4705
        %4722 = vst [vmem:[#allocation4 + $0x130] sm:$0xf] %v4706
        %4723 = vst [vmem:[#allocation4 + $0x154] sm:$0xf] %v4707
        %4724 = vst [vmem:[#allocation4 + $0x178] sm:$0xf] %v4708
        %4725 = vst [vmem:[#allocation4 + $0x19c] sm:$0xf] %v4709
        %4726 = vst [vmem:[#allocation4 + $0x1c0] sm:$0xf] %v4710
        %4727 = vst [vmem:[#allocation4 + $0x1e4] sm:$0xf] %v4711
        %4728 = vst [vmem:[#allocation4 + $0x208] sm:$0xf] %v4712
        %4729 = vst [vmem:[#allocation4 + $0x22c] sm:$0xf] %v4713
        %v4730 = vld [vmem:[%s4465 + $0x4] sm:$0xf]
        %v4731 = vld [vmem:[%s4465 + $0x8] sm:$0xf]
        %v4732 = vld [vmem:[%s4465 + $0xc] sm:$0x1]
        %v4733 = vld [vmem:[%s4465 + $0x14] sm:$0xf]
        %v4734 = vld [vmem:[%s4465 + $0x18] sm:$0xf]
        %v4735 = vld [vmem:[%s4465 + $0x1c] sm:$0x1]
        %v4736 = vld [vmem:[%s4465 + $0x24] sm:$0xf]
        %v4737 = vld [vmem:[%s4465 + $0x28] sm:$0xf]
        %v4738 = vld [vmem:[%s4465 + $0x2c] sm:$0x1]
        %v4739 = vld [vmem:[%s4465 + $0x34] sm:$0xf]
        %v4740 = vld [vmem:[%s4465 + $0x38] sm:$0xf]
        %v4741 = vld [vmem:[%s4465 + $0x3c] sm:$0x1]
        %v4742 = vld [vmem:[%s4465 + $0x44] sm:$0xf]
        %v4743 = vld [vmem:[%s4465 + $0x48] sm:$0xf]
        %v4744 = vld [vmem:[%s4465 + $0x4c] sm:$0x1]
        %v4745 = vld [vmem:[%s4465 + $0x54] sm:$0xf]
        %v4746 = vld [vmem:[%s4465 + $0x58] sm:$0xf]
        %v4747 = vld [vmem:[%s4465 + $0x5c] sm:$0x1]
        %v4748 = vld [vmem:[%s4465 + $0x64] sm:$0xf]
        %v4749 = vld [vmem:[%s4465 + $0x68] sm:$0xf]
        %v4750 = vld [vmem:[%s4465 + $0x6c] sm:$0x1]
        %v4751 = vld [vmem:[%s4465 + $0x74] sm:$0xf]
        %v4752 = vld [vmem:[%s4465 + $0x78] sm:$0xf]
        %v4753 = vld [vmem:[%s4465 + $0x7c] sm:$0x1]
        %v4755 = vshrl.u32 %v4730, 16
        %v4757 = vrot.slane %v4755, 4
        %v4758 = vshll.u32 %v4730, 16
        %v4760 = vrot.slane %v4758, 5
        %v4761 = vor.u32 %v4757, %v4760
        %v4762 = vrot.slane %v4761, 4
        %v4764 = vshll.u32 %v4731, 16
        %v4766 = vrot.slane %v4764, 5
        %v4767 = vsel %vm393, %v4762, %v4766
        %v4768 = vshrl.u32 %v4731, 16
        %v4770 = vrot.slane %v4768, 4
        %v4771 = vor.u32 %v4770, %v4766
        %v4772 = vrot.slane %v4771, 4
        %v4774 = vshll.u32 %v4732, 16
        %v4776 = vrot.slane %v4774, 5
        %v4777 = vsel %vm393, %v4772, %v4776
        %v4779 = vshrl.u32 %v4733, 16
        %v4781 = vrot.slane %v4779, 4
        %v4782 = vshll.u32 %v4733, 16
        %v4784 = vrot.slane %v4782, 5
        %v4785 = vor.u32 %v4781, %v4784
        %v4786 = vrot.slane %v4785, 4
        %v4788 = vshll.u32 %v4734, 16
        %v4790 = vrot.slane %v4788, 5
        %v4791 = vsel %vm393, %v4786, %v4790
        %v4792 = vshrl.u32 %v4734, 16
        %v4794 = vrot.slane %v4792, 4
        %v4795 = vor.u32 %v4794, %v4790
        %v4796 = vrot.slane %v4795, 4
        %v4798 = vshll.u32 %v4735, 16
        %v4800 = vrot.slane %v4798, 5
        %v4801 = vsel %vm393, %v4796, %v4800
        %v4803 = vshrl.u32 %v4736, 16
        %v4805 = vrot.slane %v4803, 4
        %v4806 = vshll.u32 %v4736, 16
        %v4808 = vrot.slane %v4806, 5
        %v4809 = vor.u32 %v4805, %v4808
        %v4810 = vrot.slane %v4809, 4
        %v4812 = vshll.u32 %v4737, 16
        %v4814 = vrot.slane %v4812, 5
        %v4815 = vsel %vm393, %v4810, %v4814
        %v4816 = vshrl.u32 %v4737, 16
        %v4818 = vrot.slane %v4816, 4
        %v4819 = vor.u32 %v4818, %v4814
        %v4820 = vrot.slane %v4819, 4
        %v4822 = vshll.u32 %v4738, 16
        %v4824 = vrot.slane %v4822, 5
        %v4825 = vsel %vm393, %v4820, %v4824
        %v4827 = vshrl.u32 %v4739, 16
        %v4829 = vrot.slane %v4827, 4
        %v4830 = vshll.u32 %v4739, 16
        %v4832 = vrot.slane %v4830, 5
        %v4833 = vor.u32 %v4829, %v4832
        %v4834 = vrot.slane %v4833, 4
        %v4836 = vshll.u32 %v4740, 16
        %v4838 = vrot.slane %v4836, 5
        %v4839 = vsel %vm393, %v4834, %v4838
        %v4840 = vshrl.u32 %v4740, 16
        %v4842 = vrot.slane %v4840, 4
        %v4843 = vor.u32 %v4842, %v4838
        %v4844 = vrot.slane %v4843, 4
        %v4846 = vshll.u32 %v4741, 16
        %v4848 = vrot.slane %v4846, 5
        %v4849 = vsel %vm393, %v4844, %v4848
        %v4851 = vshrl.u32 %v4742, 16
        %v4853 = vrot.slane %v4851, 4
        %v4854 = vshll.u32 %v4742, 16
        %v4856 = vrot.slane %v4854, 5
        %v4857 = vor.u32 %v4853, %v4856
        %v4858 = vrot.slane %v4857, 4
        %v4860 = vshll.u32 %v4743, 16
        %v4862 = vrot.slane %v4860, 5
        %v4863 = vsel %vm393, %v4858, %v4862
        %v4864 = vshrl.u32 %v4743, 16
        %v4866 = vrot.slane %v4864, 4
        %v4867 = vor.u32 %v4866, %v4862
        %v4868 = vrot.slane %v4867, 4
        %v4870 = vshll.u32 %v4744, 16
        %v4872 = vrot.slane %v4870, 5
        %v4873 = vsel %vm393, %v4868, %v4872
        %v4875 = vshrl.u32 %v4745, 16
        %v4877 = vrot.slane %v4875, 4
        %v4878 = vshll.u32 %v4745, 16
        %v4880 = vrot.slane %v4878, 5
        %v4881 = vor.u32 %v4877, %v4880
        %v4882 = vrot.slane %v4881, 4
        %v4884 = vshll.u32 %v4746, 16
        %v4886 = vrot.slane %v4884, 5
        %v4887 = vsel %vm393, %v4882, %v4886
        %v4888 = vshrl.u32 %v4746, 16
        %v4890 = vrot.slane %v4888, 4
        %v4891 = vor.u32 %v4890, %v4886
        %v4892 = vrot.slane %v4891, 4
        %v4894 = vshll.u32 %v4747, 16
        %v4896 = vrot.slane %v4894, 5
        %v4897 = vsel %vm393, %v4892, %v4896
        %v4899 = vshrl.u32 %v4748, 16
        %v4901 = vrot.slane %v4899, 4
        %v4902 = vshll.u32 %v4748, 16
        %v4904 = vrot.slane %v4902, 5
        %v4905 = vor.u32 %v4901, %v4904
        %v4906 = vrot.slane %v4905, 4
        %v4908 = vshll.u32 %v4749, 16
        %v4910 = vrot.slane %v4908, 5
        %v4911 = vsel %vm393, %v4906, %v4910
        %v4912 = vshrl.u32 %v4749, 16
        %v4914 = vrot.slane %v4912, 4
        %v4915 = vor.u32 %v4914, %v4910
        %v4916 = vrot.slane %v4915, 4
        %v4918 = vshll.u32 %v4750, 16
        %v4920 = vrot.slane %v4918, 5
        %v4921 = vsel %vm393, %v4916, %v4920
        %v4923 = vshrl.u32 %v4751, 16
        %v4925 = vrot.slane %v4923, 4
        %v4926 = vshll.u32 %v4751, 16
        %v4928 = vrot.slane %v4926, 5
        %v4929 = vor.u32 %v4925, %v4928
        %v4930 = vrot.slane %v4929, 4
        %v4932 = vshll.u32 %v4752, 16
        %v4934 = vrot.slane %v4932, 5
        %v4935 = vsel %vm393, %v4930, %v4934
        %v4936 = vshrl.u32 %v4752, 16
        %v4938 = vrot.slane %v4936, 4
        %v4939 = vor.u32 %v4938, %v4934
        %v4940 = vrot.slane %v4939, 4
        %v4942 = vshll.u32 %v4753, 16
        %v4944 = vrot.slane %v4942, 5
        %v4945 = vsel %vm393, %v4940, %v4944
        %4962 = vst [vmem:[#allocation4 + $0x14] sm:$0xf] %v4767
        %4963 = vst [vmem:[#allocation4 + $0x38] sm:$0xf] %v4777
        %4964 = vst [vmem:[#allocation4 + $0x5c] sm:$0xf] %v4791
        %4965 = vst [vmem:[#allocation4 + $0x80] sm:$0xf] %v4801
        %4966 = vst [vmem:[#allocation4 + $0xa4] sm:$0xf] %v4815
        %4967 = vst [vmem:[#allocation4 + $0xc8] sm:$0xf] %v4825
        %4968 = vst [vmem:[#allocation4 + $0xec] sm:$0xf] %v4839
        %4969 = vst [vmem:[#allocation4 + $0x110] sm:$0xf] %v4849
        %4970 = vst [vmem:[#allocation4 + $0x134] sm:$0xf] %v4863
        %4971 = vst [vmem:[#allocation4 + $0x158] sm:$0xf] %v4873
        %4972 = vst [vmem:[#allocation4 + $0x17c] sm:$0xf] %v4887
        %4973 = vst [vmem:[#allocation4 + $0x1a0] sm:$0xf] %v4897
        %4974 = vst [vmem:[#allocation4 + $0x1c4] sm:$0xf] %v4911
        %4975 = vst [vmem:[#allocation4 + $0x1e8] sm:$0xf] %v4921
        %4976 = vst [vmem:[#allocation4 + $0x20c] sm:$0xf] %v4935
        %4977 = vst [vmem:[#allocation4 + $0x230] sm:$0xf] %v4945
        %s4978 = scalar_lea.vmem [#allocation3], 32
        %v4979 = vld [vmem:[%s4978] sm:$0x8]
        %v4980 = vld [vmem:[%s4978 + $0x4] sm:$0xf]
        %v4981 = vld [vmem:[%s4978 + $0x8] sm:$0xf]
        %v4982 = vld [vmem:[%s4978 + $0x10] sm:$0x8]
        %v4983 = vld [vmem:[%s4978 + $0x14] sm:$0xf]
        %v4984 = vld [vmem:[%s4978 + $0x18] sm:$0xf]
        %v4985 = vld [vmem:[%s4978 + $0x20] sm:$0x8]
        %v4986 = vld [vmem:[%s4978 + $0x24] sm:$0xf]
        %v4987 = vld [vmem:[%s4978 + $0x28] sm:$0xf]
        %v4988 = vld [vmem:[%s4978 + $0x30] sm:$0x8]
        %v4989 = vld [vmem:[%s4978 + $0x34] sm:$0xf]
        %v4990 = vld [vmem:[%s4978 + $0x38] sm:$0xf]
        %v4991 = vld [vmem:[%s4978 + $0x40] sm:$0x8]
        %v4992 = vld [vmem:[%s4978 + $0x44] sm:$0xf]
        %v4993 = vld [vmem:[%s4978 + $0x48] sm:$0xf]
        %v4994 = vld [vmem:[%s4978 + $0x50] sm:$0x8]
        %v4995 = vld [vmem:[%s4978 + $0x54] sm:$0xf]
        %v4996 = vld [vmem:[%s4978 + $0x58] sm:$0xf]
        %v4997 = vld [vmem:[%s4978 + $0x60] sm:$0x8]
        %v4998 = vld [vmem:[%s4978 + $0x64] sm:$0xf]
        %v4999 = vld [vmem:[%s4978 + $0x68] sm:$0xf]
        %v5000 = vld [vmem:[%s4978 + $0x70] sm:$0x8]
        %v5001 = vld [vmem:[%s4978 + $0x74] sm:$0xf]
        %v5002 = vld [vmem:[%s4978 + $0x78] sm:$0xf]
        %v5004 = vshrl.u32 %v4979, 16
        %v5006 = vrot.slane %v5004, 7
        %v5007 = vrot.slane %v5006, 4
        %v5009 = vshrl.u32 %v4980, 16
        %v5011 = vrot.slane %v5009, 7
        %v5012 = vshll.u32 %v4980, 16
        %v5014 = vor.u32 %v5011, %v5012
        %v5015 = vsel %vm3976, %v5007, %v5014
        %v5016 = vrot.slane %v5011, 4
        %v5018 = vshrl.u32 %v4981, 16
        %v5020 = vrot.slane %v5018, 7
        %v5021 = vshll.u32 %v4981, 16
        %v5023 = vor.u32 %v5020, %v5021
        %v5024 = vsel %vm3976, %v5016, %v5023
        %v5026 = vshrl.u32 %v4982, 16
        %v5028 = vrot.slane %v5026, 7
        %v5029 = vrot.slane %v5028, 4
        %v5031 = vshrl.u32 %v4983, 16
        %v5033 = vrot.slane %v5031, 7
        %v5034 = vshll.u32 %v4983, 16
        %v5036 = vor.u32 %v5033, %v5034
        %v5037 = vsel %vm3976, %v5029, %v5036
        %v5038 = vrot.slane %v5033, 4
        %v5040 = vshrl.u32 %v4984, 16
        %v5042 = vrot.slane %v5040, 7
        %v5043 = vshll.u32 %v4984, 16
        %v5045 = vor.u32 %v5042, %v5043
        %v5046 = vsel %vm3976, %v5038, %v5045
        %v5048 = vshrl.u32 %v4985, 16
        %v5050 = vrot.slane %v5048, 7
        %v5051 = vrot.slane %v5050, 4
        %v5053 = vshrl.u32 %v4986, 16
        %v5055 = vrot.slane %v5053, 7
        %v5056 = vshll.u32 %v4986, 16
        %v5058 = vor.u32 %v5055, %v5056
        %v5059 = vsel %vm3976, %v5051, %v5058
        %v5060 = vrot.slane %v5055, 4
        %v5062 = vshrl.u32 %v4987, 16
        %v5064 = vrot.slane %v5062, 7
        %v5065 = vshll.u32 %v4987, 16
        %v5067 = vor.u32 %v5064, %v5065
        %v5068 = vsel %vm3976, %v5060, %v5067
        %v5070 = vshrl.u32 %v4988, 16
        %v5072 = vrot.slane %v5070, 7
        %v5073 = vrot.slane %v5072, 4
        %v5075 = vshrl.u32 %v4989, 16
        %v5077 = vrot.slane %v5075, 7
        %v5078 = vshll.u32 %v4989, 16
        %v5080 = vor.u32 %v5077, %v5078
        %v5081 = vsel %vm3976, %v5073, %v5080
        %v5082 = vrot.slane %v5077, 4
        %v5084 = vshrl.u32 %v4990, 16
        %v5086 = vrot.slane %v5084, 7
        %v5087 = vshll.u32 %v4990, 16
        %v5089 = vor.u32 %v5086, %v5087
        %v5090 = vsel %vm3976, %v5082, %v5089
        %v5092 = vshrl.u32 %v4991, 16
        %v5094 = vrot.slane %v5092, 7
        %v5095 = vrot.slane %v5094, 4
        %v5097 = vshrl.u32 %v4992, 16
        %v5099 = vrot.slane %v5097, 7
        %v5100 = vshll.u32 %v4992, 16
        %v5102 = vor.u32 %v5099, %v5100
        %v5103 = vsel %vm3976, %v5095, %v5102
        %v5104 = vrot.slane %v5099, 4
        %v5106 = vshrl.u32 %v4993, 16
        %v5108 = vrot.slane %v5106, 7
        %v5109 = vshll.u32 %v4993, 16
        %v5111 = vor.u32 %v5108, %v5109
        %v5112 = vsel %vm3976, %v5104, %v5111
        %v5114 = vshrl.u32 %v4994, 16
        %v5116 = vrot.slane %v5114, 7
        %v5117 = vrot.slane %v5116, 4
        %v5119 = vshrl.u32 %v4995, 16
        %v5121 = vrot.slane %v5119, 7
        %v5122 = vshll.u32 %v4995, 16
        %v5124 = vor.u32 %v5121, %v5122
        %v5125 = vsel %vm3976, %v5117, %v5124
        %v5126 = vrot.slane %v5121, 4
        %v5128 = vshrl.u32 %v4996, 16
        %v5130 = vrot.slane %v5128, 7
        %v5131 = vshll.u32 %v4996, 16
        %v5133 = vor.u32 %v5130, %v5131
        %v5134 = vsel %vm3976, %v5126, %v5133
        %v5136 = vshrl.u32 %v4997, 16
        %v5138 = vrot.slane %v5136, 7
        %v5139 = vrot.slane %v5138, 4
        %v5141 = vshrl.u32 %v4998, 16
        %v5143 = vrot.slane %v5141, 7
        %v5144 = vshll.u32 %v4998, 16
        %v5146 = vor.u32 %v5143, %v5144
        %v5147 = vsel %vm3976, %v5139, %v5146
        %v5148 = vrot.slane %v5143, 4
        %v5150 = vshrl.u32 %v4999, 16
        %v5152 = vrot.slane %v5150, 7
        %v5153 = vshll.u32 %v4999, 16
        %v5155 = vor.u32 %v5152, %v5153
        %v5156 = vsel %vm3976, %v5148, %v5155
        %v5158 = vshrl.u32 %v5000, 16
        %v5160 = vrot.slane %v5158, 7
        %v5161 = vrot.slane %v5160, 4
        %v5163 = vshrl.u32 %v5001, 16
        %v5165 = vrot.slane %v5163, 7
        %v5166 = vshll.u32 %v5001, 16
        %v5168 = vor.u32 %v5165, %v5166
        %v5169 = vsel %vm3976, %v5161, %v5168
        %v5170 = vrot.slane %v5165, 4
        %v5172 = vshrl.u32 %v5002, 16
        %v5174 = vrot.slane %v5172, 7
        %v5175 = vshll.u32 %v5002, 16
        %v5177 = vor.u32 %v5174, %v5175
        %v5178 = vsel %vm3976, %v5170, %v5177
        %5195 = vst [vmem:[#allocation4 + $0x18] sm:$0xf] %v5015
        %5196 = vst [vmem:[#allocation4 + $0x3c] sm:$0xf] %v5024
        %5197 = vst [vmem:[#allocation4 + $0x60] sm:$0xf] %v5037
        %5198 = vst [vmem:[#allocation4 + $0x84] sm:$0xf] %v5046
        %5199 = vst [vmem:[#allocation4 + $0xa8] sm:$0xf] %v5059
        %5200 = vst [vmem:[#allocation4 + $0xcc] sm:$0xf] %v5068
        %5201 = vst [vmem:[#allocation4 + $0xf0] sm:$0xf] %v5081
        %5202 = vst [vmem:[#allocation4 + $0x114] sm:$0xf] %v5090
        %5203 = vst [vmem:[#allocation4 + $0x138] sm:$0xf] %v5103
        %5204 = vst [vmem:[#allocation4 + $0x15c] sm:$0xf] %v5112
        %5205 = vst [vmem:[#allocation4 + $0x180] sm:$0xf] %v5125
        %5206 = vst [vmem:[#allocation4 + $0x1a4] sm:$0xf] %v5134
        %5207 = vst [vmem:[#allocation4 + $0x1c8] sm:$0xf] %v5147
        %5208 = vst [vmem:[#allocation4 + $0x1ec] sm:$0xf] %v5156
        %5209 = vst [vmem:[#allocation4 + $0x210] sm:$0xf] %v5169
        %5210 = vst [vmem:[#allocation4 + $0x234] sm:$0xf] %v5178
        %v5211 = vld [vmem:[%s4978 + $0x4] sm:$0xf]
        %v5212 = vld [vmem:[%s4978 + $0x8] sm:$0xf]
        %v5213 = vld [vmem:[%s4978 + $0x14] sm:$0xf]
        %v5214 = vld [vmem:[%s4978 + $0x18] sm:$0xf]
        %v5215 = vld [vmem:[%s4978 + $0x24] sm:$0xf]
        %v5216 = vld [vmem:[%s4978 + $0x28] sm:$0xf]
        %v5217 = vld [vmem:[%s4978 + $0x34] sm:$0xf]
        %v5218 = vld [vmem:[%s4978 + $0x38] sm:$0xf]
        %v5219 = vld [vmem:[%s4978 + $0x44] sm:$0xf]
        %v5220 = vld [vmem:[%s4978 + $0x48] sm:$0xf]
        %v5221 = vld [vmem:[%s4978 + $0x54] sm:$0xf]
        %v5222 = vld [vmem:[%s4978 + $0x58] sm:$0xf]
        %v5223 = vld [vmem:[%s4978 + $0x64] sm:$0xf]
        %v5224 = vld [vmem:[%s4978 + $0x68] sm:$0xf]
        %v5225 = vld [vmem:[%s4978 + $0x74] sm:$0xf]
        %v5226 = vld [vmem:[%s4978 + $0x78] sm:$0xf]
        %5227 = vst [vmem:[#allocation4 + $0x1c] sm:$0xf] %v5211
        %5228 = vst [vmem:[#allocation4 + $0x40] sm:$0xf] %v5212
        %5229 = vst [vmem:[#allocation4 + $0x64] sm:$0xf] %v5213
        %5230 = vst [vmem:[#allocation4 + $0x88] sm:$0xf] %v5214
        %5231 = vst [vmem:[#allocation4 + $0xac] sm:$0xf] %v5215
        %5232 = vst [vmem:[#allocation4 + $0xd0] sm:$0xf] %v5216
        %5233 = vst [vmem:[#allocation4 + $0xf4] sm:$0xf] %v5217
        %5234 = vst [vmem:[#allocation4 + $0x118] sm:$0xf] %v5218
        %5235 = vst [vmem:[#allocation4 + $0x13c] sm:$0xf] %v5219
        %5236 = vst [vmem:[#allocation4 + $0x160] sm:$0xf] %v5220
        %5237 = vst [vmem:[#allocation4 + $0x184] sm:$0xf] %v5221
        %5238 = vst [vmem:[#allocation4 + $0x1a8] sm:$0xf] %v5222
        %5239 = vst [vmem:[#allocation4 + $0x1cc] sm:$0xf] %v5223
        %5240 = vst [vmem:[#allocation4 + $0x1f0] sm:$0xf] %v5224
        %5241 = vst [vmem:[#allocation4 + $0x214] sm:$0xf] %v5225
        %5242 = vst [vmem:[#allocation4 + $0x238] sm:$0xf] %v5226
        %v5243 = vld [vmem:[%s4978 + $0x4] sm:$0xf]
        %v5244 = vld [vmem:[%s4978 + $0x8] sm:$0xf]
        %v5245 = vld [vmem:[%s4978 + $0xc] sm:$0x1]
        %v5246 = vld [vmem:[%s4978 + $0x14] sm:$0xf]
        %v5247 = vld [vmem:[%s4978 + $0x18] sm:$0xf]
        %v5248 = vld [vmem:[%s4978 + $0x1c] sm:$0x1]
        %v5249 = vld [vmem:[%s4978 + $0x24] sm:$0xf]
        %v5250 = vld [vmem:[%s4978 + $0x28] sm:$0xf]
        %v5251 = vld [vmem:[%s4978 + $0x2c] sm:$0x1]
        %v5252 = vld [vmem:[%s4978 + $0x34] sm:$0xf]
        %v5253 = vld [vmem:[%s4978 + $0x38] sm:$0xf]
        %v5254 = vld [vmem:[%s4978 + $0x3c] sm:$0x1]
        %v5255 = vld [vmem:[%s4978 + $0x44] sm:$0xf]
        %v5256 = vld [vmem:[%s4978 + $0x48] sm:$0xf]
        %v5257 = vld [vmem:[%s4978 + $0x4c] sm:$0x1]
        %v5258 = vld [vmem:[%s4978 + $0x54] sm:$0xf]
        %v5259 = vld [vmem:[%s4978 + $0x58] sm:$0xf]
        %v5260 = vld [vmem:[%s4978 + $0x5c] sm:$0x1]
        %v5261 = vld [vmem:[%s4978 + $0x64] sm:$0xf]
        %v5262 = vld [vmem:[%s4978 + $0x68] sm:$0xf]
        %v5263 = vld [vmem:[%s4978 + $0x6c] sm:$0x1]
        %v5264 = vld [vmem:[%s4978 + $0x74] sm:$0xf]
        %v5265 = vld [vmem:[%s4978 + $0x78] sm:$0xf]
        %v5266 = vld [vmem:[%s4978 + $0x7c] sm:$0x1]
        %v5268 = vshrl.u32 %v5243, 16
        %v5270 = vrot.slane %v5268, 4
        %v5271 = vshll.u32 %v5243, 16
        %v5273 = vrot.slane %v5271, 5
        %v5274 = vor.u32 %v5270, %v5273
        %v5275 = vrot.slane %v5274, 4
        %v5277 = vshll.u32 %v5244, 16
        %v5279 = vrot.slane %v5277, 5
        %v5280 = vsel %vm393, %v5275, %v5279
        %v5281 = vshrl.u32 %v5244, 16
        %v5283 = vrot.slane %v5281, 4
        %v5284 = vor.u32 %v5283, %v5279
        %v5285 = vrot.slane %v5284, 4
        %v5287 = vshll.u32 %v5245, 16
        %v5289 = vrot.slane %v5287, 5
        %v5290 = vsel %vm393, %v5285, %v5289
        %v5292 = vshrl.u32 %v5246, 16
        %v5294 = vrot.slane %v5292, 4
        %v5295 = vshll.u32 %v5246, 16
        %v5297 = vrot.slane %v5295, 5
        %v5298 = vor.u32 %v5294, %v5297
        %v5299 = vrot.slane %v5298, 4
        %v5301 = vshll.u32 %v5247, 16
        %v5303 = vrot.slane %v5301, 5
        %v5304 = vsel %vm393, %v5299, %v5303
        %v5305 = vshrl.u32 %v5247, 16
        %v5307 = vrot.slane %v5305, 4
        %v5308 = vor.u32 %v5307, %v5303
        %v5309 = vrot.slane %v5308, 4
        %v5311 = vshll.u32 %v5248, 16
        %v5313 = vrot.slane %v5311, 5
        %v5314 = vsel %vm393, %v5309, %v5313
        %v5316 = vshrl.u32 %v5249, 16
        %v5318 = vrot.slane %v5316, 4
        %v5319 = vshll.u32 %v5249, 16
        %v5321 = vrot.slane %v5319, 5
        %v5322 = vor.u32 %v5318, %v5321
        %v5323 = vrot.slane %v5322, 4
        %v5325 = vshll.u32 %v5250, 16
        %v5327 = vrot.slane %v5325, 5
        %v5328 = vsel %vm393, %v5323, %v5327
        %v5329 = vshrl.u32 %v5250, 16
        %v5331 = vrot.slane %v5329, 4
        %v5332 = vor.u32 %v5331, %v5327
        %v5333 = vrot.slane %v5332, 4
        %v5335 = vshll.u32 %v5251, 16
        %v5337 = vrot.slane %v5335, 5
        %v5338 = vsel %vm393, %v5333, %v5337
        %v5340 = vshrl.u32 %v5252, 16
        %v5342 = vrot.slane %v5340, 4
        %v5343 = vshll.u32 %v5252, 16
        %v5345 = vrot.slane %v5343, 5
        %v5346 = vor.u32 %v5342, %v5345
        %v5347 = vrot.slane %v5346, 4
        %v5349 = vshll.u32 %v5253, 16
        %v5351 = vrot.slane %v5349, 5
        %v5352 = vsel %vm393, %v5347, %v5351
        %v5353 = vshrl.u32 %v5253, 16
        %v5355 = vrot.slane %v5353, 4
        %v5356 = vor.u32 %v5355, %v5351
        %v5357 = vrot.slane %v5356, 4
        %v5359 = vshll.u32 %v5254, 16
        %v5361 = vrot.slane %v5359, 5
        %v5362 = vsel %vm393, %v5357, %v5361
        %v5364 = vshrl.u32 %v5255, 16
        %v5366 = vrot.slane %v5364, 4
        %v5367 = vshll.u32 %v5255, 16
        %v5369 = vrot.slane %v5367, 5
        %v5370 = vor.u32 %v5366, %v5369
        %v5371 = vrot.slane %v5370, 4
        %v5373 = vshll.u32 %v5256, 16
        %v5375 = vrot.slane %v5373, 5
        %v5376 = vsel %vm393, %v5371, %v5375
        %v5377 = vshrl.u32 %v5256, 16
        %v5379 = vrot.slane %v5377, 4
        %v5380 = vor.u32 %v5379, %v5375
        %v5381 = vrot.slane %v5380, 4
        %v5383 = vshll.u32 %v5257, 16
        %v5385 = vrot.slane %v5383, 5
        %v5386 = vsel %vm393, %v5381, %v5385
        %v5388 = vshrl.u32 %v5258, 16
        %v5390 = vrot.slane %v5388, 4
        %v5391 = vshll.u32 %v5258, 16
        %v5393 = vrot.slane %v5391, 5
        %v5394 = vor.u32 %v5390, %v5393
        %v5395 = vrot.slane %v5394, 4
        %v5397 = vshll.u32 %v5259, 16
        %v5399 = vrot.slane %v5397, 5
        %v5400 = vsel %vm393, %v5395, %v5399
        %v5401 = vshrl.u32 %v5259, 16
        %v5403 = vrot.slane %v5401, 4
        %v5404 = vor.u32 %v5403, %v5399
        %v5405 = vrot.slane %v5404, 4
        %v5407 = vshll.u32 %v5260, 16
        %v5409 = vrot.slane %v5407, 5
        %v5410 = vsel %vm393, %v5405, %v5409
        %v5412 = vshrl.u32 %v5261, 16
        %v5414 = vrot.slane %v5412, 4
        %v5415 = vshll.u32 %v5261, 16
        %v5417 = vrot.slane %v5415, 5
        %v5418 = vor.u32 %v5414, %v5417
        %v5419 = vrot.slane %v5418, 4
        %v5421 = vshll.u32 %v5262, 16
        %v5423 = vrot.slane %v5421, 5
        %v5424 = vsel %vm393, %v5419, %v5423
        %v5425 = vshrl.u32 %v5262, 16
        %v5427 = vrot.slane %v5425, 4
        %v5428 = vor.u32 %v5427, %v5423
        %v5429 = vrot.slane %v5428, 4
        %v5431 = vshll.u32 %v5263, 16
        %v5433 = vrot.slane %v5431, 5
        %v5434 = vsel %vm393, %v5429, %v5433
        %v5436 = vshrl.u32 %v5264, 16
        %v5438 = vrot.slane %v5436, 4
        %v5439 = vshll.u32 %v5264, 16
        %v5441 = vrot.slane %v5439, 5
        %v5442 = vor.u32 %v5438, %v5441
        %v5443 = vrot.slane %v5442, 4
        %v5445 = vshll.u32 %v5265, 16
        %v5447 = vrot.slane %v5445, 5
        %v5448 = vsel %vm393, %v5443, %v5447
        %v5449 = vshrl.u32 %v5265, 16
        %v5451 = vrot.slane %v5449, 4
        %v5452 = vor.u32 %v5451, %v5447
        %v5453 = vrot.slane %v5452, 4
        %v5455 = vshll.u32 %v5266, 16
        %v5457 = vrot.slane %v5455, 5
        %v5458 = vsel %vm393, %v5453, %v5457
        %5475 = vst [vmem:[#allocation4 + $0x20] sm:$0xf] %v5280
        %5476 = vst [vmem:[#allocation4 + $0x44] sm:$0xf] %v5290
        %5477 = vst [vmem:[#allocation4 + $0x68] sm:$0xf] %v5304
        %5478 = vst [vmem:[#allocation4 + $0x8c] sm:$0xf] %v5314
        %5479 = vst [vmem:[#allocation4 + $0xb0] sm:$0xf] %v5328
        %5480 = vst [vmem:[#allocation4 + $0xd4] sm:$0xf] %v5338
        %5481 = vst [vmem:[#allocation4 + $0xf8] sm:$0xf] %v5352
        %5482 = vst [vmem:[#allocation4 + $0x11c] sm:$0xf] %v5362
        %5483 = vst [vmem:[#allocation4 + $0x140] sm:$0xf] %v5376
        %5484 = vst [vmem:[#allocation4 + $0x164] sm:$0xf] %v5386
        %5485 = vst [vmem:[#allocation4 + $0x188] sm:$0xf] %v5400
        %5486 = vst [vmem:[#allocation4 + $0x1ac] sm:$0xf] %v5410
        %5487 = vst [vmem:[#allocation4 + $0x1d0] sm:$0xf] %v5424
        %5488 = vst [vmem:[#allocation4 + $0x1f4] sm:$0xf] %v5434
        %5489 = vst [vmem:[#allocation4 + $0x218] sm:$0xf] %v5448
        %5490 = vst [vmem:[#allocation4 + $0x23c] sm:$0xf] %v5458
        %v5491 = vld [vmem:[#allocation4] sm:$0xff]
        %v5492 = vld [vmem:[#allocation4 + $0x8] sm:$0xff]
        %v5493 = vld [vmem:[#allocation4 + $0x10] sm:$0xff]
        %v5494 = vld [vmem:[#allocation4 + $0x18] sm:$0xff]
        %v5495 = vld [vmem:[#allocation4 + $0x20] sm:$0xf]
        %v5496 = vld [vmem:[#allocation4 + $0x24] sm:$0xff]
        %v5497 = vld [vmem:[#allocation4 + $0x2c] sm:$0xff]
        %v5498 = vld [vmem:[#allocation4 + $0x34] sm:$0xff]
        %v5499 = vld [vmem:[#allocation4 + $0x3c] sm:$0xff]
        %v5500 = vld [vmem:[#allocation4 + $0x44] sm:$0xf]
        %v5501 = vld [vmem:[#allocation4 + $0x48] sm:$0xff]
        %v5502 = vld [vmem:[#allocation4 + $0x50] sm:$0xff]
        %v5503 = vld [vmem:[#allocation4 + $0x58] sm:$0xff]
        %v5504 = vld [vmem:[#allocation4 + $0x60] sm:$0xff]
        %v5505 = vld [vmem:[#allocation4 + $0x68] sm:$0xf]
        %v5506 = vld [vmem:[#allocation4 + $0x6c] sm:$0xff]
        %v5507 = vld [vmem:[#allocation4 + $0x74] sm:$0xff]
        %v5508 = vld [vmem:[#allocation4 + $0x7c] sm:$0xff]
        %v5509 = vld [vmem:[#allocation4 + $0x84] sm:$0xff]
        %v5510 = vld [vmem:[#allocation4 + $0x8c] sm:$0xf]
        %v5511 = vld [vmem:[#allocation4 + $0x90] sm:$0xff]
        %v5512 = vld [vmem:[#allocation4 + $0x98] sm:$0xff]
        %v5513 = vld [vmem:[#allocation4 + $0xa0] sm:$0xff]
        %v5514 = vld [vmem:[#allocation4 + $0xa8] sm:$0xff]
        %v5515 = vld [vmem:[#allocation4 + $0xb0] sm:$0xf]
        %v5516 = vld [vmem:[#allocation4 + $0xb4] sm:$0xff]
        %v5517 = vld [vmem:[#allocation4 + $0xbc] sm:$0xff]
        %v5518 = vld [vmem:[#allocation4 + $0xc4] sm:$0xff]
        %v5519 = vld [vmem:[#allocation4 + $0xcc] sm:$0xff]
        %v5520 = vld [vmem:[#allocation4 + $0xd4] sm:$0xf]
        %v5521 = vld [vmem:[#allocation4 + $0xd8] sm:$0xff]
        %v5522 = vld [vmem:[#allocation4 + $0xe0] sm:$0xff]
        %v5523 = vld [vmem:[#allocation4 + $0xe8] sm:$0xff]
        %v5524 = vld [vmem:[#allocation4 + $0xf0] sm:$0xff]
        %v5525 = vld [vmem:[#allocation4 + $0xf8] sm:$0xf]
        %v5526 = vld [vmem:[#allocation4 + $0xfc] sm:$0xff]
        %v5527 = vld [vmem:[#allocation4 + $0x104] sm:$0xff]
        %v5528 = vld [vmem:[#allocation4 + $0x10c] sm:$0xff]
        %v5529 = vld [vmem:[#allocation4 + $0x114] sm:$0xff]
        %v5530 = vld [vmem:[#allocation4 + $0x11c] sm:$0xf]
        %v5531 = vld [vmem:[#allocation4 + $0x120] sm:$0xff]
        %v5532 = vld [vmem:[#allocation4 + $0x128] sm:$0xff]
        %v5533 = vld [vmem:[#allocation4 + $0x130] sm:$0xff]
        %v5534 = vld [vmem:[#allocation4 + $0x138] sm:$0xff]
        %v5535 = vld [vmem:[#allocation4 + $0x140] sm:$0xf]
        %v5536 = vld [vmem:[#allocation4 + $0x144] sm:$0xff]
        %v5537 = vld [vmem:[#allocation4 + $0x14c] sm:$0xff]
        %v5538 = vld [vmem:[#allocation4 + $0x154] sm:$0xff]
        %v5539 = vld [vmem:[#allocation4 + $0x15c] sm:$0xff]
        %v5540 = vld [vmem:[#allocation4 + $0x164] sm:$0xf]
        %v5541 = vld [vmem:[#allocation4 + $0x168] sm:$0xff]
        %v5542 = vld [vmem:[#allocation4 + $0x170] sm:$0xff]
        %v5543 = vld [vmem:[#allocation4 + $0x178] sm:$0xff]
        %v5544 = vld [vmem:[#allocation4 + $0x180] sm:$0xff]
        %v5545 = vld [vmem:[#allocation4 + $0x188] sm:$0xf]
        %v5546 = vld [vmem:[#allocation4 + $0x18c] sm:$0xff]
        %v5547 = vld [vmem:[#allocation4 + $0x194] sm:$0xff]
        %v5548 = vld [vmem:[#allocation4 + $0x19c] sm:$0xff]
        %v5549 = vld [vmem:[#allocation4 + $0x1a4] sm:$0xff]
        %v5550 = vld [vmem:[#allocation4 + $0x1ac] sm:$0xf]
        %v5551 = vld [vmem:[#allocation4 + $0x1b0] sm:$0xff]
        %v5552 = vld [vmem:[#allocation4 + $0x1b8] sm:$0xff]
        %v5553 = vld [vmem:[#allocation4 + $0x1c0] sm:$0xff]
        %v5554 = vld [vmem:[#allocation4 + $0x1c8] sm:$0xff]
        %v5555 = vld [vmem:[#allocation4 + $0x1d0] sm:$0xf]
        %v5556 = vld [vmem:[#allocation4 + $0x1d4] sm:$0xff]
        %v5557 = vld [vmem:[#allocation4 + $0x1dc] sm:$0xff]
        %v5558 = vld [vmem:[#allocation4 + $0x1e4] sm:$0xff]
        %v5559 = vld [vmem:[#allocation4 + $0x1ec] sm:$0xff]
        %v5560 = vld [vmem:[#allocation4 + $0x1f4] sm:$0xf]
        %v5561 = vld [vmem:[#allocation4 + $0x1f8] sm:$0xff]
        %v5562 = vld [vmem:[#allocation4 + $0x200] sm:$0xff]
        %v5563 = vld [vmem:[#allocation4 + $0x208] sm:$0xff]
        %v5564 = vld [vmem:[#allocation4 + $0x210] sm:$0xff]
        %v5565 = vld [vmem:[#allocation4 + $0x218] sm:$0xf]
        %v5566 = vld [vmem:[#allocation4 + $0x21c] sm:$0xff]
        %v5567 = vld [vmem:[#allocation4 + $0x224] sm:$0xff]
        %v5568 = vld [vmem:[#allocation4 + $0x22c] sm:$0xff]
        %v5569 = vld [vmem:[#allocation4 + $0x234] sm:$0xff]
        %v5570 = vld [vmem:[#allocation4 + $0x23c] sm:$0xf]
        %v5571 = vld [vmem:[#allocation5] sm:$0xf]
        %v5572 = vld [vmem:[#allocation5 + $0x4] sm:$0xf]
        %v5573 = vld [vmem:[#allocation5 + $0x8] sm:$0xf]
        %v5574 = vld [vmem:[#allocation5 + $0xc] sm:$0xf]
        %v5575 = vld [vmem:[#allocation5 + $0x10] sm:$0xf]
        %v5576 = vld [vmem:[#allocation5 + $0x14] sm:$0xf]
        %v5577 = vld [vmem:[#allocation5 + $0x18] sm:$0xf]
        %v5578 = vld [vmem:[#allocation5 + $0x1c] sm:$0xf]
        %v5579 = vld [vmem:[#allocation5 + $0x20] sm:$0xf]
        %v5580 = vld [vmem:[#allocation5 + $0x24] sm:$0xf]
        %v5581 = vld [vmem:[#allocation5 + $0x28] sm:$0xf]
        %v5582 = vld [vmem:[#allocation5 + $0x2c] sm:$0xf]
        %v5583 = vld [vmem:[#allocation5 + $0x30] sm:$0xf]
        %v5584 = vld [vmem:[#allocation5 + $0x34] sm:$0xf]
        %v5585 = vld [vmem:[#allocation5 + $0x38] sm:$0xf]
        %v5586 = vld [vmem:[#allocation5 + $0x3c] sm:$0xf]
        %v5587 = vld [vmem:[#allocation5 + $0x40] sm:$0xf]
        %v5588 = vld [vmem:[#allocation5 + $0x44] sm:$0xf]
        %v5589 = vld [vmem:[#allocation5 + $0x48] sm:$0xf]
        %v5590 = vld [vmem:[#allocation5 + $0x4c] sm:$0xf]
        %v5591 = vld [vmem:[#allocation5 + $0x50] sm:$0xf]
        %v5592 = vld [vmem:[#allocation5 + $0x54] sm:$0xf]
        %v5593 = vld [vmem:[#allocation5 + $0x58] sm:$0xf]
        %v5594 = vld [vmem:[#allocation5 + $0x5c] sm:$0xf]
        %v5595 = vld [vmem:[#allocation5 + $0x60] sm:$0xf]
        %v5596 = vld [vmem:[#allocation5 + $0x64] sm:$0xf]
        %v5597 = vld [vmem:[#allocation5 + $0x68] sm:$0xf]
        %v5598 = vld [vmem:[#allocation5 + $0x6c] sm:$0xf]
        %v5599 = vld [vmem:[#allocation5 + $0x70] sm:$0xf]
        %v5600 = vld [vmem:[#allocation5 + $0x74] sm:$0xf]
        %v5601 = vld [vmem:[#allocation5 + $0x78] sm:$0xf]
        %v5602 = vld [vmem:[#allocation5 + $0x7c] sm:$0xf]
        %v5603 = vld [vmem:[#allocation5 + $0x80] sm:$0xf]
        %v5604 = vld [vmem:[#allocation5 + $0x84] sm:$0xf]
        %v5605 = vld [vmem:[#allocation5 + $0x88] sm:$0xf]
        %v5606 = vld [vmem:[#allocation5 + $0x8c] sm:$0xf]
        %v5607 = vld [vmem:[#allocation5 + $0x90] sm:$0xf]
        %v5608 = vld [vmem:[#allocation5 + $0x94] sm:$0xf]
        %v5609 = vld [vmem:[#allocation5 + $0x98] sm:$0xf]
        %v5610 = vld [vmem:[#allocation5 + $0x9c] sm:$0xf]
        %v5611 = vld [vmem:[#allocation5 + $0xa0] sm:$0xf]
        %v5612 = vld [vmem:[#allocation5 + $0xa4] sm:$0xf]
        %v5613 = vld [vmem:[#allocation5 + $0xa8] sm:$0xf]
        %v5614 = vld [vmem:[#allocation5 + $0xac] sm:$0xf]
        %v5615 = vld [vmem:[#allocation5 + $0xb0] sm:$0xf]
        %v5616 = vld [vmem:[#allocation5 + $0xb4] sm:$0xf]
        %v5617 = vld [vmem:[#allocation5 + $0xb8] sm:$0xf]
        %v5618 = vld [vmem:[#allocation5 + $0xbc] sm:$0xf]
        %v5619 = vld [vmem:[#allocation5 + $0xc0] sm:$0xf]
        %v5620 = vld [vmem:[#allocation5 + $0xc4] sm:$0xf]
        %v5621 = vld [vmem:[#allocation5 + $0xc8] sm:$0xf]
        %v5622 = vld [vmem:[#allocation5 + $0xcc] sm:$0xf]
        %v5623 = vld [vmem:[#allocation5 + $0xd0] sm:$0xf]
        %v5624 = vld [vmem:[#allocation5 + $0xd4] sm:$0xf]
        %v5625 = vld [vmem:[#allocation5 + $0xd8] sm:$0xf]
        %v5626 = vld [vmem:[#allocation5 + $0xdc] sm:$0xf]
        %v5627 = vld [vmem:[#allocation5 + $0xe0] sm:$0xf]
        %v5628 = vld [vmem:[#allocation5 + $0xe4] sm:$0xf]
        %v5629 = vld [vmem:[#allocation5 + $0xe8] sm:$0xf]
        %v5630 = vld [vmem:[#allocation5 + $0xec] sm:$0xf]
        %v5631 = vld [vmem:[#allocation5 + $0xf0] sm:$0xf]
        %v5632 = vld [vmem:[#allocation5 + $0xf4] sm:$0xf]
        %v5633 = vld [vmem:[#allocation5 + $0xf8] sm:$0xf]
        %v5634 = vld [vmem:[#allocation5 + $0xfc] sm:$0xf]
        %v5635 = vld [vmem:[#allocation5 + $0x100] sm:$0xf]
        %v5636 = vld [vmem:[#allocation5 + $0x104] sm:$0xf]
        %v5637 = vld [vmem:[#allocation5 + $0x108] sm:$0xf]
        %v5638 = vld [vmem:[#allocation5 + $0x10c] sm:$0xf]
        %v5639 = vld [vmem:[#allocation5 + $0x110] sm:$0xf]
        %v5640 = vld [vmem:[#allocation5 + $0x114] sm:$0xf]
        %v5641 = vld [vmem:[#allocation5 + $0x118] sm:$0xf]
        %v5642 = vld [vmem:[#allocation5 + $0x11c] sm:$0xf]
        %v5643 = vld [vmem:[#allocation5 + $0x120] sm:$0xf]
        %v5644 = vld [vmem:[#allocation5 + $0x124] sm:$0xf]
        %v5645 = vld [vmem:[#allocation5 + $0x128] sm:$0xf]
        %v5646 = vld [vmem:[#allocation5 + $0x12c] sm:$0xf]
        %v5647 = vld [vmem:[#allocation5 + $0x130] sm:$0xf]
        %v5648 = vld [vmem:[#allocation5 + $0x134] sm:$0xf]
        %v5649 = vld [vmem:[#allocation5 + $0x138] sm:$0xf]
        %v5650 = vld [vmem:[#allocation5 + $0x13c] sm:$0xf]
        %v5651 = vld [vmem:[#allocation5 + $0x140] sm:$0xf]
        %v5652 = vld [vmem:[#allocation5 + $0x144] sm:$0xf]
        %v5653 = vld [vmem:[#allocation5 + $0x148] sm:$0xf]
        %v5654 = vld [vmem:[#allocation5 + $0x14c] sm:$0xf]
        %v5655 = vld [vmem:[#allocation5 + $0x150] sm:$0xf]
        %v5656 = vld [vmem:[#allocation5 + $0x154] sm:$0xf]
        %v5657 = vld [vmem:[#allocation5 + $0x158] sm:$0xf]
        %v5658 = vld [vmem:[#allocation5 + $0x15c] sm:$0xf]
        %v5659 = vld [vmem:[#allocation5 + $0x160] sm:$0xf]
        %v5660 = vld [vmem:[#allocation5 + $0x164] sm:$0xf]
        %v5661 = vld [vmem:[#allocation5 + $0x168] sm:$0xf]
        %v5662 = vld [vmem:[#allocation5 + $0x16c] sm:$0xf]
        %v5663 = vld [vmem:[#allocation5 + $0x170] sm:$0xf]
        %v5664 = vld [vmem:[#allocation5 + $0x174] sm:$0xf]
        %v5665 = vld [vmem:[#allocation5 + $0x178] sm:$0xf]
        %v5666 = vld [vmem:[#allocation5 + $0x17c] sm:$0xf]
        %v5667 = vld [vmem:[#allocation5 + $0x180] sm:$0xf]
        %v5668 = vld [vmem:[#allocation5 + $0x184] sm:$0xf]
        %v5669 = vld [vmem:[#allocation5 + $0x188] sm:$0xf]
        %v5670 = vld [vmem:[#allocation5 + $0x18c] sm:$0xf]
        %v5671 = vld [vmem:[#allocation5 + $0x190] sm:$0xf]
        %v5672 = vld [vmem:[#allocation5 + $0x194] sm:$0xf]
        %v5673 = vld [vmem:[#allocation5 + $0x198] sm:$0xf]
        %v5674 = vld [vmem:[#allocation5 + $0x19c] sm:$0xf]
        %v5675 = vld [vmem:[#allocation5 + $0x1a0] sm:$0xf]
        %v5676 = vld [vmem:[#allocation5 + $0x1a4] sm:$0xf]
        %v5677 = vld [vmem:[#allocation5 + $0x1a8] sm:$0xf]
        %v5678 = vld [vmem:[#allocation5 + $0x1ac] sm:$0xf]
        %v5679 = vld [vmem:[#allocation5 + $0x1b0] sm:$0xf]
        %v5680 = vld [vmem:[#allocation5 + $0x1b4] sm:$0xf]
        %v5681 = vld [vmem:[#allocation5 + $0x1b8] sm:$0xf]
        %v5682 = vld [vmem:[#allocation5 + $0x1bc] sm:$0xf]
        %v5683 = vld [vmem:[#allocation5 + $0x1c0] sm:$0xf]
        %v5684 = vld [vmem:[#allocation5 + $0x1c4] sm:$0xf]
        %v5685 = vld [vmem:[#allocation5 + $0x1c8] sm:$0xf]
        %v5686 = vld [vmem:[#allocation5 + $0x1cc] sm:$0xf]
        %v5687 = vld [vmem:[#allocation5 + $0x1d0] sm:$0xf]
        %v5688 = vld [vmem:[#allocation5 + $0x1d4] sm:$0xf]
        %v5689 = vld [vmem:[#allocation5 + $0x1d8] sm:$0xf]
        %v5690 = vld [vmem:[#allocation5 + $0x1dc] sm:$0xf]
        %v5691 = vld [vmem:[#allocation5 + $0x1e0] sm:$0xf]
        %v5692 = vld [vmem:[#allocation5 + $0x1e4] sm:$0xf]
        %v5693 = vld [vmem:[#allocation5 + $0x1e8] sm:$0xf]
        %v5694 = vld [vmem:[#allocation5 + $0x1ec] sm:$0xf]
        %v5695 = vld [vmem:[#allocation5 + $0x1f0] sm:$0xf]
        %v5696 = vld [vmem:[#allocation5 + $0x1f4] sm:$0xf]
        %v5697 = vld [vmem:[#allocation5 + $0x1f8] sm:$0xf]
        %v5698 = vld [vmem:[#allocation5 + $0x1fc] sm:$0xf]
        %v5699 = vld [vmem:[#allocation5 + $0x200] sm:$0xf]
        %v5700 = vld [vmem:[#allocation5 + $0x204] sm:$0xf]
        %v5701 = vld [vmem:[#allocation5 + $0x208] sm:$0xf]
        %v5702 = vld [vmem:[#allocation5 + $0x20c] sm:$0xf]
        %v5703 = vld [vmem:[#allocation5 + $0x210] sm:$0xf]
        %v5704 = vld [vmem:[#allocation5 + $0x214] sm:$0xf]
        %v5705 = vld [vmem:[#allocation5 + $0x218] sm:$0xf]
        %v5706 = vld [vmem:[#allocation5 + $0x21c] sm:$0xf]
        %v5707 = vld [vmem:[#allocation5 + $0x220] sm:$0xf]
        %v5708 = vld [vmem:[#allocation5 + $0x224] sm:$0xf]
        %v5709 = vld [vmem:[#allocation5 + $0x228] sm:$0xf]
        %v5710 = vld [vmem:[#allocation5 + $0x22c] sm:$0xf]
        %v5711 = vld [vmem:[#allocation5 + $0x230] sm:$0xf]
        %v5712 = vld [vmem:[#allocation5 + $0x234] sm:$0xf]
        %v5713 = vld [vmem:[#allocation5 + $0x238] sm:$0xf]
        %v5714 = vld [vmem:[#allocation5 + $0x23c] sm:$0xf]
        %v5795 = vunpack.c.l.b16 %v5491
        %v5796 = vunpack.c.h.b16 %v5491
        %v5797 = vunpack.c.l.b16 %v5492
        %v5798 = vunpack.c.h.b16 %v5492
        %v5799 = vunpack.c.l.b16 %v5493
        %v5800 = vunpack.c.h.b16 %v5493
        %v5801 = vunpack.c.l.b16 %v5494
        %v5802 = vunpack.c.h.b16 %v5494
        %v5803 = vunpack.c.l.b16 %v5495
        %v5804 = vunpack.c.l.b16 %v5496
        %v5805 = vunpack.c.h.b16 %v5496
        %v5806 = vunpack.c.l.b16 %v5497
        %v5807 = vunpack.c.h.b16 %v5497
        %v5808 = vunpack.c.l.b16 %v5498
        %v5809 = vunpack.c.h.b16 %v5498
        %v5810 = vunpack.c.l.b16 %v5499
        %v5811 = vunpack.c.h.b16 %v5499
        %v5812 = vunpack.c.l.b16 %v5500
        %v5813 = vunpack.c.l.b16 %v5501
        %v5814 = vunpack.c.h.b16 %v5501
        %v5815 = vunpack.c.l.b16 %v5502
        %v5816 = vunpack.c.h.b16 %v5502
        %v5817 = vunpack.c.l.b16 %v5503
        %v5818 = vunpack.c.h.b16 %v5503
        %v5819 = vunpack.c.l.b16 %v5504
        %v5820 = vunpack.c.h.b16 %v5504
        %v5821 = vunpack.c.l.b16 %v5505
        %v5822 = vunpack.c.l.b16 %v5506
        %v5823 = vunpack.c.h.b16 %v5506
        %v5824 = vunpack.c.l.b16 %v5507
        %v5825 = vunpack.c.h.b16 %v5507
        %v5826 = vunpack.c.l.b16 %v5508
        %v5827 = vunpack.c.h.b16 %v5508
        %v5828 = vunpack.c.l.b16 %v5509
        %v5829 = vunpack.c.h.b16 %v5509
        %v5830 = vunpack.c.l.b16 %v5510
        %v5831 = vunpack.c.l.b16 %v5511
        %v5832 = vunpack.c.h.b16 %v5511
        %v5833 = vunpack.c.l.b16 %v5512
        %v5834 = vunpack.c.h.b16 %v5512
        %v5835 = vunpack.c.l.b16 %v5513
        %v5836 = vunpack.c.h.b16 %v5513
        %v5837 = vunpack.c.l.b16 %v5514
        %v5838 = vunpack.c.h.b16 %v5514
        %v5839 = vunpack.c.l.b16 %v5515
        %v5840 = vunpack.c.l.b16 %v5516
        %v5841 = vunpack.c.h.b16 %v5516
        %v5842 = vunpack.c.l.b16 %v5517
        %v5843 = vunpack.c.h.b16 %v5517
        %v5844 = vunpack.c.l.b16 %v5518
        %v5845 = vunpack.c.h.b16 %v5518
        %v5846 = vunpack.c.l.b16 %v5519
        %v5847 = vunpack.c.h.b16 %v5519
        %v5848 = vunpack.c.l.b16 %v5520
        %v5849 = vunpack.c.l.b16 %v5521
        %v5850 = vunpack.c.h.b16 %v5521
        %v5851 = vunpack.c.l.b16 %v5522
        %v5852 = vunpack.c.h.b16 %v5522
        %v5853 = vunpack.c.l.b16 %v5523
        %v5854 = vunpack.c.h.b16 %v5523
        %v5855 = vunpack.c.l.b16 %v5524
        %v5856 = vunpack.c.h.b16 %v5524
        %v5857 = vunpack.c.l.b16 %v5525
        %v5858 = vunpack.c.l.b16 %v5526
        %v5859 = vunpack.c.h.b16 %v5526
        %v5860 = vunpack.c.l.b16 %v5527
        %v5861 = vunpack.c.h.b16 %v5527
        %v5862 = vunpack.c.l.b16 %v5528
        %v5863 = vunpack.c.h.b16 %v5528
        %v5864 = vunpack.c.l.b16 %v5529
        %v5865 = vunpack.c.h.b16 %v5529
        %v5866 = vunpack.c.l.b16 %v5530
        %v5867 = vunpack.c.l.b16 %v5531
        %v5868 = vunpack.c.h.b16 %v5531
        %v5869 = vunpack.c.l.b16 %v5532
        %v5870 = vunpack.c.h.b16 %v5532
        %v5871 = vunpack.c.l.b16 %v5533
        %v5872 = vunpack.c.h.b16 %v5533
        %v5873 = vunpack.c.l.b16 %v5534
        %v5874 = vunpack.c.h.b16 %v5534
        %v5875 = vunpack.c.l.b16 %v5535
        %v5876 = vunpack.c.l.b16 %v5536
        %v5877 = vunpack.c.h.b16 %v5536
        %v5878 = vunpack.c.l.b16 %v5537
        %v5879 = vunpack.c.h.b16 %v5537
        %v5880 = vunpack.c.l.b16 %v5538
        %v5881 = vunpack.c.h.b16 %v5538
        %v5882 = vunpack.c.l.b16 %v5539
        %v5883 = vunpack.c.h.b16 %v5539
        %v5884 = vunpack.c.l.b16 %v5540
        %v5885 = vunpack.c.l.b16 %v5541
        %v5886 = vunpack.c.h.b16 %v5541
        %v5887 = vunpack.c.l.b16 %v5542
        %v5888 = vunpack.c.h.b16 %v5542
        %v5889 = vunpack.c.l.b16 %v5543
        %v5890 = vunpack.c.h.b16 %v5543
        %v5891 = vunpack.c.l.b16 %v5544
        %v5892 = vunpack.c.h.b16 %v5544
        %v5893 = vunpack.c.l.b16 %v5545
        %v5894 = vunpack.c.l.b16 %v5546
        %v5895 = vunpack.c.h.b16 %v5546
        %v5896 = vunpack.c.l.b16 %v5547
        %v5897 = vunpack.c.h.b16 %v5547
        %v5898 = vunpack.c.l.b16 %v5548
        %v5899 = vunpack.c.h.b16 %v5548
        %v5900 = vunpack.c.l.b16 %v5549
        %v5901 = vunpack.c.h.b16 %v5549
        %v5902 = vunpack.c.l.b16 %v5550
        %v5903 = vunpack.c.l.b16 %v5551
        %v5904 = vunpack.c.h.b16 %v5551
        %v5905 = vunpack.c.l.b16 %v5552
        %v5906 = vunpack.c.h.b16 %v5552
        %v5907 = vunpack.c.l.b16 %v5553
        %v5908 = vunpack.c.h.b16 %v5553
        %v5909 = vunpack.c.l.b16 %v5554
        %v5910 = vunpack.c.h.b16 %v5554
        %v5911 = vunpack.c.l.b16 %v5555
        %v5912 = vunpack.c.l.b16 %v5556
        %v5913 = vunpack.c.h.b16 %v5556
        %v5914 = vunpack.c.l.b16 %v5557
        %v5915 = vunpack.c.h.b16 %v5557
        %v5916 = vunpack.c.l.b16 %v5558
        %v5917 = vunpack.c.h.b16 %v5558
        %v5918 = vunpack.c.l.b16 %v5559
        %v5919 = vunpack.c.h.b16 %v5559
        %v5920 = vunpack.c.l.b16 %v5560
        %v5921 = vunpack.c.l.b16 %v5561
        %v5922 = vunpack.c.h.b16 %v5561
        %v5923 = vunpack.c.l.b16 %v5562
        %v5924 = vunpack.c.h.b16 %v5562
        %v5925 = vunpack.c.l.b16 %v5563
        %v5926 = vunpack.c.h.b16 %v5563
        %v5927 = vunpack.c.l.b16 %v5564
        %v5928 = vunpack.c.h.b16 %v5564
        %v5929 = vunpack.c.l.b16 %v5565
        %v5930 = vunpack.c.l.b16 %v5566
        %v5931 = vunpack.c.h.b16 %v5566
        %v5932 = vunpack.c.l.b16 %v5567
        %v5933 = vunpack.c.h.b16 %v5567
        %v5934 = vunpack.c.l.b16 %v5568
        %v5935 = vunpack.c.h.b16 %v5568
        %v5936 = vunpack.c.l.b16 %v5569
        %v5937 = vunpack.c.h.b16 %v5569
        %v5938 = vunpack.c.l.b16 %v5570
        %v5939 = vpack.c.b16 %v5804, %v5795
        %v5940 = vpack.c.b16 %v5805, %v5796
        %v5941 = vpack.c.b16 %v5806, %v5797
        %v5942 = vpack.c.b16 %v5807, %v5798
        %v5943 = vpack.c.b16 %v5808, %v5799
        %v5944 = vpack.c.b16 %v5809, %v5800
        %v5945 = vpack.c.b16 %v5810, %v5801
        %v5946 = vpack.c.b16 %v5811, %v5802
        %v5947 = vpack.c.b16 %v5812, %v5803
        %v5948 = vpack.c.b16 %v5822, %v5813
        %v5949 = vpack.c.b16 %v5823, %v5814
        %v5950 = vpack.c.b16 %v5824, %v5815
        %v5951 = vpack.c.b16 %v5825, %v5816
        %v5952 = vpack.c.b16 %v5826, %v5817
        %v5953 = vpack.c.b16 %v5827, %v5818
        %v5954 = vpack.c.b16 %v5828, %v5819
        %v5955 = vpack.c.b16 %v5829, %v5820
        %v5956 = vpack.c.b16 %v5830, %v5821
        %v5957 = vpack.c.b16 %v5840, %v5831
        %v5958 = vpack.c.b16 %v5841, %v5832
        %v5959 = vpack.c.b16 %v5842, %v5833
        %v5960 = vpack.c.b16 %v5843, %v5834
        %v5961 = vpack.c.b16 %v5844, %v5835
        %v5962 = vpack.c.b16 %v5845, %v5836
        %v5963 = vpack.c.b16 %v5846, %v5837
        %v5964 = vpack.c.b16 %v5847, %v5838
        %v5965 = vpack.c.b16 %v5848, %v5839
        %v5966 = vpack.c.b16 %v5858, %v5849
        %v5967 = vpack.c.b16 %v5859, %v5850
        %v5968 = vpack.c.b16 %v5860, %v5851
        %v5969 = vpack.c.b16 %v5861, %v5852
        %v5970 = vpack.c.b16 %v5862, %v5853
        %v5971 = vpack.c.b16 %v5863, %v5854
        %v5972 = vpack.c.b16 %v5864, %v5855
        %v5973 = vpack.c.b16 %v5865, %v5856
        %v5974 = vpack.c.b16 %v5866, %v5857
        %v5975 = vpack.c.b16 %v5876, %v5867
        %v5976 = vpack.c.b16 %v5877, %v5868
        %v5977 = vpack.c.b16 %v5878, %v5869
        %v5978 = vpack.c.b16 %v5879, %v5870
        %v5979 = vpack.c.b16 %v5880, %v5871
        %v5980 = vpack.c.b16 %v5881, %v5872
        %v5981 = vpack.c.b16 %v5882, %v5873
        %v5982 = vpack.c.b16 %v5883, %v5874
        %v5983 = vpack.c.b16 %v5884, %v5875
        %v5984 = vpack.c.b16 %v5894, %v5885
        %v5985 = vpack.c.b16 %v5895, %v5886
        %v5986 = vpack.c.b16 %v5896, %v5887
        %v5987 = vpack.c.b16 %v5897, %v5888
        %v5988 = vpack.c.b16 %v5898, %v5889
        %v5989 = vpack.c.b16 %v5899, %v5890
        %v5990 = vpack.c.b16 %v5900, %v5891
        %v5991 = vpack.c.b16 %v5901, %v5892
        %v5992 = vpack.c.b16 %v5902, %v5893
        %v5993 = vpack.c.b16 %v5912, %v5903
        %v5994 = vpack.c.b16 %v5913, %v5904
        %v5995 = vpack.c.b16 %v5914, %v5905
        %v5996 = vpack.c.b16 %v5915, %v5906
        %v5997 = vpack.c.b16 %v5916, %v5907
        %v5998 = vpack.c.b16 %v5917, %v5908
        %v5999 = vpack.c.b16 %v5918, %v5909
        %v6000 = vpack.c.b16 %v5919, %v5910
        %v6001 = vpack.c.b16 %v5920, %v5911
        %v6002 = vpack.c.b16 %v5930, %v5921
        %v6003 = vpack.c.b16 %v5931, %v5922
        %v6004 = vpack.c.b16 %v5932, %v5923
        %v6005 = vpack.c.b16 %v5933, %v5924
        %v6006 = vpack.c.b16 %v5934, %v5925
        %v6007 = vpack.c.b16 %v5935, %v5926
        %v6008 = vpack.c.b16 %v5936, %v5927
        %v6009 = vpack.c.b16 %v5937, %v5928
        %v6010 = vpack.c.b16 %v5938, %v5929
        %v6227 = vunpack.c.l.b16 %v5571
        %v6228 = vunpack.c.l.b16 %v5572
        %v6229 = vunpack.c.l.b16 %v5573
        %v6230 = vunpack.c.l.b16 %v5574
        %v6231 = vunpack.c.l.b16 %v5575
        %v6232 = vunpack.c.l.b16 %v5576
        %v6233 = vunpack.c.l.b16 %v5577
        %v6234 = vunpack.c.l.b16 %v5578
        %v6235 = vunpack.c.l.b16 %v5579
        %v6236 = vunpack.c.l.b16 %v5580
        %v6237 = vunpack.c.l.b16 %v5581
        %v6238 = vunpack.c.l.b16 %v5582
        %v6239 = vunpack.c.l.b16 %v5583
        %v6240 = vunpack.c.l.b16 %v5584
        %v6241 = vunpack.c.l.b16 %v5585
        %v6242 = vunpack.c.l.b16 %v5586
        %v6243 = vunpack.c.l.b16 %v5587
        %v6244 = vunpack.c.l.b16 %v5588
        %v6245 = vunpack.c.l.b16 %v5589
        %v6246 = vunpack.c.l.b16 %v5590
        %v6247 = vunpack.c.l.b16 %v5591
        %v6248 = vunpack.c.l.b16 %v5592
        %v6249 = vunpack.c.l.b16 %v5593
        %v6250 = vunpack.c.l.b16 %v5594
        %v6251 = vunpack.c.l.b16 %v5595
        %v6252 = vunpack.c.l.b16 %v5596
        %v6253 = vunpack.c.l.b16 %v5597
        %v6254 = vunpack.c.l.b16 %v5598
        %v6255 = vunpack.c.l.b16 %v5599
        %v6256 = vunpack.c.l.b16 %v5600
        %v6257 = vunpack.c.l.b16 %v5601
        %v6258 = vunpack.c.l.b16 %v5602
        %v6259 = vunpack.c.l.b16 %v5603
        %v6260 = vunpack.c.l.b16 %v5604
        %v6261 = vunpack.c.l.b16 %v5605
        %v6262 = vunpack.c.l.b16 %v5606
        %v6263 = vunpack.c.l.b16 %v5607
        %v6264 = vunpack.c.l.b16 %v5608
        %v6265 = vunpack.c.l.b16 %v5609
        %v6266 = vunpack.c.l.b16 %v5610
        %v6267 = vunpack.c.l.b16 %v5611
        %v6268 = vunpack.c.l.b16 %v5612
        %v6269 = vunpack.c.l.b16 %v5613
        %v6270 = vunpack.c.l.b16 %v5614
        %v6271 = vunpack.c.l.b16 %v5615
        %v6272 = vunpack.c.l.b16 %v5616
        %v6273 = vunpack.c.l.b16 %v5617
        %v6274 = vunpack.c.l.b16 %v5618
        %v6275 = vunpack.c.l.b16 %v5619
        %v6276 = vunpack.c.l.b16 %v5620
        %v6277 = vunpack.c.l.b16 %v5621
        %v6278 = vunpack.c.l.b16 %v5622
        %v6279 = vunpack.c.l.b16 %v5623
        %v6280 = vunpack.c.l.b16 %v5624
        %v6281 = vunpack.c.l.b16 %v5625
        %v6282 = vunpack.c.l.b16 %v5626
        %v6283 = vunpack.c.l.b16 %v5627
        %v6284 = vunpack.c.l.b16 %v5628
        %v6285 = vunpack.c.l.b16 %v5629
        %v6286 = vunpack.c.l.b16 %v5630
        %v6287 = vunpack.c.l.b16 %v5631
        %v6288 = vunpack.c.l.b16 %v5632
        %v6289 = vunpack.c.l.b16 %v5633
        %v6290 = vunpack.c.l.b16 %v5634
        %v6291 = vunpack.c.l.b16 %v5635
        %v6292 = vunpack.c.l.b16 %v5636
        %v6293 = vunpack.c.l.b16 %v5637
        %v6294 = vunpack.c.l.b16 %v5638
        %v6295 = vunpack.c.l.b16 %v5639
        %v6296 = vunpack.c.l.b16 %v5640
        %v6297 = vunpack.c.l.b16 %v5641
        %v6298 = vunpack.c.l.b16 %v5642
        %v6299 = vunpack.c.l.b16 %v5643
        %v6300 = vunpack.c.l.b16 %v5644
        %v6301 = vunpack.c.l.b16 %v5645
        %v6302 = vunpack.c.l.b16 %v5646
        %v6303 = vunpack.c.l.b16 %v5647
        %v6304 = vunpack.c.l.b16 %v5648
        %v6305 = vunpack.c.l.b16 %v5649
        %v6306 = vunpack.c.l.b16 %v5650
        %v6307 = vunpack.c.l.b16 %v5651
        %v6308 = vunpack.c.l.b16 %v5652
        %v6309 = vunpack.c.l.b16 %v5653
        %v6310 = vunpack.c.l.b16 %v5654
        %v6311 = vunpack.c.l.b16 %v5655
        %v6312 = vunpack.c.l.b16 %v5656
        %v6313 = vunpack.c.l.b16 %v5657
        %v6314 = vunpack.c.l.b16 %v5658
        %v6315 = vunpack.c.l.b16 %v5659
        %v6316 = vunpack.c.l.b16 %v5660
        %v6317 = vunpack.c.l.b16 %v5661
        %v6318 = vunpack.c.l.b16 %v5662
        %v6319 = vunpack.c.l.b16 %v5663
        %v6320 = vunpack.c.l.b16 %v5664
        %v6321 = vunpack.c.l.b16 %v5665
        %v6322 = vunpack.c.l.b16 %v5666
        %v6323 = vunpack.c.l.b16 %v5667
        %v6324 = vunpack.c.l.b16 %v5668
        %v6325 = vunpack.c.l.b16 %v5669
        %v6326 = vunpack.c.l.b16 %v5670
        %v6327 = vunpack.c.l.b16 %v5671
        %v6328 = vunpack.c.l.b16 %v5672
        %v6329 = vunpack.c.l.b16 %v5673
        %v6330 = vunpack.c.l.b16 %v5674
        %v6331 = vunpack.c.l.b16 %v5675
        %v6332 = vunpack.c.l.b16 %v5676
        %v6333 = vunpack.c.l.b16 %v5677
        %v6334 = vunpack.c.l.b16 %v5678
        %v6335 = vunpack.c.l.b16 %v5679
        %v6336 = vunpack.c.l.b16 %v5680
        %v6337 = vunpack.c.l.b16 %v5681
        %v6338 = vunpack.c.l.b16 %v5682
        %v6339 = vunpack.c.l.b16 %v5683
        %v6340 = vunpack.c.l.b16 %v5684
        %v6341 = vunpack.c.l.b16 %v5685
        %v6342 = vunpack.c.l.b16 %v5686
        %v6343 = vunpack.c.l.b16 %v5687
        %v6344 = vunpack.c.l.b16 %v5688
        %v6345 = vunpack.c.l.b16 %v5689
        %v6346 = vunpack.c.l.b16 %v5690
        %v6347 = vunpack.c.l.b16 %v5691
        %v6348 = vunpack.c.l.b16 %v5692
        %v6349 = vunpack.c.l.b16 %v5693
        %v6350 = vunpack.c.l.b16 %v5694
        %v6351 = vunpack.c.l.b16 %v5695
        %v6352 = vunpack.c.l.b16 %v5696
        %v6353 = vunpack.c.l.b16 %v5697
        %v6354 = vunpack.c.l.b16 %v5698
        %v6355 = vunpack.c.l.b16 %v5699
        %v6356 = vunpack.c.l.b16 %v5700
        %v6357 = vunpack.c.l.b16 %v5701
        %v6358 = vunpack.c.l.b16 %v5702
        %v6359 = vunpack.c.l.b16 %v5703
        %v6360 = vunpack.c.l.b16 %v5704
        %v6361 = vunpack.c.l.b16 %v5705
        %v6362 = vunpack.c.l.b16 %v5706
        %v6363 = vunpack.c.l.b16 %v5707
        %v6364 = vunpack.c.l.b16 %v5708
        %v6365 = vunpack.c.l.b16 %v5709
        %v6366 = vunpack.c.l.b16 %v5710
        %v6367 = vunpack.c.l.b16 %v5711
        %v6368 = vunpack.c.l.b16 %v5712
        %v6369 = vunpack.c.l.b16 %v5713
        %v6370 = vunpack.c.l.b16 %v5714
        %v6371 = vpack.c.b16 %v6228, %v6227
        %v6372 = vpack.c.b16 %v6230, %v6229
        %v6373 = vpack.c.b16 %v6232, %v6231
        %v6374 = vpack.c.b16 %v6234, %v6233
        %v6375 = vpack.c.b16 %v6236, %v6235
        %v6376 = vpack.c.b16 %v6238, %v6237
        %v6377 = vpack.c.b16 %v6240, %v6239
        %v6378 = vpack.c.b16 %v6242, %v6241
        %v6379 = vpack.c.b16 %v6244, %v6243
        %v6380 = vpack.c.b16 %v6246, %v6245
        %v6381 = vpack.c.b16 %v6248, %v6247
        %v6382 = vpack.c.b16 %v6250, %v6249
        %v6383 = vpack.c.b16 %v6252, %v6251
        %v6384 = vpack.c.b16 %v6254, %v6253
        %v6385 = vpack.c.b16 %v6256, %v6255
        %v6386 = vpack.c.b16 %v6258, %v6257
        %v6387 = vpack.c.b16 %v6260, %v6259
        %v6388 = vpack.c.b16 %v6262, %v6261
        %v6389 = vpack.c.b16 %v6264, %v6263
        %v6390 = vpack.c.b16 %v6266, %v6265
        %v6391 = vpack.c.b16 %v6268, %v6267
        %v6392 = vpack.c.b16 %v6270, %v6269
        %v6393 = vpack.c.b16 %v6272, %v6271
        %v6394 = vpack.c.b16 %v6274, %v6273
        %v6395 = vpack.c.b16 %v6276, %v6275
        %v6396 = vpack.c.b16 %v6278, %v6277
        %v6397 = vpack.c.b16 %v6280, %v6279
        %v6398 = vpack.c.b16 %v6282, %v6281
        %v6399 = vpack.c.b16 %v6284, %v6283
        %v6400 = vpack.c.b16 %v6286, %v6285
        %v6401 = vpack.c.b16 %v6288, %v6287
        %v6402 = vpack.c.b16 %v6290, %v6289
        %v6403 = vpack.c.b16 %v6292, %v6291
        %v6404 = vpack.c.b16 %v6294, %v6293
        %v6405 = vpack.c.b16 %v6296, %v6295
        %v6406 = vpack.c.b16 %v6298, %v6297
        %v6407 = vpack.c.b16 %v6300, %v6299
        %v6408 = vpack.c.b16 %v6302, %v6301
        %v6409 = vpack.c.b16 %v6304, %v6303
        %v6410 = vpack.c.b16 %v6306, %v6305
        %v6411 = vpack.c.b16 %v6308, %v6307
        %v6412 = vpack.c.b16 %v6310, %v6309
        %v6413 = vpack.c.b16 %v6312, %v6311
        %v6414 = vpack.c.b16 %v6314, %v6313
        %v6415 = vpack.c.b16 %v6316, %v6315
        %v6416 = vpack.c.b16 %v6318, %v6317
        %v6417 = vpack.c.b16 %v6320, %v6319
        %v6418 = vpack.c.b16 %v6322, %v6321
        %v6419 = vpack.c.b16 %v6324, %v6323
        %v6420 = vpack.c.b16 %v6326, %v6325
        %v6421 = vpack.c.b16 %v6328, %v6327
        %v6422 = vpack.c.b16 %v6330, %v6329
        %v6423 = vpack.c.b16 %v6332, %v6331
        %v6424 = vpack.c.b16 %v6334, %v6333
        %v6425 = vpack.c.b16 %v6336, %v6335
        %v6426 = vpack.c.b16 %v6338, %v6337
        %v6427 = vpack.c.b16 %v6340, %v6339
        %v6428 = vpack.c.b16 %v6342, %v6341
        %v6429 = vpack.c.b16 %v6344, %v6343
        %v6430 = vpack.c.b16 %v6346, %v6345
        %v6431 = vpack.c.b16 %v6348, %v6347
        %v6432 = vpack.c.b16 %v6350, %v6349
        %v6433 = vpack.c.b16 %v6352, %v6351
        %v6434 = vpack.c.b16 %v6354, %v6353
        %v6435 = vpack.c.b16 %v6356, %v6355
        %v6436 = vpack.c.b16 %v6358, %v6357
        %v6437 = vpack.c.b16 %v6360, %v6359
        %v6438 = vpack.c.b16 %v6362, %v6361
        %v6439 = vpack.c.b16 %v6364, %v6363
        %v6440 = vpack.c.b16 %v6366, %v6365
        %v6441 = vpack.c.b16 %v6368, %v6367
        %v6442 = vpack.c.b16 %v6370, %v6369
        %6515 = vmatprep.subr.bf16.mxu0 0
        %6516 = vmatpush1.bf16.msra.mxu0 %v6378
        %6517 = vmatprep.subr.bf16.mxu0 0
        %6518 = vmatpush1.bf16.msra.mxu0 %v6377
        %6519 = vmatprep.subr.bf16.mxu0 0
        %6520 = vmatpush1.bf16.msra.mxu0 %v6376
        %6521 = vmatprep.subr.bf16.mxu0 0
        %6522 = vmatpush1.bf16.msra.mxu0 %v6375
        %6523 = vmatprep.subr.bf16.mxu0 0
        %6524 = vmatpush1.bf16.msra.mxu0 %v6374
        %6525 = vmatprep.subr.bf16.mxu0 0
        %6526 = vmatpush1.bf16.msra.mxu0 %v6373
        %6527 = vmatprep.subr.bf16.mxu0 0
        %6528 = vmatpush1.bf16.msra.mxu0 %v6372
        %6529 = vmatprep.subr.bf16.mxu0 0
        %6530 = vmatpush1.bf16.msra.mxu0 %v6371
        %6531 = vmatprep.subr.bf16.mxu0 0
        %6532 = vmatpush2.bf16.msra.mxu0 %v6386
        %6533 = vmatprep.subr.bf16.mxu0 0
        %6534 = vmatpush2.bf16.msra.mxu0 %v6385
        %6535 = vmatprep.subr.bf16.mxu0 0
        %6536 = vmatpush2.bf16.msra.mxu0 %v6384
        %6537 = vmatprep.subr.bf16.mxu0 0
        %6538 = vmatpush2.bf16.msra.mxu0 %v6383
        %6539 = vmatprep.subr.bf16.mxu0 0
        %6540 = vmatpush2.bf16.msra.mxu0 %v6382
        %6541 = vmatprep.subr.bf16.mxu0 0
        %6542 = vmatpush2.bf16.msra.mxu0 %v6381
        %6543 = vmatprep.subr.bf16.mxu0 0
        %6544 = vmatpush2.bf16.msra.mxu0 %v6380
        %6545 = vmatprep.subr.bf16.mxu0 0
        %6546 = vmatpush2.bf16.msra.mxu0 %v6379
        %6547 = vmatprep.mubr.bf16.mxu0 %v5940
        %6548 = vmatmul.mubr.bf16.gmra.mxu0 %v5939
        %v6549 = vpop.f32.mrf.mxu0
        %v6550 = vadd.f32 0.0, %v6549
        %v6551 = vpop.f32.mrf.mxu0
        %v6552 = vpop.f32.mrf.mxu0
        %v6553 = vadd.f32 0.0, %v6552
        %v6554 = vpop.f32.mrf.mxu0
        %6555 = vmatprep.mubr.bf16.mxu0 %v5949
        %6556 = vmatmul.mubr.bf16.gmra.mxu0 %v5948
        %v6557 = vpop.f32.mrf.mxu0
        %v6558 = vadd.f32 0.0, %v6557
        %v6559 = vpop.f32.mrf.mxu0
        %v6560 = vpop.f32.mrf.mxu0
        %v6561 = vadd.f32 0.0, %v6560
        %v6562 = vpop.f32.mrf.mxu0
        %6563 = vmatprep.mubr.bf16.mxu0 %v5958
        %6564 = vmatmul.mubr.bf16.gmra.mxu0 %v5957
        %v6565 = vpop.f32.mrf.mxu0
        %v6566 = vadd.f32 0.0, %v6565
        %v6567 = vpop.f32.mrf.mxu0
        %v6568 = vpop.f32.mrf.mxu0
        %v6569 = vadd.f32 0.0, %v6568
        %v6570 = vpop.f32.mrf.mxu0
        %6571 = vmatprep.mubr.bf16.mxu0 %v5967
        %6572 = vmatmul.mubr.bf16.gmra.mxu0 %v5966
        %v6573 = vpop.f32.mrf.mxu0
        %v6574 = vadd.f32 0.0, %v6573
        %v6575 = vpop.f32.mrf.mxu0
        %v6576 = vpop.f32.mrf.mxu0
        %v6577 = vadd.f32 0.0, %v6576
        %v6578 = vpop.f32.mrf.mxu0
        %6579 = vmatprep.mubr.bf16.mxu0 %v5976
        %6580 = vmatmul.mubr.bf16.gmra.mxu0 %v5975
        %v6581 = vpop.f32.mrf.mxu0
        %v6582 = vadd.f32 0.0, %v6581
        %v6583 = vpop.f32.mrf.mxu0
        %v6584 = vpop.f32.mrf.mxu0
        %v6585 = vadd.f32 0.0, %v6584
        %v6586 = vpop.f32.mrf.mxu0
        %6587 = vmatprep.mubr.bf16.mxu0 %v5985
        %6588 = vmatmul.mubr.bf16.gmra.mxu0 %v5984
        %v6589 = vpop.f32.mrf.mxu0
        %v6590 = vadd.f32 0.0, %v6589
        %v6591 = vpop.f32.mrf.mxu0
        %v6592 = vpop.f32.mrf.mxu0
        %v6593 = vadd.f32 0.0, %v6592
        %v6594 = vpop.f32.mrf.mxu0
        %6595 = vmatprep.mubr.bf16.mxu0 %v5994
        %6596 = vmatmul.mubr.bf16.gmra.mxu0 %v5993
        %v6597 = vpop.f32.mrf.mxu0
        %v6598 = vadd.f32 0.0, %v6597
        %v6599 = vpop.f32.mrf.mxu0
        %v6600 = vpop.f32.mrf.mxu0
        %v6601 = vadd.f32 0.0, %v6600
        %v6602 = vpop.f32.mrf.mxu0
        %6603 = vmatprep.mubr.bf16.mxu0 %v6003
        %6604 = vmatmul.mubr.bf16.gmra.mxu0 %v6002
        %v6605 = vpop.f32.mrf.mxu0
        %v6606 = vadd.f32 0.0, %v6605
        %v6607 = vpop.f32.mrf.mxu0
        %v6608 = vpop.f32.mrf.mxu0
        %v6609 = vadd.f32 0.0, %v6608
        %v6610 = vpop.f32.mrf.mxu0
        %6611 = vdwg.mxu0
        %6612 = vmatprep.subr.bf16.mxu0 0
        %6613 = vmatpush1.bf16.msra.mxu0 %v6394
        %6614 = vmatprep.subr.bf16.mxu0 0
        %6615 = vmatpush1.bf16.msra.mxu0 %v6393
        %6616 = vmatprep.subr.bf16.mxu0 0
        %6617 = vmatpush1.bf16.msra.mxu0 %v6392
        %6618 = vmatprep.subr.bf16.mxu0 0
        %6619 = vmatpush1.bf16.msra.mxu0 %v6391
        %6620 = vmatprep.subr.bf16.mxu0 0
        %6621 = vmatpush1.bf16.msra.mxu0 %v6390
        %6622 = vmatprep.subr.bf16.mxu0 0
        %6623 = vmatpush1.bf16.msra.mxu0 %v6389
        %6624 = vmatprep.subr.bf16.mxu0 0
        %6625 = vmatpush1.bf16.msra.mxu0 %v6388
        %6626 = vmatprep.subr.bf16.mxu0 0
        %6627 = vmatpush1.bf16.msra.mxu0 %v6387
        %6628 = vmatprep.subr.bf16.mxu0 0
        %6629 = vmatpush2.bf16.msra.mxu0 %v6402
        %6630 = vmatprep.subr.bf16.mxu0 0
        %6631 = vmatpush2.bf16.msra.mxu0 %v6401
        %6632 = vmatprep.subr.bf16.mxu0 0
        %6633 = vmatpush2.bf16.msra.mxu0 %v6400
        %6634 = vmatprep.subr.bf16.mxu0 0
        %6635 = vmatpush2.bf16.msra.mxu0 %v6399
        %6636 = vmatprep.subr.bf16.mxu0 0
        %6637 = vmatpush2.bf16.msra.mxu0 %v6398
        %6638 = vmatprep.subr.bf16.mxu0 0
        %6639 = vmatpush2.bf16.msra.mxu0 %v6397
        %6640 = vmatprep.subr.bf16.mxu0 0
        %6641 = vmatpush2.bf16.msra.mxu0 %v6396
        %6642 = vmatprep.subr.bf16.mxu0 0
        %6643 = vmatpush2.bf16.msra.mxu0 %v6395
        %6644 = vmatprep.mubr.bf16.mxu0 %v5942
        %6645 = vmatmul.mubr.bf16.gmra.mxu0 %v5941
        %v6646 = vpop.f32.mrf.mxu0
        %v6647 = vadd.f32 %v6550, %v6646
        %v6648 = vpop.f32.mrf.mxu0
        %v6649 = vpop.f32.mrf.mxu0
        %v6650 = vadd.f32 %v6553, %v6649
        %v6651 = vpop.f32.mrf.mxu0
        %6652 = vmatprep.mubr.bf16.mxu0 %v5951
        %6653 = vmatmul.mubr.bf16.gmra.mxu0 %v5950
        %v6654 = vpop.f32.mrf.mxu0
        %v6655 = vadd.f32 %v6558, %v6654
        %v6656 = vpop.f32.mrf.mxu0
        %v6657 = vpop.f32.mrf.mxu0
        %v6658 = vadd.f32 %v6561, %v6657
        %v6659 = vpop.f32.mrf.mxu0
        %6660 = vmatprep.mubr.bf16.mxu0 %v5960
        %6661 = vmatmul.mubr.bf16.gmra.mxu0 %v5959
        %v6662 = vpop.f32.mrf.mxu0
        %v6663 = vadd.f32 %v6566, %v6662
        %v6664 = vpop.f32.mrf.mxu0
        %v6665 = vpop.f32.mrf.mxu0
        %v6666 = vadd.f32 %v6569, %v6665
        %v6667 = vpop.f32.mrf.mxu0
        %6668 = vmatprep.mubr.bf16.mxu0 %v5969
        %6669 = vmatmul.mubr.bf16.gmra.mxu0 %v5968
        %v6670 = vpop.f32.mrf.mxu0
        %v6671 = vadd.f32 %v6574, %v6670
        %v6672 = vpop.f32.mrf.mxu0
        %v6673 = vpop.f32.mrf.mxu0
        %v6674 = vadd.f32 %v6577, %v6673
        %v6675 = vpop.f32.mrf.mxu0
        %6676 = vmatprep.mubr.bf16.mxu0 %v5978
        %6677 = vmatmul.mubr.bf16.gmra.mxu0 %v5977
        %v6678 = vpop.f32.mrf.mxu0
        %v6679 = vadd.f32 %v6582, %v6678
        %v6680 = vpop.f32.mrf.mxu0
        %v6681 = vpop.f32.mrf.mxu0
        %v6682 = vadd.f32 %v6585, %v6681
        %v6683 = vpop.f32.mrf.mxu0
        %6684 = vmatprep.mubr.bf16.mxu0 %v5987
        %6685 = vmatmul.mubr.bf16.gmra.mxu0 %v5986
        %v6686 = vpop.f32.mrf.mxu0
        %v6687 = vadd.f32 %v6590, %v6686
        %v6688 = vpop.f32.mrf.mxu0
        %v6689 = vpop.f32.mrf.mxu0
        %v6690 = vadd.f32 %v6593, %v6689
        %v6691 = vpop.f32.mrf.mxu0
        %6692 = vmatprep.mubr.bf16.mxu0 %v5996
        %6693 = vmatmul.mubr.bf16.gmra.mxu0 %v5995
        %v6694 = vpop.f32.mrf.mxu0
        %v6695 = vadd.f32 %v6598, %v6694
        %v6696 = vpop.f32.mrf.mxu0
        %v6697 = vpop.f32.mrf.mxu0
        %v6698 = vadd.f32 %v6601, %v6697
        %v6699 = vpop.f32.mrf.mxu0
        %6700 = vmatprep.mubr.bf16.mxu0 %v6005
        %6701 = vmatmul.mubr.bf16.gmra.mxu0 %v6004
        %v6702 = vpop.f32.mrf.mxu0
        %v6703 = vadd.f32 %v6606, %v6702
        %v6704 = vpop.f32.mrf.mxu0
        %v6705 = vpop.f32.mrf.mxu0
        %v6706 = vadd.f32 %v6609, %v6705
        %v6707 = vpop.f32.mrf.mxu0
        %6708 = vdwg.mxu0
        %6709 = vmatprep.subr.bf16.mxu0 0
        %6710 = vmatpush1.bf16.msra.mxu0 %v6410
        %6711 = vmatprep.subr.bf16.mxu0 0
        %6712 = vmatpush1.bf16.msra.mxu0 %v6409
        %6713 = vmatprep.subr.bf16.mxu0 0
        %6714 = vmatpush1.bf16.msra.mxu0 %v6408
        %6715 = vmatprep.subr.bf16.mxu0 0
        %6716 = vmatpush1.bf16.msra.mxu0 %v6407
        %6717 = vmatprep.subr.bf16.mxu0 0
        %6718 = vmatpush1.bf16.msra.mxu0 %v6406
        %6719 = vmatprep.subr.bf16.mxu0 0
        %6720 = vmatpush1.bf16.msra.mxu0 %v6405
        %6721 = vmatprep.subr.bf16.mxu0 0
        %6722 = vmatpush1.bf16.msra.mxu0 %v6404
        %6723 = vmatprep.subr.bf16.mxu0 0
        %6724 = vmatpush1.bf16.msra.mxu0 %v6403
        %6725 = vmatprep.subr.bf16.mxu0 0
        %6726 = vmatpush2.bf16.msra.mxu0 %v6418
        %6727 = vmatprep.subr.bf16.mxu0 0
        %6728 = vmatpush2.bf16.msra.mxu0 %v6417
        %6729 = vmatprep.subr.bf16.mxu0 0
        %6730 = vmatpush2.bf16.msra.mxu0 %v6416
        %6731 = vmatprep.subr.bf16.mxu0 0
        %6732 = vmatpush2.bf16.msra.mxu0 %v6415
        %6733 = vmatprep.subr.bf16.mxu0 0
        %6734 = vmatpush2.bf16.msra.mxu0 %v6414
        %6735 = vmatprep.subr.bf16.mxu0 0
        %6736 = vmatpush2.bf16.msra.mxu0 %v6413
        %6737 = vmatprep.subr.bf16.mxu0 0
        %6738 = vmatpush2.bf16.msra.mxu0 %v6412
        %6739 = vmatprep.subr.bf16.mxu0 0
        %6740 = vmatpush2.bf16.msra.mxu0 %v6411
        %6741 = vmatprep.mubr.bf16.mxu0 %v5944
        %6742 = vmatmul.mubr.bf16.gmra.mxu0 %v5943
        %v6743 = vpop.f32.mrf.mxu0
        %v6744 = vadd.f32 %v6647, %v6743
        %v6745 = vpop.f32.mrf.mxu0
        %v6746 = vpop.f32.mrf.mxu0
        %v6747 = vadd.f32 %v6650, %v6746
        %v6748 = vpop.f32.mrf.mxu0
        %6749 = vmatprep.mubr.bf16.mxu0 %v5953
        %6750 = vmatmul.mubr.bf16.gmra.mxu0 %v5952
        %v6751 = vpop.f32.mrf.mxu0
        %v6752 = vadd.f32 %v6655, %v6751
        %v6753 = vpop.f32.mrf.mxu0
        %v6754 = vpop.f32.mrf.mxu0
        %v6755 = vadd.f32 %v6658, %v6754
        %v6756 = vpop.f32.mrf.mxu0
        %6757 = vmatprep.mubr.bf16.mxu0 %v5962
        %6758 = vmatmul.mubr.bf16.gmra.mxu0 %v5961
        %v6759 = vpop.f32.mrf.mxu0
        %v6760 = vadd.f32 %v6663, %v6759
        %v6761 = vpop.f32.mrf.mxu0
        %v6762 = vpop.f32.mrf.mxu0
        %v6763 = vadd.f32 %v6666, %v6762
        %v6764 = vpop.f32.mrf.mxu0
        %6765 = vmatprep.mubr.bf16.mxu0 %v5971
        %6766 = vmatmul.mubr.bf16.gmra.mxu0 %v5970
        %v6767 = vpop.f32.mrf.mxu0
        %v6768 = vadd.f32 %v6671, %v6767
        %v6769 = vpop.f32.mrf.mxu0
        %v6770 = vpop.f32.mrf.mxu0
        %v6771 = vadd.f32 %v6674, %v6770
        %v6772 = vpop.f32.mrf.mxu0
        %6773 = vmatprep.mubr.bf16.mxu0 %v5980
        %6774 = vmatmul.mubr.bf16.gmra.mxu0 %v5979
        %v6775 = vpop.f32.mrf.mxu0
        %v6776 = vadd.f32 %v6679, %v6775
        %v6777 = vpop.f32.mrf.mxu0
        %v6778 = vpop.f32.mrf.mxu0
        %v6779 = vadd.f32 %v6682, %v6778
        %v6780 = vpop.f32.mrf.mxu0
        %6781 = vmatprep.mubr.bf16.mxu0 %v5989
        %6782 = vmatmul.mubr.bf16.gmra.mxu0 %v5988
        %v6783 = vpop.f32.mrf.mxu0
        %v6784 = vadd.f32 %v6687, %v6783
        %v6785 = vpop.f32.mrf.mxu0
        %v6786 = vpop.f32.mrf.mxu0
        %v6787 = vadd.f32 %v6690, %v6786
        %v6788 = vpop.f32.mrf.mxu0
        %6789 = vmatprep.mubr.bf16.mxu0 %v5998
        %6790 = vmatmul.mubr.bf16.gmra.mxu0 %v5997
        %v6791 = vpop.f32.mrf.mxu0
        %v6792 = vadd.f32 %v6695, %v6791
        %v6793 = vpop.f32.mrf.mxu0
        %v6794 = vpop.f32.mrf.mxu0
        %v6795 = vadd.f32 %v6698, %v6794
        %v6796 = vpop.f32.mrf.mxu0
        %6797 = vmatprep.mubr.bf16.mxu0 %v6007
        %6798 = vmatmul.mubr.bf16.gmra.mxu0 %v6006
        %v6799 = vpop.f32.mrf.mxu0
        %v6800 = vadd.f32 %v6703, %v6799
        %v6801 = vpop.f32.mrf.mxu0
        %v6802 = vpop.f32.mrf.mxu0
        %v6803 = vadd.f32 %v6706, %v6802
        %v6804 = vpop.f32.mrf.mxu0
        %6805 = vdwg.mxu0
        %6806 = vmatprep.subr.bf16.mxu0 0
        %6807 = vmatpush1.bf16.msra.mxu0 %v6426
        %6808 = vmatprep.subr.bf16.mxu0 0
        %6809 = vmatpush1.bf16.msra.mxu0 %v6425
        %6810 = vmatprep.subr.bf16.mxu0 0
        %6811 = vmatpush1.bf16.msra.mxu0 %v6424
        %6812 = vmatprep.subr.bf16.mxu0 0
        %6813 = vmatpush1.bf16.msra.mxu0 %v6423
        %6814 = vmatprep.subr.bf16.mxu0 0
        %6815 = vmatpush1.bf16.msra.mxu0 %v6422
        %6816 = vmatprep.subr.bf16.mxu0 0
        %6817 = vmatpush1.bf16.msra.mxu0 %v6421
        %6818 = vmatprep.subr.bf16.mxu0 0
        %6819 = vmatpush1.bf16.msra.mxu0 %v6420
        %6820 = vmatprep.subr.bf16.mxu0 0
        %6821 = vmatpush1.bf16.msra.mxu0 %v6419
        %6822 = vmatprep.subr.bf16.mxu0 0
        %6823 = vmatpush2.bf16.msra.mxu0 %v6434
        %6824 = vmatprep.subr.bf16.mxu0 0
        %6825 = vmatpush2.bf16.msra.mxu0 %v6433
        %6826 = vmatprep.subr.bf16.mxu0 0
        %6827 = vmatpush2.bf16.msra.mxu0 %v6432
        %6828 = vmatprep.subr.bf16.mxu0 0
        %6829 = vmatpush2.bf16.msra.mxu0 %v6431
        %6830 = vmatprep.subr.bf16.mxu0 0
        %6831 = vmatpush2.bf16.msra.mxu0 %v6430
        %6832 = vmatprep.subr.bf16.mxu0 0
        %6833 = vmatpush2.bf16.msra.mxu0 %v6429
        %6834 = vmatprep.subr.bf16.mxu0 0
        %6835 = vmatpush2.bf16.msra.mxu0 %v6428
        %6836 = vmatprep.subr.bf16.mxu0 0
        %6837 = vmatpush2.bf16.msra.mxu0 %v6427
        %6838 = vmatprep.mubr.bf16.mxu0 %v5946
        %6839 = vmatmul.mubr.bf16.gmra.mxu0 %v5945
        %v6840 = vpop.f32.mrf.mxu0
        %v6841 = vadd.f32 %v6744, %v6840
        %v6842 = vpop.f32.mrf.mxu0
        %v6843 = vpop.f32.mrf.mxu0
        %v6844 = vadd.f32 %v6747, %v6843
        %v6845 = vpop.f32.mrf.mxu0
        %6846 = vmatprep.mubr.bf16.mxu0 %v5955
        %6847 = vmatmul.mubr.bf16.gmra.mxu0 %v5954
        %v6848 = vpop.f32.mrf.mxu0
        %v6849 = vadd.f32 %v6752, %v6848
        %v6850 = vpop.f32.mrf.mxu0
        %v6851 = vpop.f32.mrf.mxu0
        %v6852 = vadd.f32 %v6755, %v6851
        %v6853 = vpop.f32.mrf.mxu0
        %6854 = vmatprep.mubr.bf16.mxu0 %v5964
        %6855 = vmatmul.mubr.bf16.gmra.mxu0 %v5963
        %v6856 = vpop.f32.mrf.mxu0
        %v6857 = vadd.f32 %v6760, %v6856
        %v6858 = vpop.f32.mrf.mxu0
        %v6859 = vpop.f32.mrf.mxu0
        %v6860 = vadd.f32 %v6763, %v6859
        %v6861 = vpop.f32.mrf.mxu0
        %6862 = vmatprep.mubr.bf16.mxu0 %v5973
        %6863 = vmatmul.mubr.bf16.gmra.mxu0 %v5972
        %v6864 = vpop.f32.mrf.mxu0
        %v6865 = vadd.f32 %v6768, %v6864
        %v6866 = vpop.f32.mrf.mxu0
        %v6867 = vpop.f32.mrf.mxu0
        %v6868 = vadd.f32 %v6771, %v6867
        %v6869 = vpop.f32.mrf.mxu0
        %6870 = vmatprep.mubr.bf16.mxu0 %v5982
        %6871 = vmatmul.mubr.bf16.gmra.mxu0 %v5981
        %v6872 = vpop.f32.mrf.mxu0
        %v6873 = vadd.f32 %v6776, %v6872
        %v6874 = vpop.f32.mrf.mxu0
        %v6875 = vpop.f32.mrf.mxu0
        %v6876 = vadd.f32 %v6779, %v6875
        %v6877 = vpop.f32.mrf.mxu0
        %6878 = vmatprep.mubr.bf16.mxu0 %v5991
        %6879 = vmatmul.mubr.bf16.gmra.mxu0 %v5990
        %v6880 = vpop.f32.mrf.mxu0
        %v6881 = vadd.f32 %v6784, %v6880
        %v6882 = vpop.f32.mrf.mxu0
        %v6883 = vpop.f32.mrf.mxu0
        %v6884 = vadd.f32 %v6787, %v6883
        %v6885 = vpop.f32.mrf.mxu0
        %6886 = vmatprep.mubr.bf16.mxu0 %v6000
        %6887 = vmatmul.mubr.bf16.gmra.mxu0 %v5999
        %v6888 = vpop.f32.mrf.mxu0
        %v6889 = vadd.f32 %v6792, %v6888
        %v6890 = vpop.f32.mrf.mxu0
        %v6891 = vpop.f32.mrf.mxu0
        %v6892 = vadd.f32 %v6795, %v6891
        %v6893 = vpop.f32.mrf.mxu0
        %6894 = vmatprep.mubr.bf16.mxu0 %v6009
        %6895 = vmatmul.mubr.bf16.gmra.mxu0 %v6008
        %v6896 = vpop.f32.mrf.mxu0
        %v6897 = vadd.f32 %v6800, %v6896
        %v6898 = vpop.f32.mrf.mxu0
        %v6899 = vpop.f32.mrf.mxu0
        %v6900 = vadd.f32 %v6803, %v6899
        %v6901 = vpop.f32.mrf.mxu0
        %6902 = vdwg.mxu0
        %6903 = vmatprep.subr.bf16.mxu0 0
        %6904 = vmatpush1.bf16.msra.mxu0 %v6442
        %6905 = vmatprep.subr.bf16.mxu0 0
        %6906 = vmatpush1.bf16.msra.mxu0 %v6441
        %6907 = vmatprep.subr.bf16.mxu0 0
        %6908 = vmatpush1.bf16.msra.mxu0 %v6440
        %6909 = vmatprep.subr.bf16.mxu0 0
        %6910 = vmatpush1.bf16.msra.mxu0 %v6439
        %6911 = vmatprep.subr.bf16.mxu0 0
        %6912 = vmatpush1.bf16.msra.mxu0 %v6438
        %6913 = vmatprep.subr.bf16.mxu0 0
        %6914 = vmatpush1.bf16.msra.mxu0 %v6437
        %6915 = vmatprep.subr.bf16.mxu0 0
        %6916 = vmatpush1.bf16.msra.mxu0 %v6436
        %6917 = vmatprep.subr.bf16.mxu0 0
        %6918 = vmatpush1.bf16.msra.mxu0 %v6435
        %6919 = vmatprep.subr.bf16.mxu0 0
        %6920 = vmatpush2.bf16.msra.mxu0 0
        %6921 = vmatprep.subr.bf16.mxu0 0
        %6922 = vmatpush2.bf16.msra.mxu0 0
        %6923 = vmatprep.subr.bf16.mxu0 0
        %6924 = vmatpush2.bf16.msra.mxu0 0
        %6925 = vmatprep.subr.bf16.mxu0 0
        %6926 = vmatpush2.bf16.msra.mxu0 0
        %6927 = vmatprep.subr.bf16.mxu0 0
        %6928 = vmatpush2.bf16.msra.mxu0 0
        %6929 = vmatprep.subr.bf16.mxu0 0
        %6930 = vmatpush2.bf16.msra.mxu0 0
        %6931 = vmatprep.subr.bf16.mxu0 0
        %6932 = vmatpush2.bf16.msra.mxu0 0
        %6933 = vmatprep.subr.bf16.mxu0 0
        %6934 = vmatpush2.bf16.msra.mxu0 0
        %6935 = vmatprep.mubr.bf16.mxu0 0
        %6936 = vmatmul.mubr.bf16.gmra.mxu0 %v5947
        %v6937 = vpop.f32.mrf.mxu0
        %v6938 = vadd.f32 %v6841, %v6937
        %v6939 = vpop.f32.mrf.mxu0
        %v6940 = vpop.f32.mrf.mxu0
        %v6941 = vadd.f32 %v6844, %v6940
        %v6942 = vpop.f32.mrf.mxu0
        %6943 = vmatprep.mubr.bf16.mxu0 0
        %6944 = vmatmul.mubr.bf16.gmra.mxu0 %v5956
        %v6945 = vpop.f32.mrf.mxu0
        %v6946 = vadd.f32 %v6849, %v6945
        %v6947 = vpop.f32.mrf.mxu0
        %v6948 = vpop.f32.mrf.mxu0
        %v6949 = vadd.f32 %v6852, %v6948
        %v6950 = vpop.f32.mrf.mxu0
        %6951 = vmatprep.mubr.bf16.mxu0 0
        %6952 = vmatmul.mubr.bf16.gmra.mxu0 %v5965
        %v6953 = vpop.f32.mrf.mxu0
        %v6954 = vadd.f32 %v6857, %v6953
        %v6955 = vpop.f32.mrf.mxu0
        %v6956 = vpop.f32.mrf.mxu0
        %v6957 = vadd.f32 %v6860, %v6956
        %v6958 = vpop.f32.mrf.mxu0
        %6959 = vmatprep.mubr.bf16.mxu0 0
        %6960 = vmatmul.mubr.bf16.gmra.mxu0 %v5974
        %v6961 = vpop.f32.mrf.mxu0
        %v6962 = vadd.f32 %v6865, %v6961
        %v6963 = vpop.f32.mrf.mxu0
        %v6964 = vpop.f32.mrf.mxu0
        %v6965 = vadd.f32 %v6868, %v6964
        %v6966 = vpop.f32.mrf.mxu0
        %6967 = vmatprep.mubr.bf16.mxu0 0
        %6968 = vmatmul.mubr.bf16.gmra.mxu0 %v5983
        %v6969 = vpop.f32.mrf.mxu0
        %v6970 = vadd.f32 %v6873, %v6969
        %v6971 = vpop.f32.mrf.mxu0
        %v6972 = vpop.f32.mrf.mxu0
        %v6973 = vadd.f32 %v6876, %v6972
        %v6974 = vpop.f32.mrf.mxu0
        %6975 = vmatprep.mubr.bf16.mxu0 0
        %6976 = vmatmul.mubr.bf16.gmra.mxu0 %v5992
        %v6977 = vpop.f32.mrf.mxu0
        %v6978 = vadd.f32 %v6881, %v6977
        %v6979 = vpop.f32.mrf.mxu0
        %v6980 = vpop.f32.mrf.mxu0
        %v6981 = vadd.f32 %v6884, %v6980
        %v6982 = vpop.f32.mrf.mxu0
        %6983 = vmatprep.mubr.bf16.mxu0 0
        %6984 = vmatmul.mubr.bf16.gmra.mxu0 %v6001
        %v6985 = vpop.f32.mrf.mxu0
        %v6986 = vadd.f32 %v6889, %v6985
        %v6987 = vpop.f32.mrf.mxu0
        %v6988 = vpop.f32.mrf.mxu0
        %v6989 = vadd.f32 %v6892, %v6988
        %v6990 = vpop.f32.mrf.mxu0
        %6991 = vmatprep.mubr.bf16.mxu0 0
        %6992 = vmatmul.mubr.bf16.gmra.mxu0 %v6010
        %v6993 = vpop.f32.mrf.mxu0
        %v6994 = vadd.f32 %v6897, %v6993
        %v6995 = vpop.f32.mrf.mxu0
        %v6996 = vpop.f32.mrf.mxu0
        %v6997 = vadd.f32 %v6900, %v6996
        %v6998 = vpop.f32.mrf.mxu0
        %6999 = vdwg.mxu0
        %v7000 = vld [vmem:[%s5] sm:$0x1]
        %v7002 = vlaneseq
        %v7003 = vshrl.u32 %v7002, 7
        %v7004 = vsub.s32 0, %v7003
        %v7005 = vrot.slane %v7000, %v7004
        %v7007 = vmul.f32 %v6938, %v7005
        %v7008 = vmul.f32 %v6941, %v7005
        %v7009 = vmul.f32 %v6946, %v7005
        %v7010 = vmul.f32 %v6949, %v7005
        %v7011 = vmul.f32 %v6954, %v7005
        %v7012 = vmul.f32 %v6957, %v7005
        %v7013 = vmul.f32 %v6962, %v7005
        %v7014 = vmul.f32 %v6965, %v7005
        %v7015 = vmul.f32 %v6970, %v7005
        %v7016 = vmul.f32 %v6973, %v7005
        %v7017 = vmul.f32 %v6978, %v7005
        %v7018 = vmul.f32 %v6981, %v7005
        %v7019 = vmul.f32 %v6986, %v7005
        %v7020 = vmul.f32 %v6989, %v7005
        %v7021 = vmul.f32 %v6994, %v7005
        %v7022 = vmul.f32 %v6997, %v7005
        %v7023 = vld [vmem:[%s6] sm:$0x1]
        %v7025 = vlaneseq
        %v7026 = vshrl.u32 %v7025, 7
        %v7027 = vsub.s32 0, %v7026
        %v7028 = vrot.slane %v7023, %v7027
        %v7030 = vadd.f32 %v7007, %v7028
        %v7031 = vadd.f32 %v7008, %v7028
        %v7032 = vadd.f32 %v7009, %v7028
        %v7033 = vadd.f32 %v7010, %v7028
        %v7034 = vadd.f32 %v7011, %v7028
        %v7035 = vadd.f32 %v7012, %v7028
        %v7036 = vadd.f32 %v7013, %v7028
        %v7037 = vadd.f32 %v7014, %v7028
        %v7038 = vadd.f32 %v7015, %v7028
        %v7039 = vadd.f32 %v7016, %v7028
        %v7040 = vadd.f32 %v7017, %v7028
        %v7041 = vadd.f32 %v7018, %v7028
        %v7042 = vadd.f32 %v7019, %v7028
        %v7043 = vadd.f32 %v7020, %v7028
        %v7044 = vadd.f32 %v7021, %v7028
        %v7045 = vadd.f32 %v7022, %v7028
        %v7046 = vsub.f32 0.0, %v7030
        %v7047 = vsub.f32 0.0, %v7031
        %v7048 = vsub.f32 0.0, %v7032
        %v7049 = vsub.f32 0.0, %v7033
        %v7050 = vsub.f32 0.0, %v7034
        %v7051 = vsub.f32 0.0, %v7035
        %v7052 = vsub.f32 0.0, %v7036
        %v7053 = vsub.f32 0.0, %v7037
        %v7054 = vsub.f32 0.0, %v7038
        %v7055 = vsub.f32 0.0, %v7039
        %v7056 = vsub.f32 0.0, %v7040
        %v7057 = vsub.f32 0.0, %v7041
        %v7058 = vsub.f32 0.0, %v7042
        %v7059 = vsub.f32 0.0, %v7043
        %v7060 = vsub.f32 0.0, %v7044
        %v7061 = vsub.f32 0.0, %v7045
        %v7062 = vmul.f32 %v7046, 1.442695
        %v7063 = vpow.pop %v7062
        %v7064 = vmul.f32 %v7047, 1.442695
        %v7065 = vpow.pop %v7064
        %v7066 = vmul.f32 %v7048, 1.442695
        %v7067 = vpow.pop %v7066
        %v7068 = vmul.f32 %v7049, 1.442695
        %v7069 = vpow.pop %v7068
        %v7070 = vmul.f32 %v7050, 1.442695
        %v7071 = vpow.pop %v7070
        %v7072 = vmul.f32 %v7051, 1.442695
        %v7073 = vpow.pop %v7072
        %v7074 = vmul.f32 %v7052, 1.442695
        %v7075 = vpow.pop %v7074
        %v7076 = vmul.f32 %v7053, 1.442695
        %v7077 = vpow.pop %v7076
        %v7078 = vmul.f32 %v7054, 1.442695
        %v7079 = vpow.pop %v7078
        %v7080 = vmul.f32 %v7055, 1.442695
        %v7081 = vpow.pop %v7080
        %v7082 = vmul.f32 %v7056, 1.442695
        %v7083 = vpow.pop %v7082
        %v7084 = vmul.f32 %v7057, 1.442695
        %v7085 = vpow.pop %v7084
        %v7086 = vmul.f32 %v7058, 1.442695
        %v7087 = vpow.pop %v7086
        %v7088 = vmul.f32 %v7059, 1.442695
        %v7089 = vpow.pop %v7088
        %v7090 = vmul.f32 %v7060, 1.442695
        %v7091 = vpow.pop %v7090
        %v7092 = vmul.f32 %v7061, 1.442695
        %v7093 = vpow.pop %v7092
        %v7094 = vadd.f32 %v7063, 1.0
        %v7095 = vadd.f32 %v7065, 1.0
        %v7096 = vadd.f32 %v7067, 1.0
        %v7097 = vadd.f32 %v7069, 1.0
        %v7098 = vadd.f32 %v7071, 1.0
        %v7099 = vadd.f32 %v7073, 1.0
        %v7100 = vadd.f32 %v7075, 1.0
        %v7101 = vadd.f32 %v7077, 1.0
        %v7102 = vadd.f32 %v7079, 1.0
        %v7103 = vadd.f32 %v7081, 1.0
        %v7104 = vadd.f32 %v7083, 1.0
        %v7105 = vadd.f32 %v7085, 1.0
        %v7106 = vadd.f32 %v7087, 1.0
        %v7107 = vadd.f32 %v7089, 1.0
        %v7108 = vadd.f32 %v7091, 1.0
        %v7109 = vadd.f32 %v7093, 1.0
        %v7110 = vrcp.pop %v7094
        %v7111 = vrcp.pop %v7095
        %v7112 = vrcp.pop %v7096
        %v7113 = vrcp.pop %v7097
        %v7114 = vrcp.pop %v7098
        %v7115 = vrcp.pop %v7099
        %v7116 = vrcp.pop %v7100
        %v7117 = vrcp.pop %v7101
        %v7118 = vrcp.pop %v7102
        %v7119 = vrcp.pop %v7103
        %v7120 = vrcp.pop %v7104
        %v7121 = vrcp.pop %v7105
        %v7122 = vrcp.pop %v7106
        %v7123 = vrcp.pop %v7107
        %v7124 = vrcp.pop %v7108
        %v7125 = vrcp.pop %v7109
        %v7126 = vmul.f32 %v7030, %v7110
        %v7127 = vmul.f32 %v7031, %v7111
        %v7128 = vmul.f32 %v7032, %v7112
        %v7129 = vmul.f32 %v7033, %v7113
        %v7130 = vmul.f32 %v7034, %v7114
        %v7131 = vmul.f32 %v7035, %v7115
        %v7132 = vmul.f32 %v7036, %v7116
        %v7133 = vmul.f32 %v7037, %v7117
        %v7134 = vmul.f32 %v7038, %v7118
        %v7135 = vmul.f32 %v7039, %v7119
        %v7136 = vmul.f32 %v7040, %v7120
        %v7137 = vmul.f32 %v7041, %v7121
        %v7138 = vmul.f32 %v7042, %v7122
        %v7139 = vmul.f32 %v7043, %v7123
        %v7140 = vmul.f32 %v7044, %v7124
        %v7141 = vmul.f32 %v7045, %v7125
        %s7142 = scalar_lea.vmem [#allocation2], 72
        %v7143 = vld [vmem:[%s7142 + $0x10] sm:$0xf]
        %v7144 = vld [vmem:[%s7142 + $0x34] sm:$0xf]
        %v7145 = vld [vmem:[%s7142 + $0x58] sm:$0xf]
        %v7146 = vld [vmem:[%s7142 + $0x7c] sm:$0xf]
        %v7147 = vld [vmem:[%s7142 + $0xa0] sm:$0xf]
        %v7148 = vld [vmem:[%s7142 + $0xc4] sm:$0xf]
        %v7149 = vld [vmem:[%s7142 + $0xe8] sm:$0xf]
        %v7150 = vld [vmem:[%s7142 + $0x10c] sm:$0xf]
        %v7151 = vld [vmem:[%s7142 + $0x130] sm:$0xf]
        %v7152 = vld [vmem:[%s7142 + $0x154] sm:$0xf]
        %v7153 = vld [vmem:[%s7142 + $0x178] sm:$0xf]
        %v7154 = vld [vmem:[%s7142 + $0x19c] sm:$0xf]
        %v7155 = vld [vmem:[%s7142 + $0x1c0] sm:$0xf]
        %v7156 = vld [vmem:[%s7142 + $0x1e4] sm:$0xf]
        %v7157 = vld [vmem:[%s7142 + $0x208] sm:$0xf]
        %v7158 = vld [vmem:[%s7142 + $0x22c] sm:$0xf]
        %v7159 = vunpack.c.l.bf16 %v7143
        %v7160 = vunpack.c.l.bf16 %v7144
        %v7161 = vunpack.c.l.bf16 %v7145
        %v7162 = vunpack.c.l.bf16 %v7146
        %v7163 = vunpack.c.l.bf16 %v7147
        %v7164 = vunpack.c.l.bf16 %v7148
        %v7165 = vunpack.c.l.bf16 %v7149
        %v7166 = vunpack.c.l.bf16 %v7150
        %v7167 = vunpack.c.l.bf16 %v7151
        %v7168 = vunpack.c.l.bf16 %v7152
        %v7169 = vunpack.c.l.bf16 %v7153
        %v7170 = vunpack.c.l.bf16 %v7154
        %v7171 = vunpack.c.l.bf16 %v7155
        %v7172 = vunpack.c.l.bf16 %v7156
        %v7173 = vunpack.c.l.bf16 %v7157
        %v7174 = vunpack.c.l.bf16 %v7158
        %v7175 = vadd.f32 %v7126, %v7159
        %v7176 = vadd.f32 %v7127, %v7160
        %v7177 = vadd.f32 %v7128, %v7161
        %v7178 = vadd.f32 %v7129, %v7162
        %v7179 = vadd.f32 %v7130, %v7163
        %v7180 = vadd.f32 %v7131, %v7164
        %v7181 = vadd.f32 %v7132, %v7165
        %v7182 = vadd.f32 %v7133, %v7166
        %v7183 = vadd.f32 %v7134, %v7167
        %v7184 = vadd.f32 %v7135, %v7168
        %v7185 = vadd.f32 %v7136, %v7169
        %v7186 = vadd.f32 %v7137, %v7170
        %v7187 = vadd.f32 %v7138, %v7171
        %v7188 = vadd.f32 %v7139, %v7172
        %v7189 = vadd.f32 %v7140, %v7173
        %v7190 = vadd.f32 %v7141, %v7174
        %7191 = vst [vmem:[%s310] sm:$0xff] %v7175
        %7192 = vst [vmem:[%s310 + $0x8] sm:$0xff] %v7176
        %7193 = vst [vmem:[%s310 + $0x10] sm:$0xff] %v7177
        %7194 = vst [vmem:[%s310 + $0x18] sm:$0xff] %v7178
        %7195 = vst [vmem:[%s310 + $0x20] sm:$0xff] %v7179
        %7196 = vst [vmem:[%s310 + $0x28] sm:$0xff] %v7180
        %7197 = vst [vmem:[%s310 + $0x30] sm:$0xff] %v7181
        %7198 = vst [vmem:[%s310 + $0x38] sm:$0xff] %v7182
        %7199 = vst [vmem:[%s310 + $0x40] sm:$0xff] %v7183
        %7200 = vst [vmem:[%s310 + $0x48] sm:$0xff] %v7184
        %7201 = vst [vmem:[%s310 + $0x50] sm:$0xff] %v7185
        %7202 = vst [vmem:[%s310 + $0x58] sm:$0xff] %v7186
        %7203 = vst [vmem:[%s310 + $0x60] sm:$0xff] %v7187
        %7204 = vst [vmem:[%s310 + $0x68] sm:$0xff] %v7188
        %7205 = vst [vmem:[%s310 + $0x70] sm:$0xff] %v7189
        %7206 = vst [vmem:[%s310 + $0x78] sm:$0xff] %v7190
        %s7207 = sand.u32 %s198, 1
        %s7208 = scalar_lea.sflag [#allocation7], %s7207
        %s7209 = sand.u32 %s198, 1
        %s7210 = smul.addr %s7209, 128
        %s7211 = scalar_lea.vmem [#allocation8], %s7210
        // Predicated region
        $region61: #{tpu_custom_call.1} parent=47 // pred_check
          %p7212 = pneg %p208
        $region62: #{tpu_custom_call.1} parent=47 // pred_check_branch
          %7214 = sbr.rel (%p7212) target = $region64
        $region63: #{tpu_custom_call.1} parent=47 // pred_region
          %s7216 = ssub.s32 2048, 2048
          %7217 = vsyncadd %s7208, %s7216
          %s7218 = smul.addr %s27, 16
          %s7219 = smul.addr %s26, 32
          %s7220 = sadd.s32 %s7218, %s7219
          %s7221 = smul.addr %s7220, 128
          %s7222 = scalar_lea.hbm %s7, %s7221
          %s7223 = sshll.u32 %s7211, 4
          %s7224 = int_to_ptr.vmem [resolvable:$true] %s7223
          %7229 = dma.vmem_to_hbm [thread:$0]  %s7224, 2048, %s7222, %s7208, 128, 128, 8
        $region64: #{tpu_custom_call.1} parent=47 // pred_fallthru
          _
      $region48: #{tpu_custom_call.1} parent=5 // pred_fallthru
        _
      %p7230 = scmp.le.s32.totalorder 2, %s17
      // Predicated region
      $region65: #{tpu_custom_call.1} parent=5 // pred_check
        %p7231 = pneg %p7230
      $region66: #{tpu_custom_call.1} parent=5 // pred_check_branch
        %7233 = sbr.rel (%p7231) target = $region68
      $region67: #{tpu_custom_call.1} parent=5 // pred_region
        %s7234 = ssub.s32 %s17, 2
        // Predicated region
        $region69: #{tpu_custom_call.1} parent=67 // pred_check
          %p7235 = pneg %p214
        $region70: #{tpu_custom_call.1} parent=67 // pred_check_branch
          %7237 = sbr.rel (%p7235) target = $region72
        $region71: #{tpu_custom_call.1} parent=67 // pred_region
          %s7238 = sand.u32 %s199, 1
          %s7239 = scalar_lea.sflag [#allocation7], %s7238
          %s7240 = sand.u32 %s199, 1
          %s7241 = smul.addr %s7240, 128
          %s7242 = scalar_lea.vmem [#allocation8], %s7241
          %7243 = dma.done %s7239, 2048
        $region72: #{tpu_custom_call.1} parent=67 // pred_fallthru
          _
      $region68: #{tpu_custom_call.1} parent=5 // pred_fallthru
        _
    $region6: #{tpu_custom_call.1} parent=1 // loop_footer
      %s21 = sadd.s32 1, %s17
    $region7: #{tpu_custom_call.1} parent=1 // loop_footer_branch
      %16 = sbr.rel target = $region3
    $region8: #{tpu_custom_call.1} parent=1 // loop_exit
      _
    %7244 = vsyncpa [#allocation6], 1
    %s7245 = scalar_lea.sflag [#allocation6], 1
    %7246 = vsyncpa %s7245, 1
    %7247 = vsyncpa [#allocation7], 1
    %s7248 = scalar_lea.sflag [#allocation7], 1
    %7249 = vsyncpa %s7248, 1

</llo_original>
